<compile_context>
chip_gen: v7x
topology: tpu7x:2x2x1
jax: 0.10.0
libtpu: 0.0.40
codegen_flags: <defaults>
</compile_context>

<pallas_src>
import functools

import jax
import jax.numpy as jnp
from jax import lax
from jax.experimental import pallas as pl
from jax.experimental.pallas import tpu as pltpu


def _inception_kernel(H, W, c1, c2a, c3a,
                      x_ref, wf_ref, of_ref,
                      w2b_ref, o2b_ref,
                      w3b_ref, o3b_ref,
                      w4_ref, o4_ref,
                      out_ref,
                      pad2_ref, pad3_ref, poolpad_ref):
    nb = x_ref.shape[0]            # images per grid step
    cin = x_ref.shape[-1]
    M = nb * H * W

    x = x_ref[...]                 # (nb, H, W, cin), activation (matmul) dtype

    # --- branches 2a / 3a / 1: one fused 1x1 conv (BN scale already folded).
    # Channel order is [c2a | c3a | c1] so mid2 is a free prefix slice.
    xf = x.reshape(M, cin)
    yf = jnp.dot(xf, wf_ref[...], preferred_element_type=jnp.float32)
    yf = jnp.maximum(yf + of_ref[...], 0.0)
    mid2 = yf[:, 0:c2a].reshape(nb, H, W, c2a)
    mid3 = yf[:, c2a:c2a + c3a].reshape(nb, H, W, c3a)
    b1 = yf[:, c2a + c3a:c2a + c3a + c1]

    # --- 3x3 conv (pad=1): kw-grouped im2col (K = 3*C) with 3 accumulated
    # MXU dots instead of one 9-piece lane concatenate.
    def conv3x3(mid, pad_ref, w_ref, o_ref):
        C = pad_ref.shape[-1]
        zr = jnp.zeros((nb, 1, W + 2, C), pad_ref.dtype)
        zc = jnp.zeros((nb, H + 2, 1, C), pad_ref.dtype)
        pad_ref[:, 0:1, :, :] = zr                 # zero only the halo
        pad_ref[:, H + 1:H + 2, :, :] = zr
        pad_ref[:, :, 0:1, :] = zc
        pad_ref[:, :, W + 1:W + 2, :] = zc
        pad_ref[:, 1:1 + H, 1:1 + W, :] = mid      # fresh interior every step
        acc = None
        for kw in range(3):
            slab = jnp.concatenate(
                [pad_ref[:, kh:kh + H, kw:kw + W, :] for kh in range(3)],
                axis=-1).reshape(M, 3 * C)
            y = jnp.dot(slab.astype(w_ref.dtype), w_ref[kw],
                        preferred_element_type=jnp.float32)
            acc = y if acc is None else acc + y
        return jnp.maximum(acc + o_ref[...], 0.0)

    b2 = conv3x3(mid2, pad2_ref, w2b_ref, o2b_ref)
    b3 = conv3x3(mid3, pad3_ref, w3b_ref, o3b_ref)

    # --- branch 4: separable 3x3 maxpool (stride 1, -inf pad built in VMEM
    # scratch -- no HBM-side padded copy) then 1x1 conv.
    ninf_r = jnp.full((nb, 1, W + 2, cin), -jnp.inf, poolpad_ref.dtype)
    ninf_c = jnp.full((nb, H + 2, 1, cin), -jnp.inf, poolpad_ref.dtype)
    poolpad_ref[:, 0:1, :, :] = ninf_r
    poolpad_ref[:, H + 1:H + 2, :, :] = ninf_r
    poolpad_ref[:, :, 0:1, :] = ninf_c
    poolpad_ref[:, :, W + 1:W + 2, :] = ninf_c
    poolpad_ref[:, 1:1 + H, 1:1 + W, :] = x.astype(poolpad_ref.dtype)
    xp = poolpad_ref[...]
    rowmax = jnp.maximum(jnp.maximum(xp[:, :, 0:W, :], xp[:, :, 1:1 + W, :]),
                         xp[:, :, 2:2 + W, :])
    pooled = jnp.maximum(jnp.maximum(rowmax[:, 0:H], rowmax[:, 1:1 + H]),
                         rowmax[:, 2:2 + H])
    p = pooled.reshape(M, cin).astype(w4_ref.dtype)
    y4 = jnp.dot(p, w4_ref[...], preferred_element_type=jnp.float32)
    b4 = jnp.maximum(y4 + o4_ref[...], 0.0)

    # --- single lane-dense store of the concatenated branches ---
    out_ref[...] = jnp.concatenate([b1, b2, b3, b4], axis=-1).reshape(
        nb, H, W, -1).astype(out_ref.dtype)


def _choose_images_per_block(N, H, W, cin, c2a, c3a, c_out, act_bytes):
    """Images per grid step: fill the MXU M dim, respect a v7x-safe VMEM
    budget, and keep >= 2 grid steps when N >= 2 so megacore can split."""
    budget = 24 * 1024 * 1024      # per-step footprint before double-buffering
    target_m = 2048
    best = 1
    for nb in range(1, N + 1):
        if N % nb:
            continue
        if N >= 2 and N // nb < 2:
            break
        step_bytes = (nb * H * W * (cin * act_bytes + c_out * 4)
                      + nb * (H + 2) * (W + 2) * (cin + c2a + c3a) * 4)
        if step_bytes > budget:
            break
        best = nb
        if nb * H * W >= target_m:
            break
    return best


def inception_forward(x_nchw, params, matmul_dtype=jnp.bfloat16,
                      images_per_block=None):
    (w1, s1, o1, w2a, s2a, o2a, w2b, s2b, o2b,
     w3a, s3a, o3a, w3b, s3b, o3b, w4, s4, o4) = params

    N, cin, H, W = x_nchw.shape
    c1, c2a, c2b = w1.shape[1], w2a.shape[1], w2b.shape[3]
    c3a, c3b, c4 = w3a.shape[1], w3b.shape[3], w4.shape[1]
    c_out = c1 + c2b + c3b + c4

    # NCHW -> NHWC; carry activations at matmul precision (halves the per-image
    # HBM->VMEM DMA for bf16).  No HBM padding: the kernel pads in VMEM.
    # TODO(synk): keep NHWC end-to-end in the surrounding model to drop the
    #             two full-tensor transposes entirely.
    x = jnp.transpose(x_nchw, (0, 2, 3, 1)).astype(matmul_dtype)

    # Fold BN scale into the conv weights; keep only the per-channel bias.
    w1f = w1 * s1[None, :]
    w2af = w2a * s2a[None, :]
    w3af = w3a * s3a[None, :]
    w4f = (w4 * s4[None, :]).astype(matmul_dtype)
    # kw-grouped im2col weights: (kh, kw, ci, co) -> (kw, kh*ci, co).
    w2bf = jnp.transpose(w2b * s2b[None, None, None, :], (1, 0, 2, 3)
                         ).reshape(3, 3 * c2a, c2b).astype(matmul_dtype)
    w3bf = jnp.transpose(w3b * s3b[None, None, None, :], (1, 0, 2, 3)
                         ).reshape(3, 3 * c3a, c3b).astype(matmul_dtype)

    # Fuse the three 1x1 convs that read x into one wide matmul; channel order
    # [c2a | c3a | c1] so the downstream mid2 slice starts at lane offset 0.
    wf = jnp.concatenate([w2af, w3af, w1f], axis=1).astype(matmul_dtype)
    of = jnp.concatenate([o2a, o3a, o1]).reshape(1, -1).astype(jnp.float32)
    o2bf = o2b.reshape(1, -1).astype(jnp.float32)
    o3bf = o3b.reshape(1, -1).astype(jnp.float32)
    o4f = o4.reshape(1, -1).astype(jnp.float32)

    act_bytes = jnp.dtype(matmul_dtype).itemsize
    if images_per_block is None:
        images_per_block = _choose_images_per_block(
            N, H, W, cin, c2a, c3a, c_out, act_bytes)
    nb = images_per_block
    assert N % nb == 0, (N, nb)

    kernel = functools.partial(_inception_kernel, H, W, c1, c2a, c3a)

    img_map = lambda n: (n, 0, 0, 0)      # per-step image block
    res2 = lambda n: (0, 0)               # resident rank-2 weights / biases
    res3 = lambda n: (0, 0, 0)            # resident rank-3 (kw-grouped) weights

    out = pl.pallas_call(
        kernel,
        out_shape=jax.ShapeDtypeStruct((N, H, W, c_out), jnp.float32),
        grid=(N // nb,),
        in_specs=[
            pl.BlockSpec((nb, H, W, cin), img_map),
            pl.BlockSpec(wf.shape, res2),
            pl.BlockSpec(of.shape, res2),
            pl.BlockSpec(w2bf.shape, res3),
            pl.BlockSpec(o2bf.shape, res2),
            pl.BlockSpec(w3bf.shape, res3),
            pl.BlockSpec(o3bf.shape, res2),
            pl.BlockSpec(w4f.shape, res2),
            pl.BlockSpec(o4f.shape, res2),
        ],
        out_specs=pl.BlockSpec((nb, H, W, c_out), img_map),
        scratch_shapes=[
            pltpu.VMEM((nb, H + 2, W + 2, c2a), jnp.float32),   # 3x3 pad (b2)
            pltpu.VMEM((nb, H + 2, W + 2, c3a), jnp.float32),   # 3x3 pad (b3)
            pltpu.VMEM((nb, H + 2, W + 2, cin), jnp.float32),   # -inf pool pad
        ],
        compiler_params=pltpu.CompilerParams(
            dimension_semantics=("parallel",),   # v7x: split batch over 2 TCs
            vmem_limit_bytes=48 * 1024 * 1024),
    )(x, wf, of, w2bf, o2bf, w3bf, o3bf, w4f, o4f)
    return jnp.transpose(out, (0, 3, 1, 2))      # NHWC -> NCHW


def init_params(key, cin, c1, c2a, c2b, c3a, c3b, c4):
    keys = jax.random.split(key, 12)

    def conv1(k, ci, co):
        return 0.2 * jax.random.normal(k, (ci, co), jnp.float32)

    def conv3(k, ci, co):
        return 0.2 * jax.random.normal(k, (3, 3, ci, co), jnp.float32)

    def bn(k, c):
        k1, k2, k3, k4 = jax.random.split(k, 4)
        gamma = 1.0 + 0.1 * jax.random.normal(k1, (c,), jnp.float32)
        beta = 0.1 * jax.random.normal(k2, (c,), jnp.float32)
        rmean = 0.05 * jax.random.normal(k3, (c,), jnp.float32)
        rvar = 1.0 + 0.2 * jax.random.uniform(k4, (c,), jnp.float32)
        eps = 1e-3  # matches nn.BatchNorm2d(eps=0.001)
        scale = gamma * lax.rsqrt(rvar + eps)
        bias = beta - rmean * scale
        return scale, bias

    w1 = conv1(keys[0], cin, c1);   s1, o1 = bn(keys[1], c1)
    w2a = conv1(keys[2], cin, c2a); s2a, o2a = bn(keys[3], c2a)
    w2b = conv3(keys[4], c2a, c2b); s2b, o2b = bn(keys[5], c2b)
    w3a = conv1(keys[6], cin, c3a); s3a, o3a = bn(keys[7], c3a)
    w3b = conv3(keys[8], c3a, c3b); s3b, o3b = bn(keys[9], c3b)
    w4 = conv1(keys[10], cin, c4);  s4, o4 = bn(keys[11], c4)
    return (w1, s1, o1, w2a, s2a, o2a, w2b, s2b, o2b,
            w3a, s3a, o3a, w3b, s3b, o3b, w4, s4, o4)


def inception_ref_nchw(x, params):
    """Pure-JAX reference (NCHW) used only to validate the Pallas kernel."""
    (w1, s1, o1, w2a, s2a, o2a, w2b, s2b, o2b,
     w3a, s3a, o3a, w3b, s3b, o3b, w4, s4, o4) = params

    def conv(x, w, pad):
        if w.ndim == 2:  # (Cin, Cout) -> (1,1,Cin,Cout)
            w = w[None, None]
        return lax.conv_general_dilated(
            x, w, (1, 1), pad, dimension_numbers=('NCHW', 'HWIO', 'NCHW'))

    def bn_relu(y, s, o):
        return jnp.maximum(y * s[None, :, None, None] + o[None, :, None, None], 0.0)

    b1 = bn_relu(conv(x, w1, 'VALID'), s1, o1)
    m2 = bn_relu(conv(x, w2a, 'VALID'), s2a, o2a)
    b2 = bn_relu(conv(m2, w2b, [(1, 1), (1, 1)]), s2b, o2b)
    m3 = bn_relu(conv(x, w3a, 'VALID'), s3a, o3a)
    b3 = bn_relu(conv(m3, w3b, [(1, 1), (1, 1)]), s3b, o3b)
    pooled = lax.reduce_window(x, -jnp.inf, lax.max, (1, 1, 3, 3), (1, 1, 1, 1),
                               [(0, 0), (0, 0), (1, 1), (1, 1)])
    b4 = bn_relu(conv(pooled, w4, 'VALID'), s4, o4)
    return jnp.concatenate([b1, b2, b3, b4], axis=1)


if __name__ == "__main__":
    key = jax.random.PRNGKey(0)
    kx, kp = jax.random.split(key)

    # Small, module-consistent shapes.
    N, Cin, H, W = 2, 4, 16, 16
    c1, c2a, c2b, c3a, c3b, c4 = 8, 4, 8, 4, 8, 8

    x = jax.random.normal(kx, (N, Cin, H, W), jnp.float32)
    params = init_params(kp, Cin, c1, c2a, c2b, c3a, c3b, c4)

    ref = jax.block_until_ready(inception_ref_nchw(x, params))

    # f32 MXU path: bit-close to the reference.
    fwd_f32 = jax.jit(functools.partial(inception_forward,
                                        matmul_dtype=jnp.float32))
    out_f32 = jax.block_until_ready(fwd_f32(x, params))
    assert out_f32.shape == (N, c1 + c2b + c3b + c4, H, W), out_f32.shape
    err_f32 = float(jnp.max(jnp.abs(out_f32 - ref)))
    assert jnp.allclose(out_f32, ref, atol=2e-4, rtol=2e-4), \
        f"f32 max abs err {err_f32}"

    # Default path: bf16 activations/weights, f32 accumulation + epilogue
    # (MXU fast path on v5e/v6e/v7x, halved input DMA).
    fwd = jax.jit(inception_forward)
    out = jax.block_until_ready(fwd(x, params))
    err_bf16 = float(jnp.max(jnp.abs(out - ref)))
    assert err_bf16 < 0.1, f"bf16 max abs err {err_bf16}"

    print("KERNEL_OK")
</pallas_src>

<mosaic_0001>
module attributes {stable_mosaic.version = 11 : i64} {
  func.func @_inception_kernel(%arg0: i32, %arg1: memref<1x16x16x4xf32, #tpu.memory_space<vmem>>, %arg2: memref<4x16xf32, #tpu.memory_space<vmem>>, %arg3: memref<1x16xf32, #tpu.memory_space<vmem>>, %arg4: memref<3x12x8xf32, #tpu.memory_space<vmem>>, %arg5: memref<1x8xf32, #tpu.memory_space<vmem>>, %arg6: memref<3x12x8xf32, #tpu.memory_space<vmem>>, %arg7: memref<1x8xf32, #tpu.memory_space<vmem>>, %arg8: memref<4x8xf32, #tpu.memory_space<vmem>>, %arg9: memref<1x8xf32, #tpu.memory_space<vmem>>, %arg10: memref<1x16x16x32xf32, #tpu.memory_space<vmem>>, %arg11: memref<1x18x18x4xf32, #tpu.memory_space<vmem>>, %arg12: memref<1x18x18x4xf32, #tpu.memory_space<vmem>>, %arg13: memref<1x18x18x4xf32, #tpu.memory_space<vmem>>) attributes {dimension_semantics = [#tpu.dimension_semantics<parallel>], iteration_bounds = array<i64: 2>, scalar_prefetch = 0 : i64, scratch_operands = 3 : i64, tpu.core_type = #tpu.core_type<tc>, window_params = [{transform_indices = @transform_0, window_bounds = array<i64: 1, 16, 16, 4>}, {pipeline_mode = #tpu.pipeline_mode<synchronous>, transform_indices = @transform_1, window_bounds = array<i64: 4, 16>}, {pipeline_mode = #tpu.pipeline_mode<synchronous>, transform_indices = @transform_2, window_bounds = array<i64: 1, 16>}, {pipeline_mode = #tpu.pipeline_mode<synchronous>, transform_indices = @transform_3, window_bounds = array<i64: 3, 12, 8>}, {pipeline_mode = #tpu.pipeline_mode<synchronous>, transform_indices = @transform_4, window_bounds = array<i64: 1, 8>}, {pipeline_mode = #tpu.pipeline_mode<synchronous>, transform_indices = @transform_5, window_bounds = array<i64: 3, 12, 8>}, {pipeline_mode = #tpu.pipeline_mode<synchronous>, transform_indices = @transform_6, window_bounds = array<i64: 1, 8>}, {pipeline_mode = #tpu.pipeline_mode<synchronous>, transform_indices = @transform_7, window_bounds = array<i64: 4, 8>}, {pipeline_mode = #tpu.pipeline_mode<synchronous>, transform_indices = @transform_8, window_bounds = array<i64: 1, 8>}, {transform_indices = @transform_9, window_bounds = array<i64: 1, 16, 16, 32>}]} {
    %c0 = arith.constant 0 : index
    %c0_0 = arith.constant 0 : index
    %c0_1 = arith.constant 0 : index
    %c0_2 = arith.constant 0 : index
    %0 = vector.load %arg1[%c0, %c0_0, %c0_1, %c0_2] : memref<1x16x16x4xf32, #tpu.memory_space<vmem>>, vector<1x16x16x4xf32>
    %1 = vector.shape_cast %0 : vector<1x16x16x4xf32> to vector<256x4xf32>
    %c0_3 = arith.constant 0 : index
    %c0_4 = arith.constant 0 : index
    %2 = vector.load %arg2[%c0_3, %c0_4] : memref<4x16xf32, #tpu.memory_space<vmem>>, vector<4x16xf32>
    %cst = arith.constant dense<0.000000e+00> : vector<256x16xf32>
    %3 = tpu.matmul %1, %2, %cst {dimension_numbers = #tpu.dot_dimension_numbers<[1], [0], [0], [1], [0, 0, 1, 1], [], []>} : vector<256x4xf32>, vector<4x16xf32>, vector<256x16xf32> -> vector<256x16xf32>
    %c0_5 = arith.constant 0 : index
    %c0_6 = arith.constant 0 : index
    %4 = vector.load %arg3[%c0_5, %c0_6] : memref<1x16xf32, #tpu.memory_space<vmem>>, vector<1x16xf32>
    %5 = vector.broadcast %4 : vector<1x16xf32> to vector<256x16xf32>
    %6 = arith.addf %3, %5 : vector<256x16xf32>
    %cst_7 = arith.constant 0.000000e+00 : f32
    %7 = vector.broadcast %cst_7 : f32 to vector<256x16xf32>
    %8 = arith.maximumf %6, %7 : vector<256x16xf32>
    %9 = vector.extract_strided_slice %8 {offsets = [0, 0], sizes = [256, 4], strides = [1, 1]} : vector<256x16xf32> to vector<256x4xf32>
    %10 = vector.shape_cast %9 : vector<256x4xf32> to vector<1x16x16x4xf32>
    %11 = vector.extract_strided_slice %8 {offsets = [0, 4], sizes = [256, 4], strides = [1, 1]} : vector<256x16xf32> to vector<256x4xf32>
    %12 = vector.shape_cast %11 : vector<256x4xf32> to vector<1x16x16x4xf32>
    %13 = vector.extract_strided_slice %8 {offsets = [0, 8], sizes = [256, 8], strides = [1, 1]} : vector<256x16xf32> to vector<256x8xf32>
    %cst_8 = arith.constant 0.000000e+00 : f32
    %14 = vector.broadcast %cst_8 : f32 to vector<1x1x18x4xf32>
    %cst_9 = arith.constant 0.000000e+00 : f32
    %15 = vector.broadcast %cst_9 : f32 to vector<1x18x1x4xf32>
    %c0_10 = arith.constant 0 : index
    %c0_11 = arith.constant 0 : index
    %c0_12 = arith.constant 0 : index
    %c0_13 = arith.constant 0 : index
    %16 = vector.load %arg11[%c0_10, %c0_11, %c0_12, %c0_13] : memref<1x18x18x4xf32, #tpu.memory_space<vmem>>, vector<1x1x18x4xf32>
    tpu.vector_store %arg11[%c0_10, %c0_11, %c0_12, %c0_13], %14 {strides = array<i32>} : memref<1x18x18x4xf32, #tpu.memory_space<vmem>>, vector<1x1x18x4xf32>,
    %c0_14 = arith.constant 0 : index
    %c17 = arith.constant 17 : index
    %c0_15 = arith.constant 0 : index
    %c0_16 = arith.constant 0 : index
    %17 = vector.load %arg11[%c0_14, %c17, %c0_15, %c0_16] : memref<1x18x18x4xf32, #tpu.memory_space<vmem>>, vector<1x1x18x4xf32>
    tpu.vector_store %arg11[%c0_14, %c17, %c0_15, %c0_16], %14 {strides = array<i32>} : memref<1x18x18x4xf32, #tpu.memory_space<vmem>>, vector<1x1x18x4xf32>,
    %c0_17 = arith.constant 0 : index
    %c0_18 = arith.constant 0 : index
    %c0_19 = arith.constant 0 : index
    %c0_20 = arith.constant 0 : index
    %18 = vector.load %arg11[%c0_17, %c0_18, %c0_19, %c0_20] : memref<1x18x18x4xf32, #tpu.memory_space<vmem>>, vector<1x18x1x4xf32>
    tpu.vector_store %arg11[%c0_17, %c0_18, %c0_19, %c0_20], %15 {strides = array<i32>} : memref<1x18x18x4xf32, #tpu.memory_space<vmem>>, vector<1x18x1x4xf32>,
    %c0_21 = arith.constant 0 : index
    %c0_22 = arith.constant 0 : index
    %c17_23 = arith.constant 17 : index
    %c0_24 = arith.constant 0 : index
    %19 = vector.load %arg11[%c0_21, %c0_22, %c17_23, %c0_24] : memref<1x18x18x4xf32, #tpu.memory_space<vmem>>, vector<1x18x1x4xf32>
    tpu.vector_store %arg11[%c0_21, %c0_22, %c17_23, %c0_24], %15 {strides = array<i32>} : memref<1x18x18x4xf32, #tpu.memory_space<vmem>>, vector<1x18x1x4xf32>,
    %c0_25 = arith.constant 0 : index
    %c1 = arith.constant 1 : index
    %c1_26 = arith.constant 1 : index
    %c0_27 = arith.constant 0 : index
    %20 = vector.load %arg11[%c0_25, %c1, %c1_26, %c0_27] : memref<1x18x18x4xf32, #tpu.memory_space<vmem>>, vector<1x16x16x4xf32>
    tpu.vector_store %arg11[%c0_25, %c1, %c1_26, %c0_27], %10 {strides = array<i32>} : memref<1x18x18x4xf32, #tpu.memory_space<vmem>>, vector<1x16x16x4xf32>,
    %c0_28 = arith.constant 0 : index
    %c0_29 = arith.constant 0 : index
    %c0_30 = arith.constant 0 : index
    %c0_31 = arith.constant 0 : index
    %21 = vector.load %arg11[%c0_28, %c0_29, %c0_30, %c0_31] : memref<1x18x18x4xf32, #tpu.memory_space<vmem>>, vector<1x16x16x4xf32>
    %c0_32 = arith.constant 0 : index
    %c1_33 = arith.constant 1 : index
    %c0_34 = arith.constant 0 : index
    %c0_35 = arith.constant 0 : index
    %22 = vector.load %arg11[%c0_32, %c1_33, %c0_34, %c0_35] : memref<1x18x18x4xf32, #tpu.memory_space<vmem>>, vector<1x16x16x4xf32>
    %c0_36 = arith.constant 0 : index
    %c2 = arith.constant 2 : index
    %c0_37 = arith.constant 0 : index
    %c0_38 = arith.constant 0 : index
    %23 = vector.load %arg11[%c0_36, %c2, %c0_37, %c0_38] : memref<1x18x18x4xf32, #tpu.memory_space<vmem>>, vector<1x16x16x4xf32>
    %24 = tpu.concatenate %21, %22, %23 in 3 : vector<1x16x16x4xf32>, vector<1x16x16x4xf32>, vector<1x16x16x4xf32> -> vector<1x16x16x12xf32>
    %25 = vector.shape_cast %24 : vector<1x16x16x12xf32> to vector<256x12xf32>
    %c0_39 = arith.constant 0 : index
    %c0_40 = arith.constant 0 : index
    %c0_41 = arith.constant 0 : index
    %26 = vector.load %arg4[%c0_39, %c0_40, %c0_41] : memref<3x12x8xf32, #tpu.memory_space<vmem>>, vector<1x12x8xf32>
    %27 = vector.shape_cast %26 : vector<1x12x8xf32> to vector<12x8xf32>
    %cst_42 = arith.constant dense<0.000000e+00> : vector<256x8xf32>
    %28 = tpu.matmul %25, %27, %cst_42 {dimension_numbers = #tpu.dot_dimension_numbers<[1], [0], [0], [1], [0, 0, 1, 1], [], []>} : vector<256x12xf32>, vector<12x8xf32>, vector<256x8xf32> -> vector<256x8xf32>
    %c0_43 = arith.constant 0 : index
    %c0_44 = arith.constant 0 : index
    %c1_45 = arith.constant 1 : index
    %c0_46 = arith.constant 0 : index
    %29 = vector.load %arg11[%c0_43, %c0_44, %c1_45, %c0_46] : memref<1x18x18x4xf32, #tpu.memory_space<vmem>>, vector<1x16x16x4xf32>
    %c0_47 = arith.constant 0 : index
    %c1_48 = arith.constant 1 : index
    %c1_49 = arith.constant 1 : index
    %c0_50 = arith.constant 0 : index
    %30 = vector.load %arg11[%c0_47, %c1_48, %c1_49, %c0_50] : memref<1x18x18x4xf32, #tpu.memory_space<vmem>>, vector<1x16x16x4xf32>
    %c0_51 = arith.constant 0 : index
    %c2_52 = arith.constant 2 : index
    %c1_53 = arith.constant 1 : index
    %c0_54 = arith.constant 0 : index
    %31 = vector.load %arg11[%c0_51, %c2_52, %c1_53, %c0_54] : memref<1x18x18x4xf32, #tpu.memory_space<vmem>>, vector<1x16x16x4xf32>
    %32 = tpu.concatenate %29, %30, %31 in 3 : vector<1x16x16x4xf32>, vector<1x16x16x4xf32>, vector<1x16x16x4xf32> -> vector<1x16x16x12xf32>
    %33 = vector.shape_cast %32 : vector<1x16x16x12xf32> to vector<256x12xf32>
    %c1_55 = arith.constant 1 : index
    %c0_56 = arith.constant 0 : index
    %c0_57 = arith.constant 0 : index
    %34 = vector.load %arg4[%c1_55, %c0_56, %c0_57] : memref<3x12x8xf32, #tpu.memory_space<vmem>>, vector<1x12x8xf32>
    %35 = vector.shape_cast %34 : vector<1x12x8xf32> to vector<12x8xf32>
    %cst_58 = arith.constant dense<0.000000e+00> : vector<256x8xf32>
    %36 = tpu.matmul %33, %35, %cst_58 {dimension_numbers = #tpu.dot_dimension_numbers<[1], [0], [0], [1], [0, 0, 1, 1], [], []>} : vector<256x12xf32>, vector<12x8xf32>, vector<256x8xf32> -> vector<256x8xf32>
    %37 = arith.addf %28, %36 : vector<256x8xf32>
    %c0_59 = arith.constant 0 : index
    %c0_60 = arith.constant 0 : index
    %c2_61 = arith.constant 2 : index
    %c0_62 = arith.constant 0 : index
    %38 = vector.load %arg11[%c0_59, %c0_60, %c2_61, %c0_62] : memref<1x18x18x4xf32, #tpu.memory_space<vmem>>, vector<1x16x16x4xf32>
    %c0_63 = arith.constant 0 : index
    %c1_64 = arith.constant 1 : index
    %c2_65 = arith.constant 2 : index
    %c0_66 = arith.constant 0 : index
    %39 = vector.load %arg11[%c0_63, %c1_64, %c2_65, %c0_66] : memref<1x18x18x4xf32, #tpu.memory_space<vmem>>, vector<1x16x16x4xf32>
    %c0_67 = arith.constant 0 : index
    %c2_68 = arith.constant 2 : index
    %c2_69 = arith.constant 2 : index
    %c0_70 = arith.constant 0 : index
    %40 = vector.load %arg11[%c0_67, %c2_68, %c2_69, %c0_70] : memref<1x18x18x4xf32, #tpu.memory_space<vmem>>, vector<1x16x16x4xf32>
    %41 = tpu.concatenate %38, %39, %40 in 3 : vector<1x16x16x4xf32>, vector<1x16x16x4xf32>, vector<1x16x16x4xf32> -> vector<1x16x16x12xf32>
    %42 = vector.shape_cast %41 : vector<1x16x16x12xf32> to vector<256x12xf32>
    %c2_71 = arith.constant 2 : index
    %c0_72 = arith.constant 0 : index
    %c0_73 = arith.constant 0 : index
    %43 = vector.load %arg4[%c2_71, %c0_72, %c0_73] : memref<3x12x8xf32, #tpu.memory_space<vmem>>, vector<1x12x8xf32>
    %44 = vector.shape_cast %43 : vector<1x12x8xf32> to vector<12x8xf32>
    %cst_74 = arith.constant dense<0.000000e+00> : vector<256x8xf32>
    %45 = tpu.matmul %42, %44, %cst_74 {dimension_numbers = #tpu.dot_dimension_numbers<[1], [0], [0], [1], [0, 0, 1, 1], [], []>} : vector<256x12xf32>, vector<12x8xf32>, vector<256x8xf32> -> vector<256x8xf32>
    %46 = arith.addf %37, %45 : vector<256x8xf32>
    %c0_75 = arith.constant 0 : index
    %c0_76 = arith.constant 0 : index
    %47 = vector.load %arg5[%c0_75, %c0_76] : memref<1x8xf32, #tpu.memory_space<vmem>>, vector<1x8xf32>
    %48 = vector.broadcast %47 : vector<1x8xf32> to vector<256x8xf32>
    %49 = arith.addf %46, %48 : vector<256x8xf32>
    %cst_77 = arith.constant 0.000000e+00 : f32
    %50 = vector.broadcast %cst_77 : f32 to vector<256x8xf32>
    %51 = arith.maximumf %49, %50 : vector<256x8xf32>
    %cst_78 = arith.constant 0.000000e+00 : f32
    %52 = vector.broadcast %cst_78 : f32 to vector<1x1x18x4xf32>
    %cst_79 = arith.constant 0.000000e+00 : f32
    %53 = vector.broadcast %cst_79 : f32 to vector<1x18x1x4xf32>
    %c0_80 = arith.constant 0 : index
    %c0_81 = arith.constant 0 : index
    %c0_82 = arith.constant 0 : index
    %c0_83 = arith.constant 0 : index
    %54 = vector.load %arg12[%c0_80, %c0_81, %c0_82, %c0_83] : memref<1x18x18x4xf32, #tpu.memory_space<vmem>>, vector<1x1x18x4xf32>
    tpu.vector_store %arg12[%c0_80, %c0_81, %c0_82, %c0_83], %52 {strides = array<i32>} : memref<1x18x18x4xf32, #tpu.memory_space<vmem>>, vector<1x1x18x4xf32>,
    %c0_84 = arith.constant 0 : index
    %c17_85 = arith.constant 17 : index
    %c0_86 = arith.constant 0 : index
    %c0_87 = arith.constant 0 : index
    %55 = vector.load %arg12[%c0_84, %c17_85, %c0_86, %c0_87] : memref<1x18x18x4xf32, #tpu.memory_space<vmem>>, vector<1x1x18x4xf32>
    tpu.vector_store %arg12[%c0_84, %c17_85, %c0_86, %c0_87], %52 {strides = array<i32>} : memref<1x18x18x4xf32, #tpu.memory_space<vmem>>, vector<1x1x18x4xf32>,
    %c0_88 = arith.constant 0 : index
    %c0_89 = arith.constant 0 : index
    %c0_90 = arith.constant 0 : index
    %c0_91 = arith.constant 0 : index
    %56 = vector.load %arg12[%c0_88, %c0_89, %c0_90, %c0_91] : memref<1x18x18x4xf32, #tpu.memory_space<vmem>>, vector<1x18x1x4xf32>
    tpu.vector_store %arg12[%c0_88, %c0_89, %c0_90, %c0_91], %53 {strides = array<i32>} : memref<1x18x18x4xf32, #tpu.memory_space<vmem>>, vector<1x18x1x4xf32>,
    %c0_92 = arith.constant 0 : index
    %c0_93 = arith.constant 0 : index
    %c17_94 = arith.constant 17 : index
    %c0_95 = arith.constant 0 : index
    %57 = vector.load %arg12[%c0_92, %c0_93, %c17_94, %c0_95] : memref<1x18x18x4xf32, #tpu.memory_space<vmem>>, vector<1x18x1x4xf32>
    tpu.vector_store %arg12[%c0_92, %c0_93, %c17_94, %c0_95], %53 {strides = array<i32>} : memref<1x18x18x4xf32, #tpu.memory_space<vmem>>, vector<1x18x1x4xf32>,
    %c0_96 = arith.constant 0 : index
    %c1_97 = arith.constant 1 : index
    %c1_98 = arith.constant 1 : index
    %c0_99 = arith.constant 0 : index
    %58 = vector.load %arg12[%c0_96, %c1_97, %c1_98, %c0_99] : memref<1x18x18x4xf32, #tpu.memory_space<vmem>>, vector<1x16x16x4xf32>
    tpu.vector_store %arg12[%c0_96, %c1_97, %c1_98, %c0_99], %12 {strides = array<i32>} : memref<1x18x18x4xf32, #tpu.memory_space<vmem>>, vector<1x16x16x4xf32>,
    %c0_100 = arith.constant 0 : index
    %c0_101 = arith.constant 0 : index
    %c0_102 = arith.constant 0 : index
    %c0_103 = arith.constant 0 : index
    %59 = vector.load %arg12[%c0_100, %c0_101, %c0_102, %c0_103] : memref<1x18x18x4xf32, #tpu.memory_space<vmem>>, vector<1x16x16x4xf32>
    %c0_104 = arith.constant 0 : index
    %c1_105 = arith.constant 1 : index
    %c0_106 = arith.constant 0 : index
    %c0_107 = arith.constant 0 : index
    %60 = vector.load %arg12[%c0_104, %c1_105, %c0_106, %c0_107] : memref<1x18x18x4xf32, #tpu.memory_space<vmem>>, vector<1x16x16x4xf32>
    %c0_108 = arith.constant 0 : index
    %c2_109 = arith.constant 2 : index
    %c0_110 = arith.constant 0 : index
    %c0_111 = arith.constant 0 : index
    %61 = vector.load %arg12[%c0_108, %c2_109, %c0_110, %c0_111] : memref<1x18x18x4xf32, #tpu.memory_space<vmem>>, vector<1x16x16x4xf32>
    %62 = tpu.concatenate %59, %60, %61 in 3 : vector<1x16x16x4xf32>, vector<1x16x16x4xf32>, vector<1x16x16x4xf32> -> vector<1x16x16x12xf32>
    %63 = vector.shape_cast %62 : vector<1x16x16x12xf32> to vector<256x12xf32>
    %c0_112 = arith.constant 0 : index
    %c0_113 = arith.constant 0 : index
    %c0_114 = arith.constant 0 : index
    %64 = vector.load %arg6[%c0_112, %c0_113, %c0_114] : memref<3x12x8xf32, #tpu.memory_space<vmem>>, vector<1x12x8xf32>
    %65 = vector.shape_cast %64 : vector<1x12x8xf32> to vector<12x8xf32>
    %cst_115 = arith.constant dense<0.000000e+00> : vector<256x8xf32>
    %66 = tpu.matmul %63, %65, %cst_115 {dimension_numbers = #tpu.dot_dimension_numbers<[1], [0], [0], [1], [0, 0, 1, 1], [], []>} : vector<256x12xf32>, vector<12x8xf32>, vector<256x8xf32> -> vector<256x8xf32>
    %c0_116 = arith.constant 0 : index
    %c0_117 = arith.constant 0 : index
    %c1_118 = arith.constant 1 : index
    %c0_119 = arith.constant 0 : index
    %67 = vector.load %arg12[%c0_116, %c0_117, %c1_118, %c0_119] : memref<1x18x18x4xf32, #tpu.memory_space<vmem>>, vector<1x16x16x4xf32>
    %c0_120 = arith.constant 0 : index
    %c1_121 = arith.constant 1 : index
    %c1_122 = arith.constant 1 : index
    %c0_123 = arith.constant 0 : index
    %68 = vector.load %arg12[%c0_120, %c1_121, %c1_122, %c0_123] : memref<1x18x18x4xf32, #tpu.memory_space<vmem>>, vector<1x16x16x4xf32>
    %c0_124 = arith.constant 0 : index
    %c2_125 = arith.constant 2 : index
    %c1_126 = arith.constant 1 : index
    %c0_127 = arith.constant 0 : index
    %69 = vector.load %arg12[%c0_124, %c2_125, %c1_126, %c0_127] : memref<1x18x18x4xf32, #tpu.memory_space<vmem>>, vector<1x16x16x4xf32>
    %70 = tpu.concatenate %67, %68, %69 in 3 : vector<1x16x16x4xf32>, vector<1x16x16x4xf32>, vector<1x16x16x4xf32> -> vector<1x16x16x12xf32>
    %71 = vector.shape_cast %70 : vector<1x16x16x12xf32> to vector<256x12xf32>
    %c1_128 = arith.constant 1 : index
    %c0_129 = arith.constant 0 : index
    %c0_130 = arith.constant 0 : index
    %72 = vector.load %arg6[%c1_128, %c0_129, %c0_130] : memref<3x12x8xf32, #tpu.memory_space<vmem>>, vector<1x12x8xf32>
    %73 = vector.shape_cast %72 : vector<1x12x8xf32> to vector<12x8xf32>
    %cst_131 = arith.constant dense<0.000000e+00> : vector<256x8xf32>
    %74 = tpu.matmul %71, %73, %cst_131 {dimension_numbers = #tpu.dot_dimension_numbers<[1], [0], [0], [1], [0, 0, 1, 1], [], []>} : vector<256x12xf32>, vector<12x8xf32>, vector<256x8xf32> -> vector<256x8xf32>
    %75 = arith.addf %66, %74 : vector<256x8xf32>
    %c0_132 = arith.constant 0 : index
    %c0_133 = arith.constant 0 : index
    %c2_134 = arith.constant 2 : index
    %c0_135 = arith.constant 0 : index
    %76 = vector.load %arg12[%c0_132, %c0_133, %c2_134, %c0_135] : memref<1x18x18x4xf32, #tpu.memory_space<vmem>>, vector<1x16x16x4xf32>
    %c0_136 = arith.constant 0 : index
    %c1_137 = arith.constant 1 : index
    %c2_138 = arith.constant 2 : index
    %c0_139 = arith.constant 0 : index
    %77 = vector.load %arg12[%c0_136, %c1_137, %c2_138, %c0_139] : memref<1x18x18x4xf32, #tpu.memory_space<vmem>>, vector<1x16x16x4xf32>
    %c0_140 = arith.constant 0 : index
    %c2_141 = arith.constant 2 : index
    %c2_142 = arith.constant 2 : index
    %c0_143 = arith.constant 0 : index
    %78 = vector.load %arg12[%c0_140, %c2_141, %c2_142, %c0_143] : memref<1x18x18x4xf32, #tpu.memory_space<vmem>>, vector<1x16x16x4xf32>
    %79 = tpu.concatenate %76, %77, %78 in 3 : vector<1x16x16x4xf32>, vector<1x16x16x4xf32>, vector<1x16x16x4xf32> -> vector<1x16x16x12xf32>
    %80 = vector.shape_cast %79 : vector<1x16x16x12xf32> to vector<256x12xf32>
    %c2_144 = arith.constant 2 : index
    %c0_145 = arith.constant 0 : index
    %c0_146 = arith.constant 0 : index
    %81 = vector.load %arg6[%c2_144, %c0_145, %c0_146] : memref<3x12x8xf32, #tpu.memory_space<vmem>>, vector<1x12x8xf32>
    %82 = vector.shape_cast %81 : vector<1x12x8xf32> to vector<12x8xf32>
    %cst_147 = arith.constant dense<0.000000e+00> : vector<256x8xf32>
    %83 = tpu.matmul %80, %82, %cst_147 {dimension_numbers = #tpu.dot_dimension_numbers<[1], [0], [0], [1], [0, 0, 1, 1], [], []>} : vector<256x12xf32>, vector<12x8xf32>, vector<256x8xf32> -> vector<256x8xf32>
    %84 = arith.addf %75, %83 : vector<256x8xf32>
    %c0_148 = arith.constant 0 : index
    %c0_149 = arith.constant 0 : index
    %85 = vector.load %arg7[%c0_148, %c0_149] : memref<1x8xf32, #tpu.memory_space<vmem>>, vector<1x8xf32>
    %86 = vector.broadcast %85 : vector<1x8xf32> to vector<256x8xf32>
    %87 = arith.addf %84, %86 : vector<256x8xf32>
    %cst_150 = arith.constant 0.000000e+00 : f32
    %88 = vector.broadcast %cst_150 : f32 to vector<256x8xf32>
    %89 = arith.maximumf %87, %88 : vector<256x8xf32>
    %cst_151 = arith.constant 0xFF800000 : f32
    %90 = vector.broadcast %cst_151 : f32 to vector<1x1x18x4xf32>
    %cst_152 = arith.constant 0xFF800000 : f32
    %91 = vector.broadcast %cst_152 : f32 to vector<1x18x1x4xf32>
    %c0_153 = arith.constant 0 : index
    %c0_154 = arith.constant 0 : index
    %c0_155 = arith.constant 0 : index
    %c0_156 = arith.constant 0 : index
    %92 = vector.load %arg13[%c0_153, %c0_154, %c0_155, %c0_156] : memref<1x18x18x4xf32, #tpu.memory_space<vmem>>, vector<1x1x18x4xf32>
    tpu.vector_store %arg13[%c0_153, %c0_154, %c0_155, %c0_156], %90 {strides = array<i32>} : memref<1x18x18x4xf32, #tpu.memory_space<vmem>>, vector<1x1x18x4xf32>,
    %c0_157 = arith.constant 0 : index
    %c17_158 = arith.constant 17 : index
    %c0_159 = arith.constant 0 : index
    %c0_160 = arith.constant 0 : index
    %93 = vector.load %arg13[%c0_157, %c17_158, %c0_159, %c0_160] : memref<1x18x18x4xf32, #tpu.memory_space<vmem>>, vector<1x1x18x4xf32>
    tpu.vector_store %arg13[%c0_157, %c17_158, %c0_159, %c0_160], %90 {strides = array<i32>} : memref<1x18x18x4xf32, #tpu.memory_space<vmem>>, vector<1x1x18x4xf32>,
    %c0_161 = arith.constant 0 : index
    %c0_162 = arith.constant 0 : index
    %c0_163 = arith.constant 0 : index
    %c0_164 = arith.constant 0 : index
    %94 = vector.load %arg13[%c0_161, %c0_162, %c0_163, %c0_164] : memref<1x18x18x4xf32, #tpu.memory_space<vmem>>, vector<1x18x1x4xf32>
    tpu.vector_store %arg13[%c0_161, %c0_162, %c0_163, %c0_164], %91 {strides = array<i32>} : memref<1x18x18x4xf32, #tpu.memory_space<vmem>>, vector<1x18x1x4xf32>,
    %c0_165 = arith.constant 0 : index
    %c0_166 = arith.constant 0 : index
    %c17_167 = arith.constant 17 : index
    %c0_168 = arith.constant 0 : index
    %95 = vector.load %arg13[%c0_165, %c0_166, %c17_167, %c0_168] : memref<1x18x18x4xf32, #tpu.memory_space<vmem>>, vector<1x18x1x4xf32>
    tpu.vector_store %arg13[%c0_165, %c0_166, %c17_167, %c0_168], %91 {strides = array<i32>} : memref<1x18x18x4xf32, #tpu.memory_space<vmem>>, vector<1x18x1x4xf32>,
    %c0_169 = arith.constant 0 : index
    %c1_170 = arith.constant 1 : index
    %c1_171 = arith.constant 1 : index
    %c0_172 = arith.constant 0 : index
    %96 = vector.load %arg13[%c0_169, %c1_170, %c1_171, %c0_172] : memref<1x18x18x4xf32, #tpu.memory_space<vmem>>, vector<1x16x16x4xf32>
    tpu.vector_store %arg13[%c0_169, %c1_170, %c1_171, %c0_172], %0 {strides = array<i32>} : memref<1x18x18x4xf32, #tpu.memory_space<vmem>>, vector<1x16x16x4xf32>,
    %c0_173 = arith.constant 0 : index
    %c0_174 = arith.constant 0 : index
    %c0_175 = arith.constant 0 : index
    %c0_176 = arith.constant 0 : index
    %97 = vector.load %arg13[%c0_173, %c0_174, %c0_175, %c0_176] : memref<1x18x18x4xf32, #tpu.memory_space<vmem>>, vector<1x18x18x4xf32>
    %98 = vector.extract_strided_slice %97 {offsets = [0, 0, 0, 0], sizes = [1, 18, 16, 4], strides = [1, 1, 1, 1]} : vector<1x18x18x4xf32> to vector<1x18x16x4xf32>
    %99 = vector.extract_strided_slice %97 {offsets = [0, 0, 1, 0], sizes = [1, 18, 16, 4], strides = [1, 1, 1, 1]} : vector<1x18x18x4xf32> to vector<1x18x16x4xf32>
    %100 = arith.maximumf %98, %99 : vector<1x18x16x4xf32>
    %101 = vector.extract_strided_slice %97 {offsets = [0, 0, 2, 0], sizes = [1, 18, 16, 4], strides = [1, 1, 1, 1]} : vector<1x18x18x4xf32> to vector<1x18x16x4xf32>
    %102 = arith.maximumf %100, %101 : vector<1x18x16x4xf32>
    %103 = vector.extract_strided_slice %102 {offsets = [0, 0, 0, 0], sizes = [1, 16, 16, 4], strides = [1, 1, 1, 1]} : vector<1x18x16x4xf32> to vector<1x16x16x4xf32>
    %104 = vector.extract_strided_slice %102 {offsets = [0, 1, 0, 0], sizes = [1, 16, 16, 4], strides = [1, 1, 1, 1]} : vector<1x18x16x4xf32> to vector<1x16x16x4xf32>
    %105 = arith.maximumf %103, %104 : vector<1x16x16x4xf32>
    %106 = vector.extract_strided_slice %102 {offsets = [0, 2, 0, 0], sizes = [1, 16, 16, 4], strides = [1, 1, 1, 1]} : vector<1x18x16x4xf32> to vector<1x16x16x4xf32>
    %107 = arith.maximumf %105, %106 : vector<1x16x16x4xf32>
    %108 = vector.shape_cast %107 : vector<1x16x16x4xf32> to vector<256x4xf32>
    %c0_177 = arith.constant 0 : index
    %c0_178 = arith.constant 0 : index
    %109 = vector.load %arg8[%c0_177, %c0_178] : memref<4x8xf32, #tpu.memory_space<vmem>>, vector<4x8xf32>
    %cst_179 = arith.constant dense<0.000000e+00> : vector<256x8xf32>
    %110 = tpu.matmul %108, %109, %cst_179 {dimension_numbers = #tpu.dot_dimension_numbers<[1], [0], [0], [1], [0, 0, 1, 1], [], []>} : vector<256x4xf32>, vector<4x8xf32>, vector<256x8xf32> -> vector<256x8xf32>
    %c0_180 = arith.constant 0 : index
    %c0_181 = arith.constant 0 : index
    %111 = vector.load %arg9[%c0_180, %c0_181] : memref<1x8xf32, #tpu.memory_space<vmem>>, vector<1x8xf32>
    %112 = vector.broadcast %111 : vector<1x8xf32> to vector<256x8xf32>
    %113 = arith.addf %110, %112 : vector<256x8xf32>
    %cst_182 = arith.constant 0.000000e+00 : f32
    %114 = vector.broadcast %cst_182 : f32 to vector<256x8xf32>
    %115 = arith.maximumf %113, %114 : vector<256x8xf32>
    %116 = tpu.concatenate %13, %51, %89, %115 in 1 : vector<256x8xf32>, vector<256x8xf32>, vector<256x8xf32>, vector<256x8xf32> -> vector<256x32xf32>
    %117 = vector.shape_cast %116 : vector<256x32xf32> to vector<1x16x16x32xf32>
    %c0_183 = arith.constant 0 : index
    %c0_184 = arith.constant 0 : index
    %c0_185 = arith.constant 0 : index
    %c0_186 = arith.constant 0 : index
    %118 = vector.load %arg10[%c0_183, %c0_184, %c0_185, %c0_186] : memref<1x16x16x32xf32, #tpu.memory_space<vmem>>, vector<1x16x16x32xf32>
    tpu.vector_store %arg10[%c0_183, %c0_184, %c0_185, %c0_186], %117 {strides = array<i32>} : memref<1x16x16x32xf32, #tpu.memory_space<vmem>>, vector<1x16x16x32xf32>,
    return
  }
  func.func @transform_0(%arg0: i32) -> (i32, i32, i32, i32) {
    %c0_i32 = arith.constant 0 : i32
    %c0_i32_0 = arith.constant 0 : i32
    %c0_i32_1 = arith.constant 0 : i32
    %c0_i32_2 = arith.constant 0 : i32
    return %arg0, %c0_i32, %c0_i32_0, %c0_i32_1 : i32, i32, i32, i32
  }
  func.func @transform_1(%arg0: i32) -> (i32, i32) {
    %c0_i32 = arith.constant 0 : i32
    %c0_i32_0 = arith.constant 0 : i32
    %c0_i32_1 = arith.constant 0 : i32
    return %c0_i32, %c0_i32_0 : i32, i32
  }
  func.func @transform_2(%arg0: i32) -> (i32, i32) {
    %c0_i32 = arith.constant 0 : i32
    %c0_i32_0 = arith.constant 0 : i32
    %c0_i32_1 = arith.constant 0 : i32
    return %c0_i32, %c0_i32_0 : i32, i32
  }
  func.func @transform_3(%arg0: i32) -> (i32, i32, i32) {
    %c0_i32 = arith.constant 0 : i32
    %c0_i32_0 = arith.constant 0 : i32
    %c0_i32_1 = arith.constant 0 : i32
    %c0_i32_2 = arith.constant 0 : i32
    return %c0_i32, %c0_i32_0, %c0_i32_1 : i32, i32, i32
  }
  func.func @transform_4(%arg0: i32) -> (i32, i32) {
    %c0_i32 = arith.constant 0 : i32
    %c0_i32_0 = arith.constant 0 : i32
    %c0_i32_1 = arith.constant 0 : i32
    return %c0_i32, %c0_i32_0 : i32, i32
  }
  func.func @transform_5(%arg0: i32) -> (i32, i32, i32) {
    %c0_i32 = arith.constant 0 : i32
    %c0_i32_0 = arith.constant 0 : i32
    %c0_i32_1 = arith.constant 0 : i32
    %c0_i32_2 = arith.constant 0 : i32
    return %c0_i32, %c0_i32_0, %c0_i32_1 : i32, i32, i32
  }
  func.func @transform_6(%arg0: i32) -> (i32, i32) {
    %c0_i32 = arith.constant 0 : i32
    %c0_i32_0 = arith.constant 0 : i32
    %c0_i32_1 = arith.constant 0 : i32
    return %c0_i32, %c0_i32_0 : i32, i32
  }
  func.func @transform_7(%arg0: i32) -> (i32, i32) {
    %c0_i32 = arith.constant 0 : i32
    %c0_i32_0 = arith.constant 0 : i32
    %c0_i32_1 = arith.constant 0 : i32
    return %c0_i32, %c0_i32_0 : i32, i32
  }
  func.func @transform_8(%arg0: i32) -> (i32, i32) {
    %c0_i32 = arith.constant 0 : i32
    %c0_i32_0 = arith.constant 0 : i32
    %c0_i32_1 = arith.constant 0 : i32
    return %c0_i32, %c0_i32_0 : i32, i32
  }
  func.func @transform_9(%arg0: i32) -> (i32, i32, i32, i32) {
    %c0_i32 = arith.constant 0 : i32
    %c0_i32_0 = arith.constant 0 : i32
    %c0_i32_1 = arith.constant 0 : i32
    %c0_i32_2 = arith.constant 0 : i32
    return %arg0, %c0_i32, %c0_i32_0, %c0_i32_1 : i32, i32, i32, i32
  }
}

</mosaic_0001>

<llo_original>
// kernel: inception_forward.1
$region0: #{inception_forward.1}
  #allocation0 [shape = 'u32[]', space=smem, size = 0x4, offset = 0x4, fixed_abs, tag = 'smem constant byte address 0x4 - core index']
  #allocation1 [shape = 'u32[144,128]{1,0:T(1,128)}', space=vmem, size = 0x12000, scoped, tag = 'internal scratch']
  #allocation2 [shape = 'f32[1,18,18,4]{3,2,1,0:T(8,128)}', space=vmem, size = 0x36000, scoped, tag = 'scratch operand']
  #allocation3 [shape = 'f32[1,18,18,4]{3,2,1,0:T(8,128)}', space=vmem, size = 0x36000, scoped, tag = 'scratch operand']
  #allocation4 [shape = 'f32[1,18,18,4]{3,2,1,0:T(8,128)}', space=vmem, size = 0x36000, scoped, tag = 'scratch operand']
  %s0 = inlined_call_operand.vmem [shape: f32[2,16,16,4], index: 0, kind: input, shape index: {}]
  %s1 = inlined_call_operand.vmem [shape: f32[4,16], index: 1, kind: input, shape index: {}]
  %s2 = inlined_call_operand.vmem [shape: f32[1,16], index: 2, kind: input, shape index: {}]
  %s3 = inlined_call_operand.vmem [shape: f32[3,12,8], index: 3, kind: input, shape index: {}]
  %s4 = inlined_call_operand.vmem [shape: f32[1,8], index: 4, kind: input, shape index: {}]
  %s5 = inlined_call_operand.vmem [shape: f32[3,12,8], index: 5, kind: input, shape index: {}]
  %s6 = inlined_call_operand.vmem [shape: f32[1,8], index: 6, kind: input, shape index: {}]
  %s7 = inlined_call_operand.vmem [shape: f32[4,8], index: 7, kind: input, shape index: {}]
  %s8 = inlined_call_operand.vmem [shape: f32[1,8], index: 8, kind: input, shape index: {}]
  %s9 = inlined_call_operand.hbm [shape: f32[2,16,16,32], index: 9, kind: output, shape index: {}]
  %s10 = sld [smem:[#allocation0]]
  $region69: #{inception_forward.1} parent=0
    _
  %s12 = ssub.s32 1, %s10
  %s13 = scalar_select 0, %s12, %s10
  $region1: #{inception_forward.1} parent=0
    #allocation5 [shape = 'u8[262144]{0}', space=vmem, size = 0x40000, scoped, tag = 'output window, operand 0']
    #allocation6 [shape = 's32[2]{0}', space=sflag, size = 0x8, scoped, tag = 'scoped memory for inception_forward.1']
    %14 = vsyncpa [#allocation6], 0
    %s15 = scalar_lea.sflag [#allocation6], 1
    %16 = vsyncpa %s15, 0
    loop: start=0, step=1, limit=4
    $region2: #{inception_forward.1} parent=1 // loop_pre_header
      _
    $region3: #{inception_forward.1} parent=1 // loop_header
      %s18 = sphi 0, %s22
      %p19 = scmp.ge.s32.totalorder %s18, 4
      %s28 = sphi 0, %s30
      %s31 = sphi 0, %s28
      %s32 = sphi 0, %s31
      %s48 = sphi 0, %s32
      %s52 = sphi 0, %s52
      %s54 = sphi 0, %s52
      %s55 = sphi 0, %s54
      %s69 = sphi 0, %s55
      %s73 = sphi 0, %s73
      %s75 = sphi 0, %s73
      %s76 = sphi 0, %s75
      %s90 = sphi 0, %s76
      %s94 = sphi 0, %s94
      %s96 = sphi 0, %s94
      %s97 = sphi 0, %s96
      %s111 = sphi 0, %s97
      %s115 = sphi 0, %s115
      %s117 = sphi 0, %s115
      %s118 = sphi 0, %s117
      %s132 = sphi 0, %s118
      %s136 = sphi 0, %s136
      %s138 = sphi 0, %s136
      %s139 = sphi 0, %s138
      %s153 = sphi 0, %s139
      %s157 = sphi 0, %s157
      %s159 = sphi 0, %s157
      %s160 = sphi 0, %s159
      %s174 = sphi 0, %s160
      %s178 = sphi 0, %s178
      %s180 = sphi 0, %s178
      %s181 = sphi 0, %s180
      %s195 = sphi 0, %s181
      %s199 = sphi 0, %s199
      %s201 = sphi 0, %s199
      %s202 = sphi 0, %s201
      %s216 = sphi 0, %s202
      %s222 = sphi 0, %s224
      %s225 = sphi 0, %s222
      %s226 = sphi 0, %s225
      %s242 = sphi 0, %s226
    $region4: #{inception_forward.1} parent=1 // loop_header_branch
      %21 = sbr.rel (%p19) target = $region8
    $region5: #{inception_forward.1} parent=1 // loop_body
      %s23 = ssub.s32 %s18, 1
      %s24 = ssub.s32 %s18, 2
      %s25 = sadd.s32 %s18, 1
      %s26 = ssub.s32 %s18, %s25
      %p27 = scmp.eq.s32.totalorder %s26, 0
      %s29 = sadd.s32 %s28, 1
      %s30 = scalar_select %p27, %s28, %s29
      %p33 = pneg %p27
      %p34 = scmp.eq.s32.totalorder %s18, 1
      %p35 = por %p33, %p34
      %p36 = scmp.ne.s32.totalorder %s28, %s31
      %p37 = scmp.eq.s32.totalorder %s18, 0
      %p38 = por %p36, %p37
      %p39 = scmp.ne.s32.totalorder %s28, %s31
      %p40 = scmp.eq.s32.totalorder %s23, 1
      %p41 = por %p39, %p40
      %p42 = scmp.ne.s32.totalorder %s31, %s32
      %p43 = scmp.eq.s32.totalorder %s23, 0
      %p44 = por %p42, %p43
      %p45 = scmp.ne.s32.totalorder %s31, %s32
      %p46 = scmp.eq.s32.totalorder %s24, 1
      %p47 = por %p45, %p46
      %p49 = scmp.ne.s32.totalorder %s32, %s48
      %p50 = scmp.eq.s32.totalorder %s24, 0
      %p51 = por %p49, %p50
      %s53 = sadd.s32 %s52, 1
      %p56 = scmp.eq.s32.totalorder %s18, 1
      %p57 = scmp.ne.s32.totalorder %s52, %s54
      %p58 = scmp.eq.s32.totalorder %s18, 0
      %p59 = por %p57, %p58
      %p60 = scmp.ne.s32.totalorder %s52, %s54
      %p61 = scmp.eq.s32.totalorder %s23, 1
      %p62 = por %p60, %p61
      %p63 = scmp.ne.s32.totalorder %s54, %s55
      %p64 = scmp.eq.s32.totalorder %s23, 0
      %p65 = por %p63, %p64
      %p66 = scmp.ne.s32.totalorder %s54, %s55
      %p67 = scmp.eq.s32.totalorder %s24, 1
      %p68 = por %p66, %p67
      %p70 = scmp.ne.s32.totalorder %s55, %s69
      %p71 = scmp.eq.s32.totalorder %s24, 0
      %p72 = por %p70, %p71
      %s74 = sadd.s32 %s73, 1
      %p77 = scmp.eq.s32.totalorder %s18, 1
      %p78 = scmp.ne.s32.totalorder %s73, %s75
      %p79 = scmp.eq.s32.totalorder %s18, 0
      %p80 = por %p78, %p79
      %p81 = scmp.ne.s32.totalorder %s73, %s75
      %p82 = scmp.eq.s32.totalorder %s23, 1
      %p83 = por %p81, %p82
      %p84 = scmp.ne.s32.totalorder %s75, %s76
      %p85 = scmp.eq.s32.totalorder %s23, 0
      %p86 = por %p84, %p85
      %p87 = scmp.ne.s32.totalorder %s75, %s76
      %p88 = scmp.eq.s32.totalorder %s24, 1
      %p89 = por %p87, %p88
      %p91 = scmp.ne.s32.totalorder %s76, %s90
      %p92 = scmp.eq.s32.totalorder %s24, 0
      %p93 = por %p91, %p92
      %s95 = sadd.s32 %s94, 1
      %p98 = scmp.eq.s32.totalorder %s18, 1
      %p99 = scmp.ne.s32.totalorder %s94, %s96
      %p100 = scmp.eq.s32.totalorder %s18, 0
      %p101 = por %p99, %p100
      %p102 = scmp.ne.s32.totalorder %s94, %s96
      %p103 = scmp.eq.s32.totalorder %s23, 1
      %p104 = por %p102, %p103
      %p105 = scmp.ne.s32.totalorder %s96, %s97
      %p106 = scmp.eq.s32.totalorder %s23, 0
      %p107 = por %p105, %p106
      %p108 = scmp.ne.s32.totalorder %s96, %s97
      %p109 = scmp.eq.s32.totalorder %s24, 1
      %p110 = por %p108, %p109
      %p112 = scmp.ne.s32.totalorder %s97, %s111
      %p113 = scmp.eq.s32.totalorder %s24, 0
      %p114 = por %p112, %p113
      %s116 = sadd.s32 %s115, 1
      %p119 = scmp.eq.s32.totalorder %s18, 1
      %p120 = scmp.ne.s32.totalorder %s115, %s117
      %p121 = scmp.eq.s32.totalorder %s18, 0
      %p122 = por %p120, %p121
      %p123 = scmp.ne.s32.totalorder %s115, %s117
      %p124 = scmp.eq.s32.totalorder %s23, 1
      %p125 = por %p123, %p124
      %p126 = scmp.ne.s32.totalorder %s117, %s118
      %p127 = scmp.eq.s32.totalorder %s23, 0
      %p128 = por %p126, %p127
      %p129 = scmp.ne.s32.totalorder %s117, %s118
      %p130 = scmp.eq.s32.totalorder %s24, 1
      %p131 = por %p129, %p130
      %p133 = scmp.ne.s32.totalorder %s118, %s132
      %p134 = scmp.eq.s32.totalorder %s24, 0
      %p135 = por %p133, %p134
      %s137 = sadd.s32 %s136, 1
      %p140 = scmp.eq.s32.totalorder %s18, 1
      %p141 = scmp.ne.s32.totalorder %s136, %s138
      %p142 = scmp.eq.s32.totalorder %s18, 0
      %p143 = por %p141, %p142
      %p144 = scmp.ne.s32.totalorder %s136, %s138
      %p145 = scmp.eq.s32.totalorder %s23, 1
      %p146 = por %p144, %p145
      %p147 = scmp.ne.s32.totalorder %s138, %s139
      %p148 = scmp.eq.s32.totalorder %s23, 0
      %p149 = por %p147, %p148
      %p150 = scmp.ne.s32.totalorder %s138, %s139
      %p151 = scmp.eq.s32.totalorder %s24, 1
      %p152 = por %p150, %p151
      %p154 = scmp.ne.s32.totalorder %s139, %s153
      %p155 = scmp.eq.s32.totalorder %s24, 0
      %p156 = por %p154, %p155
      %s158 = sadd.s32 %s157, 1
      %p161 = scmp.eq.s32.totalorder %s18, 1
      %p162 = scmp.ne.s32.totalorder %s157, %s159
      %p163 = scmp.eq.s32.totalorder %s18, 0
      %p164 = por %p162, %p163
      %p165 = scmp.ne.s32.totalorder %s157, %s159
      %p166 = scmp.eq.s32.totalorder %s23, 1
      %p167 = por %p165, %p166
      %p168 = scmp.ne.s32.totalorder %s159, %s160
      %p169 = scmp.eq.s32.totalorder %s23, 0
      %p170 = por %p168, %p169
      %p171 = scmp.ne.s32.totalorder %s159, %s160
      %p172 = scmp.eq.s32.totalorder %s24, 1
      %p173 = por %p171, %p172
      %p175 = scmp.ne.s32.totalorder %s160, %s174
      %p176 = scmp.eq.s32.totalorder %s24, 0
      %p177 = por %p175, %p176
      %s179 = sadd.s32 %s178, 1
      %p182 = scmp.eq.s32.totalorder %s18, 1
      %p183 = scmp.ne.s32.totalorder %s178, %s180
      %p184 = scmp.eq.s32.totalorder %s18, 0
      %p185 = por %p183, %p184
      %p186 = scmp.ne.s32.totalorder %s178, %s180
      %p187 = scmp.eq.s32.totalorder %s23, 1
      %p188 = por %p186, %p187
      %p189 = scmp.ne.s32.totalorder %s180, %s181
      %p190 = scmp.eq.s32.totalorder %s23, 0
      %p191 = por %p189, %p190
      %p192 = scmp.ne.s32.totalorder %s180, %s181
      %p193 = scmp.eq.s32.totalorder %s24, 1
      %p194 = por %p192, %p193
      %p196 = scmp.ne.s32.totalorder %s181, %s195
      %p197 = scmp.eq.s32.totalorder %s24, 0
      %p198 = por %p196, %p197
      %s200 = sadd.s32 %s199, 1
      %p203 = scmp.eq.s32.totalorder %s18, 1
      %p204 = scmp.ne.s32.totalorder %s199, %s201
      %p205 = scmp.eq.s32.totalorder %s18, 0
      %p206 = por %p204, %p205
      %p207 = scmp.ne.s32.totalorder %s199, %s201
      %p208 = scmp.eq.s32.totalorder %s23, 1
      %p209 = por %p207, %p208
      %p210 = scmp.ne.s32.totalorder %s201, %s202
      %p211 = scmp.eq.s32.totalorder %s23, 0
      %p212 = por %p210, %p211
      %p213 = scmp.ne.s32.totalorder %s201, %s202
      %p214 = scmp.eq.s32.totalorder %s24, 1
      %p215 = por %p213, %p214
      %p217 = scmp.ne.s32.totalorder %s202, %s216
      %p218 = scmp.eq.s32.totalorder %s24, 0
      %p219 = por %p217, %p218
      %s220 = ssub.s32 %s18, %s25
      %p221 = scmp.eq.s32.totalorder %s220, 0
      %s223 = sadd.s32 %s222, 1
      %s224 = scalar_select %p221, %s222, %s223
      %p227 = pneg %p221
      %p228 = scmp.eq.s32.totalorder %s18, 1
      %p229 = por %p227, %p228
      %p230 = scmp.ne.s32.totalorder %s222, %s225
      %p231 = scmp.eq.s32.totalorder %s18, 0
      %p232 = por %p230, %p231
      %p233 = scmp.ne.s32.totalorder %s222, %s225
      %p234 = scmp.eq.s32.totalorder %s23, 1
      %p235 = por %p233, %p234
      %p236 = scmp.ne.s32.totalorder %s225, %s226
      %p237 = scmp.eq.s32.totalorder %s23, 0
      %p238 = por %p236, %p237
      %p239 = scmp.ne.s32.totalorder %s225, %s226
      %p240 = scmp.eq.s32.totalorder %s24, 1
      %p241 = por %p239, %p240
      %p243 = scmp.ne.s32.totalorder %s226, %s242
      %p244 = scmp.eq.s32.totalorder %s24, 0
      %p245 = por %p243, %p244
      %p246 = scmp.le.s32.totalorder 1, %s18
      %p247 = scmp.lt.s32.totalorder %s18, 3
      %p248 = pnand %p246, %p247
      %p249 = pneg %p248
      // Predicated region
      $region9: #{inception_forward.1} parent=5 // pred_check
        _
      $region10: #{inception_forward.1} parent=5 // pred_check_branch
        %251 = sbr.rel (%p248) target = $region12
      $region11: #{inception_forward.1} parent=5 // pred_region
        %s252 = ssub.s32 %s18, 1
        // Predicated region
        $region13: #{inception_forward.1} parent=11 // pred_check
          %p253 = pneg %p65
        $region14: #{inception_forward.1} parent=11 // pred_check_branch
          %255 = sbr.rel (%p253) target = $region16
        $region15: #{inception_forward.1} parent=11 // pred_region
          _
        $region16: #{inception_forward.1} parent=11 // pred_fallthru
          _
        // Predicated region
        $region17: #{inception_forward.1} parent=11 // pred_check
          %p256 = pneg %p86
        $region18: #{inception_forward.1} parent=11 // pred_check_branch
          %258 = sbr.rel (%p256) target = $region20
        $region19: #{inception_forward.1} parent=11 // pred_region
          _
        $region20: #{inception_forward.1} parent=11 // pred_fallthru
          _
        // Predicated region
        $region21: #{inception_forward.1} parent=11 // pred_check
          %p259 = pneg %p107
        $region22: #{inception_forward.1} parent=11 // pred_check_branch
          %261 = sbr.rel (%p259) target = $region24
        $region23: #{inception_forward.1} parent=11 // pred_region
          _
        $region24: #{inception_forward.1} parent=11 // pred_fallthru
          _
        // Predicated region
        $region25: #{inception_forward.1} parent=11 // pred_check
          %p262 = pneg %p128
        $region26: #{inception_forward.1} parent=11 // pred_check_branch
          %264 = sbr.rel (%p262) target = $region28
        $region27: #{inception_forward.1} parent=11 // pred_region
          _
        $region28: #{inception_forward.1} parent=11 // pred_fallthru
          _
        // Predicated region
        $region29: #{inception_forward.1} parent=11 // pred_check
          %p265 = pneg %p149
        $region30: #{inception_forward.1} parent=11 // pred_check_branch
          %267 = sbr.rel (%p265) target = $region32
        $region31: #{inception_forward.1} parent=11 // pred_region
          _
        $region32: #{inception_forward.1} parent=11 // pred_fallthru
          _
        // Predicated region
        $region33: #{inception_forward.1} parent=11 // pred_check
          %p268 = pneg %p170
        $region34: #{inception_forward.1} parent=11 // pred_check_branch
          %270 = sbr.rel (%p268) target = $region36
        $region35: #{inception_forward.1} parent=11 // pred_region
          _
        $region36: #{inception_forward.1} parent=11 // pred_fallthru
          _
        // Predicated region
        $region37: #{inception_forward.1} parent=11 // pred_check
          %p271 = pneg %p191
        $region38: #{inception_forward.1} parent=11 // pred_check_branch
          %273 = sbr.rel (%p271) target = $region40
        $region39: #{inception_forward.1} parent=11 // pred_region
          _
        $region40: #{inception_forward.1} parent=11 // pred_fallthru
          _
        // Predicated region
        $region41: #{inception_forward.1} parent=11 // pred_check
          %p274 = pneg %p212
        $region42: #{inception_forward.1} parent=11 // pred_check_branch
          %276 = sbr.rel (%p274) target = $region44
        $region43: #{inception_forward.1} parent=11 // pred_region
          _
        $region44: #{inception_forward.1} parent=11 // pred_fallthru
          _
      $region12: #{inception_forward.1} parent=5 // pred_fallthru
        _
      %p277 = scmp.lt.s32.totalorder %s18, 2
      // Predicated region
      $region45: #{inception_forward.1} parent=5 // pred_check
        %p278 = pneg %p277
      $region46: #{inception_forward.1} parent=5 // pred_check_branch
        %280 = sbr.rel (%p278) target = $region48
      $region47: #{inception_forward.1} parent=5 // pred_region
        // Predicated region
        $region49: #{inception_forward.1} parent=47 // pred_check
          %p281 = pneg %p38
        $region50: #{inception_forward.1} parent=47 // pred_check_branch
          %283 = sbr.rel (%p281) target = $region52
        $region51: #{inception_forward.1} parent=47 // pred_region
          %p284 = scmp.lt.s32.totalorder %s18, 1
          %s285 = scalar_select %p284, %s18, 1
          %s286 = smul.addr %s285, 32
          %s287 = smul.addr %s286, 8
          %s288 = scalar_lea.vmem %s0, %s287
        $region52: #{inception_forward.1} parent=47 // pred_fallthru
          _
      $region48: #{inception_forward.1} parent=5 // pred_fallthru
        _
      %p289 = scmp.le.s32.totalorder 1, %s18
      %p290 = scmp.lt.s32.totalorder %s18, 3
      %p291 = pnand %p289, %p290
      %p292 = pneg %p291
      // Predicated region
      $region53: #{inception_forward.1} parent=5 // pred_check
        _
      $region54: #{inception_forward.1} parent=5 // pred_check_branch
        %294 = sbr.rel (%p291) target = $region56
      $region55: #{inception_forward.1} parent=5 // pred_region
        %s295 = ssub.s32 %s18, 1
        %p296 = scmp.lt.s32.totalorder %s23, 1
        %s297 = scalar_select %p296, %s23, 1
        %s298 = smul.addr %s297, 32
        %s299 = smul.addr %s298, 8
        %s300 = scalar_lea.vmem %s0, %s299
        %p301 = pneg %p44
        %p302 = pneg %p41
        %p303 = pneg %p65
        %p304 = pneg %p62
        %p305 = pneg %p86
        %p306 = pneg %p83
        %p307 = pneg %p107
        %p308 = pneg %p104
        %p309 = pneg %p128
        %p310 = pneg %p125
        %p311 = pneg %p149
        %p312 = pneg %p146
        %p313 = pneg %p170
        %p314 = pneg %p167
        %p315 = pneg %p191
        %p316 = pneg %p188
        %p317 = pneg %p212
        %p318 = pneg %p209
        %p319 = pneg %p238
        %p320 = pneg %p235
        %s321 = sand.u32 %s225, 1
        %s322 = scalar_lea.sflag [#allocation6], %s321
        %s323 = sand.u32 %s225, 1
        %s324 = smul.addr %s323, 256
        %s325 = scalar_lea.vmem [#allocation5], %s324
        %p326 = scmp.lt.s32.totalorder %s23, 1
        %s327 = scalar_select %p326, %s23, 1
        %s328 = smul.addr %s327, 32
        %s329 = smul.addr %s328, 8
        %s330 = scalar_lea.vmem %s0, %s329
        %v331 = vld [vmem:[%s330] sm:$0xff]
        %v332 = vld [vmem:[%s330 + $0x8] sm:$0xff]
        %v333 = vld [vmem:[%s330 + $0x10] sm:$0xff]
        %v334 = vld [vmem:[%s330 + $0x18] sm:$0xff]
        %v335 = vld [vmem:[%s330 + $0x20] sm:$0xff]
        %v336 = vld [vmem:[%s330 + $0x28] sm:$0xff]
        %v337 = vld [vmem:[%s330 + $0x30] sm:$0xff]
        %v338 = vld [vmem:[%s330 + $0x38] sm:$0xff]
        %v339 = vld [vmem:[%s330 + $0x40] sm:$0xff]
        %v340 = vld [vmem:[%s330 + $0x48] sm:$0xff]
        %v341 = vld [vmem:[%s330 + $0x50] sm:$0xff]
        %v342 = vld [vmem:[%s330 + $0x58] sm:$0xff]
        %v343 = vld [vmem:[%s330 + $0x60] sm:$0xff]
        %v344 = vld [vmem:[%s330 + $0x68] sm:$0xff]
        %v345 = vld [vmem:[%s330 + $0x70] sm:$0xff]
        %v346 = vld [vmem:[%s330 + $0x78] sm:$0xff]
        %v347 = vld [vmem:[%s330 + $0x80] sm:$0xff]
        %v348 = vld [vmem:[%s330 + $0x88] sm:$0xff]
        %v349 = vld [vmem:[%s330 + $0x90] sm:$0xff]
        %v350 = vld [vmem:[%s330 + $0x98] sm:$0xff]
        %v351 = vld [vmem:[%s330 + $0xa0] sm:$0xff]
        %v352 = vld [vmem:[%s330 + $0xa8] sm:$0xff]
        %v353 = vld [vmem:[%s330 + $0xb0] sm:$0xff]
        %v354 = vld [vmem:[%s330 + $0xb8] sm:$0xff]
        %v355 = vld [vmem:[%s330 + $0xc0] sm:$0xff]
        %v356 = vld [vmem:[%s330 + $0xc8] sm:$0xff]
        %v357 = vld [vmem:[%s330 + $0xd0] sm:$0xff]
        %v358 = vld [vmem:[%s330 + $0xd8] sm:$0xff]
        %v359 = vld [vmem:[%s330 + $0xe0] sm:$0xff]
        %v360 = vld [vmem:[%s330 + $0xe8] sm:$0xff]
        %v361 = vld [vmem:[%s330 + $0xf0] sm:$0xff]
        %v362 = vld [vmem:[%s330 + $0xf8] sm:$0xff]
        %v363 = vld [vmem:[%s1] sm:$0xf]
        %v364 = vld [vmem:[%s2] sm:$0x1]
        %v366 = vlaneseq
        %v367 = vshrl.u32 %v366, 7
        %v368 = vsub.s32 0, %v367
        %v369 = vrot.slane %v364, %v368
        %vm371 = vcmask 31744
        %v373 = vsel %vm371, %v331, 0
        %v376 = vsel %vm371, %v332, 0
        %v379 = vsel %vm371, %v333, 0
        %v382 = vsel %vm371, %v334, 0
        %v385 = vsel %vm371, %v335, 0
        %v388 = vsel %vm371, %v336, 0
        %v391 = vsel %vm371, %v337, 0
        %v394 = vsel %vm371, %v338, 0
        %v397 = vsel %vm371, %v339, 0
        %v400 = vsel %vm371, %v340, 0
        %v403 = vsel %vm371, %v341, 0
        %v406 = vsel %vm371, %v342, 0
        %v409 = vsel %vm371, %v343, 0
        %v412 = vsel %vm371, %v344, 0
        %v415 = vsel %vm371, %v345, 0
        %v418 = vsel %vm371, %v346, 0
        %v421 = vsel %vm371, %v347, 0
        %v424 = vsel %vm371, %v348, 0
        %v427 = vsel %vm371, %v349, 0
        %v430 = vsel %vm371, %v350, 0
        %v433 = vsel %vm371, %v351, 0
        %v436 = vsel %vm371, %v352, 0
        %v439 = vsel %vm371, %v353, 0
        %v442 = vsel %vm371, %v354, 0
        %v445 = vsel %vm371, %v355, 0
        %v448 = vsel %vm371, %v356, 0
        %v451 = vsel %vm371, %v357, 0
        %v454 = vsel %vm371, %v358, 0
        %v457 = vsel %vm371, %v359, 0
        %v460 = vsel %vm371, %v360, 0
        %v463 = vsel %vm371, %v361, 0
        %v466 = vsel %vm371, %v362, 0
        %vm468 = vcmask 1043456
        %v470 = vsel %vm468, %v363, 0
        %472 = vmatprep.subr.mxu0 0.0
        %473 = vmatpush1.msra.mxu0 %v470
        %474 = vmatprep.subr.mxu0 0.0
        %475 = vmatpush1.msra.mxu0 0.0
        %476 = vmatprep.subr.mxu0 0.0
        %477 = vmatpush1.msra.mxu0 0.0
        %478 = vmatprep.subr.mxu0 0.0
        %479 = vmatpush1.msra.mxu0 0.0
        %480 = vmatprep.subr.mxu0 0.0
        %481 = vmatpush1.msra.mxu0 0.0
        %482 = vmatprep.subr.mxu0 0.0
        %483 = vmatpush1.msra.mxu0 0.0
        %484 = vmatprep.subr.mxu0 0.0
        %485 = vmatpush1.msra.mxu0 0.0
        %486 = vmatprep.subr.mxu0 0.0
        %487 = vmatpush1.msra.mxu0 0.0
        %488 = vmatprep.subr.mxu0 0.0
        %489 = vmatpush1.msra.mxu0 0.0
        %490 = vmatprep.subr.mxu0 0.0
        %491 = vmatpush1.msra.mxu0 0.0
        %492 = vmatprep.subr.mxu0 0.0
        %493 = vmatpush1.msra.mxu0 0.0
        %494 = vmatprep.subr.mxu0 0.0
        %495 = vmatpush1.msra.mxu0 0.0
        %496 = vmatprep.subr.mxu0 0.0
        %497 = vmatpush1.msra.mxu0 0.0
        %498 = vmatprep.subr.mxu0 0.0
        %499 = vmatpush1.msra.mxu0 0.0
        %500 = vmatprep.subr.mxu0 0.0
        %501 = vmatpush1.msra.mxu0 0.0
        %502 = vmatprep.subr.mxu0 0.0
        %503 = vmatpush1.msra.mxu0 0.0
        %504 = vmatprep.subr.mxu0 0.0
        %505 = vmatpush1.msra.mxu0 0.0
        %506 = vmatprep.subr.mxu0 0.0
        %507 = vmatpush1.msra.mxu0 0.0
        %508 = vmatprep.subr.mxu0 0.0
        %509 = vmatpush1.msra.mxu0 0.0
        %510 = vmatprep.subr.mxu0 0.0
        %511 = vmatpush1.msra.mxu0 0.0
        %512 = vmatprep.subr.mxu0 0.0
        %513 = vmatpush1.msra.mxu0 0.0
        %514 = vmatprep.subr.mxu0 0.0
        %515 = vmatpush1.msra.mxu0 0.0
        %516 = vmatprep.subr.mxu0 0.0
        %517 = vmatpush1.msra.mxu0 0.0
        %518 = vmatprep.subr.mxu0 0.0
        %519 = vmatpush1.msra.mxu0 0.0
        %520 = vmatprep.subr.mxu0 0.0
        %521 = vmatpush1.msra.mxu0 0.0
        %522 = vmatprep.subr.mxu0 0.0
        %523 = vmatpush1.msra.mxu0 0.0
        %524 = vmatprep.subr.mxu0 0.0
        %525 = vmatpush1.msra.mxu0 0.0
        %526 = vmatprep.subr.mxu0 0.0
        %527 = vmatpush1.msra.mxu0 0.0
        %528 = vmatprep.subr.mxu0 0.0
        %529 = vmatpush1.msra.mxu0 0.0
        %530 = vmatprep.subr.mxu0 0.0
        %531 = vmatpush1.msra.mxu0 0.0
        %532 = vmatprep.subr.mxu0 0.0
        %533 = vmatpush1.msra.mxu0 0.0
        %534 = vmatprep.subr.mxu0 0.0
        %535 = vmatpush1.msra.mxu0 0.0
        %536 = vmatprep.mubr.f32.mxu0 0.0
        %537 = vmatmul.mubr.f32.gmra.mrb[0].mxu0 %v373
        %v538 = vpop.f32.mrb[0].mxu0
        %v539 = vadd.f32 %v369, %v538
        %v540 = vpop.f32.mrb[0].mxu0
        %541 = vmatprep.mubr.f32.mxu0 0.0
        %542 = vmatmul.mubr.f32.gmra.mrb[0].mxu0 %v376
        %v543 = vpop.f32.mrb[0].mxu0
        %v544 = vadd.f32 %v369, %v543
        %v545 = vpop.f32.mrb[0].mxu0
        %546 = vmatprep.mubr.f32.mxu0 0.0
        %547 = vmatmul.mubr.f32.gmra.mrb[0].mxu0 %v379
        %v548 = vpop.f32.mrb[0].mxu0
        %v549 = vadd.f32 %v369, %v548
        %v550 = vpop.f32.mrb[0].mxu0
        %551 = vmatprep.mubr.f32.mxu0 0.0
        %552 = vmatmul.mubr.f32.gmra.mrb[0].mxu0 %v382
        %v553 = vpop.f32.mrb[0].mxu0
        %v554 = vadd.f32 %v369, %v553
        %v555 = vpop.f32.mrb[0].mxu0
        %556 = vmatprep.mubr.f32.mxu0 0.0
        %557 = vmatmul.mubr.f32.gmra.mrb[0].mxu0 %v385
        %v558 = vpop.f32.mrb[0].mxu0
        %v559 = vadd.f32 %v369, %v558
        %v560 = vpop.f32.mrb[0].mxu0
        %561 = vmatprep.mubr.f32.mxu0 0.0
        %562 = vmatmul.mubr.f32.gmra.mrb[0].mxu0 %v388
        %v563 = vpop.f32.mrb[0].mxu0
        %v564 = vadd.f32 %v369, %v563
        %v565 = vpop.f32.mrb[0].mxu0
        %566 = vmatprep.mubr.f32.mxu0 0.0
        %567 = vmatmul.mubr.f32.gmra.mrb[0].mxu0 %v391
        %v568 = vpop.f32.mrb[0].mxu0
        %v569 = vadd.f32 %v369, %v568
        %v570 = vpop.f32.mrb[0].mxu0
        %571 = vmatprep.mubr.f32.mxu0 0.0
        %572 = vmatmul.mubr.f32.gmra.mrb[0].mxu0 %v394
        %v573 = vpop.f32.mrb[0].mxu0
        %v574 = vadd.f32 %v369, %v573
        %v575 = vpop.f32.mrb[0].mxu0
        %576 = vmatprep.mubr.f32.mxu0 0.0
        %577 = vmatmul.mubr.f32.gmra.mrb[0].mxu0 %v397
        %v578 = vpop.f32.mrb[0].mxu0
        %v579 = vadd.f32 %v369, %v578
        %v580 = vpop.f32.mrb[0].mxu0
        %581 = vmatprep.mubr.f32.mxu0 0.0
        %582 = vmatmul.mubr.f32.gmra.mrb[0].mxu0 %v400
        %v583 = vpop.f32.mrb[0].mxu0
        %v584 = vadd.f32 %v369, %v583
        %v585 = vpop.f32.mrb[0].mxu0
        %586 = vmatprep.mubr.f32.mxu0 0.0
        %587 = vmatmul.mubr.f32.gmra.mrb[0].mxu0 %v403
        %v588 = vpop.f32.mrb[0].mxu0
        %v589 = vadd.f32 %v369, %v588
        %v590 = vpop.f32.mrb[0].mxu0
        %591 = vmatprep.mubr.f32.mxu0 0.0
        %592 = vmatmul.mubr.f32.gmra.mrb[0].mxu0 %v406
        %v593 = vpop.f32.mrb[0].mxu0
        %v594 = vadd.f32 %v369, %v593
        %v595 = vpop.f32.mrb[0].mxu0
        %596 = vmatprep.mubr.f32.mxu0 0.0
        %597 = vmatmul.mubr.f32.gmra.mrb[0].mxu0 %v409
        %v598 = vpop.f32.mrb[0].mxu0
        %v599 = vadd.f32 %v369, %v598
        %v600 = vpop.f32.mrb[0].mxu0
        %601 = vmatprep.mubr.f32.mxu0 0.0
        %602 = vmatmul.mubr.f32.gmra.mrb[0].mxu0 %v412
        %v603 = vpop.f32.mrb[0].mxu0
        %v604 = vadd.f32 %v369, %v603
        %v605 = vpop.f32.mrb[0].mxu0
        %606 = vmatprep.mubr.f32.mxu0 0.0
        %607 = vmatmul.mubr.f32.gmra.mrb[0].mxu0 %v415
        %v608 = vpop.f32.mrb[0].mxu0
        %v609 = vadd.f32 %v369, %v608
        %v610 = vpop.f32.mrb[0].mxu0
        %611 = vmatprep.mubr.f32.mxu0 0.0
        %612 = vmatmul.mubr.f32.gmra.mrb[0].mxu0 %v418
        %v613 = vpop.f32.mrb[0].mxu0
        %v614 = vadd.f32 %v369, %v613
        %v615 = vpop.f32.mrb[0].mxu0
        %616 = vmatprep.mubr.f32.mxu0 0.0
        %617 = vmatmul.mubr.f32.gmra.mrb[0].mxu0 %v421
        %v618 = vpop.f32.mrb[0].mxu0
        %v619 = vadd.f32 %v369, %v618
        %v620 = vpop.f32.mrb[0].mxu0
        %621 = vmatprep.mubr.f32.mxu0 0.0
        %622 = vmatmul.mubr.f32.gmra.mrb[0].mxu0 %v424
        %v623 = vpop.f32.mrb[0].mxu0
        %v624 = vadd.f32 %v369, %v623
        %v625 = vpop.f32.mrb[0].mxu0
        %626 = vmatprep.mubr.f32.mxu0 0.0
        %627 = vmatmul.mubr.f32.gmra.mrb[0].mxu0 %v427
        %v628 = vpop.f32.mrb[0].mxu0
        %v629 = vadd.f32 %v369, %v628
        %v630 = vpop.f32.mrb[0].mxu0
        %631 = vmatprep.mubr.f32.mxu0 0.0
        %632 = vmatmul.mubr.f32.gmra.mrb[0].mxu0 %v430
        %v633 = vpop.f32.mrb[0].mxu0
        %v634 = vadd.f32 %v369, %v633
        %v635 = vpop.f32.mrb[0].mxu0
        %636 = vmatprep.mubr.f32.mxu0 0.0
        %637 = vmatmul.mubr.f32.gmra.mrb[0].mxu0 %v433
        %v638 = vpop.f32.mrb[0].mxu0
        %v639 = vadd.f32 %v369, %v638
        %v640 = vpop.f32.mrb[0].mxu0
        %641 = vmatprep.mubr.f32.mxu0 0.0
        %642 = vmatmul.mubr.f32.gmra.mrb[0].mxu0 %v436
        %v643 = vpop.f32.mrb[0].mxu0
        %v644 = vadd.f32 %v369, %v643
        %v645 = vpop.f32.mrb[0].mxu0
        %646 = vmatprep.mubr.f32.mxu0 0.0
        %647 = vmatmul.mubr.f32.gmra.mrb[0].mxu0 %v439
        %v648 = vpop.f32.mrb[0].mxu0
        %v649 = vadd.f32 %v369, %v648
        %v650 = vpop.f32.mrb[0].mxu0
        %651 = vmatprep.mubr.f32.mxu0 0.0
        %652 = vmatmul.mubr.f32.gmra.mrb[0].mxu0 %v442
        %v653 = vpop.f32.mrb[0].mxu0
        %v654 = vadd.f32 %v369, %v653
        %v655 = vpop.f32.mrb[0].mxu0
        %656 = vmatprep.mubr.f32.mxu0 0.0
        %657 = vmatmul.mubr.f32.gmra.mrb[0].mxu0 %v445
        %v658 = vpop.f32.mrb[0].mxu0
        %v659 = vadd.f32 %v369, %v658
        %v660 = vpop.f32.mrb[0].mxu0
        %661 = vmatprep.mubr.f32.mxu0 0.0
        %662 = vmatmul.mubr.f32.gmra.mrb[0].mxu0 %v448
        %v663 = vpop.f32.mrb[0].mxu0
        %v664 = vadd.f32 %v369, %v663
        %v665 = vpop.f32.mrb[0].mxu0
        %666 = vmatprep.mubr.f32.mxu0 0.0
        %667 = vmatmul.mubr.f32.gmra.mrb[0].mxu0 %v451
        %v668 = vpop.f32.mrb[0].mxu0
        %v669 = vadd.f32 %v369, %v668
        %v670 = vpop.f32.mrb[0].mxu0
        %671 = vmatprep.mubr.f32.mxu0 0.0
        %672 = vmatmul.mubr.f32.gmra.mrb[0].mxu0 %v454
        %v673 = vpop.f32.mrb[0].mxu0
        %v674 = vadd.f32 %v369, %v673
        %v675 = vpop.f32.mrb[0].mxu0
        %676 = vmatprep.mubr.f32.mxu0 0.0
        %677 = vmatmul.mubr.f32.gmra.mrb[0].mxu0 %v457
        %v678 = vpop.f32.mrb[0].mxu0
        %v679 = vadd.f32 %v369, %v678
        %v680 = vpop.f32.mrb[0].mxu0
        %681 = vmatprep.mubr.f32.mxu0 0.0
        %682 = vmatmul.mubr.f32.gmra.mrb[0].mxu0 %v460
        %v683 = vpop.f32.mrb[0].mxu0
        %v684 = vadd.f32 %v369, %v683
        %v685 = vpop.f32.mrb[0].mxu0
        %686 = vmatprep.mubr.f32.mxu0 0.0
        %687 = vmatmul.mubr.f32.gmra.mrb[0].mxu0 %v463
        %v688 = vpop.f32.mrb[0].mxu0
        %v689 = vadd.f32 %v369, %v688
        %v690 = vpop.f32.mrb[0].mxu0
        %691 = vmatprep.mubr.f32.mxu0 0.0
        %692 = vmatmul.mubr.f32.gmra.mrb[0].mxu0 %v466
        %v693 = vpop.f32.mrb[0].mxu0
        %v694 = vadd.f32 %v369, %v693
        %v695 = vpop.f32.mrb[0].mxu0
        %696 = vdwg.mxu0
        %v697 = vmax.f32 %v539, 0.0
        %v698 = vmax.f32 %v544, 0.0
        %v699 = vmax.f32 %v549, 0.0
        %v700 = vmax.f32 %v554, 0.0
        %v701 = vmax.f32 %v559, 0.0
        %v702 = vmax.f32 %v564, 0.0
        %v703 = vmax.f32 %v569, 0.0
        %v704 = vmax.f32 %v574, 0.0
        %v705 = vmax.f32 %v579, 0.0
        %v706 = vmax.f32 %v584, 0.0
        %v707 = vmax.f32 %v589, 0.0
        %v708 = vmax.f32 %v594, 0.0
        %v709 = vmax.f32 %v599, 0.0
        %v710 = vmax.f32 %v604, 0.0
        %v711 = vmax.f32 %v609, 0.0
        %v712 = vmax.f32 %v614, 0.0
        %v713 = vmax.f32 %v619, 0.0
        %v714 = vmax.f32 %v624, 0.0
        %v715 = vmax.f32 %v629, 0.0
        %v716 = vmax.f32 %v634, 0.0
        %v717 = vmax.f32 %v639, 0.0
        %v718 = vmax.f32 %v644, 0.0
        %v719 = vmax.f32 %v649, 0.0
        %v720 = vmax.f32 %v654, 0.0
        %v721 = vmax.f32 %v659, 0.0
        %v722 = vmax.f32 %v664, 0.0
        %v723 = vmax.f32 %v669, 0.0
        %v724 = vmax.f32 %v674, 0.0
        %v725 = vmax.f32 %v679, 0.0
        %v726 = vmax.f32 %v684, 0.0
        %v727 = vmax.f32 %v689, 0.0
        %v728 = vmax.f32 %v694, 0.0
        %729 = vst.msk [vmem:[#allocation2] sm:$0xff] %vm371, 0.0
        %730 = vst.msk [vmem:[#allocation2 + $0x8] sm:$0xff] %vm371, 0.0
        %vm731 = vcmask 25600
        %732 = vst.msk [vmem:[#allocation2 + $0x10] sm:$0x3] %vm731, 0.0
        %s733 = scalar_lea.vmem [#allocation2], 408
        %734 = vst.msk [vmem:[%s733] sm:$0xff] %vm371, 0.0
        %735 = vst.msk [vmem:[%s733 + $0x8] sm:$0xff] %vm371, 0.0
        %736 = vst.msk [vmem:[%s733 + $0x10] sm:$0x3] %vm731, 0.0
        %vm737 = vcmask 24576
        %738 = vst.msk [vmem:[#allocation2] sm:$0x1] %vm737, 0.0
        %739 = vst.msk [vmem:[#allocation2 + $0x18] sm:$0x1] %vm737, 0.0
        %740 = vst.msk [vmem:[#allocation2 + $0x30] sm:$0x1] %vm737, 0.0
        %741 = vst.msk [vmem:[#allocation2 + $0x48] sm:$0x1] %vm737, 0.0
        %742 = vst.msk [vmem:[#allocation2 + $0x60] sm:$0x1] %vm737, 0.0
        %743 = vst.msk [vmem:[#allocation2 + $0x78] sm:$0x1] %vm737, 0.0
        %744 = vst.msk [vmem:[#allocation2 + $0x90] sm:$0x1] %vm737, 0.0
        %745 = vst.msk [vmem:[#allocation2 + $0xa8] sm:$0x1] %vm737, 0.0
        %746 = vst.msk [vmem:[#allocation2 + $0xc0] sm:$0x1] %vm737, 0.0
        %747 = vst.msk [vmem:[#allocation2 + $0xd8] sm:$0x1] %vm737, 0.0
        %748 = vst.msk [vmem:[#allocation2 + $0xf0] sm:$0x1] %vm737, 0.0
        %749 = vst.msk [vmem:[#allocation2 + $0x108] sm:$0x1] %vm737, 0.0
        %750 = vst.msk [vmem:[#allocation2 + $0x120] sm:$0x1] %vm737, 0.0
        %751 = vst.msk [vmem:[#allocation2 + $0x138] sm:$0x1] %vm737, 0.0
        %752 = vst.msk [vmem:[#allocation2 + $0x150] sm:$0x1] %vm737, 0.0
        %753 = vst.msk [vmem:[#allocation2 + $0x168] sm:$0x1] %vm737, 0.0
        %754 = vst.msk [vmem:[#allocation2 + $0x180] sm:$0x1] %vm737, 0.0
        %755 = vst.msk [vmem:[#allocation2 + $0x198] sm:$0x1] %vm737, 0.0
        %756 = vst.msk [vmem:[#allocation2 + $0x11] sm:$0x1] %vm737, 0.0
        %757 = vst.msk [vmem:[#allocation2 + $0x29] sm:$0x1] %vm737, 0.0
        %758 = vst.msk [vmem:[#allocation2 + $0x41] sm:$0x1] %vm737, 0.0
        %759 = vst.msk [vmem:[#allocation2 + $0x59] sm:$0x1] %vm737, 0.0
        %760 = vst.msk [vmem:[#allocation2 + $0x71] sm:$0x1] %vm737, 0.0
        %761 = vst.msk [vmem:[#allocation2 + $0x89] sm:$0x1] %vm737, 0.0
        %762 = vst.msk [vmem:[#allocation2 + $0xa1] sm:$0x1] %vm737, 0.0
        %763 = vst.msk [vmem:[#allocation2 + $0xb9] sm:$0x1] %vm737, 0.0
        %764 = vst.msk [vmem:[#allocation2 + $0xd1] sm:$0x1] %vm737, 0.0
        %765 = vst.msk [vmem:[#allocation2 + $0xe9] sm:$0x1] %vm737, 0.0
        %766 = vst.msk [vmem:[#allocation2 + $0x101] sm:$0x1] %vm737, 0.0
        %767 = vst.msk [vmem:[#allocation2 + $0x119] sm:$0x1] %vm737, 0.0
        %768 = vst.msk [vmem:[#allocation2 + $0x131] sm:$0x1] %vm737, 0.0
        %769 = vst.msk [vmem:[#allocation2 + $0x149] sm:$0x1] %vm737, 0.0
        %770 = vst.msk [vmem:[#allocation2 + $0x161] sm:$0x1] %vm737, 0.0
        %771 = vst.msk [vmem:[#allocation2 + $0x179] sm:$0x1] %vm737, 0.0
        %772 = vst.msk [vmem:[#allocation2 + $0x191] sm:$0x1] %vm737, 0.0
        %773 = vst.msk [vmem:[#allocation2 + $0x1a9] sm:$0x1] %vm737, 0.0
        %s774 = scalar_lea.vmem [#allocation2], 24
        %775 = vst.msk [vmem:[%s774 + $0x1] sm:$0xff] %vm371, %v697
        %776 = vst.msk [vmem:[%s774 + $0x9] sm:$0xff] %vm371, %v698
        %777 = vst.msk [vmem:[%s774 + $0x19] sm:$0xff] %vm371, %v699
        %778 = vst.msk [vmem:[%s774 + $0x21] sm:$0xff] %vm371, %v700
        %779 = vst.msk [vmem:[%s774 + $0x31] sm:$0xff] %vm371, %v701
        %780 = vst.msk [vmem:[%s774 + $0x39] sm:$0xff] %vm371, %v702
        %781 = vst.msk [vmem:[%s774 + $0x49] sm:$0xff] %vm371, %v703
        %782 = vst.msk [vmem:[%s774 + $0x51] sm:$0xff] %vm371, %v704
        %783 = vst.msk [vmem:[%s774 + $0x61] sm:$0xff] %vm371, %v705
        %784 = vst.msk [vmem:[%s774 + $0x69] sm:$0xff] %vm371, %v706
        %785 = vst.msk [vmem:[%s774 + $0x79] sm:$0xff] %vm371, %v707
        %786 = vst.msk [vmem:[%s774 + $0x81] sm:$0xff] %vm371, %v708
        %787 = vst.msk [vmem:[%s774 + $0x91] sm:$0xff] %vm371, %v709
        %788 = vst.msk [vmem:[%s774 + $0x99] sm:$0xff] %vm371, %v710
        %789 = vst.msk [vmem:[%s774 + $0xa9] sm:$0xff] %vm371, %v711
        %790 = vst.msk [vmem:[%s774 + $0xb1] sm:$0xff] %vm371, %v712
        %791 = vst.msk [vmem:[%s774 + $0xc1] sm:$0xff] %vm371, %v713
        %792 = vst.msk [vmem:[%s774 + $0xc9] sm:$0xff] %vm371, %v714
        %793 = vst.msk [vmem:[%s774 + $0xd9] sm:$0xff] %vm371, %v715
        %794 = vst.msk [vmem:[%s774 + $0xe1] sm:$0xff] %vm371, %v716
        %795 = vst.msk [vmem:[%s774 + $0xf1] sm:$0xff] %vm371, %v717
        %796 = vst.msk [vmem:[%s774 + $0xf9] sm:$0xff] %vm371, %v718
        %797 = vst.msk [vmem:[%s774 + $0x109] sm:$0xff] %vm371, %v719
        %798 = vst.msk [vmem:[%s774 + $0x111] sm:$0xff] %vm371, %v720
        %799 = vst.msk [vmem:[%s774 + $0x121] sm:$0xff] %vm371, %v721
        %800 = vst.msk [vmem:[%s774 + $0x129] sm:$0xff] %vm371, %v722
        %801 = vst.msk [vmem:[%s774 + $0x139] sm:$0xff] %vm371, %v723
        %802 = vst.msk [vmem:[%s774 + $0x141] sm:$0xff] %vm371, %v724
        %803 = vst.msk [vmem:[%s774 + $0x151] sm:$0xff] %vm371, %v725
        %804 = vst.msk [vmem:[%s774 + $0x159] sm:$0xff] %vm371, %v726
        %805 = vst.msk [vmem:[%s774 + $0x169] sm:$0xff] %vm371, %v727
        %806 = vst.msk [vmem:[%s774 + $0x171] sm:$0xff] %vm371, %v728
        %v807 = vld [vmem:[#allocation2] sm:$0xff]
        %v808 = vld [vmem:[#allocation2 + $0x8] sm:$0xff]
        %v809 = vld [vmem:[#allocation2 + $0x18] sm:$0xff]
        %v810 = vld [vmem:[#allocation2 + $0x20] sm:$0xff]
        %v811 = vld [vmem:[#allocation2 + $0x30] sm:$0xff]
        %v812 = vld [vmem:[#allocation2 + $0x38] sm:$0xff]
        %v813 = vld [vmem:[#allocation2 + $0x48] sm:$0xff]
        %v814 = vld [vmem:[#allocation2 + $0x50] sm:$0xff]
        %v815 = vld [vmem:[#allocation2 + $0x60] sm:$0xff]
        %v816 = vld [vmem:[#allocation2 + $0x68] sm:$0xff]
        %v817 = vld [vmem:[#allocation2 + $0x78] sm:$0xff]
        %v818 = vld [vmem:[#allocation2 + $0x80] sm:$0xff]
        %v819 = vld [vmem:[#allocation2 + $0x90] sm:$0xff]
        %v820 = vld [vmem:[#allocation2 + $0x98] sm:$0xff]
        %v821 = vld [vmem:[#allocation2 + $0xa8] sm:$0xff]
        %v822 = vld [vmem:[#allocation2 + $0xb0] sm:$0xff]
        %v823 = vld [vmem:[#allocation2 + $0xc0] sm:$0xff]
        %v824 = vld [vmem:[#allocation2 + $0xc8] sm:$0xff]
        %v825 = vld [vmem:[#allocation2 + $0xd8] sm:$0xff]
        %v826 = vld [vmem:[#allocation2 + $0xe0] sm:$0xff]
        %v827 = vld [vmem:[#allocation2 + $0xf0] sm:$0xff]
        %v828 = vld [vmem:[#allocation2 + $0xf8] sm:$0xff]
        %v829 = vld [vmem:[#allocation2 + $0x108] sm:$0xff]
        %v830 = vld [vmem:[#allocation2 + $0x110] sm:$0xff]
        %v831 = vld [vmem:[#allocation2 + $0x120] sm:$0xff]
        %v832 = vld [vmem:[#allocation2 + $0x128] sm:$0xff]
        %v833 = vld [vmem:[#allocation2 + $0x138] sm:$0xff]
        %v834 = vld [vmem:[#allocation2 + $0x140] sm:$0xff]
        %v835 = vld [vmem:[#allocation2 + $0x150] sm:$0xff]
        %v836 = vld [vmem:[#allocation2 + $0x158] sm:$0xff]
        %v837 = vld [vmem:[#allocation2 + $0x168] sm:$0xff]
        %v838 = vld [vmem:[#allocation2 + $0x170] sm:$0xff]
        %v839 = vld [vmem:[%s774] sm:$0xff]
        %v840 = vld [vmem:[%s774 + $0x8] sm:$0xff]
        %v841 = vld [vmem:[%s774 + $0x18] sm:$0xff]
        %v842 = vld [vmem:[%s774 + $0x20] sm:$0xff]
        %v843 = vld [vmem:[%s774 + $0x30] sm:$0xff]
        %v844 = vld [vmem:[%s774 + $0x38] sm:$0xff]
        %v845 = vld [vmem:[%s774 + $0x48] sm:$0xff]
        %v846 = vld [vmem:[%s774 + $0x50] sm:$0xff]
        %v847 = vld [vmem:[%s774 + $0x60] sm:$0xff]
        %v848 = vld [vmem:[%s774 + $0x68] sm:$0xff]
        %v849 = vld [vmem:[%s774 + $0x78] sm:$0xff]
        %v850 = vld [vmem:[%s774 + $0x80] sm:$0xff]
        %v851 = vld [vmem:[%s774 + $0x90] sm:$0xff]
        %v852 = vld [vmem:[%s774 + $0x98] sm:$0xff]
        %v853 = vld [vmem:[%s774 + $0xa8] sm:$0xff]
        %v854 = vld [vmem:[%s774 + $0xb0] sm:$0xff]
        %v855 = vld [vmem:[%s774 + $0xc0] sm:$0xff]
        %v856 = vld [vmem:[%s774 + $0xc8] sm:$0xff]
        %v857 = vld [vmem:[%s774 + $0xd8] sm:$0xff]
        %v858 = vld [vmem:[%s774 + $0xe0] sm:$0xff]
        %v859 = vld [vmem:[%s774 + $0xf0] sm:$0xff]
        %v860 = vld [vmem:[%s774 + $0xf8] sm:$0xff]
        %v861 = vld [vmem:[%s774 + $0x108] sm:$0xff]
        %v862 = vld [vmem:[%s774 + $0x110] sm:$0xff]
        %v863 = vld [vmem:[%s774 + $0x120] sm:$0xff]
        %v864 = vld [vmem:[%s774 + $0x128] sm:$0xff]
        %v865 = vld [vmem:[%s774 + $0x138] sm:$0xff]
        %v866 = vld [vmem:[%s774 + $0x140] sm:$0xff]
        %v867 = vld [vmem:[%s774 + $0x150] sm:$0xff]
        %v868 = vld [vmem:[%s774 + $0x158] sm:$0xff]
        %v869 = vld [vmem:[%s774 + $0x168] sm:$0xff]
        %v870 = vld [vmem:[%s774 + $0x170] sm:$0xff]
        %s871 = scalar_lea.vmem [#allocation2], 48
        %v872 = vld [vmem:[%s871] sm:$0xff]
        %v873 = vld [vmem:[%s871 + $0x8] sm:$0xff]
        %v874 = vld [vmem:[%s871 + $0x18] sm:$0xff]
        %v875 = vld [vmem:[%s871 + $0x20] sm:$0xff]
        %v876 = vld [vmem:[%s871 + $0x30] sm:$0xff]
        %v877 = vld [vmem:[%s871 + $0x38] sm:$0xff]
        %v878 = vld [vmem:[%s871 + $0x48] sm:$0xff]
        %v879 = vld [vmem:[%s871 + $0x50] sm:$0xff]
        %v880 = vld [vmem:[%s871 + $0x60] sm:$0xff]
        %v881 = vld [vmem:[%s871 + $0x68] sm:$0xff]
        %v882 = vld [vmem:[%s871 + $0x78] sm:$0xff]
        %v883 = vld [vmem:[%s871 + $0x80] sm:$0xff]
        %v884 = vld [vmem:[%s871 + $0x90] sm:$0xff]
        %v885 = vld [vmem:[%s871 + $0x98] sm:$0xff]
        %v886 = vld [vmem:[%s871 + $0xa8] sm:$0xff]
        %v887 = vld [vmem:[%s871 + $0xb0] sm:$0xff]
        %v888 = vld [vmem:[%s871 + $0xc0] sm:$0xff]
        %v889 = vld [vmem:[%s871 + $0xc8] sm:$0xff]
        %v890 = vld [vmem:[%s871 + $0xd8] sm:$0xff]
        %v891 = vld [vmem:[%s871 + $0xe0] sm:$0xff]
        %v892 = vld [vmem:[%s871 + $0xf0] sm:$0xff]
        %v893 = vld [vmem:[%s871 + $0xf8] sm:$0xff]
        %v894 = vld [vmem:[%s871 + $0x108] sm:$0xff]
        %v895 = vld [vmem:[%s871 + $0x110] sm:$0xff]
        %v896 = vld [vmem:[%s871 + $0x120] sm:$0xff]
        %v897 = vld [vmem:[%s871 + $0x128] sm:$0xff]
        %v898 = vld [vmem:[%s871 + $0x138] sm:$0xff]
        %v899 = vld [vmem:[%s871 + $0x140] sm:$0xff]
        %v900 = vld [vmem:[%s871 + $0x150] sm:$0xff]
        %v901 = vld [vmem:[%s871 + $0x158] sm:$0xff]
        %v902 = vld [vmem:[%s871 + $0x168] sm:$0xff]
        %v903 = vld [vmem:[%s871 + $0x170] sm:$0xff]
        %936 = vrot.lane.b32.xlu0 %v839, 4
        %v937 = vpop.permute.xlu0 %936
        %938 = vrot.lane.b32.xlu0 %v840, 4
        %v939 = vpop.permute.xlu0 %938
        %940 = vrot.lane.b32.xlu0 %v841, 4
        %v941 = vpop.permute.xlu0 %940
        %942 = vrot.lane.b32.xlu0 %v842, 4
        %v943 = vpop.permute.xlu0 %942
        %944 = vrot.lane.b32.xlu0 %v843, 4
        %v945 = vpop.permute.xlu0 %944
        %946 = vrot.lane.b32.xlu0 %v844, 4
        %v947 = vpop.permute.xlu0 %946
        %948 = vrot.lane.b32.xlu0 %v845, 4
        %v949 = vpop.permute.xlu0 %948
        %950 = vrot.lane.b32.xlu0 %v846, 4
        %v951 = vpop.permute.xlu0 %950
        %952 = vrot.lane.b32.xlu0 %v847, 4
        %v953 = vpop.permute.xlu0 %952
        %954 = vrot.lane.b32.xlu0 %v848, 4
        %v955 = vpop.permute.xlu0 %954
        %956 = vrot.lane.b32.xlu0 %v849, 4
        %v957 = vpop.permute.xlu0 %956
        %958 = vrot.lane.b32.xlu0 %v850, 4
        %v959 = vpop.permute.xlu0 %958
        %960 = vrot.lane.b32.xlu0 %v851, 4
        %v961 = vpop.permute.xlu0 %960
        %962 = vrot.lane.b32.xlu0 %v852, 4
        %v963 = vpop.permute.xlu0 %962
        %964 = vrot.lane.b32.xlu0 %v853, 4
        %v965 = vpop.permute.xlu0 %964
        %966 = vrot.lane.b32.xlu0 %v854, 4
        %v967 = vpop.permute.xlu0 %966
        %968 = vrot.lane.b32.xlu0 %v855, 4
        %v969 = vpop.permute.xlu0 %968
        %970 = vrot.lane.b32.xlu0 %v856, 4
        %v971 = vpop.permute.xlu0 %970
        %972 = vrot.lane.b32.xlu0 %v857, 4
        %v973 = vpop.permute.xlu0 %972
        %974 = vrot.lane.b32.xlu0 %v858, 4
        %v975 = vpop.permute.xlu0 %974
        %976 = vrot.lane.b32.xlu0 %v859, 4
        %v977 = vpop.permute.xlu0 %976
        %978 = vrot.lane.b32.xlu0 %v860, 4
        %v979 = vpop.permute.xlu0 %978
        %980 = vrot.lane.b32.xlu0 %v861, 4
        %v981 = vpop.permute.xlu0 %980
        %982 = vrot.lane.b32.xlu0 %v862, 4
        %v983 = vpop.permute.xlu0 %982
        %984 = vrot.lane.b32.xlu0 %v863, 4
        %v985 = vpop.permute.xlu0 %984
        %986 = vrot.lane.b32.xlu0 %v864, 4
        %v987 = vpop.permute.xlu0 %986
        %988 = vrot.lane.b32.xlu0 %v865, 4
        %v989 = vpop.permute.xlu0 %988
        %990 = vrot.lane.b32.xlu0 %v866, 4
        %v991 = vpop.permute.xlu0 %990
        %992 = vrot.lane.b32.xlu0 %v867, 4
        %v993 = vpop.permute.xlu0 %992
        %994 = vrot.lane.b32.xlu0 %v868, 4
        %v995 = vpop.permute.xlu0 %994
        %996 = vrot.lane.b32.xlu0 %v869, 4
        %v997 = vpop.permute.xlu0 %996
        %998 = vrot.lane.b32.xlu0 %v870, 4
        %v999 = vpop.permute.xlu0 %998
        %1064 = vrot.lane.b32.xlu0 %v872, 8
        %v1065 = vpop.permute.xlu0 %1064
        %1066 = vrot.lane.b32.xlu0 %v873, 8
        %v1067 = vpop.permute.xlu0 %1066
        %1068 = vrot.lane.b32.xlu0 %v874, 8
        %v1069 = vpop.permute.xlu0 %1068
        %1070 = vrot.lane.b32.xlu0 %v875, 8
        %v1071 = vpop.permute.xlu0 %1070
        %1072 = vrot.lane.b32.xlu0 %v876, 8
        %v1073 = vpop.permute.xlu0 %1072
        %1074 = vrot.lane.b32.xlu0 %v877, 8
        %v1075 = vpop.permute.xlu0 %1074
        %1076 = vrot.lane.b32.xlu0 %v878, 8
        %v1077 = vpop.permute.xlu0 %1076
        %1078 = vrot.lane.b32.xlu0 %v879, 8
        %v1079 = vpop.permute.xlu0 %1078
        %1080 = vrot.lane.b32.xlu0 %v880, 8
        %v1081 = vpop.permute.xlu0 %1080
        %1082 = vrot.lane.b32.xlu0 %v881, 8
        %v1083 = vpop.permute.xlu0 %1082
        %1084 = vrot.lane.b32.xlu0 %v882, 8
        %v1085 = vpop.permute.xlu0 %1084
        %1086 = vrot.lane.b32.xlu0 %v883, 8
        %v1087 = vpop.permute.xlu0 %1086
        %1088 = vrot.lane.b32.xlu0 %v884, 8
        %v1089 = vpop.permute.xlu0 %1088
        %1090 = vrot.lane.b32.xlu0 %v885, 8
        %v1091 = vpop.permute.xlu0 %1090
        %1092 = vrot.lane.b32.xlu0 %v886, 8
        %v1093 = vpop.permute.xlu0 %1092
        %1094 = vrot.lane.b32.xlu0 %v887, 8
        %v1095 = vpop.permute.xlu0 %1094
        %1096 = vrot.lane.b32.xlu0 %v888, 8
        %v1097 = vpop.permute.xlu0 %1096
        %1098 = vrot.lane.b32.xlu0 %v889, 8
        %v1099 = vpop.permute.xlu0 %1098
        %1100 = vrot.lane.b32.xlu0 %v890, 8
        %v1101 = vpop.permute.xlu0 %1100
        %1102 = vrot.lane.b32.xlu0 %v891, 8
        %v1103 = vpop.permute.xlu0 %1102
        %1104 = vrot.lane.b32.xlu0 %v892, 8
        %v1105 = vpop.permute.xlu0 %1104
        %1106 = vrot.lane.b32.xlu0 %v893, 8
        %v1107 = vpop.permute.xlu0 %1106
        %1108 = vrot.lane.b32.xlu0 %v894, 8
        %v1109 = vpop.permute.xlu0 %1108
        %1110 = vrot.lane.b32.xlu0 %v895, 8
        %v1111 = vpop.permute.xlu0 %1110
        %1112 = vrot.lane.b32.xlu0 %v896, 8
        %v1113 = vpop.permute.xlu0 %1112
        %1114 = vrot.lane.b32.xlu0 %v897, 8
        %v1115 = vpop.permute.xlu0 %1114
        %1116 = vrot.lane.b32.xlu0 %v898, 8
        %v1117 = vpop.permute.xlu0 %1116
        %1118 = vrot.lane.b32.xlu0 %v899, 8
        %v1119 = vpop.permute.xlu0 %1118
        %1120 = vrot.lane.b32.xlu0 %v900, 8
        %v1121 = vpop.permute.xlu0 %1120
        %1122 = vrot.lane.b32.xlu0 %v901, 8
        %v1123 = vpop.permute.xlu0 %1122
        %1124 = vrot.lane.b32.xlu0 %v902, 8
        %v1125 = vpop.permute.xlu0 %1124
        %1126 = vrot.lane.b32.xlu0 %v903, 8
        %v1127 = vpop.permute.xlu0 %1126
        %v1160 = vsel %vm371, %v807, %v937
        %v1161 = vsel %vm371, %v808, %v939
        %v1162 = vsel %vm371, %v809, %v941
        %v1163 = vsel %vm371, %v810, %v943
        %v1164 = vsel %vm371, %v811, %v945
        %v1165 = vsel %vm371, %v812, %v947
        %v1166 = vsel %vm371, %v813, %v949
        %v1167 = vsel %vm371, %v814, %v951
        %v1168 = vsel %vm371, %v815, %v953
        %v1169 = vsel %vm371, %v816, %v955
        %v1170 = vsel %vm371, %v817, %v957
        %v1171 = vsel %vm371, %v818, %v959
        %v1172 = vsel %vm371, %v819, %v961
        %v1173 = vsel %vm371, %v820, %v963
        %v1174 = vsel %vm371, %v821, %v965
        %v1175 = vsel %vm371, %v822, %v967
        %v1176 = vsel %vm371, %v823, %v969
        %v1177 = vsel %vm371, %v824, %v971
        %v1178 = vsel %vm371, %v825, %v973
        %v1179 = vsel %vm371, %v826, %v975
        %v1180 = vsel %vm371, %v827, %v977
        %v1181 = vsel %vm371, %v828, %v979
        %v1182 = vsel %vm371, %v829, %v981
        %v1183 = vsel %vm371, %v830, %v983
        %v1184 = vsel %vm371, %v831, %v985
        %v1185 = vsel %vm371, %v832, %v987
        %v1186 = vsel %vm371, %v833, %v989
        %v1187 = vsel %vm371, %v834, %v991
        %v1188 = vsel %vm371, %v835, %v993
        %v1189 = vsel %vm371, %v836, %v995
        %v1190 = vsel %vm371, %v837, %v997
        %v1191 = vsel %vm371, %v838, %v999
        %vm1192 = vcmask 64512
        %v1193 = vsel %vm1192, %v1160, %v1065
        %v1194 = vsel %vm1192, %v1161, %v1067
        %v1195 = vsel %vm1192, %v1162, %v1069
        %v1196 = vsel %vm1192, %v1163, %v1071
        %v1197 = vsel %vm1192, %v1164, %v1073
        %v1198 = vsel %vm1192, %v1165, %v1075
        %v1199 = vsel %vm1192, %v1166, %v1077
        %v1200 = vsel %vm1192, %v1167, %v1079
        %v1201 = vsel %vm1192, %v1168, %v1081
        %v1202 = vsel %vm1192, %v1169, %v1083
        %v1203 = vsel %vm1192, %v1170, %v1085
        %v1204 = vsel %vm1192, %v1171, %v1087
        %v1205 = vsel %vm1192, %v1172, %v1089
        %v1206 = vsel %vm1192, %v1173, %v1091
        %v1207 = vsel %vm1192, %v1174, %v1093
        %v1208 = vsel %vm1192, %v1175, %v1095
        %v1209 = vsel %vm1192, %v1176, %v1097
        %v1210 = vsel %vm1192, %v1177, %v1099
        %v1211 = vsel %vm1192, %v1178, %v1101
        %v1212 = vsel %vm1192, %v1179, %v1103
        %v1213 = vsel %vm1192, %v1180, %v1105
        %v1214 = vsel %vm1192, %v1181, %v1107
        %v1215 = vsel %vm1192, %v1182, %v1109
        %v1216 = vsel %vm1192, %v1183, %v1111
        %v1217 = vsel %vm1192, %v1184, %v1113
        %v1218 = vsel %vm1192, %v1185, %v1115
        %v1219 = vsel %vm1192, %v1186, %v1117
        %v1220 = vsel %vm1192, %v1187, %v1119
        %v1221 = vsel %vm1192, %v1188, %v1121
        %v1222 = vsel %vm1192, %v1189, %v1123
        %v1223 = vsel %vm1192, %v1190, %v1125
        %v1224 = vsel %vm1192, %v1191, %v1127
        %v1225 = vld [vmem:[%s3] sm:$0xff]
        %v1226 = vld [vmem:[%s3 + $0x8] sm:$0xf]
        %v1227 = vld [vmem:[#allocation2 + $0x1] sm:$0xff]
        %v1228 = vld [vmem:[#allocation2 + $0x9] sm:$0xff]
        %v1229 = vld [vmem:[#allocation2 + $0x19] sm:$0xff]
        %v1230 = vld [vmem:[#allocation2 + $0x21] sm:$0xff]
        %v1231 = vld [vmem:[#allocation2 + $0x31] sm:$0xff]
        %v1232 = vld [vmem:[#allocation2 + $0x39] sm:$0xff]
        %v1233 = vld [vmem:[#allocation2 + $0x49] sm:$0xff]
        %v1234 = vld [vmem:[#allocation2 + $0x51] sm:$0xff]
        %v1235 = vld [vmem:[#allocation2 + $0x61] sm:$0xff]
        %v1236 = vld [vmem:[#allocation2 + $0x69] sm:$0xff]
        %v1237 = vld [vmem:[#allocation2 + $0x79] sm:$0xff]
        %v1238 = vld [vmem:[#allocation2 + $0x81] sm:$0xff]
        %v1239 = vld [vmem:[#allocation2 + $0x91] sm:$0xff]
        %v1240 = vld [vmem:[#allocation2 + $0x99] sm:$0xff]
        %v1241 = vld [vmem:[#allocation2 + $0xa9] sm:$0xff]
        %v1242 = vld [vmem:[#allocation2 + $0xb1] sm:$0xff]
        %v1243 = vld [vmem:[#allocation2 + $0xc1] sm:$0xff]
        %v1244 = vld [vmem:[#allocation2 + $0xc9] sm:$0xff]
        %v1245 = vld [vmem:[#allocation2 + $0xd9] sm:$0xff]
        %v1246 = vld [vmem:[#allocation2 + $0xe1] sm:$0xff]
        %v1247 = vld [vmem:[#allocation2 + $0xf1] sm:$0xff]
        %v1248 = vld [vmem:[#allocation2 + $0xf9] sm:$0xff]
        %v1249 = vld [vmem:[#allocation2 + $0x109] sm:$0xff]
        %v1250 = vld [vmem:[#allocation2 + $0x111] sm:$0xff]
        %v1251 = vld [vmem:[#allocation2 + $0x121] sm:$0xff]
        %v1252 = vld [vmem:[#allocation2 + $0x129] sm:$0xff]
        %v1253 = vld [vmem:[#allocation2 + $0x139] sm:$0xff]
        %v1254 = vld [vmem:[#allocation2 + $0x141] sm:$0xff]
        %v1255 = vld [vmem:[#allocation2 + $0x151] sm:$0xff]
        %v1256 = vld [vmem:[#allocation2 + $0x159] sm:$0xff]
        %v1257 = vld [vmem:[#allocation2 + $0x169] sm:$0xff]
        %v1258 = vld [vmem:[#allocation2 + $0x171] sm:$0xff]
        %v1259 = vld [vmem:[%s774 + $0x1] sm:$0xff]
        %v1260 = vld [vmem:[%s774 + $0x9] sm:$0xff]
        %v1261 = vld [vmem:[%s774 + $0x19] sm:$0xff]
        %v1262 = vld [vmem:[%s774 + $0x21] sm:$0xff]
        %v1263 = vld [vmem:[%s774 + $0x31] sm:$0xff]
        %v1264 = vld [vmem:[%s774 + $0x39] sm:$0xff]
        %v1265 = vld [vmem:[%s774 + $0x49] sm:$0xff]
        %v1266 = vld [vmem:[%s774 + $0x51] sm:$0xff]
        %v1267 = vld [vmem:[%s774 + $0x61] sm:$0xff]
        %v1268 = vld [vmem:[%s774 + $0x69] sm:$0xff]
        %v1269 = vld [vmem:[%s774 + $0x79] sm:$0xff]
        %v1270 = vld [vmem:[%s774 + $0x81] sm:$0xff]
        %v1271 = vld [vmem:[%s774 + $0x91] sm:$0xff]
        %v1272 = vld [vmem:[%s774 + $0x99] sm:$0xff]
        %v1273 = vld [vmem:[%s774 + $0xa9] sm:$0xff]
        %v1274 = vld [vmem:[%s774 + $0xb1] sm:$0xff]
        %v1275 = vld [vmem:[%s774 + $0xc1] sm:$0xff]
        %v1276 = vld [vmem:[%s774 + $0xc9] sm:$0xff]
        %v1277 = vld [vmem:[%s774 + $0xd9] sm:$0xff]
        %v1278 = vld [vmem:[%s774 + $0xe1] sm:$0xff]
        %v1279 = vld [vmem:[%s774 + $0xf1] sm:$0xff]
        %v1280 = vld [vmem:[%s774 + $0xf9] sm:$0xff]
        %v1281 = vld [vmem:[%s774 + $0x109] sm:$0xff]
        %v1282 = vld [vmem:[%s774 + $0x111] sm:$0xff]
        %v1283 = vld [vmem:[%s774 + $0x121] sm:$0xff]
        %v1284 = vld [vmem:[%s774 + $0x129] sm:$0xff]
        %v1285 = vld [vmem:[%s774 + $0x139] sm:$0xff]
        %v1286 = vld [vmem:[%s774 + $0x141] sm:$0xff]
        %v1287 = vld [vmem:[%s774 + $0x151] sm:$0xff]
        %v1288 = vld [vmem:[%s774 + $0x159] sm:$0xff]
        %v1289 = vld [vmem:[%s774 + $0x169] sm:$0xff]
        %v1290 = vld [vmem:[%s774 + $0x171] sm:$0xff]
        %v1291 = vld [vmem:[%s871 + $0x1] sm:$0xff]
        %v1292 = vld [vmem:[%s871 + $0x9] sm:$0xff]
        %v1293 = vld [vmem:[%s871 + $0x19] sm:$0xff]
        %v1294 = vld [vmem:[%s871 + $0x21] sm:$0xff]
        %v1295 = vld [vmem:[%s871 + $0x31] sm:$0xff]
        %v1296 = vld [vmem:[%s871 + $0x39] sm:$0xff]
        %v1297 = vld [vmem:[%s871 + $0x49] sm:$0xff]
        %v1298 = vld [vmem:[%s871 + $0x51] sm:$0xff]
        %v1299 = vld [vmem:[%s871 + $0x61] sm:$0xff]
        %v1300 = vld [vmem:[%s871 + $0x69] sm:$0xff]
        %v1301 = vld [vmem:[%s871 + $0x79] sm:$0xff]
        %v1302 = vld [vmem:[%s871 + $0x81] sm:$0xff]
        %v1303 = vld [vmem:[%s871 + $0x91] sm:$0xff]
        %v1304 = vld [vmem:[%s871 + $0x99] sm:$0xff]
        %v1305 = vld [vmem:[%s871 + $0xa9] sm:$0xff]
        %v1306 = vld [vmem:[%s871 + $0xb1] sm:$0xff]
        %v1307 = vld [vmem:[%s871 + $0xc1] sm:$0xff]
        %v1308 = vld [vmem:[%s871 + $0xc9] sm:$0xff]
        %v1309 = vld [vmem:[%s871 + $0xd9] sm:$0xff]
        %v1310 = vld [vmem:[%s871 + $0xe1] sm:$0xff]
        %v1311 = vld [vmem:[%s871 + $0xf1] sm:$0xff]
        %v1312 = vld [vmem:[%s871 + $0xf9] sm:$0xff]
        %v1313 = vld [vmem:[%s871 + $0x109] sm:$0xff]
        %v1314 = vld [vmem:[%s871 + $0x111] sm:$0xff]
        %v1315 = vld [vmem:[%s871 + $0x121] sm:$0xff]
        %v1316 = vld [vmem:[%s871 + $0x129] sm:$0xff]
        %v1317 = vld [vmem:[%s871 + $0x139] sm:$0xff]
        %v1318 = vld [vmem:[%s871 + $0x141] sm:$0xff]
        %v1319 = vld [vmem:[%s871 + $0x151] sm:$0xff]
        %v1320 = vld [vmem:[%s871 + $0x159] sm:$0xff]
        %v1321 = vld [vmem:[%s871 + $0x169] sm:$0xff]
        %v1322 = vld [vmem:[%s871 + $0x171] sm:$0xff]
        %1355 = vrot.lane.b32.xlu0 %v1259, 4
        %v1356 = vpop.permute.xlu0 %1355
        %1357 = vrot.lane.b32.xlu0 %v1260, 4
        %v1358 = vpop.permute.xlu0 %1357
        %1359 = vrot.lane.b32.xlu0 %v1261, 4
        %v1360 = vpop.permute.xlu0 %1359
        %1361 = vrot.lane.b32.xlu0 %v1262, 4
        %v1362 = vpop.permute.xlu0 %1361
        %1363 = vrot.lane.b32.xlu0 %v1263, 4
        %v1364 = vpop.permute.xlu0 %1363
        %1365 = vrot.lane.b32.xlu0 %v1264, 4
        %v1366 = vpop.permute.xlu0 %1365
        %1367 = vrot.lane.b32.xlu0 %v1265, 4
        %v1368 = vpop.permute.xlu0 %1367
        %1369 = vrot.lane.b32.xlu0 %v1266, 4
        %v1370 = vpop.permute.xlu0 %1369
        %1371 = vrot.lane.b32.xlu0 %v1267, 4
        %v1372 = vpop.permute.xlu0 %1371
        %1373 = vrot.lane.b32.xlu0 %v1268, 4
        %v1374 = vpop.permute.xlu0 %1373
        %1375 = vrot.lane.b32.xlu0 %v1269, 4
        %v1376 = vpop.permute.xlu0 %1375
        %1377 = vrot.lane.b32.xlu0 %v1270, 4
        %v1378 = vpop.permute.xlu0 %1377
        %1379 = vrot.lane.b32.xlu0 %v1271, 4
        %v1380 = vpop.permute.xlu0 %1379
        %1381 = vrot.lane.b32.xlu0 %v1272, 4
        %v1382 = vpop.permute.xlu0 %1381
        %1383 = vrot.lane.b32.xlu0 %v1273, 4
        %v1384 = vpop.permute.xlu0 %1383
        %1385 = vrot.lane.b32.xlu0 %v1274, 4
        %v1386 = vpop.permute.xlu0 %1385
        %1387 = vrot.lane.b32.xlu0 %v1275, 4
        %v1388 = vpop.permute.xlu0 %1387
        %1389 = vrot.lane.b32.xlu0 %v1276, 4
        %v1390 = vpop.permute.xlu0 %1389
        %1391 = vrot.lane.b32.xlu0 %v1277, 4
        %v1392 = vpop.permute.xlu0 %1391
        %1393 = vrot.lane.b32.xlu0 %v1278, 4
        %v1394 = vpop.permute.xlu0 %1393
        %1395 = vrot.lane.b32.xlu0 %v1279, 4
        %v1396 = vpop.permute.xlu0 %1395
        %1397 = vrot.lane.b32.xlu0 %v1280, 4
        %v1398 = vpop.permute.xlu0 %1397
        %1399 = vrot.lane.b32.xlu0 %v1281, 4
        %v1400 = vpop.permute.xlu0 %1399
        %1401 = vrot.lane.b32.xlu0 %v1282, 4
        %v1402 = vpop.permute.xlu0 %1401
        %1403 = vrot.lane.b32.xlu0 %v1283, 4
        %v1404 = vpop.permute.xlu0 %1403
        %1405 = vrot.lane.b32.xlu0 %v1284, 4
        %v1406 = vpop.permute.xlu0 %1405
        %1407 = vrot.lane.b32.xlu0 %v1285, 4
        %v1408 = vpop.permute.xlu0 %1407
        %1409 = vrot.lane.b32.xlu0 %v1286, 4
        %v1410 = vpop.permute.xlu0 %1409
        %1411 = vrot.lane.b32.xlu0 %v1287, 4
        %v1412 = vpop.permute.xlu0 %1411
        %1413 = vrot.lane.b32.xlu0 %v1288, 4
        %v1414 = vpop.permute.xlu0 %1413
        %1415 = vrot.lane.b32.xlu0 %v1289, 4
        %v1416 = vpop.permute.xlu0 %1415
        %1417 = vrot.lane.b32.xlu0 %v1290, 4
        %v1418 = vpop.permute.xlu0 %1417
        %1483 = vrot.lane.b32.xlu0 %v1291, 8
        %v1484 = vpop.permute.xlu0 %1483
        %1485 = vrot.lane.b32.xlu0 %v1292, 8
        %v1486 = vpop.permute.xlu0 %1485
        %1487 = vrot.lane.b32.xlu0 %v1293, 8
        %v1488 = vpop.permute.xlu0 %1487
        %1489 = vrot.lane.b32.xlu0 %v1294, 8
        %v1490 = vpop.permute.xlu0 %1489
        %1491 = vrot.lane.b32.xlu0 %v1295, 8
        %v1492 = vpop.permute.xlu0 %1491
        %1493 = vrot.lane.b32.xlu0 %v1296, 8
        %v1494 = vpop.permute.xlu0 %1493
        %1495 = vrot.lane.b32.xlu0 %v1297, 8
        %v1496 = vpop.permute.xlu0 %1495
        %1497 = vrot.lane.b32.xlu0 %v1298, 8
        %v1498 = vpop.permute.xlu0 %1497
        %1499 = vrot.lane.b32.xlu0 %v1299, 8
        %v1500 = vpop.permute.xlu0 %1499
        %1501 = vrot.lane.b32.xlu0 %v1300, 8
        %v1502 = vpop.permute.xlu0 %1501
        %1503 = vrot.lane.b32.xlu0 %v1301, 8
        %v1504 = vpop.permute.xlu0 %1503
        %1505 = vrot.lane.b32.xlu0 %v1302, 8
        %v1506 = vpop.permute.xlu0 %1505
        %1507 = vrot.lane.b32.xlu0 %v1303, 8
        %v1508 = vpop.permute.xlu0 %1507
        %1509 = vrot.lane.b32.xlu0 %v1304, 8
        %v1510 = vpop.permute.xlu0 %1509
        %1511 = vrot.lane.b32.xlu0 %v1305, 8
        %v1512 = vpop.permute.xlu0 %1511
        %1513 = vrot.lane.b32.xlu0 %v1306, 8
        %v1514 = vpop.permute.xlu0 %1513
        %1515 = vrot.lane.b32.xlu0 %v1307, 8
        %v1516 = vpop.permute.xlu0 %1515
        %1517 = vrot.lane.b32.xlu0 %v1308, 8
        %v1518 = vpop.permute.xlu0 %1517
        %1519 = vrot.lane.b32.xlu0 %v1309, 8
        %v1520 = vpop.permute.xlu0 %1519
        %1521 = vrot.lane.b32.xlu0 %v1310, 8
        %v1522 = vpop.permute.xlu0 %1521
        %1523 = vrot.lane.b32.xlu0 %v1311, 8
        %v1524 = vpop.permute.xlu0 %1523
        %1525 = vrot.lane.b32.xlu0 %v1312, 8
        %v1526 = vpop.permute.xlu0 %1525
        %1527 = vrot.lane.b32.xlu0 %v1313, 8
        %v1528 = vpop.permute.xlu0 %1527
        %1529 = vrot.lane.b32.xlu0 %v1314, 8
        %v1530 = vpop.permute.xlu0 %1529
        %1531 = vrot.lane.b32.xlu0 %v1315, 8
        %v1532 = vpop.permute.xlu0 %1531
        %1533 = vrot.lane.b32.xlu0 %v1316, 8
        %v1534 = vpop.permute.xlu0 %1533
        %1535 = vrot.lane.b32.xlu0 %v1317, 8
        %v1536 = vpop.permute.xlu0 %1535
        %1537 = vrot.lane.b32.xlu0 %v1318, 8
        %v1538 = vpop.permute.xlu0 %1537
        %1539 = vrot.lane.b32.xlu0 %v1319, 8
        %v1540 = vpop.permute.xlu0 %1539
        %1541 = vrot.lane.b32.xlu0 %v1320, 8
        %v1542 = vpop.permute.xlu0 %1541
        %1543 = vrot.lane.b32.xlu0 %v1321, 8
        %v1544 = vpop.permute.xlu0 %1543
        %1545 = vrot.lane.b32.xlu0 %v1322, 8
        %v1546 = vpop.permute.xlu0 %1545
        %v1579 = vsel %vm371, %v1227, %v1356
        %v1580 = vsel %vm371, %v1228, %v1358
        %v1581 = vsel %vm371, %v1229, %v1360
        %v1582 = vsel %vm371, %v1230, %v1362
        %v1583 = vsel %vm371, %v1231, %v1364
        %v1584 = vsel %vm371, %v1232, %v1366
        %v1585 = vsel %vm371, %v1233, %v1368
        %v1586 = vsel %vm371, %v1234, %v1370
        %v1587 = vsel %vm371, %v1235, %v1372
        %v1588 = vsel %vm371, %v1236, %v1374
        %v1589 = vsel %vm371, %v1237, %v1376
        %v1590 = vsel %vm371, %v1238, %v1378
        %v1591 = vsel %vm371, %v1239, %v1380
        %v1592 = vsel %vm371, %v1240, %v1382
        %v1593 = vsel %vm371, %v1241, %v1384
        %v1594 = vsel %vm371, %v1242, %v1386
        %v1595 = vsel %vm371, %v1243, %v1388
        %v1596 = vsel %vm371, %v1244, %v1390
        %v1597 = vsel %vm371, %v1245, %v1392
        %v1598 = vsel %vm371, %v1246, %v1394
        %v1599 = vsel %vm371, %v1247, %v1396
        %v1600 = vsel %vm371, %v1248, %v1398
        %v1601 = vsel %vm371, %v1249, %v1400
        %v1602 = vsel %vm371, %v1250, %v1402
        %v1603 = vsel %vm371, %v1251, %v1404
        %v1604 = vsel %vm371, %v1252, %v1406
        %v1605 = vsel %vm371, %v1253, %v1408
        %v1606 = vsel %vm371, %v1254, %v1410
        %v1607 = vsel %vm371, %v1255, %v1412
        %v1608 = vsel %vm371, %v1256, %v1414
        %v1609 = vsel %vm371, %v1257, %v1416
        %v1610 = vsel %vm371, %v1258, %v1418
        %v1611 = vsel %vm1192, %v1579, %v1484
        %v1612 = vsel %vm1192, %v1580, %v1486
        %v1613 = vsel %vm1192, %v1581, %v1488
        %v1614 = vsel %vm1192, %v1582, %v1490
        %v1615 = vsel %vm1192, %v1583, %v1492
        %v1616 = vsel %vm1192, %v1584, %v1494
        %v1617 = vsel %vm1192, %v1585, %v1496
        %v1618 = vsel %vm1192, %v1586, %v1498
        %v1619 = vsel %vm1192, %v1587, %v1500
        %v1620 = vsel %vm1192, %v1588, %v1502
        %v1621 = vsel %vm1192, %v1589, %v1504
        %v1622 = vsel %vm1192, %v1590, %v1506
        %v1623 = vsel %vm1192, %v1591, %v1508
        %v1624 = vsel %vm1192, %v1592, %v1510
        %v1625 = vsel %vm1192, %v1593, %v1512
        %v1626 = vsel %vm1192, %v1594, %v1514
        %v1627 = vsel %vm1192, %v1595, %v1516
        %v1628 = vsel %vm1192, %v1596, %v1518
        %v1629 = vsel %vm1192, %v1597, %v1520
        %v1630 = vsel %vm1192, %v1598, %v1522
        %v1631 = vsel %vm1192, %v1599, %v1524
        %v1632 = vsel %vm1192, %v1600, %v1526
        %v1633 = vsel %vm1192, %v1601, %v1528
        %v1634 = vsel %vm1192, %v1602, %v1530
        %v1635 = vsel %vm1192, %v1603, %v1532
        %v1636 = vsel %vm1192, %v1604, %v1534
        %v1637 = vsel %vm1192, %v1605, %v1536
        %v1638 = vsel %vm1192, %v1606, %v1538
        %v1639 = vsel %vm1192, %v1607, %v1540
        %v1640 = vsel %vm1192, %v1608, %v1542
        %v1641 = vsel %vm1192, %v1609, %v1544
        %v1642 = vsel %vm1192, %v1610, %v1546
        %s1643 = scalar_lea.vmem %s3, 16
        %v1644 = vld [vmem:[%s1643] sm:$0xff]
        %v1645 = vld [vmem:[%s1643 + $0x8] sm:$0xf]
        %vm1646 = vcmask 97280
        %v1648 = vsel %vm1646, %v1611, 0
        %v1651 = vsel %vm1646, %v1612, 0
        %v1654 = vsel %vm1646, %v1613, 0
        %v1657 = vsel %vm1646, %v1614, 0
        %v1660 = vsel %vm1646, %v1615, 0
        %v1663 = vsel %vm1646, %v1616, 0
        %v1666 = vsel %vm1646, %v1617, 0
        %v1669 = vsel %vm1646, %v1618, 0
        %v1672 = vsel %vm1646, %v1619, 0
        %v1675 = vsel %vm1646, %v1620, 0
        %v1678 = vsel %vm1646, %v1621, 0
        %v1681 = vsel %vm1646, %v1622, 0
        %v1684 = vsel %vm1646, %v1623, 0
        %v1687 = vsel %vm1646, %v1624, 0
        %v1690 = vsel %vm1646, %v1625, 0
        %v1693 = vsel %vm1646, %v1626, 0
        %v1696 = vsel %vm1646, %v1627, 0
        %v1699 = vsel %vm1646, %v1628, 0
        %v1702 = vsel %vm1646, %v1629, 0
        %v1705 = vsel %vm1646, %v1630, 0
        %v1708 = vsel %vm1646, %v1631, 0
        %v1711 = vsel %vm1646, %v1632, 0
        %v1714 = vsel %vm1646, %v1633, 0
        %v1717 = vsel %vm1646, %v1634, 0
        %v1720 = vsel %vm1646, %v1635, 0
        %v1723 = vsel %vm1646, %v1636, 0
        %v1726 = vsel %vm1646, %v1637, 0
        %v1729 = vsel %vm1646, %v1638, 0
        %v1732 = vsel %vm1646, %v1639, 0
        %v1735 = vsel %vm1646, %v1640, 0
        %v1738 = vsel %vm1646, %v1641, 0
        %v1741 = vsel %vm1646, %v1642, 0
        %v1744 = vsel %vm468, %v1645, 0
        %1746 = vmatprep.subr.mxu0 0.0
        %1747 = vmatpush1.msra.mxu0 %v1644
        %1748 = vmatprep.subr.mxu0 0.0
        %1749 = vmatpush1.msra.mxu0 %v1744
        %1750 = vmatprep.subr.mxu0 0.0
        %1751 = vmatpush1.msra.mxu0 0.0
        %1752 = vmatprep.subr.mxu0 0.0
        %1753 = vmatpush1.msra.mxu0 0.0
        %1754 = vmatprep.subr.mxu0 0.0
        %1755 = vmatpush1.msra.mxu0 0.0
        %1756 = vmatprep.subr.mxu0 0.0
        %1757 = vmatpush1.msra.mxu0 0.0
        %1758 = vmatprep.subr.mxu0 0.0
        %1759 = vmatpush1.msra.mxu0 0.0
        %1760 = vmatprep.subr.mxu0 0.0
        %1761 = vmatpush1.msra.mxu0 0.0
        %1762 = vmatprep.subr.mxu0 0.0
        %1763 = vmatpush1.msra.mxu0 0.0
        %1764 = vmatprep.subr.mxu0 0.0
        %1765 = vmatpush1.msra.mxu0 0.0
        %1766 = vmatprep.subr.mxu0 0.0
        %1767 = vmatpush1.msra.mxu0 0.0
        %1768 = vmatprep.subr.mxu0 0.0
        %1769 = vmatpush1.msra.mxu0 0.0
        %1770 = vmatprep.subr.mxu0 0.0
        %1771 = vmatpush1.msra.mxu0 0.0
        %1772 = vmatprep.subr.mxu0 0.0
        %1773 = vmatpush1.msra.mxu0 0.0
        %1774 = vmatprep.subr.mxu0 0.0
        %1775 = vmatpush1.msra.mxu0 0.0
        %1776 = vmatprep.subr.mxu0 0.0
        %1777 = vmatpush1.msra.mxu0 0.0
        %1778 = vmatprep.subr.mxu0 0.0
        %1779 = vmatpush1.msra.mxu0 0.0
        %1780 = vmatprep.subr.mxu0 0.0
        %1781 = vmatpush1.msra.mxu0 0.0
        %1782 = vmatprep.subr.mxu0 0.0
        %1783 = vmatpush1.msra.mxu0 0.0
        %1784 = vmatprep.subr.mxu0 0.0
        %1785 = vmatpush1.msra.mxu0 0.0
        %1786 = vmatprep.subr.mxu0 0.0
        %1787 = vmatpush1.msra.mxu0 0.0
        %1788 = vmatprep.subr.mxu0 0.0
        %1789 = vmatpush1.msra.mxu0 0.0
        %1790 = vmatprep.subr.mxu0 0.0
        %1791 = vmatpush1.msra.mxu0 0.0
        %1792 = vmatprep.subr.mxu0 0.0
        %1793 = vmatpush1.msra.mxu0 0.0
        %1794 = vmatprep.subr.mxu0 0.0
        %1795 = vmatpush1.msra.mxu0 0.0
        %1796 = vmatprep.subr.mxu0 0.0
        %1797 = vmatpush1.msra.mxu0 0.0
        %1798 = vmatprep.subr.mxu0 0.0
        %1799 = vmatpush1.msra.mxu0 0.0
        %1800 = vmatprep.subr.mxu0 0.0
        %1801 = vmatpush1.msra.mxu0 0.0
        %1802 = vmatprep.subr.mxu0 0.0
        %1803 = vmatpush1.msra.mxu0 0.0
        %1804 = vmatprep.subr.mxu0 0.0
        %1805 = vmatpush1.msra.mxu0 0.0
        %1806 = vmatprep.subr.mxu0 0.0
        %1807 = vmatpush1.msra.mxu0 0.0
        %1808 = vmatprep.subr.mxu0 0.0
        %1809 = vmatpush1.msra.mxu0 0.0
        %1810 = vmatprep.mubr.f32.mxu0 0.0
        %1811 = vmatmul.mubr.f32.gmra.mrb[0].mxu0 %v1648
        %v1812 = vpop.f32.mrb[0].mxu0
        %v1813 = vadd.f32 0.0, %v1812
        %v1814 = vpop.f32.mrb[0].mxu0
        %1815 = vmatprep.mubr.f32.mxu0 0.0
        %1816 = vmatmul.mubr.f32.gmra.mrb[0].mxu0 %v1651
        %v1817 = vpop.f32.mrb[0].mxu0
        %v1818 = vadd.f32 0.0, %v1817
        %v1819 = vpop.f32.mrb[0].mxu0
        %1820 = vmatprep.mubr.f32.mxu0 0.0
        %1821 = vmatmul.mubr.f32.gmra.mrb[0].mxu0 %v1654
        %v1822 = vpop.f32.mrb[0].mxu0
        %v1823 = vadd.f32 0.0, %v1822
        %v1824 = vpop.f32.mrb[0].mxu0
        %1825 = vmatprep.mubr.f32.mxu0 0.0
        %1826 = vmatmul.mubr.f32.gmra.mrb[0].mxu0 %v1657
        %v1827 = vpop.f32.mrb[0].mxu0
        %v1828 = vadd.f32 0.0, %v1827
        %v1829 = vpop.f32.mrb[0].mxu0
        %1830 = vmatprep.mubr.f32.mxu0 0.0
        %1831 = vmatmul.mubr.f32.gmra.mrb[0].mxu0 %v1660
        %v1832 = vpop.f32.mrb[0].mxu0
        %v1833 = vadd.f32 0.0, %v1832
        %v1834 = vpop.f32.mrb[0].mxu0
        %1835 = vmatprep.mubr.f32.mxu0 0.0
        %1836 = vmatmul.mubr.f32.gmra.mrb[0].mxu0 %v1663
        %v1837 = vpop.f32.mrb[0].mxu0
        %v1838 = vadd.f32 0.0, %v1837
        %v1839 = vpop.f32.mrb[0].mxu0
        %1840 = vmatprep.mubr.f32.mxu0 0.0
        %1841 = vmatmul.mubr.f32.gmra.mrb[0].mxu0 %v1666
        %v1842 = vpop.f32.mrb[0].mxu0
        %v1843 = vadd.f32 0.0, %v1842
        %v1844 = vpop.f32.mrb[0].mxu0
        %1845 = vmatprep.mubr.f32.mxu0 0.0
        %1846 = vmatmul.mubr.f32.gmra.mrb[0].mxu0 %v1669
        %v1847 = vpop.f32.mrb[0].mxu0
        %v1848 = vadd.f32 0.0, %v1847
        %v1849 = vpop.f32.mrb[0].mxu0
        %1850 = vmatprep.mubr.f32.mxu0 0.0
        %1851 = vmatmul.mubr.f32.gmra.mrb[0].mxu0 %v1672
        %v1852 = vpop.f32.mrb[0].mxu0
        %v1853 = vadd.f32 0.0, %v1852
        %v1854 = vpop.f32.mrb[0].mxu0
        %1855 = vmatprep.mubr.f32.mxu0 0.0
        %1856 = vmatmul.mubr.f32.gmra.mrb[0].mxu0 %v1675
        %v1857 = vpop.f32.mrb[0].mxu0
        %v1858 = vadd.f32 0.0, %v1857
        %v1859 = vpop.f32.mrb[0].mxu0
        %1860 = vmatprep.mubr.f32.mxu0 0.0
        %1861 = vmatmul.mubr.f32.gmra.mrb[0].mxu0 %v1678
        %v1862 = vpop.f32.mrb[0].mxu0
        %v1863 = vadd.f32 0.0, %v1862
        %v1864 = vpop.f32.mrb[0].mxu0
        %1865 = vmatprep.mubr.f32.mxu0 0.0
        %1866 = vmatmul.mubr.f32.gmra.mrb[0].mxu0 %v1681
        %v1867 = vpop.f32.mrb[0].mxu0
        %v1868 = vadd.f32 0.0, %v1867
        %v1869 = vpop.f32.mrb[0].mxu0
        %1870 = vmatprep.mubr.f32.mxu0 0.0
        %1871 = vmatmul.mubr.f32.gmra.mrb[0].mxu0 %v1684
        %v1872 = vpop.f32.mrb[0].mxu0
        %v1873 = vadd.f32 0.0, %v1872
        %v1874 = vpop.f32.mrb[0].mxu0
        %1875 = vmatprep.mubr.f32.mxu0 0.0
        %1876 = vmatmul.mubr.f32.gmra.mrb[0].mxu0 %v1687
        %v1877 = vpop.f32.mrb[0].mxu0
        %v1878 = vadd.f32 0.0, %v1877
        %v1879 = vpop.f32.mrb[0].mxu0
        %1880 = vmatprep.mubr.f32.mxu0 0.0
        %1881 = vmatmul.mubr.f32.gmra.mrb[0].mxu0 %v1690
        %v1882 = vpop.f32.mrb[0].mxu0
        %v1883 = vadd.f32 0.0, %v1882
        %v1884 = vpop.f32.mrb[0].mxu0
        %1885 = vmatprep.mubr.f32.mxu0 0.0
        %1886 = vmatmul.mubr.f32.gmra.mrb[0].mxu0 %v1693
        %v1887 = vpop.f32.mrb[0].mxu0
        %v1888 = vadd.f32 0.0, %v1887
        %v1889 = vpop.f32.mrb[0].mxu0
        %1890 = vmatprep.mubr.f32.mxu0 0.0
        %1891 = vmatmul.mubr.f32.gmra.mrb[0].mxu0 %v1696
        %v1892 = vpop.f32.mrb[0].mxu0
        %v1893 = vadd.f32 0.0, %v1892
        %v1894 = vpop.f32.mrb[0].mxu0
        %1895 = vmatprep.mubr.f32.mxu0 0.0
        %1896 = vmatmul.mubr.f32.gmra.mrb[0].mxu0 %v1699
        %v1897 = vpop.f32.mrb[0].mxu0
        %v1898 = vadd.f32 0.0, %v1897
        %v1899 = vpop.f32.mrb[0].mxu0
        %1900 = vmatprep.mubr.f32.mxu0 0.0
        %1901 = vmatmul.mubr.f32.gmra.mrb[0].mxu0 %v1702
        %v1902 = vpop.f32.mrb[0].mxu0
        %v1903 = vadd.f32 0.0, %v1902
        %v1904 = vpop.f32.mrb[0].mxu0
        %1905 = vmatprep.mubr.f32.mxu0 0.0
        %1906 = vmatmul.mubr.f32.gmra.mrb[0].mxu0 %v1705
        %v1907 = vpop.f32.mrb[0].mxu0
        %v1908 = vadd.f32 0.0, %v1907
        %v1909 = vpop.f32.mrb[0].mxu0
        %1910 = vmatprep.mubr.f32.mxu0 0.0
        %1911 = vmatmul.mubr.f32.gmra.mrb[0].mxu0 %v1708
        %v1912 = vpop.f32.mrb[0].mxu0
        %v1913 = vadd.f32 0.0, %v1912
        %v1914 = vpop.f32.mrb[0].mxu0
        %1915 = vmatprep.mubr.f32.mxu0 0.0
        %1916 = vmatmul.mubr.f32.gmra.mrb[0].mxu0 %v1711
        %v1917 = vpop.f32.mrb[0].mxu0
        %v1918 = vadd.f32 0.0, %v1917
        %v1919 = vpop.f32.mrb[0].mxu0
        %1920 = vmatprep.mubr.f32.mxu0 0.0
        %1921 = vmatmul.mubr.f32.gmra.mrb[0].mxu0 %v1714
        %v1922 = vpop.f32.mrb[0].mxu0
        %v1923 = vadd.f32 0.0, %v1922
        %v1924 = vpop.f32.mrb[0].mxu0
        %1925 = vmatprep.mubr.f32.mxu0 0.0
        %1926 = vmatmul.mubr.f32.gmra.mrb[0].mxu0 %v1717
        %v1927 = vpop.f32.mrb[0].mxu0
        %v1928 = vadd.f32 0.0, %v1927
        %v1929 = vpop.f32.mrb[0].mxu0
        %1930 = vmatprep.mubr.f32.mxu0 0.0
        %1931 = vmatmul.mubr.f32.gmra.mrb[0].mxu0 %v1720
        %v1932 = vpop.f32.mrb[0].mxu0
        %v1933 = vadd.f32 0.0, %v1932
        %v1934 = vpop.f32.mrb[0].mxu0
        %1935 = vmatprep.mubr.f32.mxu0 0.0
        %1936 = vmatmul.mubr.f32.gmra.mrb[0].mxu0 %v1723
        %v1937 = vpop.f32.mrb[0].mxu0
        %v1938 = vadd.f32 0.0, %v1937
        %v1939 = vpop.f32.mrb[0].mxu0
        %1940 = vmatprep.mubr.f32.mxu0 0.0
        %1941 = vmatmul.mubr.f32.gmra.mrb[0].mxu0 %v1726
        %v1942 = vpop.f32.mrb[0].mxu0
        %v1943 = vadd.f32 0.0, %v1942
        %v1944 = vpop.f32.mrb[0].mxu0
        %1945 = vmatprep.mubr.f32.mxu0 0.0
        %1946 = vmatmul.mubr.f32.gmra.mrb[0].mxu0 %v1729
        %v1947 = vpop.f32.mrb[0].mxu0
        %v1948 = vadd.f32 0.0, %v1947
        %v1949 = vpop.f32.mrb[0].mxu0
        %1950 = vmatprep.mubr.f32.mxu0 0.0
        %1951 = vmatmul.mubr.f32.gmra.mrb[0].mxu0 %v1732
        %v1952 = vpop.f32.mrb[0].mxu0
        %v1953 = vadd.f32 0.0, %v1952
        %v1954 = vpop.f32.mrb[0].mxu0
        %1955 = vmatprep.mubr.f32.mxu0 0.0
        %1956 = vmatmul.mubr.f32.gmra.mrb[0].mxu0 %v1735
        %v1957 = vpop.f32.mrb[0].mxu0
        %v1958 = vadd.f32 0.0, %v1957
        %v1959 = vpop.f32.mrb[0].mxu0
        %1960 = vmatprep.mubr.f32.mxu0 0.0
        %1961 = vmatmul.mubr.f32.gmra.mrb[0].mxu0 %v1738
        %v1962 = vpop.f32.mrb[0].mxu0
        %v1963 = vadd.f32 0.0, %v1962
        %v1964 = vpop.f32.mrb[0].mxu0
        %1965 = vmatprep.mubr.f32.mxu0 0.0
        %1966 = vmatmul.mubr.f32.gmra.mrb[0].mxu0 %v1741
        %v1967 = vpop.f32.mrb[0].mxu0
        %v1968 = vadd.f32 0.0, %v1967
        %v1969 = vpop.f32.mrb[0].mxu0
        %1970 = vdwg.mxu0
        %v1972 = vsel %vm1646, %v1193, 0
        %v1975 = vsel %vm1646, %v1194, 0
        %v1978 = vsel %vm1646, %v1195, 0
        %v1981 = vsel %vm1646, %v1196, 0
        %v1984 = vsel %vm1646, %v1197, 0
        %v1987 = vsel %vm1646, %v1198, 0
        %v1990 = vsel %vm1646, %v1199, 0
        %v1993 = vsel %vm1646, %v1200, 0
        %v1996 = vsel %vm1646, %v1201, 0
        %v1999 = vsel %vm1646, %v1202, 0
        %v2002 = vsel %vm1646, %v1203, 0
        %v2005 = vsel %vm1646, %v1204, 0
        %v2008 = vsel %vm1646, %v1205, 0
        %v2011 = vsel %vm1646, %v1206, 0
        %v2014 = vsel %vm1646, %v1207, 0
        %v2017 = vsel %vm1646, %v1208, 0
        %v2020 = vsel %vm1646, %v1209, 0
        %v2023 = vsel %vm1646, %v1210, 0
        %v2026 = vsel %vm1646, %v1211, 0
        %v2029 = vsel %vm1646, %v1212, 0
        %v2032 = vsel %vm1646, %v1213, 0
        %v2035 = vsel %vm1646, %v1214, 0
        %v2038 = vsel %vm1646, %v1215, 0
        %v2041 = vsel %vm1646, %v1216, 0
        %v2044 = vsel %vm1646, %v1217, 0
        %v2047 = vsel %vm1646, %v1218, 0
        %v2050 = vsel %vm1646, %v1219, 0
        %v2053 = vsel %vm1646, %v1220, 0
        %v2056 = vsel %vm1646, %v1221, 0
        %v2059 = vsel %vm1646, %v1222, 0
        %v2062 = vsel %vm1646, %v1223, 0
        %v2065 = vsel %vm1646, %v1224, 0
        %v2068 = vsel %vm468, %v1226, 0
        %2070 = vmatprep.subr.mxu0 0.0
        %2071 = vmatpush1.msra.mxu0 %v1225
        %2072 = vmatprep.subr.mxu0 0.0
        %2073 = vmatpush1.msra.mxu0 %v2068
        %2074 = vmatprep.subr.mxu0 0.0
        %2075 = vmatpush1.msra.mxu0 0.0
        %2076 = vmatprep.subr.mxu0 0.0
        %2077 = vmatpush1.msra.mxu0 0.0
        %2078 = vmatprep.subr.mxu0 0.0
        %2079 = vmatpush1.msra.mxu0 0.0
        %2080 = vmatprep.subr.mxu0 0.0
        %2081 = vmatpush1.msra.mxu0 0.0
        %2082 = vmatprep.subr.mxu0 0.0
        %2083 = vmatpush1.msra.mxu0 0.0
        %2084 = vmatprep.subr.mxu0 0.0
        %2085 = vmatpush1.msra.mxu0 0.0
        %2086 = vmatprep.subr.mxu0 0.0
        %2087 = vmatpush1.msra.mxu0 0.0
        %2088 = vmatprep.subr.mxu0 0.0
        %2089 = vmatpush1.msra.mxu0 0.0
        %2090 = vmatprep.subr.mxu0 0.0
        %2091 = vmatpush1.msra.mxu0 0.0
        %2092 = vmatprep.subr.mxu0 0.0
        %2093 = vmatpush1.msra.mxu0 0.0
        %2094 = vmatprep.subr.mxu0 0.0
        %2095 = vmatpush1.msra.mxu0 0.0
        %2096 = vmatprep.subr.mxu0 0.0
        %2097 = vmatpush1.msra.mxu0 0.0
        %2098 = vmatprep.subr.mxu0 0.0
        %2099 = vmatpush1.msra.mxu0 0.0
        %2100 = vmatprep.subr.mxu0 0.0
        %2101 = vmatpush1.msra.mxu0 0.0
        %2102 = vmatprep.subr.mxu0 0.0
        %2103 = vmatpush1.msra.mxu0 0.0
        %2104 = vmatprep.subr.mxu0 0.0
        %2105 = vmatpush1.msra.mxu0 0.0
        %2106 = vmatprep.subr.mxu0 0.0
        %2107 = vmatpush1.msra.mxu0 0.0
        %2108 = vmatprep.subr.mxu0 0.0
        %2109 = vmatpush1.msra.mxu0 0.0
        %2110 = vmatprep.subr.mxu0 0.0
        %2111 = vmatpush1.msra.mxu0 0.0
        %2112 = vmatprep.subr.mxu0 0.0
        %2113 = vmatpush1.msra.mxu0 0.0
        %2114 = vmatprep.subr.mxu0 0.0
        %2115 = vmatpush1.msra.mxu0 0.0
        %2116 = vmatprep.subr.mxu0 0.0
        %2117 = vmatpush1.msra.mxu0 0.0
        %2118 = vmatprep.subr.mxu0 0.0
        %2119 = vmatpush1.msra.mxu0 0.0
        %2120 = vmatprep.subr.mxu0 0.0
        %2121 = vmatpush1.msra.mxu0 0.0
        %2122 = vmatprep.subr.mxu0 0.0
        %2123 = vmatpush1.msra.mxu0 0.0
        %2124 = vmatprep.subr.mxu0 0.0
        %2125 = vmatpush1.msra.mxu0 0.0
        %2126 = vmatprep.subr.mxu0 0.0
        %2127 = vmatpush1.msra.mxu0 0.0
        %2128 = vmatprep.subr.mxu0 0.0
        %2129 = vmatpush1.msra.mxu0 0.0
        %2130 = vmatprep.subr.mxu0 0.0
        %2131 = vmatpush1.msra.mxu0 0.0
        %2132 = vmatprep.subr.mxu0 0.0
        %2133 = vmatpush1.msra.mxu0 0.0
        %2134 = vmatprep.mubr.f32.mxu0 0.0
        %2135 = vmatmul.mubr.f32.gmra.mrb[0].mxu0 %v1972
        %v2136 = vpop.f32.mrb[0].mxu0
        %v2137 = vadd.f32 %v1813, %v2136
        %v2138 = vpop.f32.mrb[0].mxu0
        %2139 = vmatprep.mubr.f32.mxu0 0.0
        %2140 = vmatmul.mubr.f32.gmra.mrb[0].mxu0 %v1975
        %v2141 = vpop.f32.mrb[0].mxu0
        %v2142 = vadd.f32 %v1818, %v2141
        %v2143 = vpop.f32.mrb[0].mxu0
        %2144 = vmatprep.mubr.f32.mxu0 0.0
        %2145 = vmatmul.mubr.f32.gmra.mrb[0].mxu0 %v1978
        %v2146 = vpop.f32.mrb[0].mxu0
        %v2147 = vadd.f32 %v1823, %v2146
        %v2148 = vpop.f32.mrb[0].mxu0
        %2149 = vmatprep.mubr.f32.mxu0 0.0
        %2150 = vmatmul.mubr.f32.gmra.mrb[0].mxu0 %v1981
        %v2151 = vpop.f32.mrb[0].mxu0
        %v2152 = vadd.f32 %v1828, %v2151
        %v2153 = vpop.f32.mrb[0].mxu0
        %2154 = vmatprep.mubr.f32.mxu0 0.0
        %2155 = vmatmul.mubr.f32.gmra.mrb[0].mxu0 %v1984
        %v2156 = vpop.f32.mrb[0].mxu0
        %v2157 = vadd.f32 %v1833, %v2156
        %v2158 = vpop.f32.mrb[0].mxu0
        %2159 = vmatprep.mubr.f32.mxu0 0.0
        %2160 = vmatmul.mubr.f32.gmra.mrb[0].mxu0 %v1987
        %v2161 = vpop.f32.mrb[0].mxu0
        %v2162 = vadd.f32 %v1838, %v2161
        %v2163 = vpop.f32.mrb[0].mxu0
        %2164 = vmatprep.mubr.f32.mxu0 0.0
        %2165 = vmatmul.mubr.f32.gmra.mrb[0].mxu0 %v1990
        %v2166 = vpop.f32.mrb[0].mxu0
        %v2167 = vadd.f32 %v1843, %v2166
        %v2168 = vpop.f32.mrb[0].mxu0
        %2169 = vmatprep.mubr.f32.mxu0 0.0
        %2170 = vmatmul.mubr.f32.gmra.mrb[0].mxu0 %v1993
        %v2171 = vpop.f32.mrb[0].mxu0
        %v2172 = vadd.f32 %v1848, %v2171
        %v2173 = vpop.f32.mrb[0].mxu0
        %2174 = vmatprep.mubr.f32.mxu0 0.0
        %2175 = vmatmul.mubr.f32.gmra.mrb[0].mxu0 %v1996
        %v2176 = vpop.f32.mrb[0].mxu0
        %v2177 = vadd.f32 %v1853, %v2176
        %v2178 = vpop.f32.mrb[0].mxu0
        %2179 = vmatprep.mubr.f32.mxu0 0.0
        %2180 = vmatmul.mubr.f32.gmra.mrb[0].mxu0 %v1999
        %v2181 = vpop.f32.mrb[0].mxu0
        %v2182 = vadd.f32 %v1858, %v2181
        %v2183 = vpop.f32.mrb[0].mxu0
        %2184 = vmatprep.mubr.f32.mxu0 0.0
        %2185 = vmatmul.mubr.f32.gmra.mrb[0].mxu0 %v2002
        %v2186 = vpop.f32.mrb[0].mxu0
        %v2187 = vadd.f32 %v1863, %v2186
        %v2188 = vpop.f32.mrb[0].mxu0
        %2189 = vmatprep.mubr.f32.mxu0 0.0
        %2190 = vmatmul.mubr.f32.gmra.mrb[0].mxu0 %v2005
        %v2191 = vpop.f32.mrb[0].mxu0
        %v2192 = vadd.f32 %v1868, %v2191
        %v2193 = vpop.f32.mrb[0].mxu0
        %2194 = vmatprep.mubr.f32.mxu0 0.0
        %2195 = vmatmul.mubr.f32.gmra.mrb[0].mxu0 %v2008
        %v2196 = vpop.f32.mrb[0].mxu0
        %v2197 = vadd.f32 %v1873, %v2196
        %v2198 = vpop.f32.mrb[0].mxu0
        %2199 = vmatprep.mubr.f32.mxu0 0.0
        %2200 = vmatmul.mubr.f32.gmra.mrb[0].mxu0 %v2011
        %v2201 = vpop.f32.mrb[0].mxu0
        %v2202 = vadd.f32 %v1878, %v2201
        %v2203 = vpop.f32.mrb[0].mxu0
        %2204 = vmatprep.mubr.f32.mxu0 0.0
        %2205 = vmatmul.mubr.f32.gmra.mrb[0].mxu0 %v2014
        %v2206 = vpop.f32.mrb[0].mxu0
        %v2207 = vadd.f32 %v1883, %v2206
        %v2208 = vpop.f32.mrb[0].mxu0
        %2209 = vmatprep.mubr.f32.mxu0 0.0
        %2210 = vmatmul.mubr.f32.gmra.mrb[0].mxu0 %v2017
        %v2211 = vpop.f32.mrb[0].mxu0
        %v2212 = vadd.f32 %v1888, %v2211
        %v2213 = vpop.f32.mrb[0].mxu0
        %2214 = vmatprep.mubr.f32.mxu0 0.0
        %2215 = vmatmul.mubr.f32.gmra.mrb[0].mxu0 %v2020
        %v2216 = vpop.f32.mrb[0].mxu0
        %v2217 = vadd.f32 %v1893, %v2216
        %v2218 = vpop.f32.mrb[0].mxu0
        %2219 = vmatprep.mubr.f32.mxu0 0.0
        %2220 = vmatmul.mubr.f32.gmra.mrb[0].mxu0 %v2023
        %v2221 = vpop.f32.mrb[0].mxu0
        %v2222 = vadd.f32 %v1898, %v2221
        %v2223 = vpop.f32.mrb[0].mxu0
        %2224 = vmatprep.mubr.f32.mxu0 0.0
        %2225 = vmatmul.mubr.f32.gmra.mrb[0].mxu0 %v2026
        %v2226 = vpop.f32.mrb[0].mxu0
        %v2227 = vadd.f32 %v1903, %v2226
        %v2228 = vpop.f32.mrb[0].mxu0
        %2229 = vmatprep.mubr.f32.mxu0 0.0
        %2230 = vmatmul.mubr.f32.gmra.mrb[0].mxu0 %v2029
        %v2231 = vpop.f32.mrb[0].mxu0
        %v2232 = vadd.f32 %v1908, %v2231
        %v2233 = vpop.f32.mrb[0].mxu0
        %2234 = vmatprep.mubr.f32.mxu0 0.0
        %2235 = vmatmul.mubr.f32.gmra.mrb[0].mxu0 %v2032
        %v2236 = vpop.f32.mrb[0].mxu0
        %v2237 = vadd.f32 %v1913, %v2236
        %v2238 = vpop.f32.mrb[0].mxu0
        %2239 = vmatprep.mubr.f32.mxu0 0.0
        %2240 = vmatmul.mubr.f32.gmra.mrb[0].mxu0 %v2035
        %v2241 = vpop.f32.mrb[0].mxu0
        %v2242 = vadd.f32 %v1918, %v2241
        %v2243 = vpop.f32.mrb[0].mxu0
        %2244 = vmatprep.mubr.f32.mxu0 0.0
        %2245 = vmatmul.mubr.f32.gmra.mrb[0].mxu0 %v2038
        %v2246 = vpop.f32.mrb[0].mxu0
        %v2247 = vadd.f32 %v1923, %v2246
        %v2248 = vpop.f32.mrb[0].mxu0
        %2249 = vmatprep.mubr.f32.mxu0 0.0
        %2250 = vmatmul.mubr.f32.gmra.mrb[0].mxu0 %v2041
        %v2251 = vpop.f32.mrb[0].mxu0
        %v2252 = vadd.f32 %v1928, %v2251
        %v2253 = vpop.f32.mrb[0].mxu0
        %2254 = vmatprep.mubr.f32.mxu0 0.0
        %2255 = vmatmul.mubr.f32.gmra.mrb[0].mxu0 %v2044
        %v2256 = vpop.f32.mrb[0].mxu0
        %v2257 = vadd.f32 %v1933, %v2256
        %v2258 = vpop.f32.mrb[0].mxu0
        %2259 = vmatprep.mubr.f32.mxu0 0.0
        %2260 = vmatmul.mubr.f32.gmra.mrb[0].mxu0 %v2047
        %v2261 = vpop.f32.mrb[0].mxu0
        %v2262 = vadd.f32 %v1938, %v2261
        %v2263 = vpop.f32.mrb[0].mxu0
        %2264 = vmatprep.mubr.f32.mxu0 0.0
        %2265 = vmatmul.mubr.f32.gmra.mrb[0].mxu0 %v2050
        %v2266 = vpop.f32.mrb[0].mxu0
        %v2267 = vadd.f32 %v1943, %v2266
        %v2268 = vpop.f32.mrb[0].mxu0
        %2269 = vmatprep.mubr.f32.mxu0 0.0
        %2270 = vmatmul.mubr.f32.gmra.mrb[0].mxu0 %v2053
        %v2271 = vpop.f32.mrb[0].mxu0
        %v2272 = vadd.f32 %v1948, %v2271
        %v2273 = vpop.f32.mrb[0].mxu0
        %2274 = vmatprep.mubr.f32.mxu0 0.0
        %2275 = vmatmul.mubr.f32.gmra.mrb[0].mxu0 %v2056
        %v2276 = vpop.f32.mrb[0].mxu0
        %v2277 = vadd.f32 %v1953, %v2276
        %v2278 = vpop.f32.mrb[0].mxu0
        %2279 = vmatprep.mubr.f32.mxu0 0.0
        %2280 = vmatmul.mubr.f32.gmra.mrb[0].mxu0 %v2059
        %v2281 = vpop.f32.mrb[0].mxu0
        %v2282 = vadd.f32 %v1958, %v2281
        %v2283 = vpop.f32.mrb[0].mxu0
        %2284 = vmatprep.mubr.f32.mxu0 0.0
        %2285 = vmatmul.mubr.f32.gmra.mrb[0].mxu0 %v2062
        %v2286 = vpop.f32.mrb[0].mxu0
        %v2287 = vadd.f32 %v1963, %v2286
        %v2288 = vpop.f32.mrb[0].mxu0
        %2289 = vmatprep.mubr.f32.mxu0 0.0
        %2290 = vmatmul.mubr.f32.gmra.mrb[0].mxu0 %v2065
        %v2291 = vpop.f32.mrb[0].mxu0
        %v2292 = vadd.f32 %v1968, %v2291
        %v2293 = vpop.f32.mrb[0].mxu0
        %2294 = vdwg.mxu0
        %v2295 = vld [vmem:[#allocation2 + $0x2] sm:$0xff]
        %v2296 = vld [vmem:[#allocation2 + $0xa] sm:$0xff]
        %v2297 = vld [vmem:[#allocation2 + $0x1a] sm:$0xff]
        %v2298 = vld [vmem:[#allocation2 + $0x22] sm:$0xff]
        %v2299 = vld [vmem:[#allocation2 + $0x32] sm:$0xff]
        %v2300 = vld [vmem:[#allocation2 + $0x3a] sm:$0xff]
        %v2301 = vld [vmem:[#allocation2 + $0x4a] sm:$0xff]
        %v2302 = vld [vmem:[#allocation2 + $0x52] sm:$0xff]
        %v2303 = vld [vmem:[#allocation2 + $0x62] sm:$0xff]
        %v2304 = vld [vmem:[#allocation2 + $0x6a] sm:$0xff]
        %v2305 = vld [vmem:[#allocation2 + $0x7a] sm:$0xff]
        %v2306 = vld [vmem:[#allocation2 + $0x82] sm:$0xff]
        %v2307 = vld [vmem:[#allocation2 + $0x92] sm:$0xff]
        %v2308 = vld [vmem:[#allocation2 + $0x9a] sm:$0xff]
        %v2309 = vld [vmem:[#allocation2 + $0xaa] sm:$0xff]
        %v2310 = vld [vmem:[#allocation2 + $0xb2] sm:$0xff]
        %v2311 = vld [vmem:[#allocation2 + $0xc2] sm:$0xff]
        %v2312 = vld [vmem:[#allocation2 + $0xca] sm:$0xff]
        %v2313 = vld [vmem:[#allocation2 + $0xda] sm:$0xff]
        %v2314 = vld [vmem:[#allocation2 + $0xe2] sm:$0xff]
        %v2315 = vld [vmem:[#allocation2 + $0xf2] sm:$0xff]
        %v2316 = vld [vmem:[#allocation2 + $0xfa] sm:$0xff]
        %v2317 = vld [vmem:[#allocation2 + $0x10a] sm:$0xff]
        %v2318 = vld [vmem:[#allocation2 + $0x112] sm:$0xff]
        %v2319 = vld [vmem:[#allocation2 + $0x122] sm:$0xff]
        %v2320 = vld [vmem:[#allocation2 + $0x12a] sm:$0xff]
        %v2321 = vld [vmem:[#allocation2 + $0x13a] sm:$0xff]
        %v2322 = vld [vmem:[#allocation2 + $0x142] sm:$0xff]
        %v2323 = vld [vmem:[#allocation2 + $0x152] sm:$0xff]
        %v2324 = vld [vmem:[#allocation2 + $0x15a] sm:$0xff]
        %v2325 = vld [vmem:[#allocation2 + $0x16a] sm:$0xff]
        %v2326 = vld [vmem:[#allocation2 + $0x172] sm:$0xff]
        %v2327 = vld [vmem:[%s774 + $0x2] sm:$0xff]
        %v2328 = vld [vmem:[%s774 + $0xa] sm:$0xff]
        %v2329 = vld [vmem:[%s774 + $0x1a] sm:$0xff]
        %v2330 = vld [vmem:[%s774 + $0x22] sm:$0xff]
        %v2331 = vld [vmem:[%s774 + $0x32] sm:$0xff]
        %v2332 = vld [vmem:[%s774 + $0x3a] sm:$0xff]
        %v2333 = vld [vmem:[%s774 + $0x4a] sm:$0xff]
        %v2334 = vld [vmem:[%s774 + $0x52] sm:$0xff]
        %v2335 = vld [vmem:[%s774 + $0x62] sm:$0xff]
        %v2336 = vld [vmem:[%s774 + $0x6a] sm:$0xff]
        %v2337 = vld [vmem:[%s774 + $0x7a] sm:$0xff]
        %v2338 = vld [vmem:[%s774 + $0x82] sm:$0xff]
        %v2339 = vld [vmem:[%s774 + $0x92] sm:$0xff]
        %v2340 = vld [vmem:[%s774 + $0x9a] sm:$0xff]
        %v2341 = vld [vmem:[%s774 + $0xaa] sm:$0xff]
        %v2342 = vld [vmem:[%s774 + $0xb2] sm:$0xff]
        %v2343 = vld [vmem:[%s774 + $0xc2] sm:$0xff]
        %v2344 = vld [vmem:[%s774 + $0xca] sm:$0xff]
        %v2345 = vld [vmem:[%s774 + $0xda] sm:$0xff]
        %v2346 = vld [vmem:[%s774 + $0xe2] sm:$0xff]
        %v2347 = vld [vmem:[%s774 + $0xf2] sm:$0xff]
        %v2348 = vld [vmem:[%s774 + $0xfa] sm:$0xff]
        %v2349 = vld [vmem:[%s774 + $0x10a] sm:$0xff]
        %v2350 = vld [vmem:[%s774 + $0x112] sm:$0xff]
        %v2351 = vld [vmem:[%s774 + $0x122] sm:$0xff]
        %v2352 = vld [vmem:[%s774 + $0x12a] sm:$0xff]
        %v2353 = vld [vmem:[%s774 + $0x13a] sm:$0xff]
        %v2354 = vld [vmem:[%s774 + $0x142] sm:$0xff]
        %v2355 = vld [vmem:[%s774 + $0x152] sm:$0xff]
        %v2356 = vld [vmem:[%s774 + $0x15a] sm:$0xff]
        %v2357 = vld [vmem:[%s774 + $0x16a] sm:$0xff]
        %v2358 = vld [vmem:[%s774 + $0x172] sm:$0xff]
        %v2359 = vld [vmem:[%s871 + $0x2] sm:$0xff]
        %v2360 = vld [vmem:[%s871 + $0xa] sm:$0xff]
        %v2361 = vld [vmem:[%s871 + $0x1a] sm:$0xff]
        %v2362 = vld [vmem:[%s871 + $0x22] sm:$0xff]
        %v2363 = vld [vmem:[%s871 + $0x32] sm:$0xff]
        %v2364 = vld [vmem:[%s871 + $0x3a] sm:$0xff]
        %v2365 = vld [vmem:[%s871 + $0x4a] sm:$0xff]
        %v2366 = vld [vmem:[%s871 + $0x52] sm:$0xff]
        %v2367 = vld [vmem:[%s871 + $0x62] sm:$0xff]
        %v2368 = vld [vmem:[%s871 + $0x6a] sm:$0xff]
        %v2369 = vld [vmem:[%s871 + $0x7a] sm:$0xff]
        %v2370 = vld [vmem:[%s871 + $0x82] sm:$0xff]
        %v2371 = vld [vmem:[%s871 + $0x92] sm:$0xff]
        %v2372 = vld [vmem:[%s871 + $0x9a] sm:$0xff]
        %v2373 = vld [vmem:[%s871 + $0xaa] sm:$0xff]
        %v2374 = vld [vmem:[%s871 + $0xb2] sm:$0xff]
        %v2375 = vld [vmem:[%s871 + $0xc2] sm:$0xff]
        %v2376 = vld [vmem:[%s871 + $0xca] sm:$0xff]
        %v2377 = vld [vmem:[%s871 + $0xda] sm:$0xff]
        %v2378 = vld [vmem:[%s871 + $0xe2] sm:$0xff]
        %v2379 = vld [vmem:[%s871 + $0xf2] sm:$0xff]
        %v2380 = vld [vmem:[%s871 + $0xfa] sm:$0xff]
        %v2381 = vld [vmem:[%s871 + $0x10a] sm:$0xff]
        %v2382 = vld [vmem:[%s871 + $0x112] sm:$0xff]
        %v2383 = vld [vmem:[%s871 + $0x122] sm:$0xff]
        %v2384 = vld [vmem:[%s871 + $0x12a] sm:$0xff]
        %v2385 = vld [vmem:[%s871 + $0x13a] sm:$0xff]
        %v2386 = vld [vmem:[%s871 + $0x142] sm:$0xff]
        %v2387 = vld [vmem:[%s871 + $0x152] sm:$0xff]
        %v2388 = vld [vmem:[%s871 + $0x15a] sm:$0xff]
        %v2389 = vld [vmem:[%s871 + $0x16a] sm:$0xff]
        %v2390 = vld [vmem:[%s871 + $0x172] sm:$0xff]
        %2423 = vrot.lane.b32.xlu0 %v2327, 4
        %v2424 = vpop.permute.xlu0 %2423
        %2425 = vrot.lane.b32.xlu0 %v2328, 4
        %v2426 = vpop.permute.xlu0 %2425
        %2427 = vrot.lane.b32.xlu0 %v2329, 4
        %v2428 = vpop.permute.xlu0 %2427
        %2429 = vrot.lane.b32.xlu0 %v2330, 4
        %v2430 = vpop.permute.xlu0 %2429
        %2431 = vrot.lane.b32.xlu0 %v2331, 4
        %v2432 = vpop.permute.xlu0 %2431
        %2433 = vrot.lane.b32.xlu0 %v2332, 4
        %v2434 = vpop.permute.xlu0 %2433
        %2435 = vrot.lane.b32.xlu0 %v2333, 4
        %v2436 = vpop.permute.xlu0 %2435
        %2437 = vrot.lane.b32.xlu0 %v2334, 4
        %v2438 = vpop.permute.xlu0 %2437
        %2439 = vrot.lane.b32.xlu0 %v2335, 4
        %v2440 = vpop.permute.xlu0 %2439
        %2441 = vrot.lane.b32.xlu0 %v2336, 4
        %v2442 = vpop.permute.xlu0 %2441
        %2443 = vrot.lane.b32.xlu0 %v2337, 4
        %v2444 = vpop.permute.xlu0 %2443
        %2445 = vrot.lane.b32.xlu0 %v2338, 4
        %v2446 = vpop.permute.xlu0 %2445
        %2447 = vrot.lane.b32.xlu0 %v2339, 4
        %v2448 = vpop.permute.xlu0 %2447
        %2449 = vrot.lane.b32.xlu0 %v2340, 4
        %v2450 = vpop.permute.xlu0 %2449
        %2451 = vrot.lane.b32.xlu0 %v2341, 4
        %v2452 = vpop.permute.xlu0 %2451
        %2453 = vrot.lane.b32.xlu0 %v2342, 4
        %v2454 = vpop.permute.xlu0 %2453
        %2455 = vrot.lane.b32.xlu0 %v2343, 4
        %v2456 = vpop.permute.xlu0 %2455
        %2457 = vrot.lane.b32.xlu0 %v2344, 4
        %v2458 = vpop.permute.xlu0 %2457
        %2459 = vrot.lane.b32.xlu0 %v2345, 4
        %v2460 = vpop.permute.xlu0 %2459
        %2461 = vrot.lane.b32.xlu0 %v2346, 4
        %v2462 = vpop.permute.xlu0 %2461
        %2463 = vrot.lane.b32.xlu0 %v2347, 4
        %v2464 = vpop.permute.xlu0 %2463
        %2465 = vrot.lane.b32.xlu0 %v2348, 4
        %v2466 = vpop.permute.xlu0 %2465
        %2467 = vrot.lane.b32.xlu0 %v2349, 4
        %v2468 = vpop.permute.xlu0 %2467
        %2469 = vrot.lane.b32.xlu0 %v2350, 4
        %v2470 = vpop.permute.xlu0 %2469
        %2471 = vrot.lane.b32.xlu0 %v2351, 4
        %v2472 = vpop.permute.xlu0 %2471
        %2473 = vrot.lane.b32.xlu0 %v2352, 4
        %v2474 = vpop.permute.xlu0 %2473
        %2475 = vrot.lane.b32.xlu0 %v2353, 4
        %v2476 = vpop.permute.xlu0 %2475
        %2477 = vrot.lane.b32.xlu0 %v2354, 4
        %v2478 = vpop.permute.xlu0 %2477
        %2479 = vrot.lane.b32.xlu0 %v2355, 4
        %v2480 = vpop.permute.xlu0 %2479
        %2481 = vrot.lane.b32.xlu0 %v2356, 4
        %v2482 = vpop.permute.xlu0 %2481
        %2483 = vrot.lane.b32.xlu0 %v2357, 4
        %v2484 = vpop.permute.xlu0 %2483
        %2485 = vrot.lane.b32.xlu0 %v2358, 4
        %v2486 = vpop.permute.xlu0 %2485
        %2551 = vrot.lane.b32.xlu0 %v2359, 8
        %v2552 = vpop.permute.xlu0 %2551
        %2553 = vrot.lane.b32.xlu0 %v2360, 8
        %v2554 = vpop.permute.xlu0 %2553
        %2555 = vrot.lane.b32.xlu0 %v2361, 8
        %v2556 = vpop.permute.xlu0 %2555
        %2557 = vrot.lane.b32.xlu0 %v2362, 8
        %v2558 = vpop.permute.xlu0 %2557
        %2559 = vrot.lane.b32.xlu0 %v2363, 8
        %v2560 = vpop.permute.xlu0 %2559
        %2561 = vrot.lane.b32.xlu0 %v2364, 8
        %v2562 = vpop.permute.xlu0 %2561
        %2563 = vrot.lane.b32.xlu0 %v2365, 8
        %v2564 = vpop.permute.xlu0 %2563
        %2565 = vrot.lane.b32.xlu0 %v2366, 8
        %v2566 = vpop.permute.xlu0 %2565
        %2567 = vrot.lane.b32.xlu0 %v2367, 8
        %v2568 = vpop.permute.xlu0 %2567
        %2569 = vrot.lane.b32.xlu0 %v2368, 8
        %v2570 = vpop.permute.xlu0 %2569
        %2571 = vrot.lane.b32.xlu0 %v2369, 8
        %v2572 = vpop.permute.xlu0 %2571
        %2573 = vrot.lane.b32.xlu0 %v2370, 8
        %v2574 = vpop.permute.xlu0 %2573
        %2575 = vrot.lane.b32.xlu0 %v2371, 8
        %v2576 = vpop.permute.xlu0 %2575
        %2577 = vrot.lane.b32.xlu0 %v2372, 8
        %v2578 = vpop.permute.xlu0 %2577
        %2579 = vrot.lane.b32.xlu0 %v2373, 8
        %v2580 = vpop.permute.xlu0 %2579
        %2581 = vrot.lane.b32.xlu0 %v2374, 8
        %v2582 = vpop.permute.xlu0 %2581
        %2583 = vrot.lane.b32.xlu0 %v2375, 8
        %v2584 = vpop.permute.xlu0 %2583
        %2585 = vrot.lane.b32.xlu0 %v2376, 8
        %v2586 = vpop.permute.xlu0 %2585
        %2587 = vrot.lane.b32.xlu0 %v2377, 8
        %v2588 = vpop.permute.xlu0 %2587
        %2589 = vrot.lane.b32.xlu0 %v2378, 8
        %v2590 = vpop.permute.xlu0 %2589
        %2591 = vrot.lane.b32.xlu0 %v2379, 8
        %v2592 = vpop.permute.xlu0 %2591
        %2593 = vrot.lane.b32.xlu0 %v2380, 8
        %v2594 = vpop.permute.xlu0 %2593
        %2595 = vrot.lane.b32.xlu0 %v2381, 8
        %v2596 = vpop.permute.xlu0 %2595
        %2597 = vrot.lane.b32.xlu0 %v2382, 8
        %v2598 = vpop.permute.xlu0 %2597
        %2599 = vrot.lane.b32.xlu0 %v2383, 8
        %v2600 = vpop.permute.xlu0 %2599
        %2601 = vrot.lane.b32.xlu0 %v2384, 8
        %v2602 = vpop.permute.xlu0 %2601
        %2603 = vrot.lane.b32.xlu0 %v2385, 8
        %v2604 = vpop.permute.xlu0 %2603
        %2605 = vrot.lane.b32.xlu0 %v2386, 8
        %v2606 = vpop.permute.xlu0 %2605
        %2607 = vrot.lane.b32.xlu0 %v2387, 8
        %v2608 = vpop.permute.xlu0 %2607
        %2609 = vrot.lane.b32.xlu0 %v2388, 8
        %v2610 = vpop.permute.xlu0 %2609
        %2611 = vrot.lane.b32.xlu0 %v2389, 8
        %v2612 = vpop.permute.xlu0 %2611
        %2613 = vrot.lane.b32.xlu0 %v2390, 8
        %v2614 = vpop.permute.xlu0 %2613
        %v2647 = vsel %vm371, %v2295, %v2424
        %v2648 = vsel %vm371, %v2296, %v2426
        %v2649 = vsel %vm371, %v2297, %v2428
        %v2650 = vsel %vm371, %v2298, %v2430
        %v2651 = vsel %vm371, %v2299, %v2432
        %v2652 = vsel %vm371, %v2300, %v2434
        %v2653 = vsel %vm371, %v2301, %v2436
        %v2654 = vsel %vm371, %v2302, %v2438
        %v2655 = vsel %vm371, %v2303, %v2440
        %v2656 = vsel %vm371, %v2304, %v2442
        %v2657 = vsel %vm371, %v2305, %v2444
        %v2658 = vsel %vm371, %v2306, %v2446
        %v2659 = vsel %vm371, %v2307, %v2448
        %v2660 = vsel %vm371, %v2308, %v2450
        %v2661 = vsel %vm371, %v2309, %v2452
        %v2662 = vsel %vm371, %v2310, %v2454
        %v2663 = vsel %vm371, %v2311, %v2456
        %v2664 = vsel %vm371, %v2312, %v2458
        %v2665 = vsel %vm371, %v2313, %v2460
        %v2666 = vsel %vm371, %v2314, %v2462
        %v2667 = vsel %vm371, %v2315, %v2464
        %v2668 = vsel %vm371, %v2316, %v2466
        %v2669 = vsel %vm371, %v2317, %v2468
        %v2670 = vsel %vm371, %v2318, %v2470
        %v2671 = vsel %vm371, %v2319, %v2472
        %v2672 = vsel %vm371, %v2320, %v2474
        %v2673 = vsel %vm371, %v2321, %v2476
        %v2674 = vsel %vm371, %v2322, %v2478
        %v2675 = vsel %vm371, %v2323, %v2480
        %v2676 = vsel %vm371, %v2324, %v2482
        %v2677 = vsel %vm371, %v2325, %v2484
        %v2678 = vsel %vm371, %v2326, %v2486
        %v2679 = vsel %vm1192, %v2647, %v2552
        %v2680 = vsel %vm1192, %v2648, %v2554
        %v2681 = vsel %vm1192, %v2649, %v2556
        %v2682 = vsel %vm1192, %v2650, %v2558
        %v2683 = vsel %vm1192, %v2651, %v2560
        %v2684 = vsel %vm1192, %v2652, %v2562
        %v2685 = vsel %vm1192, %v2653, %v2564
        %v2686 = vsel %vm1192, %v2654, %v2566
        %v2687 = vsel %vm1192, %v2655, %v2568
        %v2688 = vsel %vm1192, %v2656, %v2570
        %v2689 = vsel %vm1192, %v2657, %v2572
        %v2690 = vsel %vm1192, %v2658, %v2574
        %v2691 = vsel %vm1192, %v2659, %v2576
        %v2692 = vsel %vm1192, %v2660, %v2578
        %v2693 = vsel %vm1192, %v2661, %v2580
        %v2694 = vsel %vm1192, %v2662, %v2582
        %v2695 = vsel %vm1192, %v2663, %v2584
        %v2696 = vsel %vm1192, %v2664, %v2586
        %v2697 = vsel %vm1192, %v2665, %v2588
        %v2698 = vsel %vm1192, %v2666, %v2590
        %v2699 = vsel %vm1192, %v2667, %v2592
        %v2700 = vsel %vm1192, %v2668, %v2594
        %v2701 = vsel %vm1192, %v2669, %v2596
        %v2702 = vsel %vm1192, %v2670, %v2598
        %v2703 = vsel %vm1192, %v2671, %v2600
        %v2704 = vsel %vm1192, %v2672, %v2602
        %v2705 = vsel %vm1192, %v2673, %v2604
        %v2706 = vsel %vm1192, %v2674, %v2606
        %v2707 = vsel %vm1192, %v2675, %v2608
        %v2708 = vsel %vm1192, %v2676, %v2610
        %v2709 = vsel %vm1192, %v2677, %v2612
        %v2710 = vsel %vm1192, %v2678, %v2614
        %s2711 = scalar_lea.vmem %s3, 32
        %v2712 = vld [vmem:[%s2711] sm:$0xff]
        %v2713 = vld [vmem:[%s2711 + $0x8] sm:$0xf]
        %v2715 = vsel %vm1646, %v2679, 0
        %v2718 = vsel %vm1646, %v2680, 0
        %v2721 = vsel %vm1646, %v2681, 0
        %v2724 = vsel %vm1646, %v2682, 0
        %v2727 = vsel %vm1646, %v2683, 0
        %v2730 = vsel %vm1646, %v2684, 0
        %v2733 = vsel %vm1646, %v2685, 0
        %v2736 = vsel %vm1646, %v2686, 0
        %v2739 = vsel %vm1646, %v2687, 0
        %v2742 = vsel %vm1646, %v2688, 0
        %v2745 = vsel %vm1646, %v2689, 0
        %v2748 = vsel %vm1646, %v2690, 0
        %v2751 = vsel %vm1646, %v2691, 0
        %v2754 = vsel %vm1646, %v2692, 0
        %v2757 = vsel %vm1646, %v2693, 0
        %v2760 = vsel %vm1646, %v2694, 0
        %v2763 = vsel %vm1646, %v2695, 0
        %v2766 = vsel %vm1646, %v2696, 0
        %v2769 = vsel %vm1646, %v2697, 0
        %v2772 = vsel %vm1646, %v2698, 0
        %v2775 = vsel %vm1646, %v2699, 0
        %v2778 = vsel %vm1646, %v2700, 0
        %v2781 = vsel %vm1646, %v2701, 0
        %v2784 = vsel %vm1646, %v2702, 0
        %v2787 = vsel %vm1646, %v2703, 0
        %v2790 = vsel %vm1646, %v2704, 0
        %v2793 = vsel %vm1646, %v2705, 0
        %v2796 = vsel %vm1646, %v2706, 0
        %v2799 = vsel %vm1646, %v2707, 0
        %v2802 = vsel %vm1646, %v2708, 0
        %v2805 = vsel %vm1646, %v2709, 0
        %v2808 = vsel %vm1646, %v2710, 0
        %v2811 = vsel %vm468, %v2713, 0
        %2813 = vmatprep.subr.mxu0 0.0
        %2814 = vmatpush1.msra.mxu0 %v2712
        %2815 = vmatprep.subr.mxu0 0.0
        %2816 = vmatpush1.msra.mxu0 %v2811
        %2817 = vmatprep.subr.mxu0 0.0
        %2818 = vmatpush1.msra.mxu0 0.0
        %2819 = vmatprep.subr.mxu0 0.0
        %2820 = vmatpush1.msra.mxu0 0.0
        %2821 = vmatprep.subr.mxu0 0.0
        %2822 = vmatpush1.msra.mxu0 0.0
        %2823 = vmatprep.subr.mxu0 0.0
        %2824 = vmatpush1.msra.mxu0 0.0
        %2825 = vmatprep.subr.mxu0 0.0
        %2826 = vmatpush1.msra.mxu0 0.0
        %2827 = vmatprep.subr.mxu0 0.0
        %2828 = vmatpush1.msra.mxu0 0.0
        %2829 = vmatprep.subr.mxu0 0.0
        %2830 = vmatpush1.msra.mxu0 0.0
        %2831 = vmatprep.subr.mxu0 0.0
        %2832 = vmatpush1.msra.mxu0 0.0
        %2833 = vmatprep.subr.mxu0 0.0
        %2834 = vmatpush1.msra.mxu0 0.0
        %2835 = vmatprep.subr.mxu0 0.0
        %2836 = vmatpush1.msra.mxu0 0.0
        %2837 = vmatprep.subr.mxu0 0.0
        %2838 = vmatpush1.msra.mxu0 0.0
        %2839 = vmatprep.subr.mxu0 0.0
        %2840 = vmatpush1.msra.mxu0 0.0
        %2841 = vmatprep.subr.mxu0 0.0
        %2842 = vmatpush1.msra.mxu0 0.0
        %2843 = vmatprep.subr.mxu0 0.0
        %2844 = vmatpush1.msra.mxu0 0.0
        %2845 = vmatprep.subr.mxu0 0.0
        %2846 = vmatpush1.msra.mxu0 0.0
        %2847 = vmatprep.subr.mxu0 0.0
        %2848 = vmatpush1.msra.mxu0 0.0
        %2849 = vmatprep.subr.mxu0 0.0
        %2850 = vmatpush1.msra.mxu0 0.0
        %2851 = vmatprep.subr.mxu0 0.0
        %2852 = vmatpush1.msra.mxu0 0.0
        %2853 = vmatprep.subr.mxu0 0.0
        %2854 = vmatpush1.msra.mxu0 0.0
        %2855 = vmatprep.subr.mxu0 0.0
        %2856 = vmatpush1.msra.mxu0 0.0
        %2857 = vmatprep.subr.mxu0 0.0
        %2858 = vmatpush1.msra.mxu0 0.0
        %2859 = vmatprep.subr.mxu0 0.0
        %2860 = vmatpush1.msra.mxu0 0.0
        %2861 = vmatprep.subr.mxu0 0.0
        %2862 = vmatpush1.msra.mxu0 0.0
        %2863 = vmatprep.subr.mxu0 0.0
        %2864 = vmatpush1.msra.mxu0 0.0
        %2865 = vmatprep.subr.mxu0 0.0
        %2866 = vmatpush1.msra.mxu0 0.0
        %2867 = vmatprep.subr.mxu0 0.0
        %2868 = vmatpush1.msra.mxu0 0.0
        %2869 = vmatprep.subr.mxu0 0.0
        %2870 = vmatpush1.msra.mxu0 0.0
        %2871 = vmatprep.subr.mxu0 0.0
        %2872 = vmatpush1.msra.mxu0 0.0
        %2873 = vmatprep.subr.mxu0 0.0
        %2874 = vmatpush1.msra.mxu0 0.0
        %2875 = vmatprep.subr.mxu0 0.0
        %2876 = vmatpush1.msra.mxu0 0.0
        %2877 = vmatprep.mubr.f32.mxu0 0.0
        %2878 = vmatmul.mubr.f32.gmra.mrb[0].mxu0 %v2715
        %v2879 = vpop.f32.mrb[0].mxu0
        %v2880 = vadd.f32 0.0, %v2879
        %v2881 = vpop.f32.mrb[0].mxu0
        %2882 = vmatprep.mubr.f32.mxu0 0.0
        %2883 = vmatmul.mubr.f32.gmra.mrb[0].mxu0 %v2718
        %v2884 = vpop.f32.mrb[0].mxu0
        %v2885 = vadd.f32 0.0, %v2884
        %v2886 = vpop.f32.mrb[0].mxu0
        %2887 = vmatprep.mubr.f32.mxu0 0.0
        %2888 = vmatmul.mubr.f32.gmra.mrb[0].mxu0 %v2721
        %v2889 = vpop.f32.mrb[0].mxu0
        %v2890 = vadd.f32 0.0, %v2889
        %v2891 = vpop.f32.mrb[0].mxu0
        %2892 = vmatprep.mubr.f32.mxu0 0.0
        %2893 = vmatmul.mubr.f32.gmra.mrb[0].mxu0 %v2724
        %v2894 = vpop.f32.mrb[0].mxu0
        %v2895 = vadd.f32 0.0, %v2894
        %v2896 = vpop.f32.mrb[0].mxu0
        %2897 = vmatprep.mubr.f32.mxu0 0.0
        %2898 = vmatmul.mubr.f32.gmra.mrb[0].mxu0 %v2727
        %v2899 = vpop.f32.mrb[0].mxu0
        %v2900 = vadd.f32 0.0, %v2899
        %v2901 = vpop.f32.mrb[0].mxu0
        %2902 = vmatprep.mubr.f32.mxu0 0.0
        %2903 = vmatmul.mubr.f32.gmra.mrb[0].mxu0 %v2730
        %v2904 = vpop.f32.mrb[0].mxu0
        %v2905 = vadd.f32 0.0, %v2904
        %v2906 = vpop.f32.mrb[0].mxu0
        %2907 = vmatprep.mubr.f32.mxu0 0.0
        %2908 = vmatmul.mubr.f32.gmra.mrb[0].mxu0 %v2733
        %v2909 = vpop.f32.mrb[0].mxu0
        %v2910 = vadd.f32 0.0, %v2909
        %v2911 = vpop.f32.mrb[0].mxu0
        %2912 = vmatprep.mubr.f32.mxu0 0.0
        %2913 = vmatmul.mubr.f32.gmra.mrb[0].mxu0 %v2736
        %v2914 = vpop.f32.mrb[0].mxu0
        %v2915 = vadd.f32 0.0, %v2914
        %v2916 = vpop.f32.mrb[0].mxu0
        %2917 = vmatprep.mubr.f32.mxu0 0.0
        %2918 = vmatmul.mubr.f32.gmra.mrb[0].mxu0 %v2739
        %v2919 = vpop.f32.mrb[0].mxu0
        %v2920 = vadd.f32 0.0, %v2919
        %v2921 = vpop.f32.mrb[0].mxu0
        %2922 = vmatprep.mubr.f32.mxu0 0.0
        %2923 = vmatmul.mubr.f32.gmra.mrb[0].mxu0 %v2742
        %v2924 = vpop.f32.mrb[0].mxu0
        %v2925 = vadd.f32 0.0, %v2924
        %v2926 = vpop.f32.mrb[0].mxu0
        %2927 = vmatprep.mubr.f32.mxu0 0.0
        %2928 = vmatmul.mubr.f32.gmra.mrb[0].mxu0 %v2745
        %v2929 = vpop.f32.mrb[0].mxu0
        %v2930 = vadd.f32 0.0, %v2929
        %v2931 = vpop.f32.mrb[0].mxu0
        %2932 = vmatprep.mubr.f32.mxu0 0.0
        %2933 = vmatmul.mubr.f32.gmra.mrb[0].mxu0 %v2748
        %v2934 = vpop.f32.mrb[0].mxu0
        %v2935 = vadd.f32 0.0, %v2934
        %v2936 = vpop.f32.mrb[0].mxu0
        %2937 = vmatprep.mubr.f32.mxu0 0.0
        %2938 = vmatmul.mubr.f32.gmra.mrb[0].mxu0 %v2751
        %v2939 = vpop.f32.mrb[0].mxu0
        %v2940 = vadd.f32 0.0, %v2939
        %v2941 = vpop.f32.mrb[0].mxu0
        %2942 = vmatprep.mubr.f32.mxu0 0.0
        %2943 = vmatmul.mubr.f32.gmra.mrb[0].mxu0 %v2754
        %v2944 = vpop.f32.mrb[0].mxu0
        %v2945 = vadd.f32 0.0, %v2944
        %v2946 = vpop.f32.mrb[0].mxu0
        %2947 = vmatprep.mubr.f32.mxu0 0.0
        %2948 = vmatmul.mubr.f32.gmra.mrb[0].mxu0 %v2757
        %v2949 = vpop.f32.mrb[0].mxu0
        %v2950 = vadd.f32 0.0, %v2949
        %v2951 = vpop.f32.mrb[0].mxu0
        %2952 = vmatprep.mubr.f32.mxu0 0.0
        %2953 = vmatmul.mubr.f32.gmra.mrb[0].mxu0 %v2760
        %v2954 = vpop.f32.mrb[0].mxu0
        %v2955 = vadd.f32 0.0, %v2954
        %v2956 = vpop.f32.mrb[0].mxu0
        %2957 = vmatprep.mubr.f32.mxu0 0.0
        %2958 = vmatmul.mubr.f32.gmra.mrb[0].mxu0 %v2763
        %v2959 = vpop.f32.mrb[0].mxu0
        %v2960 = vadd.f32 0.0, %v2959
        %v2961 = vpop.f32.mrb[0].mxu0
        %2962 = vmatprep.mubr.f32.mxu0 0.0
        %2963 = vmatmul.mubr.f32.gmra.mrb[0].mxu0 %v2766
        %v2964 = vpop.f32.mrb[0].mxu0
        %v2965 = vadd.f32 0.0, %v2964
        %v2966 = vpop.f32.mrb[0].mxu0
        %2967 = vmatprep.mubr.f32.mxu0 0.0
        %2968 = vmatmul.mubr.f32.gmra.mrb[0].mxu0 %v2769
        %v2969 = vpop.f32.mrb[0].mxu0
        %v2970 = vadd.f32 0.0, %v2969
        %v2971 = vpop.f32.mrb[0].mxu0
        %2972 = vmatprep.mubr.f32.mxu0 0.0
        %2973 = vmatmul.mubr.f32.gmra.mrb[0].mxu0 %v2772
        %v2974 = vpop.f32.mrb[0].mxu0
        %v2975 = vadd.f32 0.0, %v2974
        %v2976 = vpop.f32.mrb[0].mxu0
        %2977 = vmatprep.mubr.f32.mxu0 0.0
        %2978 = vmatmul.mubr.f32.gmra.mrb[0].mxu0 %v2775
        %v2979 = vpop.f32.mrb[0].mxu0
        %v2980 = vadd.f32 0.0, %v2979
        %v2981 = vpop.f32.mrb[0].mxu0
        %2982 = vmatprep.mubr.f32.mxu0 0.0
        %2983 = vmatmul.mubr.f32.gmra.mrb[0].mxu0 %v2778
        %v2984 = vpop.f32.mrb[0].mxu0
        %v2985 = vadd.f32 0.0, %v2984
        %v2986 = vpop.f32.mrb[0].mxu0
        %2987 = vmatprep.mubr.f32.mxu0 0.0
        %2988 = vmatmul.mubr.f32.gmra.mrb[0].mxu0 %v2781
        %v2989 = vpop.f32.mrb[0].mxu0
        %v2990 = vadd.f32 0.0, %v2989
        %v2991 = vpop.f32.mrb[0].mxu0
        %2992 = vmatprep.mubr.f32.mxu0 0.0
        %2993 = vmatmul.mubr.f32.gmra.mrb[0].mxu0 %v2784
        %v2994 = vpop.f32.mrb[0].mxu0
        %v2995 = vadd.f32 0.0, %v2994
        %v2996 = vpop.f32.mrb[0].mxu0
        %2997 = vmatprep.mubr.f32.mxu0 0.0
        %2998 = vmatmul.mubr.f32.gmra.mrb[0].mxu0 %v2787
        %v2999 = vpop.f32.mrb[0].mxu0
        %v3000 = vadd.f32 0.0, %v2999
        %v3001 = vpop.f32.mrb[0].mxu0
        %3002 = vmatprep.mubr.f32.mxu0 0.0
        %3003 = vmatmul.mubr.f32.gmra.mrb[0].mxu0 %v2790
        %v3004 = vpop.f32.mrb[0].mxu0
        %v3005 = vadd.f32 0.0, %v3004
        %v3006 = vpop.f32.mrb[0].mxu0
        %3007 = vmatprep.mubr.f32.mxu0 0.0
        %3008 = vmatmul.mubr.f32.gmra.mrb[0].mxu0 %v2793
        %v3009 = vpop.f32.mrb[0].mxu0
        %v3010 = vadd.f32 0.0, %v3009
        %v3011 = vpop.f32.mrb[0].mxu0
        %3012 = vmatprep.mubr.f32.mxu0 0.0
        %3013 = vmatmul.mubr.f32.gmra.mrb[0].mxu0 %v2796
        %v3014 = vpop.f32.mrb[0].mxu0
        %v3015 = vadd.f32 0.0, %v3014
        %v3016 = vpop.f32.mrb[0].mxu0
        %3017 = vmatprep.mubr.f32.mxu0 0.0
        %3018 = vmatmul.mubr.f32.gmra.mrb[0].mxu0 %v2799
        %v3019 = vpop.f32.mrb[0].mxu0
        %v3020 = vadd.f32 0.0, %v3019
        %v3021 = vpop.f32.mrb[0].mxu0
        %3022 = vmatprep.mubr.f32.mxu0 0.0
        %3023 = vmatmul.mubr.f32.gmra.mrb[0].mxu0 %v2802
        %v3024 = vpop.f32.mrb[0].mxu0
        %v3025 = vadd.f32 0.0, %v3024
        %v3026 = vpop.f32.mrb[0].mxu0
        %3027 = vmatprep.mubr.f32.mxu0 0.0
        %3028 = vmatmul.mubr.f32.gmra.mrb[0].mxu0 %v2805
        %v3029 = vpop.f32.mrb[0].mxu0
        %v3030 = vadd.f32 0.0, %v3029
        %v3031 = vpop.f32.mrb[0].mxu0
        %3032 = vmatprep.mubr.f32.mxu0 0.0
        %3033 = vmatmul.mubr.f32.gmra.mrb[0].mxu0 %v2808
        %v3034 = vpop.f32.mrb[0].mxu0
        %v3035 = vadd.f32 0.0, %v3034
        %v3036 = vpop.f32.mrb[0].mxu0
        %3037 = vdwg.mxu0
        %v3038 = vadd.f32 %v2137, %v2880
        %v3039 = vadd.f32 %v2142, %v2885
        %v3040 = vadd.f32 %v2147, %v2890
        %v3041 = vadd.f32 %v2152, %v2895
        %v3042 = vadd.f32 %v2157, %v2900
        %v3043 = vadd.f32 %v2162, %v2905
        %v3044 = vadd.f32 %v2167, %v2910
        %v3045 = vadd.f32 %v2172, %v2915
        %v3046 = vadd.f32 %v2177, %v2920
        %v3047 = vadd.f32 %v2182, %v2925
        %v3048 = vadd.f32 %v2187, %v2930
        %v3049 = vadd.f32 %v2192, %v2935
        %v3050 = vadd.f32 %v2197, %v2940
        %v3051 = vadd.f32 %v2202, %v2945
        %v3052 = vadd.f32 %v2207, %v2950
        %v3053 = vadd.f32 %v2212, %v2955
        %v3054 = vadd.f32 %v2217, %v2960
        %v3055 = vadd.f32 %v2222, %v2965
        %v3056 = vadd.f32 %v2227, %v2970
        %v3057 = vadd.f32 %v2232, %v2975
        %v3058 = vadd.f32 %v2237, %v2980
        %v3059 = vadd.f32 %v2242, %v2985
        %v3060 = vadd.f32 %v2247, %v2990
        %v3061 = vadd.f32 %v2252, %v2995
        %v3062 = vadd.f32 %v2257, %v3000
        %v3063 = vadd.f32 %v2262, %v3005
        %v3064 = vadd.f32 %v2267, %v3010
        %v3065 = vadd.f32 %v2272, %v3015
        %v3066 = vadd.f32 %v2277, %v3020
        %v3067 = vadd.f32 %v2282, %v3025
        %v3068 = vadd.f32 %v2287, %v3030
        %v3069 = vadd.f32 %v2292, %v3035
        %v3070 = vld [vmem:[%s4] sm:$0x1]
        %v3072 = vlaneseq
        %v3073 = vshrl.u32 %v3072, 7
        %v3074 = vsub.s32 0, %v3073
        %v3075 = vrot.slane %v3070, %v3074
        %v3077 = vadd.f32 %v3038, %v3075
        %v3078 = vadd.f32 %v3039, %v3075
        %v3079 = vadd.f32 %v3040, %v3075
        %v3080 = vadd.f32 %v3041, %v3075
        %v3081 = vadd.f32 %v3042, %v3075
        %v3082 = vadd.f32 %v3043, %v3075
        %v3083 = vadd.f32 %v3044, %v3075
        %v3084 = vadd.f32 %v3045, %v3075
        %v3085 = vadd.f32 %v3046, %v3075
        %v3086 = vadd.f32 %v3047, %v3075
        %v3087 = vadd.f32 %v3048, %v3075
        %v3088 = vadd.f32 %v3049, %v3075
        %v3089 = vadd.f32 %v3050, %v3075
        %v3090 = vadd.f32 %v3051, %v3075
        %v3091 = vadd.f32 %v3052, %v3075
        %v3092 = vadd.f32 %v3053, %v3075
        %v3093 = vadd.f32 %v3054, %v3075
        %v3094 = vadd.f32 %v3055, %v3075
        %v3095 = vadd.f32 %v3056, %v3075
        %v3096 = vadd.f32 %v3057, %v3075
        %v3097 = vadd.f32 %v3058, %v3075
        %v3098 = vadd.f32 %v3059, %v3075
        %v3099 = vadd.f32 %v3060, %v3075
        %v3100 = vadd.f32 %v3061, %v3075
        %v3101 = vadd.f32 %v3062, %v3075
        %v3102 = vadd.f32 %v3063, %v3075
        %v3103 = vadd.f32 %v3064, %v3075
        %v3104 = vadd.f32 %v3065, %v3075
        %v3105 = vadd.f32 %v3066, %v3075
        %v3106 = vadd.f32 %v3067, %v3075
        %v3107 = vadd.f32 %v3068, %v3075
        %v3108 = vadd.f32 %v3069, %v3075
        %v3109 = vmax.f32 %v3077, 0.0
        %v3110 = vmax.f32 %v3078, 0.0
        %v3111 = vmax.f32 %v3079, 0.0
        %v3112 = vmax.f32 %v3080, 0.0
        %v3113 = vmax.f32 %v3081, 0.0
        %v3114 = vmax.f32 %v3082, 0.0
        %v3115 = vmax.f32 %v3083, 0.0
        %v3116 = vmax.f32 %v3084, 0.0
        %v3117 = vmax.f32 %v3085, 0.0
        %v3118 = vmax.f32 %v3086, 0.0
        %v3119 = vmax.f32 %v3087, 0.0
        %v3120 = vmax.f32 %v3088, 0.0
        %v3121 = vmax.f32 %v3089, 0.0
        %v3122 = vmax.f32 %v3090, 0.0
        %v3123 = vmax.f32 %v3091, 0.0
        %v3124 = vmax.f32 %v3092, 0.0
        %v3125 = vmax.f32 %v3093, 0.0
        %v3126 = vmax.f32 %v3094, 0.0
        %v3127 = vmax.f32 %v3095, 0.0
        %v3128 = vmax.f32 %v3096, 0.0
        %v3129 = vmax.f32 %v3097, 0.0
        %v3130 = vmax.f32 %v3098, 0.0
        %v3131 = vmax.f32 %v3099, 0.0
        %v3132 = vmax.f32 %v3100, 0.0
        %v3133 = vmax.f32 %v3101, 0.0
        %v3134 = vmax.f32 %v3102, 0.0
        %v3135 = vmax.f32 %v3103, 0.0
        %v3136 = vmax.f32 %v3104, 0.0
        %v3137 = vmax.f32 %v3105, 0.0
        %v3138 = vmax.f32 %v3106, 0.0
        %v3139 = vmax.f32 %v3107, 0.0
        %v3140 = vmax.f32 %v3108, 0.0
        %3141 = vst.msk [vmem:[#allocation3] sm:$0xff] %vm371, 0.0
        %3142 = vst.msk [vmem:[#allocation3 + $0x8] sm:$0xff] %vm371, 0.0
        %3143 = vst.msk [vmem:[#allocation3 + $0x10] sm:$0x3] %vm731, 0.0
        %s3144 = scalar_lea.vmem [#allocation3], 408
        %3145 = vst.msk [vmem:[%s3144] sm:$0xff] %vm371, 0.0
        %3146 = vst.msk [vmem:[%s3144 + $0x8] sm:$0xff] %vm371, 0.0
        %3147 = vst.msk [vmem:[%s3144 + $0x10] sm:$0x3] %vm731, 0.0
        %3148 = vst.msk [vmem:[#allocation3] sm:$0x1] %vm737, 0.0
        %3149 = vst.msk [vmem:[#allocation3 + $0x18] sm:$0x1] %vm737, 0.0
        %3150 = vst.msk [vmem:[#allocation3 + $0x30] sm:$0x1] %vm737, 0.0
        %3151 = vst.msk [vmem:[#allocation3 + $0x48] sm:$0x1] %vm737, 0.0
        %3152 = vst.msk [vmem:[#allocation3 + $0x60] sm:$0x1] %vm737, 0.0
        %3153 = vst.msk [vmem:[#allocation3 + $0x78] sm:$0x1] %vm737, 0.0
        %3154 = vst.msk [vmem:[#allocation3 + $0x90] sm:$0x1] %vm737, 0.0
        %3155 = vst.msk [vmem:[#allocation3 + $0xa8] sm:$0x1] %vm737, 0.0
        %3156 = vst.msk [vmem:[#allocation3 + $0xc0] sm:$0x1] %vm737, 0.0
        %3157 = vst.msk [vmem:[#allocation3 + $0xd8] sm:$0x1] %vm737, 0.0
        %3158 = vst.msk [vmem:[#allocation3 + $0xf0] sm:$0x1] %vm737, 0.0
        %3159 = vst.msk [vmem:[#allocation3 + $0x108] sm:$0x1] %vm737, 0.0
        %3160 = vst.msk [vmem:[#allocation3 + $0x120] sm:$0x1] %vm737, 0.0
        %3161 = vst.msk [vmem:[#allocation3 + $0x138] sm:$0x1] %vm737, 0.0
        %3162 = vst.msk [vmem:[#allocation3 + $0x150] sm:$0x1] %vm737, 0.0
        %3163 = vst.msk [vmem:[#allocation3 + $0x168] sm:$0x1] %vm737, 0.0
        %3164 = vst.msk [vmem:[#allocation3 + $0x180] sm:$0x1] %vm737, 0.0
        %3165 = vst.msk [vmem:[#allocation3 + $0x198] sm:$0x1] %vm737, 0.0
        %3166 = vst.msk [vmem:[#allocation3 + $0x11] sm:$0x1] %vm737, 0.0
        %3167 = vst.msk [vmem:[#allocation3 + $0x29] sm:$0x1] %vm737, 0.0
        %3168 = vst.msk [vmem:[#allocation3 + $0x41] sm:$0x1] %vm737, 0.0
        %3169 = vst.msk [vmem:[#allocation3 + $0x59] sm:$0x1] %vm737, 0.0
        %3170 = vst.msk [vmem:[#allocation3 + $0x71] sm:$0x1] %vm737, 0.0
        %3171 = vst.msk [vmem:[#allocation3 + $0x89] sm:$0x1] %vm737, 0.0
        %3172 = vst.msk [vmem:[#allocation3 + $0xa1] sm:$0x1] %vm737, 0.0
        %3173 = vst.msk [vmem:[#allocation3 + $0xb9] sm:$0x1] %vm737, 0.0
        %3174 = vst.msk [vmem:[#allocation3 + $0xd1] sm:$0x1] %vm737, 0.0
        %3175 = vst.msk [vmem:[#allocation3 + $0xe9] sm:$0x1] %vm737, 0.0
        %3176 = vst.msk [vmem:[#allocation3 + $0x101] sm:$0x1] %vm737, 0.0
        %3177 = vst.msk [vmem:[#allocation3 + $0x119] sm:$0x1] %vm737, 0.0
        %3178 = vst.msk [vmem:[#allocation3 + $0x131] sm:$0x1] %vm737, 0.0
        %3179 = vst.msk [vmem:[#allocation3 + $0x149] sm:$0x1] %vm737, 0.0
        %3180 = vst.msk [vmem:[#allocation3 + $0x161] sm:$0x1] %vm737, 0.0
        %3181 = vst.msk [vmem:[#allocation3 + $0x179] sm:$0x1] %vm737, 0.0
        %3182 = vst.msk [vmem:[#allocation3 + $0x191] sm:$0x1] %vm737, 0.0
        %3183 = vst.msk [vmem:[#allocation3 + $0x1a9] sm:$0x1] %vm737, 0.0
        %3216 = vrot.lane.b32.xlu0 %v697, 124
        %v3217 = vpop.permute.xlu0 %3216
        %3218 = vrot.lane.b32.xlu0 %v698, 124
        %v3219 = vpop.permute.xlu0 %3218
        %3220 = vrot.lane.b32.xlu0 %v699, 124
        %v3221 = vpop.permute.xlu0 %3220
        %3222 = vrot.lane.b32.xlu0 %v700, 124
        %v3223 = vpop.permute.xlu0 %3222
        %3224 = vrot.lane.b32.xlu0 %v701, 124
        %v3225 = vpop.permute.xlu0 %3224
        %3226 = vrot.lane.b32.xlu0 %v702, 124
        %v3227 = vpop.permute.xlu0 %3226
        %3228 = vrot.lane.b32.xlu0 %v703, 124
        %v3229 = vpop.permute.xlu0 %3228
        %3230 = vrot.lane.b32.xlu0 %v704, 124
        %v3231 = vpop.permute.xlu0 %3230
        %3232 = vrot.lane.b32.xlu0 %v705, 124
        %v3233 = vpop.permute.xlu0 %3232
        %3234 = vrot.lane.b32.xlu0 %v706, 124
        %v3235 = vpop.permute.xlu0 %3234
        %3236 = vrot.lane.b32.xlu0 %v707, 124
        %v3237 = vpop.permute.xlu0 %3236
        %3238 = vrot.lane.b32.xlu0 %v708, 124
        %v3239 = vpop.permute.xlu0 %3238
        %3240 = vrot.lane.b32.xlu0 %v709, 124
        %v3241 = vpop.permute.xlu0 %3240
        %3242 = vrot.lane.b32.xlu0 %v710, 124
        %v3243 = vpop.permute.xlu0 %3242
        %3244 = vrot.lane.b32.xlu0 %v711, 124
        %v3245 = vpop.permute.xlu0 %3244
        %3246 = vrot.lane.b32.xlu0 %v712, 124
        %v3247 = vpop.permute.xlu0 %3246
        %3248 = vrot.lane.b32.xlu0 %v713, 124
        %v3249 = vpop.permute.xlu0 %3248
        %3250 = vrot.lane.b32.xlu0 %v714, 124
        %v3251 = vpop.permute.xlu0 %3250
        %3252 = vrot.lane.b32.xlu0 %v715, 124
        %v3253 = vpop.permute.xlu0 %3252
        %3254 = vrot.lane.b32.xlu0 %v716, 124
        %v3255 = vpop.permute.xlu0 %3254
        %3256 = vrot.lane.b32.xlu0 %v717, 124
        %v3257 = vpop.permute.xlu0 %3256
        %3258 = vrot.lane.b32.xlu0 %v718, 124
        %v3259 = vpop.permute.xlu0 %3258
        %3260 = vrot.lane.b32.xlu0 %v719, 124
        %v3261 = vpop.permute.xlu0 %3260
        %3262 = vrot.lane.b32.xlu0 %v720, 124
        %v3263 = vpop.permute.xlu0 %3262
        %3264 = vrot.lane.b32.xlu0 %v721, 124
        %v3265 = vpop.permute.xlu0 %3264
        %3266 = vrot.lane.b32.xlu0 %v722, 124
        %v3267 = vpop.permute.xlu0 %3266
        %3268 = vrot.lane.b32.xlu0 %v723, 124
        %v3269 = vpop.permute.xlu0 %3268
        %3270 = vrot.lane.b32.xlu0 %v724, 124
        %v3271 = vpop.permute.xlu0 %3270
        %3272 = vrot.lane.b32.xlu0 %v725, 124
        %v3273 = vpop.permute.xlu0 %3272
        %3274 = vrot.lane.b32.xlu0 %v726, 124
        %v3275 = vpop.permute.xlu0 %3274
        %3276 = vrot.lane.b32.xlu0 %v727, 124
        %v3277 = vpop.permute.xlu0 %3276
        %3278 = vrot.lane.b32.xlu0 %v728, 124
        %v3279 = vpop.permute.xlu0 %3278
        %s3312 = scalar_lea.vmem [#allocation3], 24
        %3313 = vst.msk [vmem:[%s3312 + $0x1] sm:$0xff] %vm371, %v3217
        %3314 = vst.msk [vmem:[%s3312 + $0x9] sm:$0xff] %vm371, %v3219
        %3315 = vst.msk [vmem:[%s3312 + $0x19] sm:$0xff] %vm371, %v3221
        %3316 = vst.msk [vmem:[%s3312 + $0x21] sm:$0xff] %vm371, %v3223
        %3317 = vst.msk [vmem:[%s3312 + $0x31] sm:$0xff] %vm371, %v3225
        %3318 = vst.msk [vmem:[%s3312 + $0x39] sm:$0xff] %vm371, %v3227
        %3319 = vst.msk [vmem:[%s3312 + $0x49] sm:$0xff] %vm371, %v3229
        %3320 = vst.msk [vmem:[%s3312 + $0x51] sm:$0xff] %vm371, %v3231
        %3321 = vst.msk [vmem:[%s3312 + $0x61] sm:$0xff] %vm371, %v3233
        %3322 = vst.msk [vmem:[%s3312 + $0x69] sm:$0xff] %vm371, %v3235
        %3323 = vst.msk [vmem:[%s3312 + $0x79] sm:$0xff] %vm371, %v3237
        %3324 = vst.msk [vmem:[%s3312 + $0x81] sm:$0xff] %vm371, %v3239
        %3325 = vst.msk [vmem:[%s3312 + $0x91] sm:$0xff] %vm371, %v3241
        %3326 = vst.msk [vmem:[%s3312 + $0x99] sm:$0xff] %vm371, %v3243
        %3327 = vst.msk [vmem:[%s3312 + $0xa9] sm:$0xff] %vm371, %v3245
        %3328 = vst.msk [vmem:[%s3312 + $0xb1] sm:$0xff] %vm371, %v3247
        %3329 = vst.msk [vmem:[%s3312 + $0xc1] sm:$0xff] %vm371, %v3249
        %3330 = vst.msk [vmem:[%s3312 + $0xc9] sm:$0xff] %vm371, %v3251
        %3331 = vst.msk [vmem:[%s3312 + $0xd9] sm:$0xff] %vm371, %v3253
        %3332 = vst.msk [vmem:[%s3312 + $0xe1] sm:$0xff] %vm371, %v3255
        %3333 = vst.msk [vmem:[%s3312 + $0xf1] sm:$0xff] %vm371, %v3257
        %3334 = vst.msk [vmem:[%s3312 + $0xf9] sm:$0xff] %vm371, %v3259
        %3335 = vst.msk [vmem:[%s3312 + $0x109] sm:$0xff] %vm371, %v3261
        %3336 = vst.msk [vmem:[%s3312 + $0x111] sm:$0xff] %vm371, %v3263
        %3337 = vst.msk [vmem:[%s3312 + $0x121] sm:$0xff] %vm371, %v3265
        %3338 = vst.msk [vmem:[%s3312 + $0x129] sm:$0xff] %vm371, %v3267
        %3339 = vst.msk [vmem:[%s3312 + $0x139] sm:$0xff] %vm371, %v3269
        %3340 = vst.msk [vmem:[%s3312 + $0x141] sm:$0xff] %vm371, %v3271
        %3341 = vst.msk [vmem:[%s3312 + $0x151] sm:$0xff] %vm371, %v3273
        %3342 = vst.msk [vmem:[%s3312 + $0x159] sm:$0xff] %vm371, %v3275
        %3343 = vst.msk [vmem:[%s3312 + $0x169] sm:$0xff] %vm371, %v3277
        %3344 = vst.msk [vmem:[%s3312 + $0x171] sm:$0xff] %vm371, %v3279
        %v3345 = vld [vmem:[#allocation3] sm:$0xff]
        %v3346 = vld [vmem:[#allocation3 + $0x8] sm:$0xff]
        %v3347 = vld [vmem:[#allocation3 + $0x18] sm:$0xff]
        %v3348 = vld [vmem:[#allocation3 + $0x20] sm:$0xff]
        %v3349 = vld [vmem:[#allocation3 + $0x30] sm:$0xff]
        %v3350 = vld [vmem:[#allocation3 + $0x38] sm:$0xff]
        %v3351 = vld [vmem:[#allocation3 + $0x48] sm:$0xff]
        %v3352 = vld [vmem:[#allocation3 + $0x50] sm:$0xff]
        %v3353 = vld [vmem:[#allocation3 + $0x60] sm:$0xff]
        %v3354 = vld [vmem:[#allocation3 + $0x68] sm:$0xff]
        %v3355 = vld [vmem:[#allocation3 + $0x78] sm:$0xff]
        %v3356 = vld [vmem:[#allocation3 + $0x80] sm:$0xff]
        %v3357 = vld [vmem:[#allocation3 + $0x90] sm:$0xff]
        %v3358 = vld [vmem:[#allocation3 + $0x98] sm:$0xff]
        %v3359 = vld [vmem:[#allocation3 + $0xa8] sm:$0xff]
        %v3360 = vld [vmem:[#allocation3 + $0xb0] sm:$0xff]
        %v3361 = vld [vmem:[#allocation3 + $0xc0] sm:$0xff]
        %v3362 = vld [vmem:[#allocation3 + $0xc8] sm:$0xff]
        %v3363 = vld [vmem:[#allocation3 + $0xd8] sm:$0xff]
        %v3364 = vld [vmem:[#allocation3 + $0xe0] sm:$0xff]
        %v3365 = vld [vmem:[#allocation3 + $0xf0] sm:$0xff]
        %v3366 = vld [vmem:[#allocation3 + $0xf8] sm:$0xff]
        %v3367 = vld [vmem:[#allocation3 + $0x108] sm:$0xff]
        %v3368 = vld [vmem:[#allocation3 + $0x110] sm:$0xff]
        %v3369 = vld [vmem:[#allocation3 + $0x120] sm:$0xff]
        %v3370 = vld [vmem:[#allocation3 + $0x128] sm:$0xff]
        %v3371 = vld [vmem:[#allocation3 + $0x138] sm:$0xff]
        %v3372 = vld [vmem:[#allocation3 + $0x140] sm:$0xff]
        %v3373 = vld [vmem:[#allocation3 + $0x150] sm:$0xff]
        %v3374 = vld [vmem:[#allocation3 + $0x158] sm:$0xff]
        %v3375 = vld [vmem:[#allocation3 + $0x168] sm:$0xff]
        %v3376 = vld [vmem:[#allocation3 + $0x170] sm:$0xff]
        %v3377 = vld [vmem:[%s3312] sm:$0xff]
        %v3378 = vld [vmem:[%s3312 + $0x8] sm:$0xff]
        %v3379 = vld [vmem:[%s3312 + $0x18] sm:$0xff]
        %v3380 = vld [vmem:[%s3312 + $0x20] sm:$0xff]
        %v3381 = vld [vmem:[%s3312 + $0x30] sm:$0xff]
        %v3382 = vld [vmem:[%s3312 + $0x38] sm:$0xff]
        %v3383 = vld [vmem:[%s3312 + $0x48] sm:$0xff]
        %v3384 = vld [vmem:[%s3312 + $0x50] sm:$0xff]
        %v3385 = vld [vmem:[%s3312 + $0x60] sm:$0xff]
        %v3386 = vld [vmem:[%s3312 + $0x68] sm:$0xff]
        %v3387 = vld [vmem:[%s3312 + $0x78] sm:$0xff]
        %v3388 = vld [vmem:[%s3312 + $0x80] sm:$0xff]
        %v3389 = vld [vmem:[%s3312 + $0x90] sm:$0xff]
        %v3390 = vld [vmem:[%s3312 + $0x98] sm:$0xff]
        %v3391 = vld [vmem:[%s3312 + $0xa8] sm:$0xff]
        %v3392 = vld [vmem:[%s3312 + $0xb0] sm:$0xff]
        %v3393 = vld [vmem:[%s3312 + $0xc0] sm:$0xff]
        %v3394 = vld [vmem:[%s3312 + $0xc8] sm:$0xff]
        %v3395 = vld [vmem:[%s3312 + $0xd8] sm:$0xff]
        %v3396 = vld [vmem:[%s3312 + $0xe0] sm:$0xff]
        %v3397 = vld [vmem:[%s3312 + $0xf0] sm:$0xff]
        %v3398 = vld [vmem:[%s3312 + $0xf8] sm:$0xff]
        %v3399 = vld [vmem:[%s3312 + $0x108] sm:$0xff]
        %v3400 = vld [vmem:[%s3312 + $0x110] sm:$0xff]
        %v3401 = vld [vmem:[%s3312 + $0x120] sm:$0xff]
        %v3402 = vld [vmem:[%s3312 + $0x128] sm:$0xff]
        %v3403 = vld [vmem:[%s3312 + $0x138] sm:$0xff]
        %v3404 = vld [vmem:[%s3312 + $0x140] sm:$0xff]
        %v3405 = vld [vmem:[%s3312 + $0x150] sm:$0xff]
        %v3406 = vld [vmem:[%s3312 + $0x158] sm:$0xff]
        %v3407 = vld [vmem:[%s3312 + $0x168] sm:$0xff]
        %v3408 = vld [vmem:[%s3312 + $0x170] sm:$0xff]
        %s3409 = scalar_lea.vmem [#allocation3], 48
        %v3410 = vld [vmem:[%s3409] sm:$0xff]
        %v3411 = vld [vmem:[%s3409 + $0x8] sm:$0xff]
        %v3412 = vld [vmem:[%s3409 + $0x18] sm:$0xff]
        %v3413 = vld [vmem:[%s3409 + $0x20] sm:$0xff]
        %v3414 = vld [vmem:[%s3409 + $0x30] sm:$0xff]
        %v3415 = vld [vmem:[%s3409 + $0x38] sm:$0xff]
        %v3416 = vld [vmem:[%s3409 + $0x48] sm:$0xff]
        %v3417 = vld [vmem:[%s3409 + $0x50] sm:$0xff]
        %v3418 = vld [vmem:[%s3409 + $0x60] sm:$0xff]
        %v3419 = vld [vmem:[%s3409 + $0x68] sm:$0xff]
        %v3420 = vld [vmem:[%s3409 + $0x78] sm:$0xff]
        %v3421 = vld [vmem:[%s3409 + $0x80] sm:$0xff]
        %v3422 = vld [vmem:[%s3409 + $0x90] sm:$0xff]
        %v3423 = vld [vmem:[%s3409 + $0x98] sm:$0xff]
        %v3424 = vld [vmem:[%s3409 + $0xa8] sm:$0xff]
        %v3425 = vld [vmem:[%s3409 + $0xb0] sm:$0xff]
        %v3426 = vld [vmem:[%s3409 + $0xc0] sm:$0xff]
        %v3427 = vld [vmem:[%s3409 + $0xc8] sm:$0xff]
        %v3428 = vld [vmem:[%s3409 + $0xd8] sm:$0xff]
        %v3429 = vld [vmem:[%s3409 + $0xe0] sm:$0xff]
        %v3430 = vld [vmem:[%s3409 + $0xf0] sm:$0xff]
        %v3431 = vld [vmem:[%s3409 + $0xf8] sm:$0xff]
        %v3432 = vld [vmem:[%s3409 + $0x108] sm:$0xff]
        %v3433 = vld [vmem:[%s3409 + $0x110] sm:$0xff]
        %v3434 = vld [vmem:[%s3409 + $0x120] sm:$0xff]
        %v3435 = vld [vmem:[%s3409 + $0x128] sm:$0xff]
        %v3436 = vld [vmem:[%s3409 + $0x138] sm:$0xff]
        %v3437 = vld [vmem:[%s3409 + $0x140] sm:$0xff]
        %v3438 = vld [vmem:[%s3409 + $0x150] sm:$0xff]
        %v3439 = vld [vmem:[%s3409 + $0x158] sm:$0xff]
        %v3440 = vld [vmem:[%s3409 + $0x168] sm:$0xff]
        %v3441 = vld [vmem:[%s3409 + $0x170] sm:$0xff]
        %3474 = vrot.lane.b32.xlu0 %v3377, 4
        %v3475 = vpop.permute.xlu0 %3474
        %3476 = vrot.lane.b32.xlu0 %v3378, 4
        %v3477 = vpop.permute.xlu0 %3476
        %3478 = vrot.lane.b32.xlu0 %v3379, 4
        %v3479 = vpop.permute.xlu0 %3478
        %3480 = vrot.lane.b32.xlu0 %v3380, 4
        %v3481 = vpop.permute.xlu0 %3480
        %3482 = vrot.lane.b32.xlu0 %v3381, 4
        %v3483 = vpop.permute.xlu0 %3482
        %3484 = vrot.lane.b32.xlu0 %v3382, 4
        %v3485 = vpop.permute.xlu0 %3484
        %3486 = vrot.lane.b32.xlu0 %v3383, 4
        %v3487 = vpop.permute.xlu0 %3486
        %3488 = vrot.lane.b32.xlu0 %v3384, 4
        %v3489 = vpop.permute.xlu0 %3488
        %3490 = vrot.lane.b32.xlu0 %v3385, 4
        %v3491 = vpop.permute.xlu0 %3490
        %3492 = vrot.lane.b32.xlu0 %v3386, 4
        %v3493 = vpop.permute.xlu0 %3492
        %3494 = vrot.lane.b32.xlu0 %v3387, 4
        %v3495 = vpop.permute.xlu0 %3494
        %3496 = vrot.lane.b32.xlu0 %v3388, 4
        %v3497 = vpop.permute.xlu0 %3496
        %3498 = vrot.lane.b32.xlu0 %v3389, 4
        %v3499 = vpop.permute.xlu0 %3498
        %3500 = vrot.lane.b32.xlu0 %v3390, 4
        %v3501 = vpop.permute.xlu0 %3500
        %3502 = vrot.lane.b32.xlu0 %v3391, 4
        %v3503 = vpop.permute.xlu0 %3502
        %3504 = vrot.lane.b32.xlu0 %v3392, 4
        %v3505 = vpop.permute.xlu0 %3504
        %3506 = vrot.lane.b32.xlu0 %v3393, 4
        %v3507 = vpop.permute.xlu0 %3506
        %3508 = vrot.lane.b32.xlu0 %v3394, 4
        %v3509 = vpop.permute.xlu0 %3508
        %3510 = vrot.lane.b32.xlu0 %v3395, 4
        %v3511 = vpop.permute.xlu0 %3510
        %3512 = vrot.lane.b32.xlu0 %v3396, 4
        %v3513 = vpop.permute.xlu0 %3512
        %3514 = vrot.lane.b32.xlu0 %v3397, 4
        %v3515 = vpop.permute.xlu0 %3514
        %3516 = vrot.lane.b32.xlu0 %v3398, 4
        %v3517 = vpop.permute.xlu0 %3516
        %3518 = vrot.lane.b32.xlu0 %v3399, 4
        %v3519 = vpop.permute.xlu0 %3518
        %3520 = vrot.lane.b32.xlu0 %v3400, 4
        %v3521 = vpop.permute.xlu0 %3520
        %3522 = vrot.lane.b32.xlu0 %v3401, 4
        %v3523 = vpop.permute.xlu0 %3522
        %3524 = vrot.lane.b32.xlu0 %v3402, 4
        %v3525 = vpop.permute.xlu0 %3524
        %3526 = vrot.lane.b32.xlu0 %v3403, 4
        %v3527 = vpop.permute.xlu0 %3526
        %3528 = vrot.lane.b32.xlu0 %v3404, 4
        %v3529 = vpop.permute.xlu0 %3528
        %3530 = vrot.lane.b32.xlu0 %v3405, 4
        %v3531 = vpop.permute.xlu0 %3530
        %3532 = vrot.lane.b32.xlu0 %v3406, 4
        %v3533 = vpop.permute.xlu0 %3532
        %3534 = vrot.lane.b32.xlu0 %v3407, 4
        %v3535 = vpop.permute.xlu0 %3534
        %3536 = vrot.lane.b32.xlu0 %v3408, 4
        %v3537 = vpop.permute.xlu0 %3536
        %3602 = vrot.lane.b32.xlu0 %v3410, 8
        %v3603 = vpop.permute.xlu0 %3602
        %3604 = vrot.lane.b32.xlu0 %v3411, 8
        %v3605 = vpop.permute.xlu0 %3604
        %3606 = vrot.lane.b32.xlu0 %v3412, 8
        %v3607 = vpop.permute.xlu0 %3606
        %3608 = vrot.lane.b32.xlu0 %v3413, 8
        %v3609 = vpop.permute.xlu0 %3608
        %3610 = vrot.lane.b32.xlu0 %v3414, 8
        %v3611 = vpop.permute.xlu0 %3610
        %3612 = vrot.lane.b32.xlu0 %v3415, 8
        %v3613 = vpop.permute.xlu0 %3612
        %3614 = vrot.lane.b32.xlu0 %v3416, 8
        %v3615 = vpop.permute.xlu0 %3614
        %3616 = vrot.lane.b32.xlu0 %v3417, 8
        %v3617 = vpop.permute.xlu0 %3616
        %3618 = vrot.lane.b32.xlu0 %v3418, 8
        %v3619 = vpop.permute.xlu0 %3618
        %3620 = vrot.lane.b32.xlu0 %v3419, 8
        %v3621 = vpop.permute.xlu0 %3620
        %3622 = vrot.lane.b32.xlu0 %v3420, 8
        %v3623 = vpop.permute.xlu0 %3622
        %3624 = vrot.lane.b32.xlu0 %v3421, 8
        %v3625 = vpop.permute.xlu0 %3624
        %3626 = vrot.lane.b32.xlu0 %v3422, 8
        %v3627 = vpop.permute.xlu0 %3626
        %3628 = vrot.lane.b32.xlu0 %v3423, 8
        %v3629 = vpop.permute.xlu0 %3628
        %3630 = vrot.lane.b32.xlu0 %v3424, 8
        %v3631 = vpop.permute.xlu0 %3630
        %3632 = vrot.lane.b32.xlu0 %v3425, 8
        %v3633 = vpop.permute.xlu0 %3632
        %3634 = vrot.lane.b32.xlu0 %v3426, 8
        %v3635 = vpop.permute.xlu0 %3634
        %3636 = vrot.lane.b32.xlu0 %v3427, 8
        %v3637 = vpop.permute.xlu0 %3636
        %3638 = vrot.lane.b32.xlu0 %v3428, 8
        %v3639 = vpop.permute.xlu0 %3638
        %3640 = vrot.lane.b32.xlu0 %v3429, 8
        %v3641 = vpop.permute.xlu0 %3640
        %3642 = vrot.lane.b32.xlu0 %v3430, 8
        %v3643 = vpop.permute.xlu0 %3642
        %3644 = vrot.lane.b32.xlu0 %v3431, 8
        %v3645 = vpop.permute.xlu0 %3644
        %3646 = vrot.lane.b32.xlu0 %v3432, 8
        %v3647 = vpop.permute.xlu0 %3646
        %3648 = vrot.lane.b32.xlu0 %v3433, 8
        %v3649 = vpop.permute.xlu0 %3648
        %3650 = vrot.lane.b32.xlu0 %v3434, 8
        %v3651 = vpop.permute.xlu0 %3650
        %3652 = vrot.lane.b32.xlu0 %v3435, 8
        %v3653 = vpop.permute.xlu0 %3652
        %3654 = vrot.lane.b32.xlu0 %v3436, 8
        %v3655 = vpop.permute.xlu0 %3654
        %3656 = vrot.lane.b32.xlu0 %v3437, 8
        %v3657 = vpop.permute.xlu0 %3656
        %3658 = vrot.lane.b32.xlu0 %v3438, 8
        %v3659 = vpop.permute.xlu0 %3658
        %3660 = vrot.lane.b32.xlu0 %v3439, 8
        %v3661 = vpop.permute.xlu0 %3660
        %3662 = vrot.lane.b32.xlu0 %v3440, 8
        %v3663 = vpop.permute.xlu0 %3662
        %3664 = vrot.lane.b32.xlu0 %v3441, 8
        %v3665 = vpop.permute.xlu0 %3664
        %v3698 = vsel %vm371, %v3345, %v3475
        %v3699 = vsel %vm371, %v3346, %v3477
        %v3700 = vsel %vm371, %v3347, %v3479
        %v3701 = vsel %vm371, %v3348, %v3481
        %v3702 = vsel %vm371, %v3349, %v3483
        %v3703 = vsel %vm371, %v3350, %v3485
        %v3704 = vsel %vm371, %v3351, %v3487
        %v3705 = vsel %vm371, %v3352, %v3489
        %v3706 = vsel %vm371, %v3353, %v3491
        %v3707 = vsel %vm371, %v3354, %v3493
        %v3708 = vsel %vm371, %v3355, %v3495
        %v3709 = vsel %vm371, %v3356, %v3497
        %v3710 = vsel %vm371, %v3357, %v3499
        %v3711 = vsel %vm371, %v3358, %v3501
        %v3712 = vsel %vm371, %v3359, %v3503
        %v3713 = vsel %vm371, %v3360, %v3505
        %v3714 = vsel %vm371, %v3361, %v3507
        %v3715 = vsel %vm371, %v3362, %v3509
        %v3716 = vsel %vm371, %v3363, %v3511
        %v3717 = vsel %vm371, %v3364, %v3513
        %v3718 = vsel %vm371, %v3365, %v3515
        %v3719 = vsel %vm371, %v3366, %v3517
        %v3720 = vsel %vm371, %v3367, %v3519
        %v3721 = vsel %vm371, %v3368, %v3521
        %v3722 = vsel %vm371, %v3369, %v3523
        %v3723 = vsel %vm371, %v3370, %v3525
        %v3724 = vsel %vm371, %v3371, %v3527
        %v3725 = vsel %vm371, %v3372, %v3529
        %v3726 = vsel %vm371, %v3373, %v3531
        %v3727 = vsel %vm371, %v3374, %v3533
        %v3728 = vsel %vm371, %v3375, %v3535
        %v3729 = vsel %vm371, %v3376, %v3537
        %v3730 = vsel %vm1192, %v3698, %v3603
        %v3731 = vsel %vm1192, %v3699, %v3605
        %v3732 = vsel %vm1192, %v3700, %v3607
        %v3733 = vsel %vm1192, %v3701, %v3609
        %v3734 = vsel %vm1192, %v3702, %v3611
        %v3735 = vsel %vm1192, %v3703, %v3613
        %v3736 = vsel %vm1192, %v3704, %v3615
        %v3737 = vsel %vm1192, %v3705, %v3617
        %v3738 = vsel %vm1192, %v3706, %v3619
        %v3739 = vsel %vm1192, %v3707, %v3621
        %v3740 = vsel %vm1192, %v3708, %v3623
        %v3741 = vsel %vm1192, %v3709, %v3625
        %v3742 = vsel %vm1192, %v3710, %v3627
        %v3743 = vsel %vm1192, %v3711, %v3629
        %v3744 = vsel %vm1192, %v3712, %v3631
        %v3745 = vsel %vm1192, %v3713, %v3633
        %v3746 = vsel %vm1192, %v3714, %v3635
        %v3747 = vsel %vm1192, %v3715, %v3637
        %v3748 = vsel %vm1192, %v3716, %v3639
        %v3749 = vsel %vm1192, %v3717, %v3641
        %v3750 = vsel %vm1192, %v3718, %v3643
        %v3751 = vsel %vm1192, %v3719, %v3645
        %v3752 = vsel %vm1192, %v3720, %v3647
        %v3753 = vsel %vm1192, %v3721, %v3649
        %v3754 = vsel %vm1192, %v3722, %v3651
        %v3755 = vsel %vm1192, %v3723, %v3653
        %v3756 = vsel %vm1192, %v3724, %v3655
        %v3757 = vsel %vm1192, %v3725, %v3657
        %v3758 = vsel %vm1192, %v3726, %v3659
        %v3759 = vsel %vm1192, %v3727, %v3661
        %v3760 = vsel %vm1192, %v3728, %v3663
        %v3761 = vsel %vm1192, %v3729, %v3665
        %v3762 = vld [vmem:[%s5] sm:$0xff]
        %v3763 = vld [vmem:[%s5 + $0x8] sm:$0xf]
        %v3764 = vld [vmem:[#allocation3 + $0x1] sm:$0xff]
        %v3765 = vld [vmem:[#allocation3 + $0x9] sm:$0xff]
        %v3766 = vld [vmem:[#allocation3 + $0x19] sm:$0xff]
        %v3767 = vld [vmem:[#allocation3 + $0x21] sm:$0xff]
        %v3768 = vld [vmem:[#allocation3 + $0x31] sm:$0xff]
        %v3769 = vld [vmem:[#allocation3 + $0x39] sm:$0xff]
        %v3770 = vld [vmem:[#allocation3 + $0x49] sm:$0xff]
        %v3771 = vld [vmem:[#allocation3 + $0x51] sm:$0xff]
        %v3772 = vld [vmem:[#allocation3 + $0x61] sm:$0xff]
        %v3773 = vld [vmem:[#allocation3 + $0x69] sm:$0xff]
        %v3774 = vld [vmem:[#allocation3 + $0x79] sm:$0xff]
        %v3775 = vld [vmem:[#allocation3 + $0x81] sm:$0xff]
        %v3776 = vld [vmem:[#allocation3 + $0x91] sm:$0xff]
        %v3777 = vld [vmem:[#allocation3 + $0x99] sm:$0xff]
        %v3778 = vld [vmem:[#allocation3 + $0xa9] sm:$0xff]
        %v3779 = vld [vmem:[#allocation3 + $0xb1] sm:$0xff]
        %v3780 = vld [vmem:[#allocation3 + $0xc1] sm:$0xff]
        %v3781 = vld [vmem:[#allocation3 + $0xc9] sm:$0xff]
        %v3782 = vld [vmem:[#allocation3 + $0xd9] sm:$0xff]
        %v3783 = vld [vmem:[#allocation3 + $0xe1] sm:$0xff]
        %v3784 = vld [vmem:[#allocation3 + $0xf1] sm:$0xff]
        %v3785 = vld [vmem:[#allocation3 + $0xf9] sm:$0xff]
        %v3786 = vld [vmem:[#allocation3 + $0x109] sm:$0xff]
        %v3787 = vld [vmem:[#allocation3 + $0x111] sm:$0xff]
        %v3788 = vld [vmem:[#allocation3 + $0x121] sm:$0xff]
        %v3789 = vld [vmem:[#allocation3 + $0x129] sm:$0xff]
        %v3790 = vld [vmem:[#allocation3 + $0x139] sm:$0xff]
        %v3791 = vld [vmem:[#allocation3 + $0x141] sm:$0xff]
        %v3792 = vld [vmem:[#allocation3 + $0x151] sm:$0xff]
        %v3793 = vld [vmem:[#allocation3 + $0x159] sm:$0xff]
        %v3794 = vld [vmem:[#allocation3 + $0x169] sm:$0xff]
        %v3795 = vld [vmem:[#allocation3 + $0x171] sm:$0xff]
        %v3796 = vld [vmem:[%s3312 + $0x1] sm:$0xff]
        %v3797 = vld [vmem:[%s3312 + $0x9] sm:$0xff]
        %v3798 = vld [vmem:[%s3312 + $0x19] sm:$0xff]
        %v3799 = vld [vmem:[%s3312 + $0x21] sm:$0xff]
        %v3800 = vld [vmem:[%s3312 + $0x31] sm:$0xff]
        %v3801 = vld [vmem:[%s3312 + $0x39] sm:$0xff]
        %v3802 = vld [vmem:[%s3312 + $0x49] sm:$0xff]
        %v3803 = vld [vmem:[%s3312 + $0x51] sm:$0xff]
        %v3804 = vld [vmem:[%s3312 + $0x61] sm:$0xff]
        %v3805 = vld [vmem:[%s3312 + $0x69] sm:$0xff]
        %v3806 = vld [vmem:[%s3312 + $0x79] sm:$0xff]
        %v3807 = vld [vmem:[%s3312 + $0x81] sm:$0xff]
        %v3808 = vld [vmem:[%s3312 + $0x91] sm:$0xff]
        %v3809 = vld [vmem:[%s3312 + $0x99] sm:$0xff]
        %v3810 = vld [vmem:[%s3312 + $0xa9] sm:$0xff]
        %v3811 = vld [vmem:[%s3312 + $0xb1] sm:$0xff]
        %v3812 = vld [vmem:[%s3312 + $0xc1] sm:$0xff]
        %v3813 = vld [vmem:[%s3312 + $0xc9] sm:$0xff]
        %v3814 = vld [vmem:[%s3312 + $0xd9] sm:$0xff]
        %v3815 = vld [vmem:[%s3312 + $0xe1] sm:$0xff]
        %v3816 = vld [vmem:[%s3312 + $0xf1] sm:$0xff]
        %v3817 = vld [vmem:[%s3312 + $0xf9] sm:$0xff]
        %v3818 = vld [vmem:[%s3312 + $0x109] sm:$0xff]
        %v3819 = vld [vmem:[%s3312 + $0x111] sm:$0xff]
        %v3820 = vld [vmem:[%s3312 + $0x121] sm:$0xff]
        %v3821 = vld [vmem:[%s3312 + $0x129] sm:$0xff]
        %v3822 = vld [vmem:[%s3312 + $0x139] sm:$0xff]
        %v3823 = vld [vmem:[%s3312 + $0x141] sm:$0xff]
        %v3824 = vld [vmem:[%s3312 + $0x151] sm:$0xff]
        %v3825 = vld [vmem:[%s3312 + $0x159] sm:$0xff]
        %v3826 = vld [vmem:[%s3312 + $0x169] sm:$0xff]
        %v3827 = vld [vmem:[%s3312 + $0x171] sm:$0xff]
        %v3828 = vld [vmem:[%s3409 + $0x1] sm:$0xff]
        %v3829 = vld [vmem:[%s3409 + $0x9] sm:$0xff]
        %v3830 = vld [vmem:[%s3409 + $0x19] sm:$0xff]
        %v3831 = vld [vmem:[%s3409 + $0x21] sm:$0xff]
        %v3832 = vld [vmem:[%s3409 + $0x31] sm:$0xff]
        %v3833 = vld [vmem:[%s3409 + $0x39] sm:$0xff]
        %v3834 = vld [vmem:[%s3409 + $0x49] sm:$0xff]
        %v3835 = vld [vmem:[%s3409 + $0x51] sm:$0xff]
        %v3836 = vld [vmem:[%s3409 + $0x61] sm:$0xff]
        %v3837 = vld [vmem:[%s3409 + $0x69] sm:$0xff]
        %v3838 = vld [vmem:[%s3409 + $0x79] sm:$0xff]
        %v3839 = vld [vmem:[%s3409 + $0x81] sm:$0xff]
        %v3840 = vld [vmem:[%s3409 + $0x91] sm:$0xff]
        %v3841 = vld [vmem:[%s3409 + $0x99] sm:$0xff]
        %v3842 = vld [vmem:[%s3409 + $0xa9] sm:$0xff]
        %v3843 = vld [vmem:[%s3409 + $0xb1] sm:$0xff]
        %v3844 = vld [vmem:[%s3409 + $0xc1] sm:$0xff]
        %v3845 = vld [vmem:[%s3409 + $0xc9] sm:$0xff]
        %v3846 = vld [vmem:[%s3409 + $0xd9] sm:$0xff]
        %v3847 = vld [vmem:[%s3409 + $0xe1] sm:$0xff]
        %v3848 = vld [vmem:[%s3409 + $0xf1] sm:$0xff]
        %v3849 = vld [vmem:[%s3409 + $0xf9] sm:$0xff]
        %v3850 = vld [vmem:[%s3409 + $0x109] sm:$0xff]
        %v3851 = vld [vmem:[%s3409 + $0x111] sm:$0xff]
        %v3852 = vld [vmem:[%s3409 + $0x121] sm:$0xff]
        %v3853 = vld [vmem:[%s3409 + $0x129] sm:$0xff]
        %v3854 = vld [vmem:[%s3409 + $0x139] sm:$0xff]
        %v3855 = vld [vmem:[%s3409 + $0x141] sm:$0xff]
        %v3856 = vld [vmem:[%s3409 + $0x151] sm:$0xff]
        %v3857 = vld [vmem:[%s3409 + $0x159] sm:$0xff]
        %v3858 = vld [vmem:[%s3409 + $0x169] sm:$0xff]
        %v3859 = vld [vmem:[%s3409 + $0x171] sm:$0xff]
        %3892 = vrot.lane.b32.xlu0 %v3796, 4
        %v3893 = vpop.permute.xlu0 %3892
        %3894 = vrot.lane.b32.xlu0 %v3797, 4
        %v3895 = vpop.permute.xlu0 %3894
        %3896 = vrot.lane.b32.xlu0 %v3798, 4
        %v3897 = vpop.permute.xlu0 %3896
        %3898 = vrot.lane.b32.xlu0 %v3799, 4
        %v3899 = vpop.permute.xlu0 %3898
        %3900 = vrot.lane.b32.xlu0 %v3800, 4
        %v3901 = vpop.permute.xlu0 %3900
        %3902 = vrot.lane.b32.xlu0 %v3801, 4
        %v3903 = vpop.permute.xlu0 %3902
        %3904 = vrot.lane.b32.xlu0 %v3802, 4
        %v3905 = vpop.permute.xlu0 %3904
        %3906 = vrot.lane.b32.xlu0 %v3803, 4
        %v3907 = vpop.permute.xlu0 %3906
        %3908 = vrot.lane.b32.xlu0 %v3804, 4
        %v3909 = vpop.permute.xlu0 %3908
        %3910 = vrot.lane.b32.xlu0 %v3805, 4
        %v3911 = vpop.permute.xlu0 %3910
        %3912 = vrot.lane.b32.xlu0 %v3806, 4
        %v3913 = vpop.permute.xlu0 %3912
        %3914 = vrot.lane.b32.xlu0 %v3807, 4
        %v3915 = vpop.permute.xlu0 %3914
        %3916 = vrot.lane.b32.xlu0 %v3808, 4
        %v3917 = vpop.permute.xlu0 %3916
        %3918 = vrot.lane.b32.xlu0 %v3809, 4
        %v3919 = vpop.permute.xlu0 %3918
        %3920 = vrot.lane.b32.xlu0 %v3810, 4
        %v3921 = vpop.permute.xlu0 %3920
        %3922 = vrot.lane.b32.xlu0 %v3811, 4
        %v3923 = vpop.permute.xlu0 %3922
        %3924 = vrot.lane.b32.xlu0 %v3812, 4
        %v3925 = vpop.permute.xlu0 %3924
        %3926 = vrot.lane.b32.xlu0 %v3813, 4
        %v3927 = vpop.permute.xlu0 %3926
        %3928 = vrot.lane.b32.xlu0 %v3814, 4
        %v3929 = vpop.permute.xlu0 %3928
        %3930 = vrot.lane.b32.xlu0 %v3815, 4
        %v3931 = vpop.permute.xlu0 %3930
        %3932 = vrot.lane.b32.xlu0 %v3816, 4
        %v3933 = vpop.permute.xlu0 %3932
        %3934 = vrot.lane.b32.xlu0 %v3817, 4
        %v3935 = vpop.permute.xlu0 %3934
        %3936 = vrot.lane.b32.xlu0 %v3818, 4
        %v3937 = vpop.permute.xlu0 %3936
        %3938 = vrot.lane.b32.xlu0 %v3819, 4
        %v3939 = vpop.permute.xlu0 %3938
        %3940 = vrot.lane.b32.xlu0 %v3820, 4
        %v3941 = vpop.permute.xlu0 %3940
        %3942 = vrot.lane.b32.xlu0 %v3821, 4
        %v3943 = vpop.permute.xlu0 %3942
        %3944 = vrot.lane.b32.xlu0 %v3822, 4
        %v3945 = vpop.permute.xlu0 %3944
        %3946 = vrot.lane.b32.xlu0 %v3823, 4
        %v3947 = vpop.permute.xlu0 %3946
        %3948 = vrot.lane.b32.xlu0 %v3824, 4
        %v3949 = vpop.permute.xlu0 %3948
        %3950 = vrot.lane.b32.xlu0 %v3825, 4
        %v3951 = vpop.permute.xlu0 %3950
        %3952 = vrot.lane.b32.xlu0 %v3826, 4
        %v3953 = vpop.permute.xlu0 %3952
        %3954 = vrot.lane.b32.xlu0 %v3827, 4
        %v3955 = vpop.permute.xlu0 %3954
        %4020 = vrot.lane.b32.xlu0 %v3828, 8
        %v4021 = vpop.permute.xlu0 %4020
        %4022 = vrot.lane.b32.xlu0 %v3829, 8
        %v4023 = vpop.permute.xlu0 %4022
        %4024 = vrot.lane.b32.xlu0 %v3830, 8
        %v4025 = vpop.permute.xlu0 %4024
        %4026 = vrot.lane.b32.xlu0 %v3831, 8
        %v4027 = vpop.permute.xlu0 %4026
        %4028 = vrot.lane.b32.xlu0 %v3832, 8
        %v4029 = vpop.permute.xlu0 %4028
        %4030 = vrot.lane.b32.xlu0 %v3833, 8
        %v4031 = vpop.permute.xlu0 %4030
        %4032 = vrot.lane.b32.xlu0 %v3834, 8
        %v4033 = vpop.permute.xlu0 %4032
        %4034 = vrot.lane.b32.xlu0 %v3835, 8
        %v4035 = vpop.permute.xlu0 %4034
        %4036 = vrot.lane.b32.xlu0 %v3836, 8
        %v4037 = vpop.permute.xlu0 %4036
        %4038 = vrot.lane.b32.xlu0 %v3837, 8
        %v4039 = vpop.permute.xlu0 %4038
        %4040 = vrot.lane.b32.xlu0 %v3838, 8
        %v4041 = vpop.permute.xlu0 %4040
        %4042 = vrot.lane.b32.xlu0 %v3839, 8
        %v4043 = vpop.permute.xlu0 %4042
        %4044 = vrot.lane.b32.xlu0 %v3840, 8
        %v4045 = vpop.permute.xlu0 %4044
        %4046 = vrot.lane.b32.xlu0 %v3841, 8
        %v4047 = vpop.permute.xlu0 %4046
        %4048 = vrot.lane.b32.xlu0 %v3842, 8
        %v4049 = vpop.permute.xlu0 %4048
        %4050 = vrot.lane.b32.xlu0 %v3843, 8
        %v4051 = vpop.permute.xlu0 %4050
        %4052 = vrot.lane.b32.xlu0 %v3844, 8
        %v4053 = vpop.permute.xlu0 %4052
        %4054 = vrot.lane.b32.xlu0 %v3845, 8
        %v4055 = vpop.permute.xlu0 %4054
        %4056 = vrot.lane.b32.xlu0 %v3846, 8
        %v4057 = vpop.permute.xlu0 %4056
        %4058 = vrot.lane.b32.xlu0 %v3847, 8
        %v4059 = vpop.permute.xlu0 %4058
        %4060 = vrot.lane.b32.xlu0 %v3848, 8
        %v4061 = vpop.permute.xlu0 %4060
        %4062 = vrot.lane.b32.xlu0 %v3849, 8
        %v4063 = vpop.permute.xlu0 %4062
        %4064 = vrot.lane.b32.xlu0 %v3850, 8
        %v4065 = vpop.permute.xlu0 %4064
        %4066 = vrot.lane.b32.xlu0 %v3851, 8
        %v4067 = vpop.permute.xlu0 %4066
        %4068 = vrot.lane.b32.xlu0 %v3852, 8
        %v4069 = vpop.permute.xlu0 %4068
        %4070 = vrot.lane.b32.xlu0 %v3853, 8
        %v4071 = vpop.permute.xlu0 %4070
        %4072 = vrot.lane.b32.xlu0 %v3854, 8
        %v4073 = vpop.permute.xlu0 %4072
        %4074 = vrot.lane.b32.xlu0 %v3855, 8
        %v4075 = vpop.permute.xlu0 %4074
        %4076 = vrot.lane.b32.xlu0 %v3856, 8
        %v4077 = vpop.permute.xlu0 %4076
        %4078 = vrot.lane.b32.xlu0 %v3857, 8
        %v4079 = vpop.permute.xlu0 %4078
        %4080 = vrot.lane.b32.xlu0 %v3858, 8
        %v4081 = vpop.permute.xlu0 %4080
        %4082 = vrot.lane.b32.xlu0 %v3859, 8
        %v4083 = vpop.permute.xlu0 %4082
        %v4116 = vsel %vm371, %v3764, %v3893
        %v4117 = vsel %vm371, %v3765, %v3895
        %v4118 = vsel %vm371, %v3766, %v3897
        %v4119 = vsel %vm371, %v3767, %v3899
        %v4120 = vsel %vm371, %v3768, %v3901
        %v4121 = vsel %vm371, %v3769, %v3903
        %v4122 = vsel %vm371, %v3770, %v3905
        %v4123 = vsel %vm371, %v3771, %v3907
        %v4124 = vsel %vm371, %v3772, %v3909
        %v4125 = vsel %vm371, %v3773, %v3911
        %v4126 = vsel %vm371, %v3774, %v3913
        %v4127 = vsel %vm371, %v3775, %v3915
        %v4128 = vsel %vm371, %v3776, %v3917
        %v4129 = vsel %vm371, %v3777, %v3919
        %v4130 = vsel %vm371, %v3778, %v3921
        %v4131 = vsel %vm371, %v3779, %v3923
        %v4132 = vsel %vm371, %v3780, %v3925
        %v4133 = vsel %vm371, %v3781, %v3927
        %v4134 = vsel %vm371, %v3782, %v3929
        %v4135 = vsel %vm371, %v3783, %v3931
        %v4136 = vsel %vm371, %v3784, %v3933
        %v4137 = vsel %vm371, %v3785, %v3935
        %v4138 = vsel %vm371, %v3786, %v3937
        %v4139 = vsel %vm371, %v3787, %v3939
        %v4140 = vsel %vm371, %v3788, %v3941
        %v4141 = vsel %vm371, %v3789, %v3943
        %v4142 = vsel %vm371, %v3790, %v3945
        %v4143 = vsel %vm371, %v3791, %v3947
        %v4144 = vsel %vm371, %v3792, %v3949
        %v4145 = vsel %vm371, %v3793, %v3951
        %v4146 = vsel %vm371, %v3794, %v3953
        %v4147 = vsel %vm371, %v3795, %v3955
        %v4148 = vsel %vm1192, %v4116, %v4021
        %v4149 = vsel %vm1192, %v4117, %v4023
        %v4150 = vsel %vm1192, %v4118, %v4025
        %v4151 = vsel %vm1192, %v4119, %v4027
        %v4152 = vsel %vm1192, %v4120, %v4029
        %v4153 = vsel %vm1192, %v4121, %v4031
        %v4154 = vsel %vm1192, %v4122, %v4033
        %v4155 = vsel %vm1192, %v4123, %v4035
        %v4156 = vsel %vm1192, %v4124, %v4037
        %v4157 = vsel %vm1192, %v4125, %v4039
        %v4158 = vsel %vm1192, %v4126, %v4041
        %v4159 = vsel %vm1192, %v4127, %v4043
        %v4160 = vsel %vm1192, %v4128, %v4045
        %v4161 = vsel %vm1192, %v4129, %v4047
        %v4162 = vsel %vm1192, %v4130, %v4049
        %v4163 = vsel %vm1192, %v4131, %v4051
        %v4164 = vsel %vm1192, %v4132, %v4053
        %v4165 = vsel %vm1192, %v4133, %v4055
        %v4166 = vsel %vm1192, %v4134, %v4057
        %v4167 = vsel %vm1192, %v4135, %v4059
        %v4168 = vsel %vm1192, %v4136, %v4061
        %v4169 = vsel %vm1192, %v4137, %v4063
        %v4170 = vsel %vm1192, %v4138, %v4065
        %v4171 = vsel %vm1192, %v4139, %v4067
        %v4172 = vsel %vm1192, %v4140, %v4069
        %v4173 = vsel %vm1192, %v4141, %v4071
        %v4174 = vsel %vm1192, %v4142, %v4073
        %v4175 = vsel %vm1192, %v4143, %v4075
        %v4176 = vsel %vm1192, %v4144, %v4077
        %v4177 = vsel %vm1192, %v4145, %v4079
        %v4178 = vsel %vm1192, %v4146, %v4081
        %v4179 = vsel %vm1192, %v4147, %v4083
        %s4180 = scalar_lea.vmem %s5, 16
        %v4181 = vld [vmem:[%s4180] sm:$0xff]
        %v4182 = vld [vmem:[%s4180 + $0x8] sm:$0xf]
        %v4184 = vsel %vm1646, %v4148, 0
        %v4187 = vsel %vm1646, %v4149, 0
        %v4190 = vsel %vm1646, %v4150, 0
        %v4193 = vsel %vm1646, %v4151, 0
        %v4196 = vsel %vm1646, %v4152, 0
        %v4199 = vsel %vm1646, %v4153, 0
        %v4202 = vsel %vm1646, %v4154, 0
        %v4205 = vsel %vm1646, %v4155, 0
        %v4208 = vsel %vm1646, %v4156, 0
        %v4211 = vsel %vm1646, %v4157, 0
        %v4214 = vsel %vm1646, %v4158, 0
        %v4217 = vsel %vm1646, %v4159, 0
        %v4220 = vsel %vm1646, %v4160, 0
        %v4223 = vsel %vm1646, %v4161, 0
        %v4226 = vsel %vm1646, %v4162, 0
        %v4229 = vsel %vm1646, %v4163, 0
        %v4232 = vsel %vm1646, %v4164, 0
        %v4235 = vsel %vm1646, %v4165, 0
        %v4238 = vsel %vm1646, %v4166, 0
        %v4241 = vsel %vm1646, %v4167, 0
        %v4244 = vsel %vm1646, %v4168, 0
        %v4247 = vsel %vm1646, %v4169, 0
        %v4250 = vsel %vm1646, %v4170, 0
        %v4253 = vsel %vm1646, %v4171, 0
        %v4256 = vsel %vm1646, %v4172, 0
        %v4259 = vsel %vm1646, %v4173, 0
        %v4262 = vsel %vm1646, %v4174, 0
        %v4265 = vsel %vm1646, %v4175, 0
        %v4268 = vsel %vm1646, %v4176, 0
        %v4271 = vsel %vm1646, %v4177, 0
        %v4274 = vsel %vm1646, %v4178, 0
        %v4277 = vsel %vm1646, %v4179, 0
        %v4280 = vsel %vm468, %v4182, 0
        %4282 = vmatprep.subr.mxu0 0.0
        %4283 = vmatpush1.msra.mxu0 %v4181
        %4284 = vmatprep.subr.mxu0 0.0
        %4285 = vmatpush1.msra.mxu0 %v4280
        %4286 = vmatprep.subr.mxu0 0.0
        %4287 = vmatpush1.msra.mxu0 0.0
        %4288 = vmatprep.subr.mxu0 0.0
        %4289 = vmatpush1.msra.mxu0 0.0
        %4290 = vmatprep.subr.mxu0 0.0
        %4291 = vmatpush1.msra.mxu0 0.0
        %4292 = vmatprep.subr.mxu0 0.0
        %4293 = vmatpush1.msra.mxu0 0.0
        %4294 = vmatprep.subr.mxu0 0.0
        %4295 = vmatpush1.msra.mxu0 0.0
        %4296 = vmatprep.subr.mxu0 0.0
        %4297 = vmatpush1.msra.mxu0 0.0
        %4298 = vmatprep.subr.mxu0 0.0
        %4299 = vmatpush1.msra.mxu0 0.0
        %4300 = vmatprep.subr.mxu0 0.0
        %4301 = vmatpush1.msra.mxu0 0.0
        %4302 = vmatprep.subr.mxu0 0.0
        %4303 = vmatpush1.msra.mxu0 0.0
        %4304 = vmatprep.subr.mxu0 0.0
        %4305 = vmatpush1.msra.mxu0 0.0
        %4306 = vmatprep.subr.mxu0 0.0
        %4307 = vmatpush1.msra.mxu0 0.0
        %4308 = vmatprep.subr.mxu0 0.0
        %4309 = vmatpush1.msra.mxu0 0.0
        %4310 = vmatprep.subr.mxu0 0.0
        %4311 = vmatpush1.msra.mxu0 0.0
        %4312 = vmatprep.subr.mxu0 0.0
        %4313 = vmatpush1.msra.mxu0 0.0
        %4314 = vmatprep.subr.mxu0 0.0
        %4315 = vmatpush1.msra.mxu0 0.0
        %4316 = vmatprep.subr.mxu0 0.0
        %4317 = vmatpush1.msra.mxu0 0.0
        %4318 = vmatprep.subr.mxu0 0.0
        %4319 = vmatpush1.msra.mxu0 0.0
        %4320 = vmatprep.subr.mxu0 0.0
        %4321 = vmatpush1.msra.mxu0 0.0
        %4322 = vmatprep.subr.mxu0 0.0
        %4323 = vmatpush1.msra.mxu0 0.0
        %4324 = vmatprep.subr.mxu0 0.0
        %4325 = vmatpush1.msra.mxu0 0.0
        %4326 = vmatprep.subr.mxu0 0.0
        %4327 = vmatpush1.msra.mxu0 0.0
        %4328 = vmatprep.subr.mxu0 0.0
        %4329 = vmatpush1.msra.mxu0 0.0
        %4330 = vmatprep.subr.mxu0 0.0
        %4331 = vmatpush1.msra.mxu0 0.0
        %4332 = vmatprep.subr.mxu0 0.0
        %4333 = vmatpush1.msra.mxu0 0.0
        %4334 = vmatprep.subr.mxu0 0.0
        %4335 = vmatpush1.msra.mxu0 0.0
        %4336 = vmatprep.subr.mxu0 0.0
        %4337 = vmatpush1.msra.mxu0 0.0
        %4338 = vmatprep.subr.mxu0 0.0
        %4339 = vmatpush1.msra.mxu0 0.0
        %4340 = vmatprep.subr.mxu0 0.0
        %4341 = vmatpush1.msra.mxu0 0.0
        %4342 = vmatprep.subr.mxu0 0.0
        %4343 = vmatpush1.msra.mxu0 0.0
        %4344 = vmatprep.subr.mxu0 0.0
        %4345 = vmatpush1.msra.mxu0 0.0
        %4346 = vmatprep.mubr.f32.mxu0 0.0
        %4347 = vmatmul.mubr.f32.gmra.mrb[0].mxu0 %v4184
        %v4348 = vpop.f32.mrb[0].mxu0
        %v4349 = vadd.f32 0.0, %v4348
        %v4350 = vpop.f32.mrb[0].mxu0
        %4351 = vmatprep.mubr.f32.mxu0 0.0
        %4352 = vmatmul.mubr.f32.gmra.mrb[0].mxu0 %v4187
        %v4353 = vpop.f32.mrb[0].mxu0
        %v4354 = vadd.f32 0.0, %v4353
        %v4355 = vpop.f32.mrb[0].mxu0
        %4356 = vmatprep.mubr.f32.mxu0 0.0
        %4357 = vmatmul.mubr.f32.gmra.mrb[0].mxu0 %v4190
        %v4358 = vpop.f32.mrb[0].mxu0
        %v4359 = vadd.f32 0.0, %v4358
        %v4360 = vpop.f32.mrb[0].mxu0
        %4361 = vmatprep.mubr.f32.mxu0 0.0
        %4362 = vmatmul.mubr.f32.gmra.mrb[0].mxu0 %v4193
        %v4363 = vpop.f32.mrb[0].mxu0
        %v4364 = vadd.f32 0.0, %v4363
        %v4365 = vpop.f32.mrb[0].mxu0
        %4366 = vmatprep.mubr.f32.mxu0 0.0
        %4367 = vmatmul.mubr.f32.gmra.mrb[0].mxu0 %v4196
        %v4368 = vpop.f32.mrb[0].mxu0
        %v4369 = vadd.f32 0.0, %v4368
        %v4370 = vpop.f32.mrb[0].mxu0
        %4371 = vmatprep.mubr.f32.mxu0 0.0
        %4372 = vmatmul.mubr.f32.gmra.mrb[0].mxu0 %v4199
        %v4373 = vpop.f32.mrb[0].mxu0
        %v4374 = vadd.f32 0.0, %v4373
        %v4375 = vpop.f32.mrb[0].mxu0
        %4376 = vmatprep.mubr.f32.mxu0 0.0
        %4377 = vmatmul.mubr.f32.gmra.mrb[0].mxu0 %v4202
        %v4378 = vpop.f32.mrb[0].mxu0
        %v4379 = vadd.f32 0.0, %v4378
        %v4380 = vpop.f32.mrb[0].mxu0
        %4381 = vmatprep.mubr.f32.mxu0 0.0
        %4382 = vmatmul.mubr.f32.gmra.mrb[0].mxu0 %v4205
        %v4383 = vpop.f32.mrb[0].mxu0
        %v4384 = vadd.f32 0.0, %v4383
        %v4385 = vpop.f32.mrb[0].mxu0
        %4386 = vmatprep.mubr.f32.mxu0 0.0
        %4387 = vmatmul.mubr.f32.gmra.mrb[0].mxu0 %v4208
        %v4388 = vpop.f32.mrb[0].mxu0
        %v4389 = vadd.f32 0.0, %v4388
        %v4390 = vpop.f32.mrb[0].mxu0
        %4391 = vmatprep.mubr.f32.mxu0 0.0
        %4392 = vmatmul.mubr.f32.gmra.mrb[0].mxu0 %v4211
        %v4393 = vpop.f32.mrb[0].mxu0
        %v4394 = vadd.f32 0.0, %v4393
        %v4395 = vpop.f32.mrb[0].mxu0
        %4396 = vmatprep.mubr.f32.mxu0 0.0
        %4397 = vmatmul.mubr.f32.gmra.mrb[0].mxu0 %v4214
        %v4398 = vpop.f32.mrb[0].mxu0
        %v4399 = vadd.f32 0.0, %v4398
        %v4400 = vpop.f32.mrb[0].mxu0
        %4401 = vmatprep.mubr.f32.mxu0 0.0
        %4402 = vmatmul.mubr.f32.gmra.mrb[0].mxu0 %v4217
        %v4403 = vpop.f32.mrb[0].mxu0
        %v4404 = vadd.f32 0.0, %v4403
        %v4405 = vpop.f32.mrb[0].mxu0
        %4406 = vmatprep.mubr.f32.mxu0 0.0
        %4407 = vmatmul.mubr.f32.gmra.mrb[0].mxu0 %v4220
        %v4408 = vpop.f32.mrb[0].mxu0
        %v4409 = vadd.f32 0.0, %v4408
        %v4410 = vpop.f32.mrb[0].mxu0
        %4411 = vmatprep.mubr.f32.mxu0 0.0
        %4412 = vmatmul.mubr.f32.gmra.mrb[0].mxu0 %v4223
        %v4413 = vpop.f32.mrb[0].mxu0
        %v4414 = vadd.f32 0.0, %v4413
        %v4415 = vpop.f32.mrb[0].mxu0
        %4416 = vmatprep.mubr.f32.mxu0 0.0
        %4417 = vmatmul.mubr.f32.gmra.mrb[0].mxu0 %v4226
        %v4418 = vpop.f32.mrb[0].mxu0
        %v4419 = vadd.f32 0.0, %v4418
        %v4420 = vpop.f32.mrb[0].mxu0
        %4421 = vmatprep.mubr.f32.mxu0 0.0
        %4422 = vmatmul.mubr.f32.gmra.mrb[0].mxu0 %v4229
        %v4423 = vpop.f32.mrb[0].mxu0
        %v4424 = vadd.f32 0.0, %v4423
        %v4425 = vpop.f32.mrb[0].mxu0
        %4426 = vmatprep.mubr.f32.mxu0 0.0
        %4427 = vmatmul.mubr.f32.gmra.mrb[0].mxu0 %v4232
        %v4428 = vpop.f32.mrb[0].mxu0
        %v4429 = vadd.f32 0.0, %v4428
        %v4430 = vpop.f32.mrb[0].mxu0
        %4431 = vmatprep.mubr.f32.mxu0 0.0
        %4432 = vmatmul.mubr.f32.gmra.mrb[0].mxu0 %v4235
        %v4433 = vpop.f32.mrb[0].mxu0
        %v4434 = vadd.f32 0.0, %v4433
        %v4435 = vpop.f32.mrb[0].mxu0
        %4436 = vmatprep.mubr.f32.mxu0 0.0
        %4437 = vmatmul.mubr.f32.gmra.mrb[0].mxu0 %v4238
        %v4438 = vpop.f32.mrb[0].mxu0
        %v4439 = vadd.f32 0.0, %v4438
        %v4440 = vpop.f32.mrb[0].mxu0
        %4441 = vmatprep.mubr.f32.mxu0 0.0
        %4442 = vmatmul.mubr.f32.gmra.mrb[0].mxu0 %v4241
        %v4443 = vpop.f32.mrb[0].mxu0
        %v4444 = vadd.f32 0.0, %v4443
        %v4445 = vpop.f32.mrb[0].mxu0
        %4446 = vmatprep.mubr.f32.mxu0 0.0
        %4447 = vmatmul.mubr.f32.gmra.mrb[0].mxu0 %v4244
        %v4448 = vpop.f32.mrb[0].mxu0
        %v4449 = vadd.f32 0.0, %v4448
        %v4450 = vpop.f32.mrb[0].mxu0
        %4451 = vmatprep.mubr.f32.mxu0 0.0
        %4452 = vmatmul.mubr.f32.gmra.mrb[0].mxu0 %v4247
        %v4453 = vpop.f32.mrb[0].mxu0
        %v4454 = vadd.f32 0.0, %v4453
        %v4455 = vpop.f32.mrb[0].mxu0
        %4456 = vmatprep.mubr.f32.mxu0 0.0
        %4457 = vmatmul.mubr.f32.gmra.mrb[0].mxu0 %v4250
        %v4458 = vpop.f32.mrb[0].mxu0
        %v4459 = vadd.f32 0.0, %v4458
        %v4460 = vpop.f32.mrb[0].mxu0
        %4461 = vmatprep.mubr.f32.mxu0 0.0
        %4462 = vmatmul.mubr.f32.gmra.mrb[0].mxu0 %v4253
        %v4463 = vpop.f32.mrb[0].mxu0
        %v4464 = vadd.f32 0.0, %v4463
        %v4465 = vpop.f32.mrb[0].mxu0
        %4466 = vmatprep.mubr.f32.mxu0 0.0
        %4467 = vmatmul.mubr.f32.gmra.mrb[0].mxu0 %v4256
        %v4468 = vpop.f32.mrb[0].mxu0
        %v4469 = vadd.f32 0.0, %v4468
        %v4470 = vpop.f32.mrb[0].mxu0
        %4471 = vmatprep.mubr.f32.mxu0 0.0
        %4472 = vmatmul.mubr.f32.gmra.mrb[0].mxu0 %v4259
        %v4473 = vpop.f32.mrb[0].mxu0
        %v4474 = vadd.f32 0.0, %v4473
        %v4475 = vpop.f32.mrb[0].mxu0
        %4476 = vmatprep.mubr.f32.mxu0 0.0
        %4477 = vmatmul.mubr.f32.gmra.mrb[0].mxu0 %v4262
        %v4478 = vpop.f32.mrb[0].mxu0
        %v4479 = vadd.f32 0.0, %v4478
        %v4480 = vpop.f32.mrb[0].mxu0
        %4481 = vmatprep.mubr.f32.mxu0 0.0
        %4482 = vmatmul.mubr.f32.gmra.mrb[0].mxu0 %v4265
        %v4483 = vpop.f32.mrb[0].mxu0
        %v4484 = vadd.f32 0.0, %v4483
        %v4485 = vpop.f32.mrb[0].mxu0
        %4486 = vmatprep.mubr.f32.mxu0 0.0
        %4487 = vmatmul.mubr.f32.gmra.mrb[0].mxu0 %v4268
        %v4488 = vpop.f32.mrb[0].mxu0
        %v4489 = vadd.f32 0.0, %v4488
        %v4490 = vpop.f32.mrb[0].mxu0
        %4491 = vmatprep.mubr.f32.mxu0 0.0
        %4492 = vmatmul.mubr.f32.gmra.mrb[0].mxu0 %v4271
        %v4493 = vpop.f32.mrb[0].mxu0
        %v4494 = vadd.f32 0.0, %v4493
        %v4495 = vpop.f32.mrb[0].mxu0
        %4496 = vmatprep.mubr.f32.mxu0 0.0
        %4497 = vmatmul.mubr.f32.gmra.mrb[0].mxu0 %v4274
        %v4498 = vpop.f32.mrb[0].mxu0
        %v4499 = vadd.f32 0.0, %v4498
        %v4500 = vpop.f32.mrb[0].mxu0
        %4501 = vmatprep.mubr.f32.mxu0 0.0
        %4502 = vmatmul.mubr.f32.gmra.mrb[0].mxu0 %v4277
        %v4503 = vpop.f32.mrb[0].mxu0
        %v4504 = vadd.f32 0.0, %v4503
        %v4505 = vpop.f32.mrb[0].mxu0
        %4506 = vdwg.mxu0
        %v4508 = vsel %vm1646, %v3730, 0
        %v4511 = vsel %vm1646, %v3731, 0
        %v4514 = vsel %vm1646, %v3732, 0
        %v4517 = vsel %vm1646, %v3733, 0
        %v4520 = vsel %vm1646, %v3734, 0
        %v4523 = vsel %vm1646, %v3735, 0
        %v4526 = vsel %vm1646, %v3736, 0
        %v4529 = vsel %vm1646, %v3737, 0
        %v4532 = vsel %vm1646, %v3738, 0
        %v4535 = vsel %vm1646, %v3739, 0
        %v4538 = vsel %vm1646, %v3740, 0
        %v4541 = vsel %vm1646, %v3741, 0
        %v4544 = vsel %vm1646, %v3742, 0
        %v4547 = vsel %vm1646, %v3743, 0
        %v4550 = vsel %vm1646, %v3744, 0
        %v4553 = vsel %vm1646, %v3745, 0
        %v4556 = vsel %vm1646, %v3746, 0
        %v4559 = vsel %vm1646, %v3747, 0
        %v4562 = vsel %vm1646, %v3748, 0
        %v4565 = vsel %vm1646, %v3749, 0
        %v4568 = vsel %vm1646, %v3750, 0
        %v4571 = vsel %vm1646, %v3751, 0
        %v4574 = vsel %vm1646, %v3752, 0
        %v4577 = vsel %vm1646, %v3753, 0
        %v4580 = vsel %vm1646, %v3754, 0
        %v4583 = vsel %vm1646, %v3755, 0
        %v4586 = vsel %vm1646, %v3756, 0
        %v4589 = vsel %vm1646, %v3757, 0
        %v4592 = vsel %vm1646, %v3758, 0
        %v4595 = vsel %vm1646, %v3759, 0
        %v4598 = vsel %vm1646, %v3760, 0
        %v4601 = vsel %vm1646, %v3761, 0
        %v4604 = vsel %vm468, %v3763, 0
        %4606 = vmatprep.subr.mxu0 0.0
        %4607 = vmatpush1.msra.mxu0 %v3762
        %4608 = vmatprep.subr.mxu0 0.0
        %4609 = vmatpush1.msra.mxu0 %v4604
        %4610 = vmatprep.subr.mxu0 0.0
        %4611 = vmatpush1.msra.mxu0 0.0
        %4612 = vmatprep.subr.mxu0 0.0
        %4613 = vmatpush1.msra.mxu0 0.0
        %4614 = vmatprep.subr.mxu0 0.0
        %4615 = vmatpush1.msra.mxu0 0.0
        %4616 = vmatprep.subr.mxu0 0.0
        %4617 = vmatpush1.msra.mxu0 0.0
        %4618 = vmatprep.subr.mxu0 0.0
        %4619 = vmatpush1.msra.mxu0 0.0
        %4620 = vmatprep.subr.mxu0 0.0
        %4621 = vmatpush1.msra.mxu0 0.0
        %4622 = vmatprep.subr.mxu0 0.0
        %4623 = vmatpush1.msra.mxu0 0.0
        %4624 = vmatprep.subr.mxu0 0.0
        %4625 = vmatpush1.msra.mxu0 0.0
        %4626 = vmatprep.subr.mxu0 0.0
        %4627 = vmatpush1.msra.mxu0 0.0
        %4628 = vmatprep.subr.mxu0 0.0
        %4629 = vmatpush1.msra.mxu0 0.0
        %4630 = vmatprep.subr.mxu0 0.0
        %4631 = vmatpush1.msra.mxu0 0.0
        %4632 = vmatprep.subr.mxu0 0.0
        %4633 = vmatpush1.msra.mxu0 0.0
        %4634 = vmatprep.subr.mxu0 0.0
        %4635 = vmatpush1.msra.mxu0 0.0
        %4636 = vmatprep.subr.mxu0 0.0
        %4637 = vmatpush1.msra.mxu0 0.0
        %4638 = vmatprep.subr.mxu0 0.0
        %4639 = vmatpush1.msra.mxu0 0.0
        %4640 = vmatprep.subr.mxu0 0.0
        %4641 = vmatpush1.msra.mxu0 0.0
        %4642 = vmatprep.subr.mxu0 0.0
        %4643 = vmatpush1.msra.mxu0 0.0
        %4644 = vmatprep.subr.mxu0 0.0
        %4645 = vmatpush1.msra.mxu0 0.0
        %4646 = vmatprep.subr.mxu0 0.0
        %4647 = vmatpush1.msra.mxu0 0.0
        %4648 = vmatprep.subr.mxu0 0.0
        %4649 = vmatpush1.msra.mxu0 0.0
        %4650 = vmatprep.subr.mxu0 0.0
        %4651 = vmatpush1.msra.mxu0 0.0
        %4652 = vmatprep.subr.mxu0 0.0
        %4653 = vmatpush1.msra.mxu0 0.0
        %4654 = vmatprep.subr.mxu0 0.0
        %4655 = vmatpush1.msra.mxu0 0.0
        %4656 = vmatprep.subr.mxu0 0.0
        %4657 = vmatpush1.msra.mxu0 0.0
        %4658 = vmatprep.subr.mxu0 0.0
        %4659 = vmatpush1.msra.mxu0 0.0
        %4660 = vmatprep.subr.mxu0 0.0
        %4661 = vmatpush1.msra.mxu0 0.0
        %4662 = vmatprep.subr.mxu0 0.0
        %4663 = vmatpush1.msra.mxu0 0.0
        %4664 = vmatprep.subr.mxu0 0.0
        %4665 = vmatpush1.msra.mxu0 0.0
        %4666 = vmatprep.subr.mxu0 0.0
        %4667 = vmatpush1.msra.mxu0 0.0
        %4668 = vmatprep.subr.mxu0 0.0
        %4669 = vmatpush1.msra.mxu0 0.0
        %4670 = vmatprep.mubr.f32.mxu0 0.0
        %4671 = vmatmul.mubr.f32.gmra.mrb[0].mxu0 %v4508
        %v4672 = vpop.f32.mrb[0].mxu0
        %v4673 = vadd.f32 %v4349, %v4672
        %v4674 = vpop.f32.mrb[0].mxu0
        %4675 = vmatprep.mubr.f32.mxu0 0.0
        %4676 = vmatmul.mubr.f32.gmra.mrb[0].mxu0 %v4511
        %v4677 = vpop.f32.mrb[0].mxu0
        %v4678 = vadd.f32 %v4354, %v4677
        %v4679 = vpop.f32.mrb[0].mxu0
        %4680 = vmatprep.mubr.f32.mxu0 0.0
        %4681 = vmatmul.mubr.f32.gmra.mrb[0].mxu0 %v4514
        %v4682 = vpop.f32.mrb[0].mxu0
        %v4683 = vadd.f32 %v4359, %v4682
        %v4684 = vpop.f32.mrb[0].mxu0
        %4685 = vmatprep.mubr.f32.mxu0 0.0
        %4686 = vmatmul.mubr.f32.gmra.mrb[0].mxu0 %v4517
        %v4687 = vpop.f32.mrb[0].mxu0
        %v4688 = vadd.f32 %v4364, %v4687
        %v4689 = vpop.f32.mrb[0].mxu0
        %4690 = vmatprep.mubr.f32.mxu0 0.0
        %4691 = vmatmul.mubr.f32.gmra.mrb[0].mxu0 %v4520
        %v4692 = vpop.f32.mrb[0].mxu0
        %v4693 = vadd.f32 %v4369, %v4692
        %v4694 = vpop.f32.mrb[0].mxu0
        %4695 = vmatprep.mubr.f32.mxu0 0.0
        %4696 = vmatmul.mubr.f32.gmra.mrb[0].mxu0 %v4523
        %v4697 = vpop.f32.mrb[0].mxu0
        %v4698 = vadd.f32 %v4374, %v4697
        %v4699 = vpop.f32.mrb[0].mxu0
        %4700 = vmatprep.mubr.f32.mxu0 0.0
        %4701 = vmatmul.mubr.f32.gmra.mrb[0].mxu0 %v4526
        %v4702 = vpop.f32.mrb[0].mxu0
        %v4703 = vadd.f32 %v4379, %v4702
        %v4704 = vpop.f32.mrb[0].mxu0
        %4705 = vmatprep.mubr.f32.mxu0 0.0
        %4706 = vmatmul.mubr.f32.gmra.mrb[0].mxu0 %v4529
        %v4707 = vpop.f32.mrb[0].mxu0
        %v4708 = vadd.f32 %v4384, %v4707
        %v4709 = vpop.f32.mrb[0].mxu0
        %4710 = vmatprep.mubr.f32.mxu0 0.0
        %4711 = vmatmul.mubr.f32.gmra.mrb[0].mxu0 %v4532
        %v4712 = vpop.f32.mrb[0].mxu0
        %v4713 = vadd.f32 %v4389, %v4712
        %v4714 = vpop.f32.mrb[0].mxu0
        %4715 = vmatprep.mubr.f32.mxu0 0.0
        %4716 = vmatmul.mubr.f32.gmra.mrb[0].mxu0 %v4535
        %v4717 = vpop.f32.mrb[0].mxu0
        %v4718 = vadd.f32 %v4394, %v4717
        %v4719 = vpop.f32.mrb[0].mxu0
        %4720 = vmatprep.mubr.f32.mxu0 0.0
        %4721 = vmatmul.mubr.f32.gmra.mrb[0].mxu0 %v4538
        %v4722 = vpop.f32.mrb[0].mxu0
        %v4723 = vadd.f32 %v4399, %v4722
        %v4724 = vpop.f32.mrb[0].mxu0
        %4725 = vmatprep.mubr.f32.mxu0 0.0
        %4726 = vmatmul.mubr.f32.gmra.mrb[0].mxu0 %v4541
        %v4727 = vpop.f32.mrb[0].mxu0
        %v4728 = vadd.f32 %v4404, %v4727
        %v4729 = vpop.f32.mrb[0].mxu0
        %4730 = vmatprep.mubr.f32.mxu0 0.0
        %4731 = vmatmul.mubr.f32.gmra.mrb[0].mxu0 %v4544
        %v4732 = vpop.f32.mrb[0].mxu0
        %v4733 = vadd.f32 %v4409, %v4732
        %v4734 = vpop.f32.mrb[0].mxu0
        %4735 = vmatprep.mubr.f32.mxu0 0.0
        %4736 = vmatmul.mubr.f32.gmra.mrb[0].mxu0 %v4547
        %v4737 = vpop.f32.mrb[0].mxu0
        %v4738 = vadd.f32 %v4414, %v4737
        %v4739 = vpop.f32.mrb[0].mxu0
        %4740 = vmatprep.mubr.f32.mxu0 0.0
        %4741 = vmatmul.mubr.f32.gmra.mrb[0].mxu0 %v4550
        %v4742 = vpop.f32.mrb[0].mxu0
        %v4743 = vadd.f32 %v4419, %v4742
        %v4744 = vpop.f32.mrb[0].mxu0
        %4745 = vmatprep.mubr.f32.mxu0 0.0
        %4746 = vmatmul.mubr.f32.gmra.mrb[0].mxu0 %v4553
        %v4747 = vpop.f32.mrb[0].mxu0
        %v4748 = vadd.f32 %v4424, %v4747
        %v4749 = vpop.f32.mrb[0].mxu0
        %4750 = vmatprep.mubr.f32.mxu0 0.0
        %4751 = vmatmul.mubr.f32.gmra.mrb[0].mxu0 %v4556
        %v4752 = vpop.f32.mrb[0].mxu0
        %v4753 = vadd.f32 %v4429, %v4752
        %v4754 = vpop.f32.mrb[0].mxu0
        %4755 = vmatprep.mubr.f32.mxu0 0.0
        %4756 = vmatmul.mubr.f32.gmra.mrb[0].mxu0 %v4559
        %v4757 = vpop.f32.mrb[0].mxu0
        %v4758 = vadd.f32 %v4434, %v4757
        %v4759 = vpop.f32.mrb[0].mxu0
        %4760 = vmatprep.mubr.f32.mxu0 0.0
        %4761 = vmatmul.mubr.f32.gmra.mrb[0].mxu0 %v4562
        %v4762 = vpop.f32.mrb[0].mxu0
        %v4763 = vadd.f32 %v4439, %v4762
        %v4764 = vpop.f32.mrb[0].mxu0
        %4765 = vmatprep.mubr.f32.mxu0 0.0
        %4766 = vmatmul.mubr.f32.gmra.mrb[0].mxu0 %v4565
        %v4767 = vpop.f32.mrb[0].mxu0
        %v4768 = vadd.f32 %v4444, %v4767
        %v4769 = vpop.f32.mrb[0].mxu0
        %4770 = vmatprep.mubr.f32.mxu0 0.0
        %4771 = vmatmul.mubr.f32.gmra.mrb[0].mxu0 %v4568
        %v4772 = vpop.f32.mrb[0].mxu0
        %v4773 = vadd.f32 %v4449, %v4772
        %v4774 = vpop.f32.mrb[0].mxu0
        %4775 = vmatprep.mubr.f32.mxu0 0.0
        %4776 = vmatmul.mubr.f32.gmra.mrb[0].mxu0 %v4571
        %v4777 = vpop.f32.mrb[0].mxu0
        %v4778 = vadd.f32 %v4454, %v4777
        %v4779 = vpop.f32.mrb[0].mxu0
        %4780 = vmatprep.mubr.f32.mxu0 0.0
        %4781 = vmatmul.mubr.f32.gmra.mrb[0].mxu0 %v4574
        %v4782 = vpop.f32.mrb[0].mxu0
        %v4783 = vadd.f32 %v4459, %v4782
        %v4784 = vpop.f32.mrb[0].mxu0
        %4785 = vmatprep.mubr.f32.mxu0 0.0
        %4786 = vmatmul.mubr.f32.gmra.mrb[0].mxu0 %v4577
        %v4787 = vpop.f32.mrb[0].mxu0
        %v4788 = vadd.f32 %v4464, %v4787
        %v4789 = vpop.f32.mrb[0].mxu0
        %4790 = vmatprep.mubr.f32.mxu0 0.0
        %4791 = vmatmul.mubr.f32.gmra.mrb[0].mxu0 %v4580
        %v4792 = vpop.f32.mrb[0].mxu0
        %v4793 = vadd.f32 %v4469, %v4792
        %v4794 = vpop.f32.mrb[0].mxu0
        %4795 = vmatprep.mubr.f32.mxu0 0.0
        %4796 = vmatmul.mubr.f32.gmra.mrb[0].mxu0 %v4583
        %v4797 = vpop.f32.mrb[0].mxu0
        %v4798 = vadd.f32 %v4474, %v4797
        %v4799 = vpop.f32.mrb[0].mxu0
        %4800 = vmatprep.mubr.f32.mxu0 0.0
        %4801 = vmatmul.mubr.f32.gmra.mrb[0].mxu0 %v4586
        %v4802 = vpop.f32.mrb[0].mxu0
        %v4803 = vadd.f32 %v4479, %v4802
        %v4804 = vpop.f32.mrb[0].mxu0
        %4805 = vmatprep.mubr.f32.mxu0 0.0
        %4806 = vmatmul.mubr.f32.gmra.mrb[0].mxu0 %v4589
        %v4807 = vpop.f32.mrb[0].mxu0
        %v4808 = vadd.f32 %v4484, %v4807
        %v4809 = vpop.f32.mrb[0].mxu0
        %4810 = vmatprep.mubr.f32.mxu0 0.0
        %4811 = vmatmul.mubr.f32.gmra.mrb[0].mxu0 %v4592
        %v4812 = vpop.f32.mrb[0].mxu0
        %v4813 = vadd.f32 %v4489, %v4812
        %v4814 = vpop.f32.mrb[0].mxu0
        %4815 = vmatprep.mubr.f32.mxu0 0.0
        %4816 = vmatmul.mubr.f32.gmra.mrb[0].mxu0 %v4595
        %v4817 = vpop.f32.mrb[0].mxu0
        %v4818 = vadd.f32 %v4494, %v4817
        %v4819 = vpop.f32.mrb[0].mxu0
        %4820 = vmatprep.mubr.f32.mxu0 0.0
        %4821 = vmatmul.mubr.f32.gmra.mrb[0].mxu0 %v4598
        %v4822 = vpop.f32.mrb[0].mxu0
        %v4823 = vadd.f32 %v4499, %v4822
        %v4824 = vpop.f32.mrb[0].mxu0
        %4825 = vmatprep.mubr.f32.mxu0 0.0
        %4826 = vmatmul.mubr.f32.gmra.mrb[0].mxu0 %v4601
        %v4827 = vpop.f32.mrb[0].mxu0
        %v4828 = vadd.f32 %v4504, %v4827
        %v4829 = vpop.f32.mrb[0].mxu0
        %4830 = vdwg.mxu0
        %v4831 = vld [vmem:[#allocation3 + $0x2] sm:$0xff]
        %v4832 = vld [vmem:[#allocation3 + $0xa] sm:$0xff]
        %v4833 = vld [vmem:[#allocation3 + $0x1a] sm:$0xff]
        %v4834 = vld [vmem:[#allocation3 + $0x22] sm:$0xff]
        %v4835 = vld [vmem:[#allocation3 + $0x32] sm:$0xff]
        %v4836 = vld [vmem:[#allocation3 + $0x3a] sm:$0xff]
        %v4837 = vld [vmem:[#allocation3 + $0x4a] sm:$0xff]
        %v4838 = vld [vmem:[#allocation3 + $0x52] sm:$0xff]
        %v4839 = vld [vmem:[#allocation3 + $0x62] sm:$0xff]
        %v4840 = vld [vmem:[#allocation3 + $0x6a] sm:$0xff]
        %v4841 = vld [vmem:[#allocation3 + $0x7a] sm:$0xff]
        %v4842 = vld [vmem:[#allocation3 + $0x82] sm:$0xff]
        %v4843 = vld [vmem:[#allocation3 + $0x92] sm:$0xff]
        %v4844 = vld [vmem:[#allocation3 + $0x9a] sm:$0xff]
        %v4845 = vld [vmem:[#allocation3 + $0xaa] sm:$0xff]
        %v4846 = vld [vmem:[#allocation3 + $0xb2] sm:$0xff]
        %v4847 = vld [vmem:[#allocation3 + $0xc2] sm:$0xff]
        %v4848 = vld [vmem:[#allocation3 + $0xca] sm:$0xff]
        %v4849 = vld [vmem:[#allocation3 + $0xda] sm:$0xff]
        %v4850 = vld [vmem:[#allocation3 + $0xe2] sm:$0xff]
        %v4851 = vld [vmem:[#allocation3 + $0xf2] sm:$0xff]
        %v4852 = vld [vmem:[#allocation3 + $0xfa] sm:$0xff]
        %v4853 = vld [vmem:[#allocation3 + $0x10a] sm:$0xff]
        %v4854 = vld [vmem:[#allocation3 + $0x112] sm:$0xff]
        %v4855 = vld [vmem:[#allocation3 + $0x122] sm:$0xff]
        %v4856 = vld [vmem:[#allocation3 + $0x12a] sm:$0xff]
        %v4857 = vld [vmem:[#allocation3 + $0x13a] sm:$0xff]
        %v4858 = vld [vmem:[#allocation3 + $0x142] sm:$0xff]
        %v4859 = vld [vmem:[#allocation3 + $0x152] sm:$0xff]
        %v4860 = vld [vmem:[#allocation3 + $0x15a] sm:$0xff]
        %v4861 = vld [vmem:[#allocation3 + $0x16a] sm:$0xff]
        %v4862 = vld [vmem:[#allocation3 + $0x172] sm:$0xff]
        %v4863 = vld [vmem:[%s3312 + $0x2] sm:$0xff]
        %v4864 = vld [vmem:[%s3312 + $0xa] sm:$0xff]
        %v4865 = vld [vmem:[%s3312 + $0x1a] sm:$0xff]
        %v4866 = vld [vmem:[%s3312 + $0x22] sm:$0xff]
        %v4867 = vld [vmem:[%s3312 + $0x32] sm:$0xff]
        %v4868 = vld [vmem:[%s3312 + $0x3a] sm:$0xff]
        %v4869 = vld [vmem:[%s3312 + $0x4a] sm:$0xff]
        %v4870 = vld [vmem:[%s3312 + $0x52] sm:$0xff]
        %v4871 = vld [vmem:[%s3312 + $0x62] sm:$0xff]
        %v4872 = vld [vmem:[%s3312 + $0x6a] sm:$0xff]
        %v4873 = vld [vmem:[%s3312 + $0x7a] sm:$0xff]
        %v4874 = vld [vmem:[%s3312 + $0x82] sm:$0xff]
        %v4875 = vld [vmem:[%s3312 + $0x92] sm:$0xff]
        %v4876 = vld [vmem:[%s3312 + $0x9a] sm:$0xff]
        %v4877 = vld [vmem:[%s3312 + $0xaa] sm:$0xff]
        %v4878 = vld [vmem:[%s3312 + $0xb2] sm:$0xff]
        %v4879 = vld [vmem:[%s3312 + $0xc2] sm:$0xff]
        %v4880 = vld [vmem:[%s3312 + $0xca] sm:$0xff]
        %v4881 = vld [vmem:[%s3312 + $0xda] sm:$0xff]
        %v4882 = vld [vmem:[%s3312 + $0xe2] sm:$0xff]
        %v4883 = vld [vmem:[%s3312 + $0xf2] sm:$0xff]
        %v4884 = vld [vmem:[%s3312 + $0xfa] sm:$0xff]
        %v4885 = vld [vmem:[%s3312 + $0x10a] sm:$0xff]
        %v4886 = vld [vmem:[%s3312 + $0x112] sm:$0xff]
        %v4887 = vld [vmem:[%s3312 + $0x122] sm:$0xff]
        %v4888 = vld [vmem:[%s3312 + $0x12a] sm:$0xff]
        %v4889 = vld [vmem:[%s3312 + $0x13a] sm:$0xff]
        %v4890 = vld [vmem:[%s3312 + $0x142] sm:$0xff]
        %v4891 = vld [vmem:[%s3312 + $0x152] sm:$0xff]
        %v4892 = vld [vmem:[%s3312 + $0x15a] sm:$0xff]
        %v4893 = vld [vmem:[%s3312 + $0x16a] sm:$0xff]
        %v4894 = vld [vmem:[%s3312 + $0x172] sm:$0xff]
        %v4895 = vld [vmem:[%s3409 + $0x2] sm:$0xff]
        %v4896 = vld [vmem:[%s3409 + $0xa] sm:$0xff]
        %v4897 = vld [vmem:[%s3409 + $0x1a] sm:$0xff]
        %v4898 = vld [vmem:[%s3409 + $0x22] sm:$0xff]
        %v4899 = vld [vmem:[%s3409 + $0x32] sm:$0xff]
        %v4900 = vld [vmem:[%s3409 + $0x3a] sm:$0xff]
        %v4901 = vld [vmem:[%s3409 + $0x4a] sm:$0xff]
        %v4902 = vld [vmem:[%s3409 + $0x52] sm:$0xff]
        %v4903 = vld [vmem:[%s3409 + $0x62] sm:$0xff]
        %v4904 = vld [vmem:[%s3409 + $0x6a] sm:$0xff]
        %v4905 = vld [vmem:[%s3409 + $0x7a] sm:$0xff]
        %v4906 = vld [vmem:[%s3409 + $0x82] sm:$0xff]
        %v4907 = vld [vmem:[%s3409 + $0x92] sm:$0xff]
        %v4908 = vld [vmem:[%s3409 + $0x9a] sm:$0xff]
        %v4909 = vld [vmem:[%s3409 + $0xaa] sm:$0xff]
        %v4910 = vld [vmem:[%s3409 + $0xb2] sm:$0xff]
        %v4911 = vld [vmem:[%s3409 + $0xc2] sm:$0xff]
        %v4912 = vld [vmem:[%s3409 + $0xca] sm:$0xff]
        %v4913 = vld [vmem:[%s3409 + $0xda] sm:$0xff]
        %v4914 = vld [vmem:[%s3409 + $0xe2] sm:$0xff]
        %v4915 = vld [vmem:[%s3409 + $0xf2] sm:$0xff]
        %v4916 = vld [vmem:[%s3409 + $0xfa] sm:$0xff]
        %v4917 = vld [vmem:[%s3409 + $0x10a] sm:$0xff]
        %v4918 = vld [vmem:[%s3409 + $0x112] sm:$0xff]
        %v4919 = vld [vmem:[%s3409 + $0x122] sm:$0xff]
        %v4920 = vld [vmem:[%s3409 + $0x12a] sm:$0xff]
        %v4921 = vld [vmem:[%s3409 + $0x13a] sm:$0xff]
        %v4922 = vld [vmem:[%s3409 + $0x142] sm:$0xff]
        %v4923 = vld [vmem:[%s3409 + $0x152] sm:$0xff]
        %v4924 = vld [vmem:[%s3409 + $0x15a] sm:$0xff]
        %v4925 = vld [vmem:[%s3409 + $0x16a] sm:$0xff]
        %v4926 = vld [vmem:[%s3409 + $0x172] sm:$0xff]
        %4959 = vrot.lane.b32.xlu0 %v4863, 4
        %v4960 = vpop.permute.xlu0 %4959
        %4961 = vrot.lane.b32.xlu0 %v4864, 4
        %v4962 = vpop.permute.xlu0 %4961
        %4963 = vrot.lane.b32.xlu0 %v4865, 4
        %v4964 = vpop.permute.xlu0 %4963
        %4965 = vrot.lane.b32.xlu0 %v4866, 4
        %v4966 = vpop.permute.xlu0 %4965
        %4967 = vrot.lane.b32.xlu0 %v4867, 4
        %v4968 = vpop.permute.xlu0 %4967
        %4969 = vrot.lane.b32.xlu0 %v4868, 4
        %v4970 = vpop.permute.xlu0 %4969
        %4971 = vrot.lane.b32.xlu0 %v4869, 4
        %v4972 = vpop.permute.xlu0 %4971
        %4973 = vrot.lane.b32.xlu0 %v4870, 4
        %v4974 = vpop.permute.xlu0 %4973
        %4975 = vrot.lane.b32.xlu0 %v4871, 4
        %v4976 = vpop.permute.xlu0 %4975
        %4977 = vrot.lane.b32.xlu0 %v4872, 4
        %v4978 = vpop.permute.xlu0 %4977
        %4979 = vrot.lane.b32.xlu0 %v4873, 4
        %v4980 = vpop.permute.xlu0 %4979
        %4981 = vrot.lane.b32.xlu0 %v4874, 4
        %v4982 = vpop.permute.xlu0 %4981
        %4983 = vrot.lane.b32.xlu0 %v4875, 4
        %v4984 = vpop.permute.xlu0 %4983
        %4985 = vrot.lane.b32.xlu0 %v4876, 4
        %v4986 = vpop.permute.xlu0 %4985
        %4987 = vrot.lane.b32.xlu0 %v4877, 4
        %v4988 = vpop.permute.xlu0 %4987
        %4989 = vrot.lane.b32.xlu0 %v4878, 4
        %v4990 = vpop.permute.xlu0 %4989
        %4991 = vrot.lane.b32.xlu0 %v4879, 4
        %v4992 = vpop.permute.xlu0 %4991
        %4993 = vrot.lane.b32.xlu0 %v4880, 4
        %v4994 = vpop.permute.xlu0 %4993
        %4995 = vrot.lane.b32.xlu0 %v4881, 4
        %v4996 = vpop.permute.xlu0 %4995
        %4997 = vrot.lane.b32.xlu0 %v4882, 4
        %v4998 = vpop.permute.xlu0 %4997
        %4999 = vrot.lane.b32.xlu0 %v4883, 4
        %v5000 = vpop.permute.xlu0 %4999
        %5001 = vrot.lane.b32.xlu0 %v4884, 4
        %v5002 = vpop.permute.xlu0 %5001
        %5003 = vrot.lane.b32.xlu0 %v4885, 4
        %v5004 = vpop.permute.xlu0 %5003
        %5005 = vrot.lane.b32.xlu0 %v4886, 4
        %v5006 = vpop.permute.xlu0 %5005
        %5007 = vrot.lane.b32.xlu0 %v4887, 4
        %v5008 = vpop.permute.xlu0 %5007
        %5009 = vrot.lane.b32.xlu0 %v4888, 4
        %v5010 = vpop.permute.xlu0 %5009
        %5011 = vrot.lane.b32.xlu0 %v4889, 4
        %v5012 = vpop.permute.xlu0 %5011
        %5013 = vrot.lane.b32.xlu0 %v4890, 4
        %v5014 = vpop.permute.xlu0 %5013
        %5015 = vrot.lane.b32.xlu0 %v4891, 4
        %v5016 = vpop.permute.xlu0 %5015
        %5017 = vrot.lane.b32.xlu0 %v4892, 4
        %v5018 = vpop.permute.xlu0 %5017
        %5019 = vrot.lane.b32.xlu0 %v4893, 4
        %v5020 = vpop.permute.xlu0 %5019
        %5021 = vrot.lane.b32.xlu0 %v4894, 4
        %v5022 = vpop.permute.xlu0 %5021
        %5087 = vrot.lane.b32.xlu0 %v4895, 8
        %v5088 = vpop.permute.xlu0 %5087
        %5089 = vrot.lane.b32.xlu0 %v4896, 8
        %v5090 = vpop.permute.xlu0 %5089
        %5091 = vrot.lane.b32.xlu0 %v4897, 8
        %v5092 = vpop.permute.xlu0 %5091
        %5093 = vrot.lane.b32.xlu0 %v4898, 8
        %v5094 = vpop.permute.xlu0 %5093
        %5095 = vrot.lane.b32.xlu0 %v4899, 8
        %v5096 = vpop.permute.xlu0 %5095
        %5097 = vrot.lane.b32.xlu0 %v4900, 8
        %v5098 = vpop.permute.xlu0 %5097
        %5099 = vrot.lane.b32.xlu0 %v4901, 8
        %v5100 = vpop.permute.xlu0 %5099
        %5101 = vrot.lane.b32.xlu0 %v4902, 8
        %v5102 = vpop.permute.xlu0 %5101
        %5103 = vrot.lane.b32.xlu0 %v4903, 8
        %v5104 = vpop.permute.xlu0 %5103
        %5105 = vrot.lane.b32.xlu0 %v4904, 8
        %v5106 = vpop.permute.xlu0 %5105
        %5107 = vrot.lane.b32.xlu0 %v4905, 8
        %v5108 = vpop.permute.xlu0 %5107
        %5109 = vrot.lane.b32.xlu0 %v4906, 8
        %v5110 = vpop.permute.xlu0 %5109
        %5111 = vrot.lane.b32.xlu0 %v4907, 8
        %v5112 = vpop.permute.xlu0 %5111
        %5113 = vrot.lane.b32.xlu0 %v4908, 8
        %v5114 = vpop.permute.xlu0 %5113
        %5115 = vrot.lane.b32.xlu0 %v4909, 8
        %v5116 = vpop.permute.xlu0 %5115
        %5117 = vrot.lane.b32.xlu0 %v4910, 8
        %v5118 = vpop.permute.xlu0 %5117
        %5119 = vrot.lane.b32.xlu0 %v4911, 8
        %v5120 = vpop.permute.xlu0 %5119
        %5121 = vrot.lane.b32.xlu0 %v4912, 8
        %v5122 = vpop.permute.xlu0 %5121
        %5123 = vrot.lane.b32.xlu0 %v4913, 8
        %v5124 = vpop.permute.xlu0 %5123
        %5125 = vrot.lane.b32.xlu0 %v4914, 8
        %v5126 = vpop.permute.xlu0 %5125
        %5127 = vrot.lane.b32.xlu0 %v4915, 8
        %v5128 = vpop.permute.xlu0 %5127
        %5129 = vrot.lane.b32.xlu0 %v4916, 8
        %v5130 = vpop.permute.xlu0 %5129
        %5131 = vrot.lane.b32.xlu0 %v4917, 8
        %v5132 = vpop.permute.xlu0 %5131
        %5133 = vrot.lane.b32.xlu0 %v4918, 8
        %v5134 = vpop.permute.xlu0 %5133
        %5135 = vrot.lane.b32.xlu0 %v4919, 8
        %v5136 = vpop.permute.xlu0 %5135
        %5137 = vrot.lane.b32.xlu0 %v4920, 8
        %v5138 = vpop.permute.xlu0 %5137
        %5139 = vrot.lane.b32.xlu0 %v4921, 8
        %v5140 = vpop.permute.xlu0 %5139
        %5141 = vrot.lane.b32.xlu0 %v4922, 8
        %v5142 = vpop.permute.xlu0 %5141
        %5143 = vrot.lane.b32.xlu0 %v4923, 8
        %v5144 = vpop.permute.xlu0 %5143
        %5145 = vrot.lane.b32.xlu0 %v4924, 8
        %v5146 = vpop.permute.xlu0 %5145
        %5147 = vrot.lane.b32.xlu0 %v4925, 8
        %v5148 = vpop.permute.xlu0 %5147
        %5149 = vrot.lane.b32.xlu0 %v4926, 8
        %v5150 = vpop.permute.xlu0 %5149
        %v5183 = vsel %vm371, %v4831, %v4960
        %v5184 = vsel %vm371, %v4832, %v4962
        %v5185 = vsel %vm371, %v4833, %v4964
        %v5186 = vsel %vm371, %v4834, %v4966
        %v5187 = vsel %vm371, %v4835, %v4968
        %v5188 = vsel %vm371, %v4836, %v4970
        %v5189 = vsel %vm371, %v4837, %v4972
        %v5190 = vsel %vm371, %v4838, %v4974
        %v5191 = vsel %vm371, %v4839, %v4976
        %v5192 = vsel %vm371, %v4840, %v4978
        %v5193 = vsel %vm371, %v4841, %v4980
        %v5194 = vsel %vm371, %v4842, %v4982
        %v5195 = vsel %vm371, %v4843, %v4984
        %v5196 = vsel %vm371, %v4844, %v4986
        %v5197 = vsel %vm371, %v4845, %v4988
        %v5198 = vsel %vm371, %v4846, %v4990
        %v5199 = vsel %vm371, %v4847, %v4992
        %v5200 = vsel %vm371, %v4848, %v4994
        %v5201 = vsel %vm371, %v4849, %v4996
        %v5202 = vsel %vm371, %v4850, %v4998
        %v5203 = vsel %vm371, %v4851, %v5000
        %v5204 = vsel %vm371, %v4852, %v5002
        %v5205 = vsel %vm371, %v4853, %v5004
        %v5206 = vsel %vm371, %v4854, %v5006
        %v5207 = vsel %vm371, %v4855, %v5008
        %v5208 = vsel %vm371, %v4856, %v5010
        %v5209 = vsel %vm371, %v4857, %v5012
        %v5210 = vsel %vm371, %v4858, %v5014
        %v5211 = vsel %vm371, %v4859, %v5016
        %v5212 = vsel %vm371, %v4860, %v5018
        %v5213 = vsel %vm371, %v4861, %v5020
        %v5214 = vsel %vm371, %v4862, %v5022
        %v5215 = vsel %vm1192, %v5183, %v5088
        %v5216 = vsel %vm1192, %v5184, %v5090
        %v5217 = vsel %vm1192, %v5185, %v5092
        %v5218 = vsel %vm1192, %v5186, %v5094
        %v5219 = vsel %vm1192, %v5187, %v5096
        %v5220 = vsel %vm1192, %v5188, %v5098
        %v5221 = vsel %vm1192, %v5189, %v5100
        %v5222 = vsel %vm1192, %v5190, %v5102
        %v5223 = vsel %vm1192, %v5191, %v5104
        %v5224 = vsel %vm1192, %v5192, %v5106
        %v5225 = vsel %vm1192, %v5193, %v5108
        %v5226 = vsel %vm1192, %v5194, %v5110
        %v5227 = vsel %vm1192, %v5195, %v5112
        %v5228 = vsel %vm1192, %v5196, %v5114
        %v5229 = vsel %vm1192, %v5197, %v5116
        %v5230 = vsel %vm1192, %v5198, %v5118
        %v5231 = vsel %vm1192, %v5199, %v5120
        %v5232 = vsel %vm1192, %v5200, %v5122
        %v5233 = vsel %vm1192, %v5201, %v5124
        %v5234 = vsel %vm1192, %v5202, %v5126
        %v5235 = vsel %vm1192, %v5203, %v5128
        %v5236 = vsel %vm1192, %v5204, %v5130
        %v5237 = vsel %vm1192, %v5205, %v5132
        %v5238 = vsel %vm1192, %v5206, %v5134
        %v5239 = vsel %vm1192, %v5207, %v5136
        %v5240 = vsel %vm1192, %v5208, %v5138
        %v5241 = vsel %vm1192, %v5209, %v5140
        %v5242 = vsel %vm1192, %v5210, %v5142
        %v5243 = vsel %vm1192, %v5211, %v5144
        %v5244 = vsel %vm1192, %v5212, %v5146
        %v5245 = vsel %vm1192, %v5213, %v5148
        %v5246 = vsel %vm1192, %v5214, %v5150
        %s5247 = scalar_lea.vmem %s5, 32
        %v5248 = vld [vmem:[%s5247] sm:$0xff]
        %v5249 = vld [vmem:[%s5247 + $0x8] sm:$0xf]
        %v5251 = vsel %vm1646, %v5215, 0
        %v5254 = vsel %vm1646, %v5216, 0
        %v5257 = vsel %vm1646, %v5217, 0
        %v5260 = vsel %vm1646, %v5218, 0
        %v5263 = vsel %vm1646, %v5219, 0
        %v5266 = vsel %vm1646, %v5220, 0
        %v5269 = vsel %vm1646, %v5221, 0
        %v5272 = vsel %vm1646, %v5222, 0
        %v5275 = vsel %vm1646, %v5223, 0
        %v5278 = vsel %vm1646, %v5224, 0
        %v5281 = vsel %vm1646, %v5225, 0
        %v5284 = vsel %vm1646, %v5226, 0
        %v5287 = vsel %vm1646, %v5227, 0
        %v5290 = vsel %vm1646, %v5228, 0
        %v5293 = vsel %vm1646, %v5229, 0
        %v5296 = vsel %vm1646, %v5230, 0
        %v5299 = vsel %vm1646, %v5231, 0
        %v5302 = vsel %vm1646, %v5232, 0
        %v5305 = vsel %vm1646, %v5233, 0
        %v5308 = vsel %vm1646, %v5234, 0
        %v5311 = vsel %vm1646, %v5235, 0
        %v5314 = vsel %vm1646, %v5236, 0
        %v5317 = vsel %vm1646, %v5237, 0
        %v5320 = vsel %vm1646, %v5238, 0
        %v5323 = vsel %vm1646, %v5239, 0
        %v5326 = vsel %vm1646, %v5240, 0
        %v5329 = vsel %vm1646, %v5241, 0
        %v5332 = vsel %vm1646, %v5242, 0
        %v5335 = vsel %vm1646, %v5243, 0
        %v5338 = vsel %vm1646, %v5244, 0
        %v5341 = vsel %vm1646, %v5245, 0
        %v5344 = vsel %vm1646, %v5246, 0
        %v5347 = vsel %vm468, %v5249, 0
        %5349 = vmatprep.subr.mxu0 0.0
        %5350 = vmatpush1.msra.mxu0 %v5248
        %5351 = vmatprep.subr.mxu0 0.0
        %5352 = vmatpush1.msra.mxu0 %v5347
        %5353 = vmatprep.subr.mxu0 0.0
        %5354 = vmatpush1.msra.mxu0 0.0
        %5355 = vmatprep.subr.mxu0 0.0
        %5356 = vmatpush1.msra.mxu0 0.0
        %5357 = vmatprep.subr.mxu0 0.0
        %5358 = vmatpush1.msra.mxu0 0.0
        %5359 = vmatprep.subr.mxu0 0.0
        %5360 = vmatpush1.msra.mxu0 0.0
        %5361 = vmatprep.subr.mxu0 0.0
        %5362 = vmatpush1.msra.mxu0 0.0
        %5363 = vmatprep.subr.mxu0 0.0
        %5364 = vmatpush1.msra.mxu0 0.0
        %5365 = vmatprep.subr.mxu0 0.0
        %5366 = vmatpush1.msra.mxu0 0.0
        %5367 = vmatprep.subr.mxu0 0.0
        %5368 = vmatpush1.msra.mxu0 0.0
        %5369 = vmatprep.subr.mxu0 0.0
        %5370 = vmatpush1.msra.mxu0 0.0
        %5371 = vmatprep.subr.mxu0 0.0
        %5372 = vmatpush1.msra.mxu0 0.0
        %5373 = vmatprep.subr.mxu0 0.0
        %5374 = vmatpush1.msra.mxu0 0.0
        %5375 = vmatprep.subr.mxu0 0.0
        %5376 = vmatpush1.msra.mxu0 0.0
        %5377 = vmatprep.subr.mxu0 0.0
        %5378 = vmatpush1.msra.mxu0 0.0
        %5379 = vmatprep.subr.mxu0 0.0
        %5380 = vmatpush1.msra.mxu0 0.0
        %5381 = vmatprep.subr.mxu0 0.0
        %5382 = vmatpush1.msra.mxu0 0.0
        %5383 = vmatprep.subr.mxu0 0.0
        %5384 = vmatpush1.msra.mxu0 0.0
        %5385 = vmatprep.subr.mxu0 0.0
        %5386 = vmatpush1.msra.mxu0 0.0
        %5387 = vmatprep.subr.mxu0 0.0
        %5388 = vmatpush1.msra.mxu0 0.0
        %5389 = vmatprep.subr.mxu0 0.0
        %5390 = vmatpush1.msra.mxu0 0.0
        %5391 = vmatprep.subr.mxu0 0.0
        %5392 = vmatpush1.msra.mxu0 0.0
        %5393 = vmatprep.subr.mxu0 0.0
        %5394 = vmatpush1.msra.mxu0 0.0
        %5395 = vmatprep.subr.mxu0 0.0
        %5396 = vmatpush1.msra.mxu0 0.0
        %5397 = vmatprep.subr.mxu0 0.0
        %5398 = vmatpush1.msra.mxu0 0.0
        %5399 = vmatprep.subr.mxu0 0.0
        %5400 = vmatpush1.msra.mxu0 0.0
        %5401 = vmatprep.subr.mxu0 0.0
        %5402 = vmatpush1.msra.mxu0 0.0
        %5403 = vmatprep.subr.mxu0 0.0
        %5404 = vmatpush1.msra.mxu0 0.0
        %5405 = vmatprep.subr.mxu0 0.0
        %5406 = vmatpush1.msra.mxu0 0.0
        %5407 = vmatprep.subr.mxu0 0.0
        %5408 = vmatpush1.msra.mxu0 0.0
        %5409 = vmatprep.subr.mxu0 0.0
        %5410 = vmatpush1.msra.mxu0 0.0
        %5411 = vmatprep.subr.mxu0 0.0
        %5412 = vmatpush1.msra.mxu0 0.0
        %5413 = vmatprep.mubr.f32.mxu0 0.0
        %5414 = vmatmul.mubr.f32.gmra.mrb[0].mxu0 %v5251
        %v5415 = vpop.f32.mrb[0].mxu0
        %v5416 = vadd.f32 0.0, %v5415
        %v5417 = vpop.f32.mrb[0].mxu0
        %5418 = vmatprep.mubr.f32.mxu0 0.0
        %5419 = vmatmul.mubr.f32.gmra.mrb[0].mxu0 %v5254
        %v5420 = vpop.f32.mrb[0].mxu0
        %v5421 = vadd.f32 0.0, %v5420
        %v5422 = vpop.f32.mrb[0].mxu0
        %5423 = vmatprep.mubr.f32.mxu0 0.0
        %5424 = vmatmul.mubr.f32.gmra.mrb[0].mxu0 %v5257
        %v5425 = vpop.f32.mrb[0].mxu0
        %v5426 = vadd.f32 0.0, %v5425
        %v5427 = vpop.f32.mrb[0].mxu0
        %5428 = vmatprep.mubr.f32.mxu0 0.0
        %5429 = vmatmul.mubr.f32.gmra.mrb[0].mxu0 %v5260
        %v5430 = vpop.f32.mrb[0].mxu0
        %v5431 = vadd.f32 0.0, %v5430
        %v5432 = vpop.f32.mrb[0].mxu0
        %5433 = vmatprep.mubr.f32.mxu0 0.0
        %5434 = vmatmul.mubr.f32.gmra.mrb[0].mxu0 %v5263
        %v5435 = vpop.f32.mrb[0].mxu0
        %v5436 = vadd.f32 0.0, %v5435
        %v5437 = vpop.f32.mrb[0].mxu0
        %5438 = vmatprep.mubr.f32.mxu0 0.0
        %5439 = vmatmul.mubr.f32.gmra.mrb[0].mxu0 %v5266
        %v5440 = vpop.f32.mrb[0].mxu0
        %v5441 = vadd.f32 0.0, %v5440
        %v5442 = vpop.f32.mrb[0].mxu0
        %5443 = vmatprep.mubr.f32.mxu0 0.0
        %5444 = vmatmul.mubr.f32.gmra.mrb[0].mxu0 %v5269
        %v5445 = vpop.f32.mrb[0].mxu0
        %v5446 = vadd.f32 0.0, %v5445
        %v5447 = vpop.f32.mrb[0].mxu0
        %5448 = vmatprep.mubr.f32.mxu0 0.0
        %5449 = vmatmul.mubr.f32.gmra.mrb[0].mxu0 %v5272
        %v5450 = vpop.f32.mrb[0].mxu0
        %v5451 = vadd.f32 0.0, %v5450
        %v5452 = vpop.f32.mrb[0].mxu0
        %5453 = vmatprep.mubr.f32.mxu0 0.0
        %5454 = vmatmul.mubr.f32.gmra.mrb[0].mxu0 %v5275
        %v5455 = vpop.f32.mrb[0].mxu0
        %v5456 = vadd.f32 0.0, %v5455
        %v5457 = vpop.f32.mrb[0].mxu0
        %5458 = vmatprep.mubr.f32.mxu0 0.0
        %5459 = vmatmul.mubr.f32.gmra.mrb[0].mxu0 %v5278
        %v5460 = vpop.f32.mrb[0].mxu0
        %v5461 = vadd.f32 0.0, %v5460
        %v5462 = vpop.f32.mrb[0].mxu0
        %5463 = vmatprep.mubr.f32.mxu0 0.0
        %5464 = vmatmul.mubr.f32.gmra.mrb[0].mxu0 %v5281
        %v5465 = vpop.f32.mrb[0].mxu0
        %v5466 = vadd.f32 0.0, %v5465
        %v5467 = vpop.f32.mrb[0].mxu0
        %5468 = vmatprep.mubr.f32.mxu0 0.0
        %5469 = vmatmul.mubr.f32.gmra.mrb[0].mxu0 %v5284
        %v5470 = vpop.f32.mrb[0].mxu0
        %v5471 = vadd.f32 0.0, %v5470
        %v5472 = vpop.f32.mrb[0].mxu0
        %5473 = vmatprep.mubr.f32.mxu0 0.0
        %5474 = vmatmul.mubr.f32.gmra.mrb[0].mxu0 %v5287
        %v5475 = vpop.f32.mrb[0].mxu0
        %v5476 = vadd.f32 0.0, %v5475
        %v5477 = vpop.f32.mrb[0].mxu0
        %5478 = vmatprep.mubr.f32.mxu0 0.0
        %5479 = vmatmul.mubr.f32.gmra.mrb[0].mxu0 %v5290
        %v5480 = vpop.f32.mrb[0].mxu0
        %v5481 = vadd.f32 0.0, %v5480
        %v5482 = vpop.f32.mrb[0].mxu0
        %5483 = vmatprep.mubr.f32.mxu0 0.0
        %5484 = vmatmul.mubr.f32.gmra.mrb[0].mxu0 %v5293
        %v5485 = vpop.f32.mrb[0].mxu0
        %v5486 = vadd.f32 0.0, %v5485
        %v5487 = vpop.f32.mrb[0].mxu0
        %5488 = vmatprep.mubr.f32.mxu0 0.0
        %5489 = vmatmul.mubr.f32.gmra.mrb[0].mxu0 %v5296
        %v5490 = vpop.f32.mrb[0].mxu0
        %v5491 = vadd.f32 0.0, %v5490
        %v5492 = vpop.f32.mrb[0].mxu0
        %5493 = vmatprep.mubr.f32.mxu0 0.0
        %5494 = vmatmul.mubr.f32.gmra.mrb[0].mxu0 %v5299
        %v5495 = vpop.f32.mrb[0].mxu0
        %v5496 = vadd.f32 0.0, %v5495
        %v5497 = vpop.f32.mrb[0].mxu0
        %5498 = vmatprep.mubr.f32.mxu0 0.0
        %5499 = vmatmul.mubr.f32.gmra.mrb[0].mxu0 %v5302
        %v5500 = vpop.f32.mrb[0].mxu0
        %v5501 = vadd.f32 0.0, %v5500
        %v5502 = vpop.f32.mrb[0].mxu0
        %5503 = vmatprep.mubr.f32.mxu0 0.0
        %5504 = vmatmul.mubr.f32.gmra.mrb[0].mxu0 %v5305
        %v5505 = vpop.f32.mrb[0].mxu0
        %v5506 = vadd.f32 0.0, %v5505
        %v5507 = vpop.f32.mrb[0].mxu0
        %5508 = vmatprep.mubr.f32.mxu0 0.0
        %5509 = vmatmul.mubr.f32.gmra.mrb[0].mxu0 %v5308
        %v5510 = vpop.f32.mrb[0].mxu0
        %v5511 = vadd.f32 0.0, %v5510
        %v5512 = vpop.f32.mrb[0].mxu0
        %5513 = vmatprep.mubr.f32.mxu0 0.0
        %5514 = vmatmul.mubr.f32.gmra.mrb[0].mxu0 %v5311
        %v5515 = vpop.f32.mrb[0].mxu0
        %v5516 = vadd.f32 0.0, %v5515
        %v5517 = vpop.f32.mrb[0].mxu0
        %5518 = vmatprep.mubr.f32.mxu0 0.0
        %5519 = vmatmul.mubr.f32.gmra.mrb[0].mxu0 %v5314
        %v5520 = vpop.f32.mrb[0].mxu0
        %v5521 = vadd.f32 0.0, %v5520
        %v5522 = vpop.f32.mrb[0].mxu0
        %5523 = vmatprep.mubr.f32.mxu0 0.0
        %5524 = vmatmul.mubr.f32.gmra.mrb[0].mxu0 %v5317
        %v5525 = vpop.f32.mrb[0].mxu0
        %v5526 = vadd.f32 0.0, %v5525
        %v5527 = vpop.f32.mrb[0].mxu0
        %5528 = vmatprep.mubr.f32.mxu0 0.0
        %5529 = vmatmul.mubr.f32.gmra.mrb[0].mxu0 %v5320
        %v5530 = vpop.f32.mrb[0].mxu0
        %v5531 = vadd.f32 0.0, %v5530
        %v5532 = vpop.f32.mrb[0].mxu0
        %5533 = vmatprep.mubr.f32.mxu0 0.0
        %5534 = vmatmul.mubr.f32.gmra.mrb[0].mxu0 %v5323
        %v5535 = vpop.f32.mrb[0].mxu0
        %v5536 = vadd.f32 0.0, %v5535
        %v5537 = vpop.f32.mrb[0].mxu0
        %5538 = vmatprep.mubr.f32.mxu0 0.0
        %5539 = vmatmul.mubr.f32.gmra.mrb[0].mxu0 %v5326
        %v5540 = vpop.f32.mrb[0].mxu0
        %v5541 = vadd.f32 0.0, %v5540
        %v5542 = vpop.f32.mrb[0].mxu0
        %5543 = vmatprep.mubr.f32.mxu0 0.0
        %5544 = vmatmul.mubr.f32.gmra.mrb[0].mxu0 %v5329
        %v5545 = vpop.f32.mrb[0].mxu0
        %v5546 = vadd.f32 0.0, %v5545
        %v5547 = vpop.f32.mrb[0].mxu0
        %5548 = vmatprep.mubr.f32.mxu0 0.0
        %5549 = vmatmul.mubr.f32.gmra.mrb[0].mxu0 %v5332
        %v5550 = vpop.f32.mrb[0].mxu0
        %v5551 = vadd.f32 0.0, %v5550
        %v5552 = vpop.f32.mrb[0].mxu0
        %5553 = vmatprep.mubr.f32.mxu0 0.0
        %5554 = vmatmul.mubr.f32.gmra.mrb[0].mxu0 %v5335
        %v5555 = vpop.f32.mrb[0].mxu0
        %v5556 = vadd.f32 0.0, %v5555
        %v5557 = vpop.f32.mrb[0].mxu0
        %5558 = vmatprep.mubr.f32.mxu0 0.0
        %5559 = vmatmul.mubr.f32.gmra.mrb[0].mxu0 %v5338
        %v5560 = vpop.f32.mrb[0].mxu0
        %v5561 = vadd.f32 0.0, %v5560
        %v5562 = vpop.f32.mrb[0].mxu0
        %5563 = vmatprep.mubr.f32.mxu0 0.0
        %5564 = vmatmul.mubr.f32.gmra.mrb[0].mxu0 %v5341
        %v5565 = vpop.f32.mrb[0].mxu0
        %v5566 = vadd.f32 0.0, %v5565
        %v5567 = vpop.f32.mrb[0].mxu0
        %5568 = vmatprep.mubr.f32.mxu0 0.0
        %5569 = vmatmul.mubr.f32.gmra.mrb[0].mxu0 %v5344
        %v5570 = vpop.f32.mrb[0].mxu0
        %v5571 = vadd.f32 0.0, %v5570
        %v5572 = vpop.f32.mrb[0].mxu0
        %5573 = vdwg.mxu0
        %v5574 = vadd.f32 %v4673, %v5416
        %v5575 = vadd.f32 %v4678, %v5421
        %v5576 = vadd.f32 %v4683, %v5426
        %v5577 = vadd.f32 %v4688, %v5431
        %v5578 = vadd.f32 %v4693, %v5436
        %v5579 = vadd.f32 %v4698, %v5441
        %v5580 = vadd.f32 %v4703, %v5446
        %v5581 = vadd.f32 %v4708, %v5451
        %v5582 = vadd.f32 %v4713, %v5456
        %v5583 = vadd.f32 %v4718, %v5461
        %v5584 = vadd.f32 %v4723, %v5466
        %v5585 = vadd.f32 %v4728, %v5471
        %v5586 = vadd.f32 %v4733, %v5476
        %v5587 = vadd.f32 %v4738, %v5481
        %v5588 = vadd.f32 %v4743, %v5486
        %v5589 = vadd.f32 %v4748, %v5491
        %v5590 = vadd.f32 %v4753, %v5496
        %v5591 = vadd.f32 %v4758, %v5501
        %v5592 = vadd.f32 %v4763, %v5506
        %v5593 = vadd.f32 %v4768, %v5511
        %v5594 = vadd.f32 %v4773, %v5516
        %v5595 = vadd.f32 %v4778, %v5521
        %v5596 = vadd.f32 %v4783, %v5526
        %v5597 = vadd.f32 %v4788, %v5531
        %v5598 = vadd.f32 %v4793, %v5536
        %v5599 = vadd.f32 %v4798, %v5541
        %v5600 = vadd.f32 %v4803, %v5546
        %v5601 = vadd.f32 %v4808, %v5551
        %v5602 = vadd.f32 %v4813, %v5556
        %v5603 = vadd.f32 %v4818, %v5561
        %v5604 = vadd.f32 %v4823, %v5566
        %v5605 = vadd.f32 %v4828, %v5571
        %v5606 = vld [vmem:[%s6] sm:$0x1]
        %v5608 = vlaneseq
        %v5609 = vshrl.u32 %v5608, 7
        %v5610 = vsub.s32 0, %v5609
        %v5611 = vrot.slane %v5606, %v5610
        %v5613 = vadd.f32 %v5574, %v5611
        %v5614 = vadd.f32 %v5575, %v5611
        %v5615 = vadd.f32 %v5576, %v5611
        %v5616 = vadd.f32 %v5577, %v5611
        %v5617 = vadd.f32 %v5578, %v5611
        %v5618 = vadd.f32 %v5579, %v5611
        %v5619 = vadd.f32 %v5580, %v5611
        %v5620 = vadd.f32 %v5581, %v5611
        %v5621 = vadd.f32 %v5582, %v5611
        %v5622 = vadd.f32 %v5583, %v5611
        %v5623 = vadd.f32 %v5584, %v5611
        %v5624 = vadd.f32 %v5585, %v5611
        %v5625 = vadd.f32 %v5586, %v5611
        %v5626 = vadd.f32 %v5587, %v5611
        %v5627 = vadd.f32 %v5588, %v5611
        %v5628 = vadd.f32 %v5589, %v5611
        %v5629 = vadd.f32 %v5590, %v5611
        %v5630 = vadd.f32 %v5591, %v5611
        %v5631 = vadd.f32 %v5592, %v5611
        %v5632 = vadd.f32 %v5593, %v5611
        %v5633 = vadd.f32 %v5594, %v5611
        %v5634 = vadd.f32 %v5595, %v5611
        %v5635 = vadd.f32 %v5596, %v5611
        %v5636 = vadd.f32 %v5597, %v5611
        %v5637 = vadd.f32 %v5598, %v5611
        %v5638 = vadd.f32 %v5599, %v5611
        %v5639 = vadd.f32 %v5600, %v5611
        %v5640 = vadd.f32 %v5601, %v5611
        %v5641 = vadd.f32 %v5602, %v5611
        %v5642 = vadd.f32 %v5603, %v5611
        %v5643 = vadd.f32 %v5604, %v5611
        %v5644 = vadd.f32 %v5605, %v5611
        %v5645 = vmax.f32 %v5613, 0.0
        %v5646 = vmax.f32 %v5614, 0.0
        %v5647 = vmax.f32 %v5615, 0.0
        %v5648 = vmax.f32 %v5616, 0.0
        %v5649 = vmax.f32 %v5617, 0.0
        %v5650 = vmax.f32 %v5618, 0.0
        %v5651 = vmax.f32 %v5619, 0.0
        %v5652 = vmax.f32 %v5620, 0.0
        %v5653 = vmax.f32 %v5621, 0.0
        %v5654 = vmax.f32 %v5622, 0.0
        %v5655 = vmax.f32 %v5623, 0.0
        %v5656 = vmax.f32 %v5624, 0.0
        %v5657 = vmax.f32 %v5625, 0.0
        %v5658 = vmax.f32 %v5626, 0.0
        %v5659 = vmax.f32 %v5627, 0.0
        %v5660 = vmax.f32 %v5628, 0.0
        %v5661 = vmax.f32 %v5629, 0.0
        %v5662 = vmax.f32 %v5630, 0.0
        %v5663 = vmax.f32 %v5631, 0.0
        %v5664 = vmax.f32 %v5632, 0.0
        %v5665 = vmax.f32 %v5633, 0.0
        %v5666 = vmax.f32 %v5634, 0.0
        %v5667 = vmax.f32 %v5635, 0.0
        %v5668 = vmax.f32 %v5636, 0.0
        %v5669 = vmax.f32 %v5637, 0.0
        %v5670 = vmax.f32 %v5638, 0.0
        %v5671 = vmax.f32 %v5639, 0.0
        %v5672 = vmax.f32 %v5640, 0.0
        %v5673 = vmax.f32 %v5641, 0.0
        %v5674 = vmax.f32 %v5642, 0.0
        %v5675 = vmax.f32 %v5643, 0.0
        %v5676 = vmax.f32 %v5644, 0.0
        %5677 = vst.msk [vmem:[#allocation4] sm:$0xff] %vm371, -inf
        %5678 = vst.msk [vmem:[#allocation4 + $0x8] sm:$0xff] %vm371, -inf
        %5679 = vst.msk [vmem:[#allocation4 + $0x10] sm:$0x3] %vm731, -inf
        %s5680 = scalar_lea.vmem [#allocation4], 408
        %5681 = vst.msk [vmem:[%s5680] sm:$0xff] %vm371, -inf
        %5682 = vst.msk [vmem:[%s5680 + $0x8] sm:$0xff] %vm371, -inf
        %5683 = vst.msk [vmem:[%s5680 + $0x10] sm:$0x3] %vm731, -inf
        %5684 = vst.msk [vmem:[#allocation4] sm:$0x1] %vm737, -inf
        %5685 = vst.msk [vmem:[#allocation4 + $0x18] sm:$0x1] %vm737, -inf
        %5686 = vst.msk [vmem:[#allocation4 + $0x30] sm:$0x1] %vm737, -inf
        %5687 = vst.msk [vmem:[#allocation4 + $0x48] sm:$0x1] %vm737, -inf
        %5688 = vst.msk [vmem:[#allocation4 + $0x60] sm:$0x1] %vm737, -inf
        %5689 = vst.msk [vmem:[#allocation4 + $0x78] sm:$0x1] %vm737, -inf
        %5690 = vst.msk [vmem:[#allocation4 + $0x90] sm:$0x1] %vm737, -inf
        %5691 = vst.msk [vmem:[#allocation4 + $0xa8] sm:$0x1] %vm737, -inf
        %5692 = vst.msk [vmem:[#allocation4 + $0xc0] sm:$0x1] %vm737, -inf
        %5693 = vst.msk [vmem:[#allocation4 + $0xd8] sm:$0x1] %vm737, -inf
        %5694 = vst.msk [vmem:[#allocation4 + $0xf0] sm:$0x1] %vm737, -inf
        %5695 = vst.msk [vmem:[#allocation4 + $0x108] sm:$0x1] %vm737, -inf
        %5696 = vst.msk [vmem:[#allocation4 + $0x120] sm:$0x1] %vm737, -inf
        %5697 = vst.msk [vmem:[#allocation4 + $0x138] sm:$0x1] %vm737, -inf
        %5698 = vst.msk [vmem:[#allocation4 + $0x150] sm:$0x1] %vm737, -inf
        %5699 = vst.msk [vmem:[#allocation4 + $0x168] sm:$0x1] %vm737, -inf
        %5700 = vst.msk [vmem:[#allocation4 + $0x180] sm:$0x1] %vm737, -inf
        %5701 = vst.msk [vmem:[#allocation4 + $0x198] sm:$0x1] %vm737, -inf
        %5702 = vst.msk [vmem:[#allocation4 + $0x11] sm:$0x1] %vm737, -inf
        %5703 = vst.msk [vmem:[#allocation4 + $0x29] sm:$0x1] %vm737, -inf
        %5704 = vst.msk [vmem:[#allocation4 + $0x41] sm:$0x1] %vm737, -inf
        %5705 = vst.msk [vmem:[#allocation4 + $0x59] sm:$0x1] %vm737, -inf
        %5706 = vst.msk [vmem:[#allocation4 + $0x71] sm:$0x1] %vm737, -inf
        %5707 = vst.msk [vmem:[#allocation4 + $0x89] sm:$0x1] %vm737, -inf
        %5708 = vst.msk [vmem:[#allocation4 + $0xa1] sm:$0x1] %vm737, -inf
        %5709 = vst.msk [vmem:[#allocation4 + $0xb9] sm:$0x1] %vm737, -inf
        %5710 = vst.msk [vmem:[#allocation4 + $0xd1] sm:$0x1] %vm737, -inf
        %5711 = vst.msk [vmem:[#allocation4 + $0xe9] sm:$0x1] %vm737, -inf
        %5712 = vst.msk [vmem:[#allocation4 + $0x101] sm:$0x1] %vm737, -inf
        %5713 = vst.msk [vmem:[#allocation4 + $0x119] sm:$0x1] %vm737, -inf
        %5714 = vst.msk [vmem:[#allocation4 + $0x131] sm:$0x1] %vm737, -inf
        %5715 = vst.msk [vmem:[#allocation4 + $0x149] sm:$0x1] %vm737, -inf
        %5716 = vst.msk [vmem:[#allocation4 + $0x161] sm:$0x1] %vm737, -inf
        %5717 = vst.msk [vmem:[#allocation4 + $0x179] sm:$0x1] %vm737, -inf
        %5718 = vst.msk [vmem:[#allocation4 + $0x191] sm:$0x1] %vm737, -inf
        %5719 = vst.msk [vmem:[#allocation4 + $0x1a9] sm:$0x1] %vm737, -inf
        %s5720 = scalar_lea.vmem [#allocation4], 24
        %5721 = vst.msk [vmem:[%s5720 + $0x1] sm:$0xff] %vm371, %v331
        %5722 = vst.msk [vmem:[%s5720 + $0x9] sm:$0xff] %vm371, %v332
        %5723 = vst.msk [vmem:[%s5720 + $0x19] sm:$0xff] %vm371, %v333
        %5724 = vst.msk [vmem:[%s5720 + $0x21] sm:$0xff] %vm371, %v334
        %5725 = vst.msk [vmem:[%s5720 + $0x31] sm:$0xff] %vm371, %v335
        %5726 = vst.msk [vmem:[%s5720 + $0x39] sm:$0xff] %vm371, %v336
        %5727 = vst.msk [vmem:[%s5720 + $0x49] sm:$0xff] %vm371, %v337
        %5728 = vst.msk [vmem:[%s5720 + $0x51] sm:$0xff] %vm371, %v338
        %5729 = vst.msk [vmem:[%s5720 + $0x61] sm:$0xff] %vm371, %v339
        %5730 = vst.msk [vmem:[%s5720 + $0x69] sm:$0xff] %vm371, %v340
        %5731 = vst.msk [vmem:[%s5720 + $0x79] sm:$0xff] %vm371, %v341
        %5732 = vst.msk [vmem:[%s5720 + $0x81] sm:$0xff] %vm371, %v342
        %5733 = vst.msk [vmem:[%s5720 + $0x91] sm:$0xff] %vm371, %v343
        %5734 = vst.msk [vmem:[%s5720 + $0x99] sm:$0xff] %vm371, %v344
        %5735 = vst.msk [vmem:[%s5720 + $0xa9] sm:$0xff] %vm371, %v345
        %5736 = vst.msk [vmem:[%s5720 + $0xb1] sm:$0xff] %vm371, %v346
        %5737 = vst.msk [vmem:[%s5720 + $0xc1] sm:$0xff] %vm371, %v347
        %5738 = vst.msk [vmem:[%s5720 + $0xc9] sm:$0xff] %vm371, %v348
        %5739 = vst.msk [vmem:[%s5720 + $0xd9] sm:$0xff] %vm371, %v349
        %5740 = vst.msk [vmem:[%s5720 + $0xe1] sm:$0xff] %vm371, %v350
        %5741 = vst.msk [vmem:[%s5720 + $0xf1] sm:$0xff] %vm371, %v351
        %5742 = vst.msk [vmem:[%s5720 + $0xf9] sm:$0xff] %vm371, %v352
        %5743 = vst.msk [vmem:[%s5720 + $0x109] sm:$0xff] %vm371, %v353
        %5744 = vst.msk [vmem:[%s5720 + $0x111] sm:$0xff] %vm371, %v354
        %5745 = vst.msk [vmem:[%s5720 + $0x121] sm:$0xff] %vm371, %v355
        %5746 = vst.msk [vmem:[%s5720 + $0x129] sm:$0xff] %vm371, %v356
        %5747 = vst.msk [vmem:[%s5720 + $0x139] sm:$0xff] %vm371, %v357
        %5748 = vst.msk [vmem:[%s5720 + $0x141] sm:$0xff] %vm371, %v358
        %5749 = vst.msk [vmem:[%s5720 + $0x151] sm:$0xff] %vm371, %v359
        %5750 = vst.msk [vmem:[%s5720 + $0x159] sm:$0xff] %vm371, %v360
        %5751 = vst.msk [vmem:[%s5720 + $0x169] sm:$0xff] %vm371, %v361
        %5752 = vst.msk [vmem:[%s5720 + $0x171] sm:$0xff] %vm371, %v362
        %v5753 = vld [vmem:[#allocation4] sm:$0xff]
        %v5754 = vld [vmem:[#allocation4 + $0x8] sm:$0xff]
        %v5755 = vld [vmem:[#allocation4 + $0x10] sm:$0x3]
        %v5756 = vld [vmem:[#allocation4 + $0x18] sm:$0xff]
        %v5757 = vld [vmem:[#allocation4 + $0x20] sm:$0xff]
        %v5758 = vld [vmem:[#allocation4 + $0x28] sm:$0x3]
        %v5759 = vld [vmem:[#allocation4 + $0x30] sm:$0xff]
        %v5760 = vld [vmem:[#allocation4 + $0x38] sm:$0xff]
        %v5761 = vld [vmem:[#allocation4 + $0x40] sm:$0x3]
        %v5762 = vld [vmem:[#allocation4 + $0x48] sm:$0xff]
        %v5763 = vld [vmem:[#allocation4 + $0x50] sm:$0xff]
        %v5764 = vld [vmem:[#allocation4 + $0x58] sm:$0x3]
        %v5765 = vld [vmem:[#allocation4 + $0x60] sm:$0xff]
        %v5766 = vld [vmem:[#allocation4 + $0x68] sm:$0xff]
        %v5767 = vld [vmem:[#allocation4 + $0x70] sm:$0x3]
        %v5768 = vld [vmem:[#allocation4 + $0x78] sm:$0xff]
        %v5769 = vld [vmem:[#allocation4 + $0x80] sm:$0xff]
        %v5770 = vld [vmem:[#allocation4 + $0x88] sm:$0x3]
        %v5771 = vld [vmem:[#allocation4 + $0x90] sm:$0xff]
        %v5772 = vld [vmem:[#allocation4 + $0x98] sm:$0xff]
        %v5773 = vld [vmem:[#allocation4 + $0xa0] sm:$0x3]
        %v5774 = vld [vmem:[#allocation4 + $0xa8] sm:$0xff]
        %v5775 = vld [vmem:[#allocation4 + $0xb0] sm:$0xff]
        %v5776 = vld [vmem:[#allocation4 + $0xb8] sm:$0x3]
        %v5777 = vld [vmem:[#allocation4 + $0xc0] sm:$0xff]
        %v5778 = vld [vmem:[#allocation4 + $0xc8] sm:$0xff]
        %v5779 = vld [vmem:[#allocation4 + $0xd0] sm:$0x3]
        %v5780 = vld [vmem:[#allocation4 + $0xd8] sm:$0xff]
        %v5781 = vld [vmem:[#allocation4 + $0xe0] sm:$0xff]
        %v5782 = vld [vmem:[#allocation4 + $0xe8] sm:$0x3]
        %v5783 = vld [vmem:[#allocation4 + $0xf0] sm:$0xff]
        %v5784 = vld [vmem:[#allocation4 + $0xf8] sm:$0xff]
        %v5785 = vld [vmem:[#allocation4 + $0x100] sm:$0x3]
        %v5786 = vld [vmem:[#allocation4 + $0x108] sm:$0xff]
        %v5787 = vld [vmem:[#allocation4 + $0x110] sm:$0xff]
        %v5788 = vld [vmem:[#allocation4 + $0x118] sm:$0x3]
        %v5789 = vld [vmem:[#allocation4 + $0x120] sm:$0xff]
        %v5790 = vld [vmem:[#allocation4 + $0x128] sm:$0xff]
        %v5791 = vld [vmem:[#allocation4 + $0x130] sm:$0x3]
        %v5792 = vld [vmem:[#allocation4 + $0x138] sm:$0xff]
        %v5793 = vld [vmem:[#allocation4 + $0x140] sm:$0xff]
        %v5794 = vld [vmem:[#allocation4 + $0x148] sm:$0x3]
        %v5795 = vld [vmem:[#allocation4 + $0x150] sm:$0xff]
        %v5796 = vld [vmem:[#allocation4 + $0x158] sm:$0xff]
        %v5797 = vld [vmem:[#allocation4 + $0x160] sm:$0x3]
        %v5798 = vld [vmem:[#allocation4 + $0x168] sm:$0xff]
        %v5799 = vld [vmem:[#allocation4 + $0x170] sm:$0xff]
        %v5800 = vld [vmem:[#allocation4 + $0x178] sm:$0x3]
        %v5801 = vld [vmem:[#allocation4 + $0x180] sm:$0xff]
        %v5802 = vld [vmem:[#allocation4 + $0x188] sm:$0xff]
        %v5803 = vld [vmem:[#allocation4 + $0x190] sm:$0x3]
        %v5804 = vld [vmem:[#allocation4 + $0x198] sm:$0xff]
        %v5805 = vld [vmem:[#allocation4 + $0x1a0] sm:$0xff]
        %v5806 = vld [vmem:[#allocation4 + $0x1a8] sm:$0x3]
        %vm5861 = vcmask 1046528
        %v5862 = vrot.slane %v5753, 1
        %v5863 = vrot.slane %v5754, 1
        %v5864 = vsel %vm5861, %v5862, %v5863
        %v5865 = vrot.slane %v5755, 1
        %v5866 = vsel %vm5861, %v5863, %v5865
        %v5867 = vrot.slane %v5756, 1
        %v5868 = vrot.slane %v5757, 1
        %v5869 = vsel %vm5861, %v5867, %v5868
        %v5870 = vrot.slane %v5758, 1
        %v5871 = vsel %vm5861, %v5868, %v5870
        %v5872 = vrot.slane %v5759, 1
        %v5873 = vrot.slane %v5760, 1
        %v5874 = vsel %vm5861, %v5872, %v5873
        %v5875 = vrot.slane %v5761, 1
        %v5876 = vsel %vm5861, %v5873, %v5875
        %v5877 = vrot.slane %v5762, 1
        %v5878 = vrot.slane %v5763, 1
        %v5879 = vsel %vm5861, %v5877, %v5878
        %v5880 = vrot.slane %v5764, 1
        %v5881 = vsel %vm5861, %v5878, %v5880
        %v5882 = vrot.slane %v5765, 1
        %v5883 = vrot.slane %v5766, 1
        %v5884 = vsel %vm5861, %v5882, %v5883
        %v5885 = vrot.slane %v5767, 1
        %v5886 = vsel %vm5861, %v5883, %v5885
        %v5887 = vrot.slane %v5768, 1
        %v5888 = vrot.slane %v5769, 1
        %v5889 = vsel %vm5861, %v5887, %v5888
        %v5890 = vrot.slane %v5770, 1
        %v5891 = vsel %vm5861, %v5888, %v5890
        %v5892 = vrot.slane %v5771, 1
        %v5893 = vrot.slane %v5772, 1
        %v5894 = vsel %vm5861, %v5892, %v5893
        %v5895 = vrot.slane %v5773, 1
        %v5896 = vsel %vm5861, %v5893, %v5895
        %v5897 = vrot.slane %v5774, 1
        %v5898 = vrot.slane %v5775, 1
        %v5899 = vsel %vm5861, %v5897, %v5898
        %v5900 = vrot.slane %v5776, 1
        %v5901 = vsel %vm5861, %v5898, %v5900
        %v5902 = vrot.slane %v5777, 1
        %v5903 = vrot.slane %v5778, 1
        %v5904 = vsel %vm5861, %v5902, %v5903
        %v5905 = vrot.slane %v5779, 1
        %v5906 = vsel %vm5861, %v5903, %v5905
        %v5907 = vrot.slane %v5780, 1
        %v5908 = vrot.slane %v5781, 1
        %v5909 = vsel %vm5861, %v5907, %v5908
        %v5910 = vrot.slane %v5782, 1
        %v5911 = vsel %vm5861, %v5908, %v5910
        %v5912 = vrot.slane %v5783, 1
        %v5913 = vrot.slane %v5784, 1
        %v5914 = vsel %vm5861, %v5912, %v5913
        %v5915 = vrot.slane %v5785, 1
        %v5916 = vsel %vm5861, %v5913, %v5915
        %v5917 = vrot.slane %v5786, 1
        %v5918 = vrot.slane %v5787, 1
        %v5919 = vsel %vm5861, %v5917, %v5918
        %v5920 = vrot.slane %v5788, 1
        %v5921 = vsel %vm5861, %v5918, %v5920
        %v5922 = vrot.slane %v5789, 1
        %v5923 = vrot.slane %v5790, 1
        %v5924 = vsel %vm5861, %v5922, %v5923
        %v5925 = vrot.slane %v5791, 1
        %v5926 = vsel %vm5861, %v5923, %v5925
        %v5927 = vrot.slane %v5792, 1
        %v5928 = vrot.slane %v5793, 1
        %v5929 = vsel %vm5861, %v5927, %v5928
        %v5930 = vrot.slane %v5794, 1
        %v5931 = vsel %vm5861, %v5928, %v5930
        %v5932 = vrot.slane %v5795, 1
        %v5933 = vrot.slane %v5796, 1
        %v5934 = vsel %vm5861, %v5932, %v5933
        %v5935 = vrot.slane %v5797, 1
        %v5936 = vsel %vm5861, %v5933, %v5935
        %v5937 = vrot.slane %v5798, 1
        %v5938 = vrot.slane %v5799, 1
        %v5939 = vsel %vm5861, %v5937, %v5938
        %v5940 = vrot.slane %v5800, 1
        %v5941 = vsel %vm5861, %v5938, %v5940
        %v5942 = vrot.slane %v5801, 1
        %v5943 = vrot.slane %v5802, 1
        %v5944 = vsel %vm5861, %v5942, %v5943
        %v5945 = vrot.slane %v5803, 1
        %v5946 = vsel %vm5861, %v5943, %v5945
        %v5947 = vrot.slane %v5804, 1
        %v5948 = vrot.slane %v5805, 1
        %v5949 = vsel %vm5861, %v5947, %v5948
        %v5950 = vrot.slane %v5806, 1
        %v5951 = vsel %vm5861, %v5948, %v5950
        %v5988 = vmax.f32 %v5753, %v5864
        %v5989 = vmax.f32 %v5754, %v5866
        %v5990 = vmax.f32 %v5756, %v5869
        %v5991 = vmax.f32 %v5757, %v5871
        %v5992 = vmax.f32 %v5759, %v5874
        %v5993 = vmax.f32 %v5760, %v5876
        %v5994 = vmax.f32 %v5762, %v5879
        %v5995 = vmax.f32 %v5763, %v5881
        %v5996 = vmax.f32 %v5765, %v5884
        %v5997 = vmax.f32 %v5766, %v5886
        %v5998 = vmax.f32 %v5768, %v5889
        %v5999 = vmax.f32 %v5769, %v5891
        %v6000 = vmax.f32 %v5771, %v5894
        %v6001 = vmax.f32 %v5772, %v5896
        %v6002 = vmax.f32 %v5774, %v5899
        %v6003 = vmax.f32 %v5775, %v5901
        %v6004 = vmax.f32 %v5777, %v5904
        %v6005 = vmax.f32 %v5778, %v5906
        %v6006 = vmax.f32 %v5780, %v5909
        %v6007 = vmax.f32 %v5781, %v5911
        %v6008 = vmax.f32 %v5783, %v5914
        %v6009 = vmax.f32 %v5784, %v5916
        %v6010 = vmax.f32 %v5786, %v5919
        %v6011 = vmax.f32 %v5787, %v5921
        %v6012 = vmax.f32 %v5789, %v5924
        %v6013 = vmax.f32 %v5790, %v5926
        %v6014 = vmax.f32 %v5792, %v5929
        %v6015 = vmax.f32 %v5793, %v5931
        %v6016 = vmax.f32 %v5795, %v5934
        %v6017 = vmax.f32 %v5796, %v5936
        %v6018 = vmax.f32 %v5798, %v5939
        %v6019 = vmax.f32 %v5799, %v5941
        %v6020 = vmax.f32 %v5801, %v5944
        %v6021 = vmax.f32 %v5802, %v5946
        %v6022 = vmax.f32 %v5804, %v5949
        %v6023 = vmax.f32 %v5805, %v5951
        %vm6024 = vcmask 1045504
        %v6025 = vrot.slane %v5753, 2
        %v6026 = vrot.slane %v5754, 2
        %v6027 = vsel %vm6024, %v6025, %v6026
        %v6028 = vrot.slane %v5755, 2
        %v6029 = vsel %vm6024, %v6026, %v6028
        %v6030 = vrot.slane %v5756, 2
        %v6031 = vrot.slane %v5757, 2
        %v6032 = vsel %vm6024, %v6030, %v6031
        %v6033 = vrot.slane %v5758, 2
        %v6034 = vsel %vm6024, %v6031, %v6033
        %v6035 = vrot.slane %v5759, 2
        %v6036 = vrot.slane %v5760, 2
        %v6037 = vsel %vm6024, %v6035, %v6036
        %v6038 = vrot.slane %v5761, 2
        %v6039 = vsel %vm6024, %v6036, %v6038
        %v6040 = vrot.slane %v5762, 2
        %v6041 = vrot.slane %v5763, 2
        %v6042 = vsel %vm6024, %v6040, %v6041
        %v6043 = vrot.slane %v5764, 2
        %v6044 = vsel %vm6024, %v6041, %v6043
        %v6045 = vrot.slane %v5765, 2
        %v6046 = vrot.slane %v5766, 2
        %v6047 = vsel %vm6024, %v6045, %v6046
        %v6048 = vrot.slane %v5767, 2
        %v6049 = vsel %vm6024, %v6046, %v6048
        %v6050 = vrot.slane %v5768, 2
        %v6051 = vrot.slane %v5769, 2
        %v6052 = vsel %vm6024, %v6050, %v6051
        %v6053 = vrot.slane %v5770, 2
        %v6054 = vsel %vm6024, %v6051, %v6053
        %v6055 = vrot.slane %v5771, 2
        %v6056 = vrot.slane %v5772, 2
        %v6057 = vsel %vm6024, %v6055, %v6056
        %v6058 = vrot.slane %v5773, 2
        %v6059 = vsel %vm6024, %v6056, %v6058
        %v6060 = vrot.slane %v5774, 2
        %v6061 = vrot.slane %v5775, 2
        %v6062 = vsel %vm6024, %v6060, %v6061
        %v6063 = vrot.slane %v5776, 2
        %v6064 = vsel %vm6024, %v6061, %v6063
        %v6065 = vrot.slane %v5777, 2
        %v6066 = vrot.slane %v5778, 2
        %v6067 = vsel %vm6024, %v6065, %v6066
        %v6068 = vrot.slane %v5779, 2
        %v6069 = vsel %vm6024, %v6066, %v6068
        %v6070 = vrot.slane %v5780, 2
        %v6071 = vrot.slane %v5781, 2
        %v6072 = vsel %vm6024, %v6070, %v6071
        %v6073 = vrot.slane %v5782, 2
        %v6074 = vsel %vm6024, %v6071, %v6073
        %v6075 = vrot.slane %v5783, 2
        %v6076 = vrot.slane %v5784, 2
        %v6077 = vsel %vm6024, %v6075, %v6076
        %v6078 = vrot.slane %v5785, 2
        %v6079 = vsel %vm6024, %v6076, %v6078
        %v6080 = vrot.slane %v5786, 2
        %v6081 = vrot.slane %v5787, 2
        %v6082 = vsel %vm6024, %v6080, %v6081
        %v6083 = vrot.slane %v5788, 2
        %v6084 = vsel %vm6024, %v6081, %v6083
        %v6085 = vrot.slane %v5789, 2
        %v6086 = vrot.slane %v5790, 2
        %v6087 = vsel %vm6024, %v6085, %v6086
        %v6088 = vrot.slane %v5791, 2
        %v6089 = vsel %vm6024, %v6086, %v6088
        %v6090 = vrot.slane %v5792, 2
        %v6091 = vrot.slane %v5793, 2
        %v6092 = vsel %vm6024, %v6090, %v6091
        %v6093 = vrot.slane %v5794, 2
        %v6094 = vsel %vm6024, %v6091, %v6093
        %v6095 = vrot.slane %v5795, 2
        %v6096 = vrot.slane %v5796, 2
        %v6097 = vsel %vm6024, %v6095, %v6096
        %v6098 = vrot.slane %v5797, 2
        %v6099 = vsel %vm6024, %v6096, %v6098
        %v6100 = vrot.slane %v5798, 2
        %v6101 = vrot.slane %v5799, 2
        %v6102 = vsel %vm6024, %v6100, %v6101
        %v6103 = vrot.slane %v5800, 2
        %v6104 = vsel %vm6024, %v6101, %v6103
        %v6105 = vrot.slane %v5801, 2
        %v6106 = vrot.slane %v5802, 2
        %v6107 = vsel %vm6024, %v6105, %v6106
        %v6108 = vrot.slane %v5803, 2
        %v6109 = vsel %vm6024, %v6106, %v6108
        %v6110 = vrot.slane %v5804, 2
        %v6111 = vrot.slane %v5805, 2
        %v6112 = vsel %vm6024, %v6110, %v6111
        %v6113 = vrot.slane %v5806, 2
        %v6114 = vsel %vm6024, %v6111, %v6113
        %v6151 = vmax.f32 %v5988, %v6027
        %v6152 = vmax.f32 %v5989, %v6029
        %v6153 = vmax.f32 %v5990, %v6032
        %v6154 = vmax.f32 %v5991, %v6034
        %v6155 = vmax.f32 %v5992, %v6037
        %v6156 = vmax.f32 %v5993, %v6039
        %v6157 = vmax.f32 %v5994, %v6042
        %v6158 = vmax.f32 %v5995, %v6044
        %v6159 = vmax.f32 %v5996, %v6047
        %v6160 = vmax.f32 %v5997, %v6049
        %v6161 = vmax.f32 %v5998, %v6052
        %v6162 = vmax.f32 %v5999, %v6054
        %v6163 = vmax.f32 %v6000, %v6057
        %v6164 = vmax.f32 %v6001, %v6059
        %v6165 = vmax.f32 %v6002, %v6062
        %v6166 = vmax.f32 %v6003, %v6064
        %v6167 = vmax.f32 %v6004, %v6067
        %v6168 = vmax.f32 %v6005, %v6069
        %v6169 = vmax.f32 %v6006, %v6072
        %v6170 = vmax.f32 %v6007, %v6074
        %v6171 = vmax.f32 %v6008, %v6077
        %v6172 = vmax.f32 %v6009, %v6079
        %v6173 = vmax.f32 %v6010, %v6082
        %v6174 = vmax.f32 %v6011, %v6084
        %v6175 = vmax.f32 %v6012, %v6087
        %v6176 = vmax.f32 %v6013, %v6089
        %v6177 = vmax.f32 %v6014, %v6092
        %v6178 = vmax.f32 %v6015, %v6094
        %v6179 = vmax.f32 %v6016, %v6097
        %v6180 = vmax.f32 %v6017, %v6099
        %v6181 = vmax.f32 %v6018, %v6102
        %v6182 = vmax.f32 %v6019, %v6104
        %v6183 = vmax.f32 %v6020, %v6107
        %v6184 = vmax.f32 %v6021, %v6109
        %v6185 = vmax.f32 %v6022, %v6112
        %v6186 = vmax.f32 %v6023, %v6114
        %v6187 = vmax.f32 %v6151, %v6153
        %v6188 = vmax.f32 %v6152, %v6154
        %v6189 = vmax.f32 %v6153, %v6155
        %v6190 = vmax.f32 %v6154, %v6156
        %v6191 = vmax.f32 %v6155, %v6157
        %v6192 = vmax.f32 %v6156, %v6158
        %v6193 = vmax.f32 %v6157, %v6159
        %v6194 = vmax.f32 %v6158, %v6160
        %v6195 = vmax.f32 %v6159, %v6161
        %v6196 = vmax.f32 %v6160, %v6162
        %v6197 = vmax.f32 %v6161, %v6163
        %v6198 = vmax.f32 %v6162, %v6164
        %v6199 = vmax.f32 %v6163, %v6165
        %v6200 = vmax.f32 %v6164, %v6166
        %v6201 = vmax.f32 %v6165, %v6167
        %v6202 = vmax.f32 %v6166, %v6168
        %v6203 = vmax.f32 %v6167, %v6169
        %v6204 = vmax.f32 %v6168, %v6170
        %v6205 = vmax.f32 %v6169, %v6171
        %v6206 = vmax.f32 %v6170, %v6172
        %v6207 = vmax.f32 %v6171, %v6173
        %v6208 = vmax.f32 %v6172, %v6174
        %v6209 = vmax.f32 %v6173, %v6175
        %v6210 = vmax.f32 %v6174, %v6176
        %v6211 = vmax.f32 %v6175, %v6177
        %v6212 = vmax.f32 %v6176, %v6178
        %v6213 = vmax.f32 %v6177, %v6179
        %v6214 = vmax.f32 %v6178, %v6180
        %v6215 = vmax.f32 %v6179, %v6181
        %v6216 = vmax.f32 %v6180, %v6182
        %v6217 = vmax.f32 %v6181, %v6183
        %v6218 = vmax.f32 %v6182, %v6184
        %v6219 = vmax.f32 %v6187, %v6155
        %v6220 = vmax.f32 %v6188, %v6156
        %v6221 = vmax.f32 %v6189, %v6157
        %v6222 = vmax.f32 %v6190, %v6158
        %v6223 = vmax.f32 %v6191, %v6159
        %v6224 = vmax.f32 %v6192, %v6160
        %v6225 = vmax.f32 %v6193, %v6161
        %v6226 = vmax.f32 %v6194, %v6162
        %v6227 = vmax.f32 %v6195, %v6163
        %v6228 = vmax.f32 %v6196, %v6164
        %v6229 = vmax.f32 %v6197, %v6165
        %v6230 = vmax.f32 %v6198, %v6166
        %v6231 = vmax.f32 %v6199, %v6167
        %v6232 = vmax.f32 %v6200, %v6168
        %v6233 = vmax.f32 %v6201, %v6169
        %v6234 = vmax.f32 %v6202, %v6170
        %v6235 = vmax.f32 %v6203, %v6171
        %v6236 = vmax.f32 %v6204, %v6172
        %v6237 = vmax.f32 %v6205, %v6173
        %v6238 = vmax.f32 %v6206, %v6174
        %v6239 = vmax.f32 %v6207, %v6175
        %v6240 = vmax.f32 %v6208, %v6176
        %v6241 = vmax.f32 %v6209, %v6177
        %v6242 = vmax.f32 %v6210, %v6178
        %v6243 = vmax.f32 %v6211, %v6179
        %v6244 = vmax.f32 %v6212, %v6180
        %v6245 = vmax.f32 %v6213, %v6181
        %v6246 = vmax.f32 %v6214, %v6182
        %v6247 = vmax.f32 %v6215, %v6183
        %v6248 = vmax.f32 %v6216, %v6184
        %v6249 = vmax.f32 %v6217, %v6185
        %v6250 = vmax.f32 %v6218, %v6186
        %v6251 = vld [vmem:[%s7] sm:$0xf]
        %v6252 = vld [vmem:[%s8] sm:$0x1]
        %v6254 = vlaneseq
        %v6255 = vshrl.u32 %v6254, 7
        %v6256 = vsub.s32 0, %v6255
        %v6257 = vrot.slane %v6252, %v6256
        %v6260 = vsel %vm371, %v6219, 0
        %v6263 = vsel %vm371, %v6220, 0
        %v6266 = vsel %vm371, %v6221, 0
        %v6269 = vsel %vm371, %v6222, 0
        %v6272 = vsel %vm371, %v6223, 0
        %v6275 = vsel %vm371, %v6224, 0
        %v6278 = vsel %vm371, %v6225, 0
        %v6281 = vsel %vm371, %v6226, 0
        %v6284 = vsel %vm371, %v6227, 0
        %v6287 = vsel %vm371, %v6228, 0
        %v6290 = vsel %vm371, %v6229, 0
        %v6293 = vsel %vm371, %v6230, 0
        %v6296 = vsel %vm371, %v6231, 0
        %v6299 = vsel %vm371, %v6232, 0
        %v6302 = vsel %vm371, %v6233, 0
        %v6305 = vsel %vm371, %v6234, 0
        %v6308 = vsel %vm371, %v6235, 0
        %v6311 = vsel %vm371, %v6236, 0
        %v6314 = vsel %vm371, %v6237, 0
        %v6317 = vsel %vm371, %v6238, 0
        %v6320 = vsel %vm371, %v6239, 0
        %v6323 = vsel %vm371, %v6240, 0
        %v6326 = vsel %vm371, %v6241, 0
        %v6329 = vsel %vm371, %v6242, 0
        %v6332 = vsel %vm371, %v6243, 0
        %v6335 = vsel %vm371, %v6244, 0
        %v6338 = vsel %vm371, %v6245, 0
        %v6341 = vsel %vm371, %v6246, 0
        %v6344 = vsel %vm371, %v6247, 0
        %v6347 = vsel %vm371, %v6248, 0
        %v6350 = vsel %vm371, %v6249, 0
        %v6353 = vsel %vm371, %v6250, 0
        %v6356 = vsel %vm468, %v6251, 0
        %6358 = vmatprep.subr.mxu0 0.0
        %6359 = vmatpush1.msra.mxu0 %v6356
        %6360 = vmatprep.subr.mxu0 0.0
        %6361 = vmatpush1.msra.mxu0 0.0
        %6362 = vmatprep.subr.mxu0 0.0
        %6363 = vmatpush1.msra.mxu0 0.0
        %6364 = vmatprep.subr.mxu0 0.0
        %6365 = vmatpush1.msra.mxu0 0.0
        %6366 = vmatprep.subr.mxu0 0.0
        %6367 = vmatpush1.msra.mxu0 0.0
        %6368 = vmatprep.subr.mxu0 0.0
        %6369 = vmatpush1.msra.mxu0 0.0
        %6370 = vmatprep.subr.mxu0 0.0
        %6371 = vmatpush1.msra.mxu0 0.0
        %6372 = vmatprep.subr.mxu0 0.0
        %6373 = vmatpush1.msra.mxu0 0.0
        %6374 = vmatprep.subr.mxu0 0.0
        %6375 = vmatpush1.msra.mxu0 0.0
        %6376 = vmatprep.subr.mxu0 0.0
        %6377 = vmatpush1.msra.mxu0 0.0
        %6378 = vmatprep.subr.mxu0 0.0
        %6379 = vmatpush1.msra.mxu0 0.0
        %6380 = vmatprep.subr.mxu0 0.0
        %6381 = vmatpush1.msra.mxu0 0.0
        %6382 = vmatprep.subr.mxu0 0.0
        %6383 = vmatpush1.msra.mxu0 0.0
        %6384 = vmatprep.subr.mxu0 0.0
        %6385 = vmatpush1.msra.mxu0 0.0
        %6386 = vmatprep.subr.mxu0 0.0
        %6387 = vmatpush1.msra.mxu0 0.0
        %6388 = vmatprep.subr.mxu0 0.0
        %6389 = vmatpush1.msra.mxu0 0.0
        %6390 = vmatprep.subr.mxu0 0.0
        %6391 = vmatpush1.msra.mxu0 0.0
        %6392 = vmatprep.subr.mxu0 0.0
        %6393 = vmatpush1.msra.mxu0 0.0
        %6394 = vmatprep.subr.mxu0 0.0
        %6395 = vmatpush1.msra.mxu0 0.0
        %6396 = vmatprep.subr.mxu0 0.0
        %6397 = vmatpush1.msra.mxu0 0.0
        %6398 = vmatprep.subr.mxu0 0.0
        %6399 = vmatpush1.msra.mxu0 0.0
        %6400 = vmatprep.subr.mxu0 0.0
        %6401 = vmatpush1.msra.mxu0 0.0
        %6402 = vmatprep.subr.mxu0 0.0
        %6403 = vmatpush1.msra.mxu0 0.0
        %6404 = vmatprep.subr.mxu0 0.0
        %6405 = vmatpush1.msra.mxu0 0.0
        %6406 = vmatprep.subr.mxu0 0.0
        %6407 = vmatpush1.msra.mxu0 0.0
        %6408 = vmatprep.subr.mxu0 0.0
        %6409 = vmatpush1.msra.mxu0 0.0
        %6410 = vmatprep.subr.mxu0 0.0
        %6411 = vmatpush1.msra.mxu0 0.0
        %6412 = vmatprep.subr.mxu0 0.0
        %6413 = vmatpush1.msra.mxu0 0.0
        %6414 = vmatprep.subr.mxu0 0.0
        %6415 = vmatpush1.msra.mxu0 0.0
        %6416 = vmatprep.subr.mxu0 0.0
        %6417 = vmatpush1.msra.mxu0 0.0
        %6418 = vmatprep.subr.mxu0 0.0
        %6419 = vmatpush1.msra.mxu0 0.0
        %6420 = vmatprep.subr.mxu0 0.0
        %6421 = vmatpush1.msra.mxu0 0.0
        %6422 = vmatprep.mubr.f32.mxu0 0.0
        %6423 = vmatmul.mubr.f32.gmra.mrb[0].mxu0 %v6260
        %v6424 = vpop.f32.mrb[0].mxu0
        %v6425 = vadd.f32 %v6257, %v6424
        %v6426 = vpop.f32.mrb[0].mxu0
        %6427 = vmatprep.mubr.f32.mxu0 0.0
        %6428 = vmatmul.mubr.f32.gmra.mrb[0].mxu0 %v6263
        %v6429 = vpop.f32.mrb[0].mxu0
        %v6430 = vadd.f32 %v6257, %v6429
        %v6431 = vpop.f32.mrb[0].mxu0
        %6432 = vmatprep.mubr.f32.mxu0 0.0
        %6433 = vmatmul.mubr.f32.gmra.mrb[0].mxu0 %v6266
        %v6434 = vpop.f32.mrb[0].mxu0
        %v6435 = vadd.f32 %v6257, %v6434
        %v6436 = vpop.f32.mrb[0].mxu0
        %6437 = vmatprep.mubr.f32.mxu0 0.0
        %6438 = vmatmul.mubr.f32.gmra.mrb[0].mxu0 %v6269
        %v6439 = vpop.f32.mrb[0].mxu0
        %v6440 = vadd.f32 %v6257, %v6439
        %v6441 = vpop.f32.mrb[0].mxu0
        %6442 = vmatprep.mubr.f32.mxu0 0.0
        %6443 = vmatmul.mubr.f32.gmra.mrb[0].mxu0 %v6272
        %v6444 = vpop.f32.mrb[0].mxu0
        %v6445 = vadd.f32 %v6257, %v6444
        %v6446 = vpop.f32.mrb[0].mxu0
        %6447 = vmatprep.mubr.f32.mxu0 0.0
        %6448 = vmatmul.mubr.f32.gmra.mrb[0].mxu0 %v6275
        %v6449 = vpop.f32.mrb[0].mxu0
        %v6450 = vadd.f32 %v6257, %v6449
        %v6451 = vpop.f32.mrb[0].mxu0
        %6452 = vmatprep.mubr.f32.mxu0 0.0
        %6453 = vmatmul.mubr.f32.gmra.mrb[0].mxu0 %v6278
        %v6454 = vpop.f32.mrb[0].mxu0
        %v6455 = vadd.f32 %v6257, %v6454
        %v6456 = vpop.f32.mrb[0].mxu0
        %6457 = vmatprep.mubr.f32.mxu0 0.0
        %6458 = vmatmul.mubr.f32.gmra.mrb[0].mxu0 %v6281
        %v6459 = vpop.f32.mrb[0].mxu0
        %v6460 = vadd.f32 %v6257, %v6459
        %v6461 = vpop.f32.mrb[0].mxu0
        %6462 = vmatprep.mubr.f32.mxu0 0.0
        %6463 = vmatmul.mubr.f32.gmra.mrb[0].mxu0 %v6284
        %v6464 = vpop.f32.mrb[0].mxu0
        %v6465 = vadd.f32 %v6257, %v6464
        %v6466 = vpop.f32.mrb[0].mxu0
        %6467 = vmatprep.mubr.f32.mxu0 0.0
        %6468 = vmatmul.mubr.f32.gmra.mrb[0].mxu0 %v6287
        %v6469 = vpop.f32.mrb[0].mxu0
        %v6470 = vadd.f32 %v6257, %v6469
        %v6471 = vpop.f32.mrb[0].mxu0
        %6472 = vmatprep.mubr.f32.mxu0 0.0
        %6473 = vmatmul.mubr.f32.gmra.mrb[0].mxu0 %v6290
        %v6474 = vpop.f32.mrb[0].mxu0
        %v6475 = vadd.f32 %v6257, %v6474
        %v6476 = vpop.f32.mrb[0].mxu0
        %6477 = vmatprep.mubr.f32.mxu0 0.0
        %6478 = vmatmul.mubr.f32.gmra.mrb[0].mxu0 %v6293
        %v6479 = vpop.f32.mrb[0].mxu0
        %v6480 = vadd.f32 %v6257, %v6479
        %v6481 = vpop.f32.mrb[0].mxu0
        %6482 = vmatprep.mubr.f32.mxu0 0.0
        %6483 = vmatmul.mubr.f32.gmra.mrb[0].mxu0 %v6296
        %v6484 = vpop.f32.mrb[0].mxu0
        %v6485 = vadd.f32 %v6257, %v6484
        %v6486 = vpop.f32.mrb[0].mxu0
        %6487 = vmatprep.mubr.f32.mxu0 0.0
        %6488 = vmatmul.mubr.f32.gmra.mrb[0].mxu0 %v6299
        %v6489 = vpop.f32.mrb[0].mxu0
        %v6490 = vadd.f32 %v6257, %v6489
        %v6491 = vpop.f32.mrb[0].mxu0
        %6492 = vmatprep.mubr.f32.mxu0 0.0
        %6493 = vmatmul.mubr.f32.gmra.mrb[0].mxu0 %v6302
        %v6494 = vpop.f32.mrb[0].mxu0
        %v6495 = vadd.f32 %v6257, %v6494
        %v6496 = vpop.f32.mrb[0].mxu0
        %6497 = vmatprep.mubr.f32.mxu0 0.0
        %6498 = vmatmul.mubr.f32.gmra.mrb[0].mxu0 %v6305
        %v6499 = vpop.f32.mrb[0].mxu0
        %v6500 = vadd.f32 %v6257, %v6499
        %v6501 = vpop.f32.mrb[0].mxu0
        %6502 = vmatprep.mubr.f32.mxu0 0.0
        %6503 = vmatmul.mubr.f32.gmra.mrb[0].mxu0 %v6308
        %v6504 = vpop.f32.mrb[0].mxu0
        %v6505 = vadd.f32 %v6257, %v6504
        %v6506 = vpop.f32.mrb[0].mxu0
        %6507 = vmatprep.mubr.f32.mxu0 0.0
        %6508 = vmatmul.mubr.f32.gmra.mrb[0].mxu0 %v6311
        %v6509 = vpop.f32.mrb[0].mxu0
        %v6510 = vadd.f32 %v6257, %v6509
        %v6511 = vpop.f32.mrb[0].mxu0
        %6512 = vmatprep.mubr.f32.mxu0 0.0
        %6513 = vmatmul.mubr.f32.gmra.mrb[0].mxu0 %v6314
        %v6514 = vpop.f32.mrb[0].mxu0
        %v6515 = vadd.f32 %v6257, %v6514
        %v6516 = vpop.f32.mrb[0].mxu0
        %6517 = vmatprep.mubr.f32.mxu0 0.0
        %6518 = vmatmul.mubr.f32.gmra.mrb[0].mxu0 %v6317
        %v6519 = vpop.f32.mrb[0].mxu0
        %v6520 = vadd.f32 %v6257, %v6519
        %v6521 = vpop.f32.mrb[0].mxu0
        %6522 = vmatprep.mubr.f32.mxu0 0.0
        %6523 = vmatmul.mubr.f32.gmra.mrb[0].mxu0 %v6320
        %v6524 = vpop.f32.mrb[0].mxu0
        %v6525 = vadd.f32 %v6257, %v6524
        %v6526 = vpop.f32.mrb[0].mxu0
        %6527 = vmatprep.mubr.f32.mxu0 0.0
        %6528 = vmatmul.mubr.f32.gmra.mrb[0].mxu0 %v6323
        %v6529 = vpop.f32.mrb[0].mxu0
        %v6530 = vadd.f32 %v6257, %v6529
        %v6531 = vpop.f32.mrb[0].mxu0
        %6532 = vmatprep.mubr.f32.mxu0 0.0
        %6533 = vmatmul.mubr.f32.gmra.mrb[0].mxu0 %v6326
        %v6534 = vpop.f32.mrb[0].mxu0
        %v6535 = vadd.f32 %v6257, %v6534
        %v6536 = vpop.f32.mrb[0].mxu0
        %6537 = vmatprep.mubr.f32.mxu0 0.0
        %6538 = vmatmul.mubr.f32.gmra.mrb[0].mxu0 %v6329
        %v6539 = vpop.f32.mrb[0].mxu0
        %v6540 = vadd.f32 %v6257, %v6539
        %v6541 = vpop.f32.mrb[0].mxu0
        %6542 = vmatprep.mubr.f32.mxu0 0.0
        %6543 = vmatmul.mubr.f32.gmra.mrb[0].mxu0 %v6332
        %v6544 = vpop.f32.mrb[0].mxu0
        %v6545 = vadd.f32 %v6257, %v6544
        %v6546 = vpop.f32.mrb[0].mxu0
        %6547 = vmatprep.mubr.f32.mxu0 0.0
        %6548 = vmatmul.mubr.f32.gmra.mrb[0].mxu0 %v6335
        %v6549 = vpop.f32.mrb[0].mxu0
        %v6550 = vadd.f32 %v6257, %v6549
        %v6551 = vpop.f32.mrb[0].mxu0
        %6552 = vmatprep.mubr.f32.mxu0 0.0
        %6553 = vmatmul.mubr.f32.gmra.mrb[0].mxu0 %v6338
        %v6554 = vpop.f32.mrb[0].mxu0
        %v6555 = vadd.f32 %v6257, %v6554
        %v6556 = vpop.f32.mrb[0].mxu0
        %6557 = vmatprep.mubr.f32.mxu0 0.0
        %6558 = vmatmul.mubr.f32.gmra.mrb[0].mxu0 %v6341
        %v6559 = vpop.f32.mrb[0].mxu0
        %v6560 = vadd.f32 %v6257, %v6559
        %v6561 = vpop.f32.mrb[0].mxu0
        %6562 = vmatprep.mubr.f32.mxu0 0.0
        %6563 = vmatmul.mubr.f32.gmra.mrb[0].mxu0 %v6344
        %v6564 = vpop.f32.mrb[0].mxu0
        %v6565 = vadd.f32 %v6257, %v6564
        %v6566 = vpop.f32.mrb[0].mxu0
        %6567 = vmatprep.mubr.f32.mxu0 0.0
        %6568 = vmatmul.mubr.f32.gmra.mrb[0].mxu0 %v6347
        %v6569 = vpop.f32.mrb[0].mxu0
        %v6570 = vadd.f32 %v6257, %v6569
        %v6571 = vpop.f32.mrb[0].mxu0
        %6572 = vmatprep.mubr.f32.mxu0 0.0
        %6573 = vmatmul.mubr.f32.gmra.mrb[0].mxu0 %v6350
        %v6574 = vpop.f32.mrb[0].mxu0
        %v6575 = vadd.f32 %v6257, %v6574
        %v6576 = vpop.f32.mrb[0].mxu0
        %6577 = vmatprep.mubr.f32.mxu0 0.0
        %6578 = vmatmul.mubr.f32.gmra.mrb[0].mxu0 %v6353
        %v6579 = vpop.f32.mrb[0].mxu0
        %v6580 = vadd.f32 %v6257, %v6579
        %v6581 = vpop.f32.mrb[0].mxu0
        %6582 = vdwg.mxu0
        %v6583 = vmax.f32 %v6425, 0.0
        %v6584 = vmax.f32 %v6430, 0.0
        %v6585 = vmax.f32 %v6435, 0.0
        %v6586 = vmax.f32 %v6440, 0.0
        %v6587 = vmax.f32 %v6445, 0.0
        %v6588 = vmax.f32 %v6450, 0.0
        %v6589 = vmax.f32 %v6455, 0.0
        %v6590 = vmax.f32 %v6460, 0.0
        %v6591 = vmax.f32 %v6465, 0.0
        %v6592 = vmax.f32 %v6470, 0.0
        %v6593 = vmax.f32 %v6475, 0.0
        %v6594 = vmax.f32 %v6480, 0.0
        %v6595 = vmax.f32 %v6485, 0.0
        %v6596 = vmax.f32 %v6490, 0.0
        %v6597 = vmax.f32 %v6495, 0.0
        %v6598 = vmax.f32 %v6500, 0.0
        %v6599 = vmax.f32 %v6505, 0.0
        %v6600 = vmax.f32 %v6510, 0.0
        %v6601 = vmax.f32 %v6515, 0.0
        %v6602 = vmax.f32 %v6520, 0.0
        %v6603 = vmax.f32 %v6525, 0.0
        %v6604 = vmax.f32 %v6530, 0.0
        %v6605 = vmax.f32 %v6535, 0.0
        %v6606 = vmax.f32 %v6540, 0.0
        %v6607 = vmax.f32 %v6545, 0.0
        %v6608 = vmax.f32 %v6550, 0.0
        %v6609 = vmax.f32 %v6555, 0.0
        %v6610 = vmax.f32 %v6560, 0.0
        %v6611 = vmax.f32 %v6565, 0.0
        %v6612 = vmax.f32 %v6570, 0.0
        %v6613 = vmax.f32 %v6575, 0.0
        %v6614 = vmax.f32 %v6580, 0.0
        %6615 = vrot.lane.b32.xlu0 %v697, 120
        %v6616 = vpop.permute.xlu0 %6615
        %6617 = vrot.lane.b32.xlu0 %v698, 120
        %v6618 = vpop.permute.xlu0 %6617
        %6619 = vrot.lane.b32.xlu0 %v699, 120
        %v6620 = vpop.permute.xlu0 %6619
        %6621 = vrot.lane.b32.xlu0 %v700, 120
        %v6622 = vpop.permute.xlu0 %6621
        %6623 = vrot.lane.b32.xlu0 %v701, 120
        %v6624 = vpop.permute.xlu0 %6623
        %6625 = vrot.lane.b32.xlu0 %v702, 120
        %v6626 = vpop.permute.xlu0 %6625
        %6627 = vrot.lane.b32.xlu0 %v703, 120
        %v6628 = vpop.permute.xlu0 %6627
        %6629 = vrot.lane.b32.xlu0 %v704, 120
        %v6630 = vpop.permute.xlu0 %6629
        %6631 = vrot.lane.b32.xlu0 %v705, 120
        %v6632 = vpop.permute.xlu0 %6631
        %6633 = vrot.lane.b32.xlu0 %v706, 120
        %v6634 = vpop.permute.xlu0 %6633
        %6635 = vrot.lane.b32.xlu0 %v707, 120
        %v6636 = vpop.permute.xlu0 %6635
        %6637 = vrot.lane.b32.xlu0 %v708, 120
        %v6638 = vpop.permute.xlu0 %6637
        %6639 = vrot.lane.b32.xlu0 %v709, 120
        %v6640 = vpop.permute.xlu0 %6639
        %6641 = vrot.lane.b32.xlu0 %v710, 120
        %v6642 = vpop.permute.xlu0 %6641
        %6643 = vrot.lane.b32.xlu0 %v711, 120
        %v6644 = vpop.permute.xlu0 %6643
        %6645 = vrot.lane.b32.xlu0 %v712, 120
        %v6646 = vpop.permute.xlu0 %6645
        %6647 = vrot.lane.b32.xlu0 %v713, 120
        %v6648 = vpop.permute.xlu0 %6647
        %6649 = vrot.lane.b32.xlu0 %v714, 120
        %v6650 = vpop.permute.xlu0 %6649
        %6651 = vrot.lane.b32.xlu0 %v715, 120
        %v6652 = vpop.permute.xlu0 %6651
        %6653 = vrot.lane.b32.xlu0 %v716, 120
        %v6654 = vpop.permute.xlu0 %6653
        %6655 = vrot.lane.b32.xlu0 %v717, 120
        %v6656 = vpop.permute.xlu0 %6655
        %6657 = vrot.lane.b32.xlu0 %v718, 120
        %v6658 = vpop.permute.xlu0 %6657
        %6659 = vrot.lane.b32.xlu0 %v719, 120
        %v6660 = vpop.permute.xlu0 %6659
        %6661 = vrot.lane.b32.xlu0 %v720, 120
        %v6662 = vpop.permute.xlu0 %6661
        %6663 = vrot.lane.b32.xlu0 %v721, 120
        %v6664 = vpop.permute.xlu0 %6663
        %6665 = vrot.lane.b32.xlu0 %v722, 120
        %v6666 = vpop.permute.xlu0 %6665
        %6667 = vrot.lane.b32.xlu0 %v723, 120
        %v6668 = vpop.permute.xlu0 %6667
        %6669 = vrot.lane.b32.xlu0 %v724, 120
        %v6670 = vpop.permute.xlu0 %6669
        %6671 = vrot.lane.b32.xlu0 %v725, 120
        %v6672 = vpop.permute.xlu0 %6671
        %6673 = vrot.lane.b32.xlu0 %v726, 120
        %v6674 = vpop.permute.xlu0 %6673
        %6675 = vrot.lane.b32.xlu0 %v727, 120
        %v6676 = vpop.permute.xlu0 %6675
        %6677 = vrot.lane.b32.xlu0 %v728, 120
        %v6678 = vpop.permute.xlu0 %6677
        %6743 = vrot.lane.b32.xlu0 %v3109, 8
        %v6744 = vpop.permute.xlu0 %6743
        %6745 = vrot.lane.b32.xlu0 %v3110, 8
        %v6746 = vpop.permute.xlu0 %6745
        %6747 = vrot.lane.b32.xlu0 %v3111, 8
        %v6748 = vpop.permute.xlu0 %6747
        %6749 = vrot.lane.b32.xlu0 %v3112, 8
        %v6750 = vpop.permute.xlu0 %6749
        %6751 = vrot.lane.b32.xlu0 %v3113, 8
        %v6752 = vpop.permute.xlu0 %6751
        %6753 = vrot.lane.b32.xlu0 %v3114, 8
        %v6754 = vpop.permute.xlu0 %6753
        %6755 = vrot.lane.b32.xlu0 %v3115, 8
        %v6756 = vpop.permute.xlu0 %6755
        %6757 = vrot.lane.b32.xlu0 %v3116, 8
        %v6758 = vpop.permute.xlu0 %6757
        %6759 = vrot.lane.b32.xlu0 %v3117, 8
        %v6760 = vpop.permute.xlu0 %6759
        %6761 = vrot.lane.b32.xlu0 %v3118, 8
        %v6762 = vpop.permute.xlu0 %6761
        %6763 = vrot.lane.b32.xlu0 %v3119, 8
        %v6764 = vpop.permute.xlu0 %6763
        %6765 = vrot.lane.b32.xlu0 %v3120, 8
        %v6766 = vpop.permute.xlu0 %6765
        %6767 = vrot.lane.b32.xlu0 %v3121, 8
        %v6768 = vpop.permute.xlu0 %6767
        %6769 = vrot.lane.b32.xlu0 %v3122, 8
        %v6770 = vpop.permute.xlu0 %6769
        %6771 = vrot.lane.b32.xlu0 %v3123, 8
        %v6772 = vpop.permute.xlu0 %6771
        %6773 = vrot.lane.b32.xlu0 %v3124, 8
        %v6774 = vpop.permute.xlu0 %6773
        %6775 = vrot.lane.b32.xlu0 %v3125, 8
        %v6776 = vpop.permute.xlu0 %6775
        %6777 = vrot.lane.b32.xlu0 %v3126, 8
        %v6778 = vpop.permute.xlu0 %6777
        %6779 = vrot.lane.b32.xlu0 %v3127, 8
        %v6780 = vpop.permute.xlu0 %6779
        %6781 = vrot.lane.b32.xlu0 %v3128, 8
        %v6782 = vpop.permute.xlu0 %6781
        %6783 = vrot.lane.b32.xlu0 %v3129, 8
        %v6784 = vpop.permute.xlu0 %6783
        %6785 = vrot.lane.b32.xlu0 %v3130, 8
        %v6786 = vpop.permute.xlu0 %6785
        %6787 = vrot.lane.b32.xlu0 %v3131, 8
        %v6788 = vpop.permute.xlu0 %6787
        %6789 = vrot.lane.b32.xlu0 %v3132, 8
        %v6790 = vpop.permute.xlu0 %6789
        %6791 = vrot.lane.b32.xlu0 %v3133, 8
        %v6792 = vpop.permute.xlu0 %6791
        %6793 = vrot.lane.b32.xlu0 %v3134, 8
        %v6794 = vpop.permute.xlu0 %6793
        %6795 = vrot.lane.b32.xlu0 %v3135, 8
        %v6796 = vpop.permute.xlu0 %6795
        %6797 = vrot.lane.b32.xlu0 %v3136, 8
        %v6798 = vpop.permute.xlu0 %6797
        %6799 = vrot.lane.b32.xlu0 %v3137, 8
        %v6800 = vpop.permute.xlu0 %6799
        %6801 = vrot.lane.b32.xlu0 %v3138, 8
        %v6802 = vpop.permute.xlu0 %6801
        %6803 = vrot.lane.b32.xlu0 %v3139, 8
        %v6804 = vpop.permute.xlu0 %6803
        %6805 = vrot.lane.b32.xlu0 %v3140, 8
        %v6806 = vpop.permute.xlu0 %6805
        %6871 = vrot.lane.b32.xlu0 %v5645, 16
        %v6872 = vpop.permute.xlu0 %6871
        %6873 = vrot.lane.b32.xlu0 %v5646, 16
        %v6874 = vpop.permute.xlu0 %6873
        %6875 = vrot.lane.b32.xlu0 %v5647, 16
        %v6876 = vpop.permute.xlu0 %6875
        %6877 = vrot.lane.b32.xlu0 %v5648, 16
        %v6878 = vpop.permute.xlu0 %6877
        %6879 = vrot.lane.b32.xlu0 %v5649, 16
        %v6880 = vpop.permute.xlu0 %6879
        %6881 = vrot.lane.b32.xlu0 %v5650, 16
        %v6882 = vpop.permute.xlu0 %6881
        %6883 = vrot.lane.b32.xlu0 %v5651, 16
        %v6884 = vpop.permute.xlu0 %6883
        %6885 = vrot.lane.b32.xlu0 %v5652, 16
        %v6886 = vpop.permute.xlu0 %6885
        %6887 = vrot.lane.b32.xlu0 %v5653, 16
        %v6888 = vpop.permute.xlu0 %6887
        %6889 = vrot.lane.b32.xlu0 %v5654, 16
        %v6890 = vpop.permute.xlu0 %6889
        %6891 = vrot.lane.b32.xlu0 %v5655, 16
        %v6892 = vpop.permute.xlu0 %6891
        %6893 = vrot.lane.b32.xlu0 %v5656, 16
        %v6894 = vpop.permute.xlu0 %6893
        %6895 = vrot.lane.b32.xlu0 %v5657, 16
        %v6896 = vpop.permute.xlu0 %6895
        %6897 = vrot.lane.b32.xlu0 %v5658, 16
        %v6898 = vpop.permute.xlu0 %6897
        %6899 = vrot.lane.b32.xlu0 %v5659, 16
        %v6900 = vpop.permute.xlu0 %6899
        %6901 = vrot.lane.b32.xlu0 %v5660, 16
        %v6902 = vpop.permute.xlu0 %6901
        %6903 = vrot.lane.b32.xlu0 %v5661, 16
        %v6904 = vpop.permute.xlu0 %6903
        %6905 = vrot.lane.b32.xlu0 %v5662, 16
        %v6906 = vpop.permute.xlu0 %6905
        %6907 = vrot.lane.b32.xlu0 %v5663, 16
        %v6908 = vpop.permute.xlu0 %6907
        %6909 = vrot.lane.b32.xlu0 %v5664, 16
        %v6910 = vpop.permute.xlu0 %6909
        %6911 = vrot.lane.b32.xlu0 %v5665, 16
        %v6912 = vpop.permute.xlu0 %6911
        %6913 = vrot.lane.b32.xlu0 %v5666, 16
        %v6914 = vpop.permute.xlu0 %6913
        %6915 = vrot.lane.b32.xlu0 %v5667, 16
        %v6916 = vpop.permute.xlu0 %6915
        %6917 = vrot.lane.b32.xlu0 %v5668, 16
        %v6918 = vpop.permute.xlu0 %6917
        %6919 = vrot.lane.b32.xlu0 %v5669, 16
        %v6920 = vpop.permute.xlu0 %6919
        %6921 = vrot.lane.b32.xlu0 %v5670, 16
        %v6922 = vpop.permute.xlu0 %6921
        %6923 = vrot.lane.b32.xlu0 %v5671, 16
        %v6924 = vpop.permute.xlu0 %6923
        %6925 = vrot.lane.b32.xlu0 %v5672, 16
        %v6926 = vpop.permute.xlu0 %6925
        %6927 = vrot.lane.b32.xlu0 %v5673, 16
        %v6928 = vpop.permute.xlu0 %6927
        %6929 = vrot.lane.b32.xlu0 %v5674, 16
        %v6930 = vpop.permute.xlu0 %6929
        %6931 = vrot.lane.b32.xlu0 %v5675, 16
        %v6932 = vpop.permute.xlu0 %6931
        %6933 = vrot.lane.b32.xlu0 %v5676, 16
        %v6934 = vpop.permute.xlu0 %6933
        %6999 = vrot.lane.b32.xlu0 %v6583, 24
        %v7000 = vpop.permute.xlu0 %6999
        %7001 = vrot.lane.b32.xlu0 %v6584, 24
        %v7002 = vpop.permute.xlu0 %7001
        %7003 = vrot.lane.b32.xlu0 %v6585, 24
        %v7004 = vpop.permute.xlu0 %7003
        %7005 = vrot.lane.b32.xlu0 %v6586, 24
        %v7006 = vpop.permute.xlu0 %7005
        %7007 = vrot.lane.b32.xlu0 %v6587, 24
        %v7008 = vpop.permute.xlu0 %7007
        %7009 = vrot.lane.b32.xlu0 %v6588, 24
        %v7010 = vpop.permute.xlu0 %7009
        %7011 = vrot.lane.b32.xlu0 %v6589, 24
        %v7012 = vpop.permute.xlu0 %7011
        %7013 = vrot.lane.b32.xlu0 %v6590, 24
        %v7014 = vpop.permute.xlu0 %7013
        %7015 = vrot.lane.b32.xlu0 %v6591, 24
        %v7016 = vpop.permute.xlu0 %7015
        %7017 = vrot.lane.b32.xlu0 %v6592, 24
        %v7018 = vpop.permute.xlu0 %7017
        %7019 = vrot.lane.b32.xlu0 %v6593, 24
        %v7020 = vpop.permute.xlu0 %7019
        %7021 = vrot.lane.b32.xlu0 %v6594, 24
        %v7022 = vpop.permute.xlu0 %7021
        %7023 = vrot.lane.b32.xlu0 %v6595, 24
        %v7024 = vpop.permute.xlu0 %7023
        %7025 = vrot.lane.b32.xlu0 %v6596, 24
        %v7026 = vpop.permute.xlu0 %7025
        %7027 = vrot.lane.b32.xlu0 %v6597, 24
        %v7028 = vpop.permute.xlu0 %7027
        %7029 = vrot.lane.b32.xlu0 %v6598, 24
        %v7030 = vpop.permute.xlu0 %7029
        %7031 = vrot.lane.b32.xlu0 %v6599, 24
        %v7032 = vpop.permute.xlu0 %7031
        %7033 = vrot.lane.b32.xlu0 %v6600, 24
        %v7034 = vpop.permute.xlu0 %7033
        %7035 = vrot.lane.b32.xlu0 %v6601, 24
        %v7036 = vpop.permute.xlu0 %7035
        %7037 = vrot.lane.b32.xlu0 %v6602, 24
        %v7038 = vpop.permute.xlu0 %7037
        %7039 = vrot.lane.b32.xlu0 %v6603, 24
        %v7040 = vpop.permute.xlu0 %7039
        %7041 = vrot.lane.b32.xlu0 %v6604, 24
        %v7042 = vpop.permute.xlu0 %7041
        %7043 = vrot.lane.b32.xlu0 %v6605, 24
        %v7044 = vpop.permute.xlu0 %7043
        %7045 = vrot.lane.b32.xlu0 %v6606, 24
        %v7046 = vpop.permute.xlu0 %7045
        %7047 = vrot.lane.b32.xlu0 %v6607, 24
        %v7048 = vpop.permute.xlu0 %7047
        %7049 = vrot.lane.b32.xlu0 %v6608, 24
        %v7050 = vpop.permute.xlu0 %7049
        %7051 = vrot.lane.b32.xlu0 %v6609, 24
        %v7052 = vpop.permute.xlu0 %7051
        %7053 = vrot.lane.b32.xlu0 %v6610, 24
        %v7054 = vpop.permute.xlu0 %7053
        %7055 = vrot.lane.b32.xlu0 %v6611, 24
        %v7056 = vpop.permute.xlu0 %7055
        %7057 = vrot.lane.b32.xlu0 %v6612, 24
        %v7058 = vpop.permute.xlu0 %7057
        %7059 = vrot.lane.b32.xlu0 %v6613, 24
        %v7060 = vpop.permute.xlu0 %7059
        %7061 = vrot.lane.b32.xlu0 %v6614, 24
        %v7062 = vpop.permute.xlu0 %7061
        %v7095 = vsel %vm1192, %v6616, %v6744
        %v7096 = vsel %vm1192, %v6618, %v6746
        %v7097 = vsel %vm1192, %v6620, %v6748
        %v7098 = vsel %vm1192, %v6622, %v6750
        %v7099 = vsel %vm1192, %v6624, %v6752
        %v7100 = vsel %vm1192, %v6626, %v6754
        %v7101 = vsel %vm1192, %v6628, %v6756
        %v7102 = vsel %vm1192, %v6630, %v6758
        %v7103 = vsel %vm1192, %v6632, %v6760
        %v7104 = vsel %vm1192, %v6634, %v6762
        %v7105 = vsel %vm1192, %v6636, %v6764
        %v7106 = vsel %vm1192, %v6638, %v6766
        %v7107 = vsel %vm1192, %v6640, %v6768
        %v7108 = vsel %vm1192, %v6642, %v6770
        %v7109 = vsel %vm1192, %v6644, %v6772
        %v7110 = vsel %vm1192, %v6646, %v6774
        %v7111 = vsel %vm1192, %v6648, %v6776
        %v7112 = vsel %vm1192, %v6650, %v6778
        %v7113 = vsel %vm1192, %v6652, %v6780
        %v7114 = vsel %vm1192, %v6654, %v6782
        %v7115 = vsel %vm1192, %v6656, %v6784
        %v7116 = vsel %vm1192, %v6658, %v6786
        %v7117 = vsel %vm1192, %v6660, %v6788
        %v7118 = vsel %vm1192, %v6662, %v6790
        %v7119 = vsel %vm1192, %v6664, %v6792
        %v7120 = vsel %vm1192, %v6666, %v6794
        %v7121 = vsel %vm1192, %v6668, %v6796
        %v7122 = vsel %vm1192, %v6670, %v6798
        %v7123 = vsel %vm1192, %v6672, %v6800
        %v7124 = vsel %vm1192, %v6674, %v6802
        %v7125 = vsel %vm1192, %v6676, %v6804
        %v7126 = vsel %vm1192, %v6678, %v6806
        %vm7127 = vcmask 130048
        %v7128 = vsel %vm7127, %v7095, %v6872
        %v7129 = vsel %vm7127, %v7096, %v6874
        %v7130 = vsel %vm7127, %v7097, %v6876
        %v7131 = vsel %vm7127, %v7098, %v6878
        %v7132 = vsel %vm7127, %v7099, %v6880
        %v7133 = vsel %vm7127, %v7100, %v6882
        %v7134 = vsel %vm7127, %v7101, %v6884
        %v7135 = vsel %vm7127, %v7102, %v6886
        %v7136 = vsel %vm7127, %v7103, %v6888
        %v7137 = vsel %vm7127, %v7104, %v6890
        %v7138 = vsel %vm7127, %v7105, %v6892
        %v7139 = vsel %vm7127, %v7106, %v6894
        %v7140 = vsel %vm7127, %v7107, %v6896
        %v7141 = vsel %vm7127, %v7108, %v6898
        %v7142 = vsel %vm7127, %v7109, %v6900
        %v7143 = vsel %vm7127, %v7110, %v6902
        %v7144 = vsel %vm7127, %v7111, %v6904
        %v7145 = vsel %vm7127, %v7112, %v6906
        %v7146 = vsel %vm7127, %v7113, %v6908
        %v7147 = vsel %vm7127, %v7114, %v6910
        %v7148 = vsel %vm7127, %v7115, %v6912
        %v7149 = vsel %vm7127, %v7116, %v6914
        %v7150 = vsel %vm7127, %v7117, %v6916
        %v7151 = vsel %vm7127, %v7118, %v6918
        %v7152 = vsel %vm7127, %v7119, %v6920
        %v7153 = vsel %vm7127, %v7120, %v6922
        %v7154 = vsel %vm7127, %v7121, %v6924
        %v7155 = vsel %vm7127, %v7122, %v6926
        %v7156 = vsel %vm7127, %v7123, %v6928
        %v7157 = vsel %vm7127, %v7124, %v6930
        %v7158 = vsel %vm7127, %v7125, %v6932
        %v7159 = vsel %vm7127, %v7126, %v6934
        %vm7160 = vcmask 195584
        %v7161 = vsel %vm7160, %v7128, %v7000
        %v7162 = vsel %vm7160, %v7129, %v7002
        %v7163 = vsel %vm7160, %v7130, %v7004
        %v7164 = vsel %vm7160, %v7131, %v7006
        %v7165 = vsel %vm7160, %v7132, %v7008
        %v7166 = vsel %vm7160, %v7133, %v7010
        %v7167 = vsel %vm7160, %v7134, %v7012
        %v7168 = vsel %vm7160, %v7135, %v7014
        %v7169 = vsel %vm7160, %v7136, %v7016
        %v7170 = vsel %vm7160, %v7137, %v7018
        %v7171 = vsel %vm7160, %v7138, %v7020
        %v7172 = vsel %vm7160, %v7139, %v7022
        %v7173 = vsel %vm7160, %v7140, %v7024
        %v7174 = vsel %vm7160, %v7141, %v7026
        %v7175 = vsel %vm7160, %v7142, %v7028
        %v7176 = vsel %vm7160, %v7143, %v7030
        %v7177 = vsel %vm7160, %v7144, %v7032
        %v7178 = vsel %vm7160, %v7145, %v7034
        %v7179 = vsel %vm7160, %v7146, %v7036
        %v7180 = vsel %vm7160, %v7147, %v7038
        %v7181 = vsel %vm7160, %v7148, %v7040
        %v7182 = vsel %vm7160, %v7149, %v7042
        %v7183 = vsel %vm7160, %v7150, %v7044
        %v7184 = vsel %vm7160, %v7151, %v7046
        %v7185 = vsel %vm7160, %v7152, %v7048
        %v7186 = vsel %vm7160, %v7153, %v7050
        %v7187 = vsel %vm7160, %v7154, %v7052
        %v7188 = vsel %vm7160, %v7155, %v7054
        %v7189 = vsel %vm7160, %v7156, %v7056
        %v7190 = vsel %vm7160, %v7157, %v7058
        %v7191 = vsel %vm7160, %v7158, %v7060
        %v7192 = vsel %vm7160, %v7159, %v7062
        %vm7193 = vcmask 261120
        %7194 = vst.msk [vmem:[%s325] sm:$0xff] %vm7193, %v7161
        %7195 = vst.msk [vmem:[%s325 + $0x8] sm:$0xff] %vm7193, %v7162
        %7196 = vst.msk [vmem:[%s325 + $0x10] sm:$0xff] %vm7193, %v7163
        %7197 = vst.msk [vmem:[%s325 + $0x18] sm:$0xff] %vm7193, %v7164
        %7198 = vst.msk [vmem:[%s325 + $0x20] sm:$0xff] %vm7193, %v7165
        %7199 = vst.msk [vmem:[%s325 + $0x28] sm:$0xff] %vm7193, %v7166
        %7200 = vst.msk [vmem:[%s325 + $0x30] sm:$0xff] %vm7193, %v7167
        %7201 = vst.msk [vmem:[%s325 + $0x38] sm:$0xff] %vm7193, %v7168
        %7202 = vst.msk [vmem:[%s325 + $0x40] sm:$0xff] %vm7193, %v7169
        %7203 = vst.msk [vmem:[%s325 + $0x48] sm:$0xff] %vm7193, %v7170
        %7204 = vst.msk [vmem:[%s325 + $0x50] sm:$0xff] %vm7193, %v7171
        %7205 = vst.msk [vmem:[%s325 + $0x58] sm:$0xff] %vm7193, %v7172
        %7206 = vst.msk [vmem:[%s325 + $0x60] sm:$0xff] %vm7193, %v7173
        %7207 = vst.msk [vmem:[%s325 + $0x68] sm:$0xff] %vm7193, %v7174
        %7208 = vst.msk [vmem:[%s325 + $0x70] sm:$0xff] %vm7193, %v7175
        %7209 = vst.msk [vmem:[%s325 + $0x78] sm:$0xff] %vm7193, %v7176
        %7210 = vst.msk [vmem:[%s325 + $0x80] sm:$0xff] %vm7193, %v7177
        %7211 = vst.msk [vmem:[%s325 + $0x88] sm:$0xff] %vm7193, %v7178
        %7212 = vst.msk [vmem:[%s325 + $0x90] sm:$0xff] %vm7193, %v7179
        %7213 = vst.msk [vmem:[%s325 + $0x98] sm:$0xff] %vm7193, %v7180
        %7214 = vst.msk [vmem:[%s325 + $0xa0] sm:$0xff] %vm7193, %v7181
        %7215 = vst.msk [vmem:[%s325 + $0xa8] sm:$0xff] %vm7193, %v7182
        %7216 = vst.msk [vmem:[%s325 + $0xb0] sm:$0xff] %vm7193, %v7183
        %7217 = vst.msk [vmem:[%s325 + $0xb8] sm:$0xff] %vm7193, %v7184
        %7218 = vst.msk [vmem:[%s325 + $0xc0] sm:$0xff] %vm7193, %v7185
        %7219 = vst.msk [vmem:[%s325 + $0xc8] sm:$0xff] %vm7193, %v7186
        %7220 = vst.msk [vmem:[%s325 + $0xd0] sm:$0xff] %vm7193, %v7187
        %7221 = vst.msk [vmem:[%s325 + $0xd8] sm:$0xff] %vm7193, %v7188
        %7222 = vst.msk [vmem:[%s325 + $0xe0] sm:$0xff] %vm7193, %v7189
        %7223 = vst.msk [vmem:[%s325 + $0xe8] sm:$0xff] %vm7193, %v7190
        %7224 = vst.msk [vmem:[%s325 + $0xf0] sm:$0xff] %vm7193, %v7191
        %7225 = vst.msk [vmem:[%s325 + $0xf8] sm:$0xff] %vm7193, %v7192
        %s7226 = sand.u32 %s225, 1
        %s7227 = scalar_lea.sflag [#allocation6], %s7226
        %s7228 = sand.u32 %s225, 1
        %s7229 = smul.addr %s7228, 256
        %s7230 = scalar_lea.vmem [#allocation5], %s7229
        // Predicated region
        $region57: #{inception_forward.1} parent=55 // pred_check
          %p7231 = pneg %p235
        $region58: #{inception_forward.1} parent=55 // pred_check_branch
          %7233 = sbr.rel (%p7231) target = $region60
        $region59: #{inception_forward.1} parent=55 // pred_region
          %s7235 = ssub.s32 4096, 4096
          %7236 = vsyncadd %s7227, %s7235
          %s7237 = smul.addr %s23, 32
          %s7238 = smul.addr %s7237, 128
          %s7239 = scalar_lea.hbm %s9, %s7238
          %s7240 = sshll.u32 %s7230, 4
          %s7241 = int_to_ptr.vmem [resolvable:$true] %s7240
          %7246 = dma.vmem_to_hbm [thread:$0]  %s7241, 4096, %s7239, %s7227, 128, 128, 8
        $region60: #{inception_forward.1} parent=55 // pred_fallthru
          _
      $region56: #{inception_forward.1} parent=5 // pred_fallthru
        _
      %p7247 = scmp.le.s32.totalorder 2, %s18
      // Predicated region
      $region61: #{inception_forward.1} parent=5 // pred_check
        %p7248 = pneg %p7247
      $region62: #{inception_forward.1} parent=5 // pred_check_branch
        %7250 = sbr.rel (%p7248) target = $region64
      $region63: #{inception_forward.1} parent=5 // pred_region
        %s7251 = ssub.s32 %s18, 2
        // Predicated region
        $region65: #{inception_forward.1} parent=63 // pred_check
          %p7252 = pneg %p241
        $region66: #{inception_forward.1} parent=63 // pred_check_branch
          %7254 = sbr.rel (%p7252) target = $region68
        $region67: #{inception_forward.1} parent=63 // pred_region
          %s7255 = sand.u32 %s226, 1
          %s7256 = scalar_lea.sflag [#allocation6], %s7255
          %s7257 = sand.u32 %s226, 1
          %s7258 = smul.addr %s7257, 256
          %s7259 = scalar_lea.vmem [#allocation5], %s7258
          %7260 = dma.done %s7256, 4096
        $region68: #{inception_forward.1} parent=63 // pred_fallthru
          _
      $region64: #{inception_forward.1} parent=5 // pred_fallthru
        _
    $region6: #{inception_forward.1} parent=1 // loop_footer
      %s22 = sadd.s32 1, %s18
    $region7: #{inception_forward.1} parent=1 // loop_footer_branch
      %17 = sbr.rel target = $region3
    $region8: #{inception_forward.1} parent=1 // loop_exit
      _
    %7261 = vsyncpa [#allocation6], 1
    %s7262 = scalar_lea.sflag [#allocation6], 1
    %7263 = vsyncpa %s7262, 1

</llo_original>
